<compile_context>
chip_gen: v7x
topology: tpu7x:2x2x1
jax: 0.10.0
libtpu: 0.0.40
codegen_flags: <defaults>
</compile_context>

<pallas_src>
import functools
import math

import jax
import jax.numpy as jnp
from jax.experimental import pallas as pl

LANE = 128


def _round_up(n, m):
    return ((n + m - 1) // m) * m


# ----------------------------------------------------------------------------
# Fused kernel: embeddings + 3 multi-head attentions, one program for all of
# (B*S) rows.  Everything stays in VMEM/vregs; only the final outputs are
# stored (lane-dense, EP = 128 columns).
# ----------------------------------------------------------------------------
def fused_kernel(x_ref, m_ref, t_ref,
                 wt_ref, bt_ref, wx_ref, bx_ref, wm_ref, bm_ref,
                 wq_ref, wk_ref, wv_ref, bq_ref, bk_ref, bv_ref,
                 wo_ref, bo_ref,
                 xo_ref, mo_ref,
                 *, batch, seq, num_heads, head_dim, embed_dim):
    f32 = jnp.float32

    # --- embeddings (lane-dense: weights padded to EP=128 output columns) ---
    te = jnp.tanh(
        jnp.dot(t_ref[...], wt_ref[...], preferred_element_type=f32)
        + bt_ref[...])
    xe = (jnp.dot(x_ref[...], wx_ref[...], preferred_element_type=f32)
          + bx_ref[...] + te)                                    # (B*S, EP)
    me = (jnp.dot(m_ref[...], wm_ref[...], preferred_element_type=f32)
          + bm_ref[...] + te)                                    # (B*S, EP)

    def attention(q_in, k_in, v_in, idx):
        # q_in/k_in/v_in: (B*S, EP).  Packed weights for attention `idx`:
        #   wq/wk/wv: (EP, EP)  heads in output lanes; scale folded into wq/bq
        #   bq/bk/bv: (1, EP)
        #   wo:       (E, EP)   heads along contraction rows (= ctx lane order)
        #   bo:       (1, EP)
        q = jnp.dot(q_in, wq_ref[idx], preferred_element_type=f32) + bq_ref[idx]
        k = jnp.dot(k_in, wk_ref[idx], preferred_element_type=f32) + bk_ref[idx]
        v = jnp.dot(v_in, wv_ref[idx], preferred_element_type=f32) + bv_ref[idx]

        # Split rows back into (B, S, ·) — leading-dim reshape only (free).
        q3 = q.reshape(batch, seq, -1)
        k3 = k.reshape(batch, seq, -1)
        v3 = v.reshape(batch, seq, -1)

        # Block-diagonal per-head scores/context: contract over head_dim (=8),
        # NOT over the padded 128-lane axis.  Static unroll over heads.
        ctx_heads = []
        for h in range(num_heads):
            lo = h * head_dim
            qh = q3[:, :, lo:lo + head_dim]                      # (B, S, hd)
            kh = k3[:, :, lo:lo + head_dim]
            vh = v3[:, :, lo:lo + head_dim]
            s = jnp.einsum("bsd,btd->bst", qh, kh,
                           preferred_element_type=f32)           # (B, S, S)
            s = s - jnp.max(s, axis=-1, keepdims=True)
            p = jnp.exp(s)
            p = p / jnp.sum(p, axis=-1, keepdims=True)           # exact divide
            ctx_heads.append(
                jnp.einsum("bst,btd->bsd", p, vh,
                           preferred_element_type=f32))          # (B, S, hd)

        # (B, S, E): lane order = head-major, matching wo's row order.
        ctx = jnp.concatenate(ctx_heads, axis=-1)
        ctx = ctx.reshape(batch * seq, embed_dim)                # (B*S, E)

        # Output projection: one matmul; heads summed by the MXU contraction.
        return (jnp.dot(ctx, wo_ref[idx], preferred_element_type=f32)
                + bo_ref[idx])                                   # (B*S, EP)

    x_sa = attention(xe, xe, xe, 0)        # self_attention_x
    m_sa = attention(me, me, me, 1)        # self_attention_m
    # cross_attention(q=x_out, k=m_out, v=x_out) — matches the PyTorch module,
    # which passes value=x_out (not the key source).
    x_ca = attention(x_sa, m_sa, x_sa, 2)

    xo_ref[...] = x_ca
    mo_ref[...] = m_sa


# ----------------------------------------------------------------------------
# Wrapper
# ----------------------------------------------------------------------------
@functools.partial(jax.jit, static_argnames=("num_heads", "embed_dim"))
def mask_guided_sequence_embedding(x, m, t, kparams, num_heads, embed_dim):
    # x: (S, B, Din), m: (S, B, Dm), t: (S, B, Dt)  (PyTorch seq-first layout)
    S, B = x.shape[0], x.shape[1]
    EP = kparams["wt"].shape[1]
    assert embed_dim % num_heads == 0
    head_dim = embed_dim // num_heads
    BS = B * S

    # I/O-only relayout on tiny tensors: (S, B, D) -> (B*S, D) so a single
    # program feeds B*S rows to every matmul (better MXU fill than grid=(B,)
    # on single-TC v5e/v6e).
    xb = jnp.transpose(x, (1, 0, 2)).reshape(BS, -1)
    mb = jnp.transpose(m, (1, 0, 2)).reshape(BS, -1)
    tb = jnp.transpose(t, (1, 0, 2)).reshape(BS, -1)

    kernel = functools.partial(
        fused_kernel, batch=B, seq=S, num_heads=num_heads,
        head_dim=head_dim, embed_dim=embed_dim)

    # No grid: single program, every operand/result is a whole-array VMEM
    # block (total footprint ~1 MiB, far under any scoped-VMEM limit).
    xo, mo = pl.pallas_call(
        kernel,
        out_shape=(jax.ShapeDtypeStruct((BS, EP), jnp.float32),
                   jax.ShapeDtypeStruct((BS, EP), jnp.float32)),
    )(xb, mb, tb,
      kparams["wt"], kparams["bt"], kparams["wx"], kparams["bx"],
      kparams["wm"], kparams["bm"],
      kparams["wq"], kparams["wk"], kparams["wv"],
      kparams["bq"], kparams["bk"], kparams["bv"],
      kparams["wo"], kparams["bo"])

    # Drop the zero padding lanes and restore (S, B, E) layout.
    x_out = jnp.transpose(xo[:, :embed_dim].reshape(B, S, embed_dim), (1, 0, 2))
    m_out = jnp.transpose(mo[:, :embed_dim].reshape(B, S, embed_dim), (1, 0, 2))
    return x_out, m_out


# ----------------------------------------------------------------------------
# Parameters: logical (for the pure-JAX reference) + packed/padded (for kernel)
# ----------------------------------------------------------------------------
def init_params(key, input_dim, mask_dim, time_dim, embed_dim):
    keys = jax.random.split(key, 40)
    it = iter(keys)

    def w(shape, scale=0.1):
        return (scale * jax.random.normal(next(it), shape)).astype(jnp.float32)

    def mha_params():
        return {"wq": w((embed_dim, embed_dim)), "wk": w((embed_dim, embed_dim)),
                "wv": w((embed_dim, embed_dim)),
                "bq": w((embed_dim,)), "bk": w((embed_dim,)), "bv": w((embed_dim,)),
                "wo": w((embed_dim, embed_dim)), "bo": w((embed_dim,))}

    return {
        "embed": {"wt": w((time_dim, embed_dim)), "bt": w((embed_dim,)),
                  "wx": w((input_dim, embed_dim)), "bx": w((embed_dim,)),
                  "wm": w((mask_dim, embed_dim)), "bm": w((embed_dim,))},
        "self_x": mha_params(),
        "self_m": mha_params(),
        "cross": mha_params(),
    }


def pack_params(params, embed_dim, num_heads):
    """One-time host-side repack into the lane-dense kernel layout.

    Heads already occupy contiguous output columns of the logical (E, E)
    weights, so the heads-in-lanes packing is just zero padding to EP=128
    (plus folding the attention scale into wq/bq).
    """
    assert embed_dim % num_heads == 0
    hd = embed_dim // num_heads
    EP = _round_up(embed_dim, LANE)          # padded embed dim (lane-dense)
    scale = 1.0 / math.sqrt(hd)

    def pad_cols(W):                         # (K, E)  -> (K, EP)
        return jnp.pad(W, ((0, 0), (0, EP - W.shape[1])))

    def pad_bias(b):                         # (E,)    -> (1, EP)
        return jnp.pad(b.reshape(1, -1), ((0, 0), (0, EP - b.shape[0])))

    def pack_in_w(W, s=1.0):                 # (E, E)  -> (EP, EP)
        return jnp.pad(W * s, ((0, EP - embed_dim), (0, EP - embed_dim)))

    def pack_out_w(W):                       # (E, E)  -> (E, EP)
        return jnp.pad(W, ((0, 0), (0, EP - embed_dim)))

    e = params["embed"]
    att = [params["self_x"], params["self_m"], params["cross"]]
    return {
        "wt": pad_cols(e["wt"]), "bt": pad_bias(e["bt"]),
        "wx": pad_cols(e["wx"]), "bx": pad_bias(e["bx"]),
        "wm": pad_cols(e["wm"]), "bm": pad_bias(e["bm"]),
        "wq": jnp.stack([pack_in_w(a["wq"], scale) for a in att]),  # (3,EP,EP)
        "wk": jnp.stack([pack_in_w(a["wk"]) for a in att]),
        "wv": jnp.stack([pack_in_w(a["wv"]) for a in att]),
        "bq": jnp.stack([pad_bias(a["bq"] * scale) for a in att]),  # (3,1,EP)
        "bk": jnp.stack([pad_bias(a["bk"]) for a in att]),
        "bv": jnp.stack([pad_bias(a["bv"]) for a in att]),
        "wo": jnp.stack([pack_out_w(a["wo"]) for a in att]),        # (3,E,EP)
        "bo": jnp.stack([pad_bias(a["bo"]) for a in att]),          # (3,1,EP)
    }


# ----------------------------------------------------------------------------
# Pure-JAX reference (unpadded) for correctness checking
# ----------------------------------------------------------------------------
def reference_forward(x, m, t, params, num_heads):
    e = params["embed"]
    te = jnp.tanh(t @ e["wt"] + e["bt"])
    xe = x @ e["wx"] + e["bx"] + te
    me = m @ e["wm"] + e["bm"] + te

    def mha_ref(q, k, v, a):
        S, B, E = q.shape
        hd = E // num_heads
        qp = q @ a["wq"] + a["bq"]
        kp = k @ a["wk"] + a["bk"]
        vp = v @ a["wv"] + a["bv"]

        def split(z):                        # (S, B, E) -> (B, H, S, hd)
            return z.reshape(S, B, num_heads, hd).transpose(1, 2, 0, 3)

        qh, kh, vh = split(qp), split(kp), split(vp)
        s = jnp.einsum("bhsd,bhtd->bhst", qh, kh) / jnp.sqrt(jnp.float32(hd))
        attn = jax.nn.softmax(s, axis=-1)
        ctx = jnp.einsum("bhst,bhtd->bhsd", attn, vh)
        ctx = ctx.transpose(2, 0, 1, 3).reshape(S, B, E)
        return ctx @ a["wo"] + a["bo"]

    x_sa = mha_ref(xe, xe, xe, params["self_x"])
    m_sa = mha_ref(me, me, me, params["self_m"])
    x_ca = mha_ref(x_sa, m_sa, x_sa, params["cross"])
    return x_ca, m_sa


if __name__ == "__main__":
    S, B = 8, 2
    input_dim, mask_dim, time_dim, embed_dim, num_heads = 16, 16, 8, 32, 4

    key = jax.random.PRNGKey(0)
    kx, km, kt, kp_key = jax.random.split(key, 4)
    x = jax.random.normal(kx, (S, B, input_dim), dtype=jnp.float32)
    m = jax.random.normal(km, (S, B, mask_dim), dtype=jnp.float32)
    t = jax.random.normal(kt, (S, B, time_dim), dtype=jnp.float32)

    params = init_params(kp_key, input_dim, mask_dim, time_dim, embed_dim)
    kparams = pack_params(params, embed_dim, num_heads)

    x_out, m_out = mask_guided_sequence_embedding(x, m, t, kparams,
                                                  num_heads, embed_dim)
    jax.block_until_ready((x_out, m_out))
    assert x_out.shape == (S, B, embed_dim) and m_out.shape == (S, B, embed_dim)

    # Pure-JAX reference check.  Force f32 matmul precision in the reference so
    # it matches the kernel's f32 MXU accumulation; exact softmax divide in the
    # kernel lets the tolerance be tight.
    with jax.default_matmul_precision("float32"):
        x_ref, m_ref = reference_forward(x, m, t, params, num_heads)
    assert jnp.allclose(x_out, x_ref, atol=1e-4, rtol=1e-4), \
        float(jnp.max(jnp.abs(x_out - x_ref)))
    assert jnp.allclose(m_out, m_ref, atol=1e-4, rtol=1e-4), \
        float(jnp.max(jnp.abs(m_out - m_ref)))

    print("KERNEL_OK")
</pallas_src>

<mosaic_0001>
module attributes {stable_mosaic.version = 11 : i64} {
  func.func @fused_kernel(%arg0: memref<16x16xf32, #tpu.memory_space<vmem>>, %arg1: memref<16x16xf32, #tpu.memory_space<vmem>>, %arg2: memref<16x8xf32, #tpu.memory_space<vmem>>, %arg3: memref<8x128xf32, #tpu.memory_space<vmem>>, %arg4: memref<1x128xf32, #tpu.memory_space<vmem>>, %arg5: memref<16x128xf32, #tpu.memory_space<vmem>>, %arg6: memref<1x128xf32, #tpu.memory_space<vmem>>, %arg7: memref<16x128xf32, #tpu.memory_space<vmem>>, %arg8: memref<1x128xf32, #tpu.memory_space<vmem>>, %arg9: memref<3x128x128xf32, #tpu.memory_space<vmem>>, %arg10: memref<3x128x128xf32, #tpu.memory_space<vmem>>, %arg11: memref<3x128x128xf32, #tpu.memory_space<vmem>>, %arg12: memref<3x1x128xf32, #tpu.memory_space<vmem>>, %arg13: memref<3x1x128xf32, #tpu.memory_space<vmem>>, %arg14: memref<3x1x128xf32, #tpu.memory_space<vmem>>, %arg15: memref<3x32x128xf32, #tpu.memory_space<vmem>>, %arg16: memref<3x1x128xf32, #tpu.memory_space<vmem>>, %arg17: memref<16x128xf32, #tpu.memory_space<vmem>>, %arg18: memref<16x128xf32, #tpu.memory_space<vmem>>) attributes {dimension_semantics = [], scalar_prefetch = 0 : i64, scratch_operands = 0 : i64, tpu.core_type = #tpu.core_type<tc>} {
    %c0 = arith.constant 0 : index
    %c0_0 = arith.constant 0 : index
    %0 = vector.load %arg2[%c0, %c0_0] : memref<16x8xf32, #tpu.memory_space<vmem>>, vector<16x8xf32>
    %c0_1 = arith.constant 0 : index
    %c0_2 = arith.constant 0 : index
    %1 = vector.load %arg3[%c0_1, %c0_2] : memref<8x128xf32, #tpu.memory_space<vmem>>, vector<8x128xf32>
    %cst = arith.constant dense<0.000000e+00> : vector<16x128xf32>
    %2 = tpu.matmul %0, %1, %cst {dimension_numbers = #tpu.dot_dimension_numbers<[1], [0], [0], [1], [0, 0, 1, 1], [], []>} : vector<16x8xf32>, vector<8x128xf32>, vector<16x128xf32> -> vector<16x128xf32>
    %c0_3 = arith.constant 0 : index
    %c0_4 = arith.constant 0 : index
    %3 = vector.load %arg4[%c0_3, %c0_4] : memref<1x128xf32, #tpu.memory_space<vmem>>, vector<1x128xf32>
    %4 = vector.broadcast %3 : vector<1x128xf32> to vector<16x128xf32>
    %5 = arith.addf %2, %4 : vector<16x128xf32>
    %6 = math.tanh %5 : vector<16x128xf32>
    %c0_5 = arith.constant 0 : index
    %c0_6 = arith.constant 0 : index
    %7 = vector.load %arg0[%c0_5, %c0_6] : memref<16x16xf32, #tpu.memory_space<vmem>>, vector<16x16xf32>
    %c0_7 = arith.constant 0 : index
    %c0_8 = arith.constant 0 : index
    %8 = vector.load %arg5[%c0_7, %c0_8] : memref<16x128xf32, #tpu.memory_space<vmem>>, vector<16x128xf32>
    %cst_9 = arith.constant dense<0.000000e+00> : vector<16x128xf32>
    %9 = tpu.matmul %7, %8, %cst_9 {dimension_numbers = #tpu.dot_dimension_numbers<[1], [0], [0], [1], [0, 0, 1, 1], [], []>} : vector<16x16xf32>, vector<16x128xf32>, vector<16x128xf32> -> vector<16x128xf32>
    %c0_10 = arith.constant 0 : index
    %c0_11 = arith.constant 0 : index
    %10 = vector.load %arg6[%c0_10, %c0_11] : memref<1x128xf32, #tpu.memory_space<vmem>>, vector<1x128xf32>
    %11 = vector.broadcast %10 : vector<1x128xf32> to vector<16x128xf32>
    %12 = arith.addf %9, %11 : vector<16x128xf32>
    %13 = arith.addf %12, %6 : vector<16x128xf32>
    %c0_12 = arith.constant 0 : index
    %c0_13 = arith.constant 0 : index
    %14 = vector.load %arg1[%c0_12, %c0_13] : memref<16x16xf32, #tpu.memory_space<vmem>>, vector<16x16xf32>
    %c0_14 = arith.constant 0 : index
    %c0_15 = arith.constant 0 : index
    %15 = vector.load %arg7[%c0_14, %c0_15] : memref<16x128xf32, #tpu.memory_space<vmem>>, vector<16x128xf32>
    %cst_16 = arith.constant dense<0.000000e+00> : vector<16x128xf32>
    %16 = tpu.matmul %14, %15, %cst_16 {dimension_numbers = #tpu.dot_dimension_numbers<[1], [0], [0], [1], [0, 0, 1, 1], [], []>} : vector<16x16xf32>, vector<16x128xf32>, vector<16x128xf32> -> vector<16x128xf32>
    %c0_17 = arith.constant 0 : index
    %c0_18 = arith.constant 0 : index
    %17 = vector.load %arg8[%c0_17, %c0_18] : memref<1x128xf32, #tpu.memory_space<vmem>>, vector<1x128xf32>
    %18 = vector.broadcast %17 : vector<1x128xf32> to vector<16x128xf32>
    %19 = arith.addf %16, %18 : vector<16x128xf32>
    %20 = arith.addf %19, %6 : vector<16x128xf32>
    %c0_19 = arith.constant 0 : index
    %c0_20 = arith.constant 0 : index
    %c0_21 = arith.constant 0 : index
    %21 = vector.load %arg9[%c0_19, %c0_20, %c0_21] : memref<3x128x128xf32, #tpu.memory_space<vmem>>, vector<1x128x128xf32>
    %22 = vector.shape_cast %21 : vector<1x128x128xf32> to vector<128x128xf32>
    %cst_22 = arith.constant dense<0.000000e+00> : vector<16x128xf32>
    %23 = tpu.matmul %13, %22, %cst_22 {dimension_numbers = #tpu.dot_dimension_numbers<[1], [0], [0], [1], [0, 0, 1, 1], [], []>} : vector<16x128xf32>, vector<128x128xf32>, vector<16x128xf32> -> vector<16x128xf32>
    %c0_23 = arith.constant 0 : index
    %c0_24 = arith.constant 0 : index
    %c0_25 = arith.constant 0 : index
    %24 = vector.load %arg12[%c0_23, %c0_24, %c0_25] : memref<3x1x128xf32, #tpu.memory_space<vmem>>, vector<1x1x128xf32>
    %25 = vector.shape_cast %24 : vector<1x1x128xf32> to vector<1x128xf32>
    %26 = vector.broadcast %25 : vector<1x128xf32> to vector<16x128xf32>
    %27 = arith.addf %23, %26 : vector<16x128xf32>
    %c0_26 = arith.constant 0 : index
    %c0_27 = arith.constant 0 : index
    %c0_28 = arith.constant 0 : index
    %28 = vector.load %arg10[%c0_26, %c0_27, %c0_28] : memref<3x128x128xf32, #tpu.memory_space<vmem>>, vector<1x128x128xf32>
    %29 = vector.shape_cast %28 : vector<1x128x128xf32> to vector<128x128xf32>
    %cst_29 = arith.constant dense<0.000000e+00> : vector<16x128xf32>
    %30 = tpu.matmul %13, %29, %cst_29 {dimension_numbers = #tpu.dot_dimension_numbers<[1], [0], [0], [1], [0, 0, 1, 1], [], []>} : vector<16x128xf32>, vector<128x128xf32>, vector<16x128xf32> -> vector<16x128xf32>
    %c0_30 = arith.constant 0 : index
    %c0_31 = arith.constant 0 : index
    %c0_32 = arith.constant 0 : index
    %31 = vector.load %arg13[%c0_30, %c0_31, %c0_32] : memref<3x1x128xf32, #tpu.memory_space<vmem>>, vector<1x1x128xf32>
    %32 = vector.shape_cast %31 : vector<1x1x128xf32> to vector<1x128xf32>
    %33 = vector.broadcast %32 : vector<1x128xf32> to vector<16x128xf32>
    %34 = arith.addf %30, %33 : vector<16x128xf32>
    %c0_33 = arith.constant 0 : index
    %c0_34 = arith.constant 0 : index
    %c0_35 = arith.constant 0 : index
    %35 = vector.load %arg11[%c0_33, %c0_34, %c0_35] : memref<3x128x128xf32, #tpu.memory_space<vmem>>, vector<1x128x128xf32>
    %36 = vector.shape_cast %35 : vector<1x128x128xf32> to vector<128x128xf32>
    %cst_36 = arith.constant dense<0.000000e+00> : vector<16x128xf32>
    %37 = tpu.matmul %13, %36, %cst_36 {dimension_numbers = #tpu.dot_dimension_numbers<[1], [0], [0], [1], [0, 0, 1, 1], [], []>} : vector<16x128xf32>, vector<128x128xf32>, vector<16x128xf32> -> vector<16x128xf32>
    %c0_37 = arith.constant 0 : index
    %c0_38 = arith.constant 0 : index
    %c0_39 = arith.constant 0 : index
    %38 = vector.load %arg14[%c0_37, %c0_38, %c0_39] : memref<3x1x128xf32, #tpu.memory_space<vmem>>, vector<1x1x128xf32>
    %39 = vector.shape_cast %38 : vector<1x1x128xf32> to vector<1x128xf32>
    %40 = vector.broadcast %39 : vector<1x128xf32> to vector<16x128xf32>
    %41 = arith.addf %37, %40 : vector<16x128xf32>
    %42 = vector.shape_cast %27 : vector<16x128xf32> to vector<2x8x128xf32>
    %43 = vector.shape_cast %34 : vector<16x128xf32> to vector<2x8x128xf32>
    %44 = vector.shape_cast %41 : vector<16x128xf32> to vector<2x8x128xf32>
    %45 = vector.extract_strided_slice %42 {offsets = [0, 0, 0], sizes = [2, 8, 8], strides = [1, 1, 1]} : vector<2x8x128xf32> to vector<2x8x8xf32>
    %46 = vector.extract_strided_slice %43 {offsets = [0, 0, 0], sizes = [2, 8, 8], strides = [1, 1, 1]} : vector<2x8x128xf32> to vector<2x8x8xf32>
    %47 = vector.extract_strided_slice %44 {offsets = [0, 0, 0], sizes = [2, 8, 8], strides = [1, 1, 1]} : vector<2x8x128xf32> to vector<2x8x8xf32>
    "tpu.trace_start"() <{level = 10 : i32, message = "bsd,btd->bst"}> : () -> ()
    %cst_40 = arith.constant dense<0.000000e+00> : vector<2x8x8xf32>
    %48 = tpu.matmul %45, %46, %cst_40 {dimension_numbers = #tpu.dot_dimension_numbers<[2], [2], [1], [1], [0, 0, 0, 1, 1, 1], [0], [0]>} : vector<2x8x8xf32>, vector<2x8x8xf32>, vector<2x8x8xf32> -> vector<2x8x8xf32>
    "tpu.trace_stop"() : () -> ()
    %cst_41 = arith.constant dense<0xFF800000> : vector<2x8xf32>
    %49 = vector.multi_reduction <maximumf>, %48, %cst_41 [2] : vector<2x8x8xf32> to vector<2x8xf32>
    %50 = vector.shape_cast %49 : vector<2x8xf32> to vector<2x8x1xf32>
    %51 = vector.broadcast %50 : vector<2x8x1xf32> to vector<2x8x8xf32>
    %52 = arith.subf %48, %51 : vector<2x8x8xf32>
    %53 = math.exp %52 : vector<2x8x8xf32>
    %cst_42 = arith.constant dense<0.000000e+00> : vector<2x8xf32>
    %54 = vector.multi_reduction <add>, %53, %cst_42 [2] : vector<2x8x8xf32> to vector<2x8xf32>
    %55 = vector.shape_cast %54 : vector<2x8xf32> to vector<2x8x1xf32>
    %56 = vector.broadcast %55 : vector<2x8x1xf32> to vector<2x8x8xf32>
    %57 = arith.divf %53, %56 : vector<2x8x8xf32>
    "tpu.trace_start"() <{level = 10 : i32, message = "bst,btd->bsd"}> : () -> ()
    %cst_43 = arith.constant dense<0.000000e+00> : vector<2x8x8xf32>
    %58 = tpu.matmul %57, %47, %cst_43 {dimension_numbers = #tpu.dot_dimension_numbers<[2], [1], [1], [2], [0, 0, 0, 1, 1, 2], [0], [0]>} : vector<2x8x8xf32>, vector<2x8x8xf32>, vector<2x8x8xf32> -> vector<2x8x8xf32>
    "tpu.trace_stop"() : () -> ()
    %59 = vector.extract_strided_slice %42 {offsets = [0, 0, 8], sizes = [2, 8, 8], strides = [1, 1, 1]} : vector<2x8x128xf32> to vector<2x8x8xf32>
    %60 = vector.extract_strided_slice %43 {offsets = [0, 0, 8], sizes = [2, 8, 8], strides = [1, 1, 1]} : vector<2x8x128xf32> to vector<2x8x8xf32>
    %61 = vector.extract_strided_slice %44 {offsets = [0, 0, 8], sizes = [2, 8, 8], strides = [1, 1, 1]} : vector<2x8x128xf32> to vector<2x8x8xf32>
    "tpu.trace_start"() <{level = 10 : i32, message = "bsd,btd->bst"}> : () -> ()
    %cst_44 = arith.constant dense<0.000000e+00> : vector<2x8x8xf32>
    %62 = tpu.matmul %59, %60, %cst_44 {dimension_numbers = #tpu.dot_dimension_numbers<[2], [2], [1], [1], [0, 0, 0, 1, 1, 1], [0], [0]>} : vector<2x8x8xf32>, vector<2x8x8xf32>, vector<2x8x8xf32> -> vector<2x8x8xf32>
    "tpu.trace_stop"() : () -> ()
    %cst_45 = arith.constant dense<0xFF800000> : vector<2x8xf32>
    %63 = vector.multi_reduction <maximumf>, %62, %cst_45 [2] : vector<2x8x8xf32> to vector<2x8xf32>
    %64 = vector.shape_cast %63 : vector<2x8xf32> to vector<2x8x1xf32>
    %65 = vector.broadcast %64 : vector<2x8x1xf32> to vector<2x8x8xf32>
    %66 = arith.subf %62, %65 : vector<2x8x8xf32>
    %67 = math.exp %66 : vector<2x8x8xf32>
    %cst_46 = arith.constant dense<0.000000e+00> : vector<2x8xf32>
    %68 = vector.multi_reduction <add>, %67, %cst_46 [2] : vector<2x8x8xf32> to vector<2x8xf32>
    %69 = vector.shape_cast %68 : vector<2x8xf32> to vector<2x8x1xf32>
    %70 = vector.broadcast %69 : vector<2x8x1xf32> to vector<2x8x8xf32>
    %71 = arith.divf %67, %70 : vector<2x8x8xf32>
    "tpu.trace_start"() <{level = 10 : i32, message = "bst,btd->bsd"}> : () -> ()
    %cst_47 = arith.constant dense<0.000000e+00> : vector<2x8x8xf32>
    %72 = tpu.matmul %71, %61, %cst_47 {dimension_numbers = #tpu.dot_dimension_numbers<[2], [1], [1], [2], [0, 0, 0, 1, 1, 2], [0], [0]>} : vector<2x8x8xf32>, vector<2x8x8xf32>, vector<2x8x8xf32> -> vector<2x8x8xf32>
    "tpu.trace_stop"() : () -> ()
    %73 = vector.extract_strided_slice %42 {offsets = [0, 0, 16], sizes = [2, 8, 8], strides = [1, 1, 1]} : vector<2x8x128xf32> to vector<2x8x8xf32>
    %74 = vector.extract_strided_slice %43 {offsets = [0, 0, 16], sizes = [2, 8, 8], strides = [1, 1, 1]} : vector<2x8x128xf32> to vector<2x8x8xf32>
    %75 = vector.extract_strided_slice %44 {offsets = [0, 0, 16], sizes = [2, 8, 8], strides = [1, 1, 1]} : vector<2x8x128xf32> to vector<2x8x8xf32>
    "tpu.trace_start"() <{level = 10 : i32, message = "bsd,btd->bst"}> : () -> ()
    %cst_48 = arith.constant dense<0.000000e+00> : vector<2x8x8xf32>
    %76 = tpu.matmul %73, %74, %cst_48 {dimension_numbers = #tpu.dot_dimension_numbers<[2], [2], [1], [1], [0, 0, 0, 1, 1, 1], [0], [0]>} : vector<2x8x8xf32>, vector<2x8x8xf32>, vector<2x8x8xf32> -> vector<2x8x8xf32>
    "tpu.trace_stop"() : () -> ()
    %cst_49 = arith.constant dense<0xFF800000> : vector<2x8xf32>
    %77 = vector.multi_reduction <maximumf>, %76, %cst_49 [2] : vector<2x8x8xf32> to vector<2x8xf32>
    %78 = vector.shape_cast %77 : vector<2x8xf32> to vector<2x8x1xf32>
    %79 = vector.broadcast %78 : vector<2x8x1xf32> to vector<2x8x8xf32>
    %80 = arith.subf %76, %79 : vector<2x8x8xf32>
    %81 = math.exp %80 : vector<2x8x8xf32>
    %cst_50 = arith.constant dense<0.000000e+00> : vector<2x8xf32>
    %82 = vector.multi_reduction <add>, %81, %cst_50 [2] : vector<2x8x8xf32> to vector<2x8xf32>
    %83 = vector.shape_cast %82 : vector<2x8xf32> to vector<2x8x1xf32>
    %84 = vector.broadcast %83 : vector<2x8x1xf32> to vector<2x8x8xf32>
    %85 = arith.divf %81, %84 : vector<2x8x8xf32>
    "tpu.trace_start"() <{level = 10 : i32, message = "bst,btd->bsd"}> : () -> ()
    %cst_51 = arith.constant dense<0.000000e+00> : vector<2x8x8xf32>
    %86 = tpu.matmul %85, %75, %cst_51 {dimension_numbers = #tpu.dot_dimension_numbers<[2], [1], [1], [2], [0, 0, 0, 1, 1, 2], [0], [0]>} : vector<2x8x8xf32>, vector<2x8x8xf32>, vector<2x8x8xf32> -> vector<2x8x8xf32>
    "tpu.trace_stop"() : () -> ()
    %87 = vector.extract_strided_slice %42 {offsets = [0, 0, 24], sizes = [2, 8, 8], strides = [1, 1, 1]} : vector<2x8x128xf32> to vector<2x8x8xf32>
    %88 = vector.extract_strided_slice %43 {offsets = [0, 0, 24], sizes = [2, 8, 8], strides = [1, 1, 1]} : vector<2x8x128xf32> to vector<2x8x8xf32>
    %89 = vector.extract_strided_slice %44 {offsets = [0, 0, 24], sizes = [2, 8, 8], strides = [1, 1, 1]} : vector<2x8x128xf32> to vector<2x8x8xf32>
    "tpu.trace_start"() <{level = 10 : i32, message = "bsd,btd->bst"}> : () -> ()
    %cst_52 = arith.constant dense<0.000000e+00> : vector<2x8x8xf32>
    %90 = tpu.matmul %87, %88, %cst_52 {dimension_numbers = #tpu.dot_dimension_numbers<[2], [2], [1], [1], [0, 0, 0, 1, 1, 1], [0], [0]>} : vector<2x8x8xf32>, vector<2x8x8xf32>, vector<2x8x8xf32> -> vector<2x8x8xf32>
    "tpu.trace_stop"() : () -> ()
    %cst_53 = arith.constant dense<0xFF800000> : vector<2x8xf32>
    %91 = vector.multi_reduction <maximumf>, %90, %cst_53 [2] : vector<2x8x8xf32> to vector<2x8xf32>
    %92 = vector.shape_cast %91 : vector<2x8xf32> to vector<2x8x1xf32>
    %93 = vector.broadcast %92 : vector<2x8x1xf32> to vector<2x8x8xf32>
    %94 = arith.subf %90, %93 : vector<2x8x8xf32>
    %95 = math.exp %94 : vector<2x8x8xf32>
    %cst_54 = arith.constant dense<0.000000e+00> : vector<2x8xf32>
    %96 = vector.multi_reduction <add>, %95, %cst_54 [2] : vector<2x8x8xf32> to vector<2x8xf32>
    %97 = vector.shape_cast %96 : vector<2x8xf32> to vector<2x8x1xf32>
    %98 = vector.broadcast %97 : vector<2x8x1xf32> to vector<2x8x8xf32>
    %99 = arith.divf %95, %98 : vector<2x8x8xf32>
    "tpu.trace_start"() <{level = 10 : i32, message = "bst,btd->bsd"}> : () -> ()
    %cst_55 = arith.constant dense<0.000000e+00> : vector<2x8x8xf32>
    %100 = tpu.matmul %99, %89, %cst_55 {dimension_numbers = #tpu.dot_dimension_numbers<[2], [1], [1], [2], [0, 0, 0, 1, 1, 2], [0], [0]>} : vector<2x8x8xf32>, vector<2x8x8xf32>, vector<2x8x8xf32> -> vector<2x8x8xf32>
    "tpu.trace_stop"() : () -> ()
    %101 = tpu.concatenate %58, %72, %86, %100 in 2 : vector<2x8x8xf32>, vector<2x8x8xf32>, vector<2x8x8xf32>, vector<2x8x8xf32> -> vector<2x8x32xf32>
    %102 = vector.shape_cast %101 : vector<2x8x32xf32> to vector<16x32xf32>
    %c0_56 = arith.constant 0 : index
    %c0_57 = arith.constant 0 : index
    %c0_58 = arith.constant 0 : index
    %103 = vector.load %arg15[%c0_56, %c0_57, %c0_58] : memref<3x32x128xf32, #tpu.memory_space<vmem>>, vector<1x32x128xf32>
    %104 = vector.shape_cast %103 : vector<1x32x128xf32> to vector<32x128xf32>
    %cst_59 = arith.constant dense<0.000000e+00> : vector<16x128xf32>
    %105 = tpu.matmul %102, %104, %cst_59 {dimension_numbers = #tpu.dot_dimension_numbers<[1], [0], [0], [1], [0, 0, 1, 1], [], []>} : vector<16x32xf32>, vector<32x128xf32>, vector<16x128xf32> -> vector<16x128xf32>
    %c0_60 = arith.constant 0 : index
    %c0_61 = arith.constant 0 : index
    %c0_62 = arith.constant 0 : index
    %106 = vector.load %arg16[%c0_60, %c0_61, %c0_62] : memref<3x1x128xf32, #tpu.memory_space<vmem>>, vector<1x1x128xf32>
    %107 = vector.shape_cast %106 : vector<1x1x128xf32> to vector<1x128xf32>
    %108 = vector.broadcast %107 : vector<1x128xf32> to vector<16x128xf32>
    %109 = arith.addf %105, %108 : vector<16x128xf32>
    %c1 = arith.constant 1 : index
    %c0_63 = arith.constant 0 : index
    %c0_64 = arith.constant 0 : index
    %110 = vector.load %arg9[%c1, %c0_63, %c0_64] : memref<3x128x128xf32, #tpu.memory_space<vmem>>, vector<1x128x128xf32>
    %111 = vector.shape_cast %110 : vector<1x128x128xf32> to vector<128x128xf32>
    %cst_65 = arith.constant dense<0.000000e+00> : vector<16x128xf32>
    %112 = tpu.matmul %20, %111, %cst_65 {dimension_numbers = #tpu.dot_dimension_numbers<[1], [0], [0], [1], [0, 0, 1, 1], [], []>} : vector<16x128xf32>, vector<128x128xf32>, vector<16x128xf32> -> vector<16x128xf32>
    %c1_66 = arith.constant 1 : index
    %c0_67 = arith.constant 0 : index
    %c0_68 = arith.constant 0 : index
    %113 = vector.load %arg12[%c1_66, %c0_67, %c0_68] : memref<3x1x128xf32, #tpu.memory_space<vmem>>, vector<1x1x128xf32>
    %114 = vector.shape_cast %113 : vector<1x1x128xf32> to vector<1x128xf32>
    %115 = vector.broadcast %114 : vector<1x128xf32> to vector<16x128xf32>
    %116 = arith.addf %112, %115 : vector<16x128xf32>
    %c1_69 = arith.constant 1 : index
    %c0_70 = arith.constant 0 : index
    %c0_71 = arith.constant 0 : index
    %117 = vector.load %arg10[%c1_69, %c0_70, %c0_71] : memref<3x128x128xf32, #tpu.memory_space<vmem>>, vector<1x128x128xf32>
    %118 = vector.shape_cast %117 : vector<1x128x128xf32> to vector<128x128xf32>
    %cst_72 = arith.constant dense<0.000000e+00> : vector<16x128xf32>
    %119 = tpu.matmul %20, %118, %cst_72 {dimension_numbers = #tpu.dot_dimension_numbers<[1], [0], [0], [1], [0, 0, 1, 1], [], []>} : vector<16x128xf32>, vector<128x128xf32>, vector<16x128xf32> -> vector<16x128xf32>
    %c1_73 = arith.constant 1 : index
    %c0_74 = arith.constant 0 : index
    %c0_75 = arith.constant 0 : index
    %120 = vector.load %arg13[%c1_73, %c0_74, %c0_75] : memref<3x1x128xf32, #tpu.memory_space<vmem>>, vector<1x1x128xf32>
    %121 = vector.shape_cast %120 : vector<1x1x128xf32> to vector<1x128xf32>
    %122 = vector.broadcast %121 : vector<1x128xf32> to vector<16x128xf32>
    %123 = arith.addf %119, %122 : vector<16x128xf32>
    %c1_76 = arith.constant 1 : index
    %c0_77 = arith.constant 0 : index
    %c0_78 = arith.constant 0 : index
    %124 = vector.load %arg11[%c1_76, %c0_77, %c0_78] : memref<3x128x128xf32, #tpu.memory_space<vmem>>, vector<1x128x128xf32>
    %125 = vector.shape_cast %124 : vector<1x128x128xf32> to vector<128x128xf32>
    %cst_79 = arith.constant dense<0.000000e+00> : vector<16x128xf32>
    %126 = tpu.matmul %20, %125, %cst_79 {dimension_numbers = #tpu.dot_dimension_numbers<[1], [0], [0], [1], [0, 0, 1, 1], [], []>} : vector<16x128xf32>, vector<128x128xf32>, vector<16x128xf32> -> vector<16x128xf32>
    %c1_80 = arith.constant 1 : index
    %c0_81 = arith.constant 0 : index
    %c0_82 = arith.constant 0 : index
    %127 = vector.load %arg14[%c1_80, %c0_81, %c0_82] : memref<3x1x128xf32, #tpu.memory_space<vmem>>, vector<1x1x128xf32>
    %128 = vector.shape_cast %127 : vector<1x1x128xf32> to vector<1x128xf32>
    %129 = vector.broadcast %128 : vector<1x128xf32> to vector<16x128xf32>
    %130 = arith.addf %126, %129 : vector<16x128xf32>
    %131 = vector.shape_cast %116 : vector<16x128xf32> to vector<2x8x128xf32>
    %132 = vector.shape_cast %123 : vector<16x128xf32> to vector<2x8x128xf32>
    %133 = vector.shape_cast %130 : vector<16x128xf32> to vector<2x8x128xf32>
    %134 = vector.extract_strided_slice %131 {offsets = [0, 0, 0], sizes = [2, 8, 8], strides = [1, 1, 1]} : vector<2x8x128xf32> to vector<2x8x8xf32>
    %135 = vector.extract_strided_slice %132 {offsets = [0, 0, 0], sizes = [2, 8, 8], strides = [1, 1, 1]} : vector<2x8x128xf32> to vector<2x8x8xf32>
    %136 = vector.extract_strided_slice %133 {offsets = [0, 0, 0], sizes = [2, 8, 8], strides = [1, 1, 1]} : vector<2x8x128xf32> to vector<2x8x8xf32>
    "tpu.trace_start"() <{level = 10 : i32, message = "bsd,btd->bst"}> : () -> ()
    %cst_83 = arith.constant dense<0.000000e+00> : vector<2x8x8xf32>
    %137 = tpu.matmul %134, %135, %cst_83 {dimension_numbers = #tpu.dot_dimension_numbers<[2], [2], [1], [1], [0, 0, 0, 1, 1, 1], [0], [0]>} : vector<2x8x8xf32>, vector<2x8x8xf32>, vector<2x8x8xf32> -> vector<2x8x8xf32>
    "tpu.trace_stop"() : () -> ()
    %cst_84 = arith.constant dense<0xFF800000> : vector<2x8xf32>
    %138 = vector.multi_reduction <maximumf>, %137, %cst_84 [2] : vector<2x8x8xf32> to vector<2x8xf32>
    %139 = vector.shape_cast %138 : vector<2x8xf32> to vector<2x8x1xf32>
    %140 = vector.broadcast %139 : vector<2x8x1xf32> to vector<2x8x8xf32>
    %141 = arith.subf %137, %140 : vector<2x8x8xf32>
    %142 = math.exp %141 : vector<2x8x8xf32>
    %cst_85 = arith.constant dense<0.000000e+00> : vector<2x8xf32>
    %143 = vector.multi_reduction <add>, %142, %cst_85 [2] : vector<2x8x8xf32> to vector<2x8xf32>
    %144 = vector.shape_cast %143 : vector<2x8xf32> to vector<2x8x1xf32>
    %145 = vector.broadcast %144 : vector<2x8x1xf32> to vector<2x8x8xf32>
    %146 = arith.divf %142, %145 : vector<2x8x8xf32>
    "tpu.trace_start"() <{level = 10 : i32, message = "bst,btd->bsd"}> : () -> ()
    %cst_86 = arith.constant dense<0.000000e+00> : vector<2x8x8xf32>
    %147 = tpu.matmul %146, %136, %cst_86 {dimension_numbers = #tpu.dot_dimension_numbers<[2], [1], [1], [2], [0, 0, 0, 1, 1, 2], [0], [0]>} : vector<2x8x8xf32>, vector<2x8x8xf32>, vector<2x8x8xf32> -> vector<2x8x8xf32>
    "tpu.trace_stop"() : () -> ()
    %148 = vector.extract_strided_slice %131 {offsets = [0, 0, 8], sizes = [2, 8, 8], strides = [1, 1, 1]} : vector<2x8x128xf32> to vector<2x8x8xf32>
    %149 = vector.extract_strided_slice %132 {offsets = [0, 0, 8], sizes = [2, 8, 8], strides = [1, 1, 1]} : vector<2x8x128xf32> to vector<2x8x8xf32>
    %150 = vector.extract_strided_slice %133 {offsets = [0, 0, 8], sizes = [2, 8, 8], strides = [1, 1, 1]} : vector<2x8x128xf32> to vector<2x8x8xf32>
    "tpu.trace_start"() <{level = 10 : i32, message = "bsd,btd->bst"}> : () -> ()
    %cst_87 = arith.constant dense<0.000000e+00> : vector<2x8x8xf32>
    %151 = tpu.matmul %148, %149, %cst_87 {dimension_numbers = #tpu.dot_dimension_numbers<[2], [2], [1], [1], [0, 0, 0, 1, 1, 1], [0], [0]>} : vector<2x8x8xf32>, vector<2x8x8xf32>, vector<2x8x8xf32> -> vector<2x8x8xf32>
    "tpu.trace_stop"() : () -> ()
    %cst_88 = arith.constant dense<0xFF800000> : vector<2x8xf32>
    %152 = vector.multi_reduction <maximumf>, %151, %cst_88 [2] : vector<2x8x8xf32> to vector<2x8xf32>
    %153 = vector.shape_cast %152 : vector<2x8xf32> to vector<2x8x1xf32>
    %154 = vector.broadcast %153 : vector<2x8x1xf32> to vector<2x8x8xf32>
    %155 = arith.subf %151, %154 : vector<2x8x8xf32>
    %156 = math.exp %155 : vector<2x8x8xf32>
    %cst_89 = arith.constant dense<0.000000e+00> : vector<2x8xf32>
    %157 = vector.multi_reduction <add>, %156, %cst_89 [2] : vector<2x8x8xf32> to vector<2x8xf32>
    %158 = vector.shape_cast %157 : vector<2x8xf32> to vector<2x8x1xf32>
    %159 = vector.broadcast %158 : vector<2x8x1xf32> to vector<2x8x8xf32>
    %160 = arith.divf %156, %159 : vector<2x8x8xf32>
    "tpu.trace_start"() <{level = 10 : i32, message = "bst,btd->bsd"}> : () -> ()
    %cst_90 = arith.constant dense<0.000000e+00> : vector<2x8x8xf32>
    %161 = tpu.matmul %160, %150, %cst_90 {dimension_numbers = #tpu.dot_dimension_numbers<[2], [1], [1], [2], [0, 0, 0, 1, 1, 2], [0], [0]>} : vector<2x8x8xf32>, vector<2x8x8xf32>, vector<2x8x8xf32> -> vector<2x8x8xf32>
    "tpu.trace_stop"() : () -> ()
    %162 = vector.extract_strided_slice %131 {offsets = [0, 0, 16], sizes = [2, 8, 8], strides = [1, 1, 1]} : vector<2x8x128xf32> to vector<2x8x8xf32>
    %163 = vector.extract_strided_slice %132 {offsets = [0, 0, 16], sizes = [2, 8, 8], strides = [1, 1, 1]} : vector<2x8x128xf32> to vector<2x8x8xf32>
    %164 = vector.extract_strided_slice %133 {offsets = [0, 0, 16], sizes = [2, 8, 8], strides = [1, 1, 1]} : vector<2x8x128xf32> to vector<2x8x8xf32>
    "tpu.trace_start"() <{level = 10 : i32, message = "bsd,btd->bst"}> : () -> ()
    %cst_91 = arith.constant dense<0.000000e+00> : vector<2x8x8xf32>
    %165 = tpu.matmul %162, %163, %cst_91 {dimension_numbers = #tpu.dot_dimension_numbers<[2], [2], [1], [1], [0, 0, 0, 1, 1, 1], [0], [0]>} : vector<2x8x8xf32>, vector<2x8x8xf32>, vector<2x8x8xf32> -> vector<2x8x8xf32>
    "tpu.trace_stop"() : () -> ()
    %cst_92 = arith.constant dense<0xFF800000> : vector<2x8xf32>
    %166 = vector.multi_reduction <maximumf>, %165, %cst_92 [2] : vector<2x8x8xf32> to vector<2x8xf32>
    %167 = vector.shape_cast %166 : vector<2x8xf32> to vector<2x8x1xf32>
    %168 = vector.broadcast %167 : vector<2x8x1xf32> to vector<2x8x8xf32>
    %169 = arith.subf %165, %168 : vector<2x8x8xf32>
    %170 = math.exp %169 : vector<2x8x8xf32>
    %cst_93 = arith.constant dense<0.000000e+00> : vector<2x8xf32>
    %171 = vector.multi_reduction <add>, %170, %cst_93 [2] : vector<2x8x8xf32> to vector<2x8xf32>
    %172 = vector.shape_cast %171 : vector<2x8xf32> to vector<2x8x1xf32>
    %173 = vector.broadcast %172 : vector<2x8x1xf32> to vector<2x8x8xf32>
    %174 = arith.divf %170, %173 : vector<2x8x8xf32>
    "tpu.trace_start"() <{level = 10 : i32, message = "bst,btd->bsd"}> : () -> ()
    %cst_94 = arith.constant dense<0.000000e+00> : vector<2x8x8xf32>
    %175 = tpu.matmul %174, %164, %cst_94 {dimension_numbers = #tpu.dot_dimension_numbers<[2], [1], [1], [2], [0, 0, 0, 1, 1, 2], [0], [0]>} : vector<2x8x8xf32>, vector<2x8x8xf32>, vector<2x8x8xf32> -> vector<2x8x8xf32>
    "tpu.trace_stop"() : () -> ()
    %176 = vector.extract_strided_slice %131 {offsets = [0, 0, 24], sizes = [2, 8, 8], strides = [1, 1, 1]} : vector<2x8x128xf32> to vector<2x8x8xf32>
    %177 = vector.extract_strided_slice %132 {offsets = [0, 0, 24], sizes = [2, 8, 8], strides = [1, 1, 1]} : vector<2x8x128xf32> to vector<2x8x8xf32>
    %178 = vector.extract_strided_slice %133 {offsets = [0, 0, 24], sizes = [2, 8, 8], strides = [1, 1, 1]} : vector<2x8x128xf32> to vector<2x8x8xf32>
    "tpu.trace_start"() <{level = 10 : i32, message = "bsd,btd->bst"}> : () -> ()
    %cst_95 = arith.constant dense<0.000000e+00> : vector<2x8x8xf32>
    %179 = tpu.matmul %176, %177, %cst_95 {dimension_numbers = #tpu.dot_dimension_numbers<[2], [2], [1], [1], [0, 0, 0, 1, 1, 1], [0], [0]>} : vector<2x8x8xf32>, vector<2x8x8xf32>, vector<2x8x8xf32> -> vector<2x8x8xf32>
    "tpu.trace_stop"() : () -> ()
    %cst_96 = arith.constant dense<0xFF800000> : vector<2x8xf32>
    %180 = vector.multi_reduction <maximumf>, %179, %cst_96 [2] : vector<2x8x8xf32> to vector<2x8xf32>
    %181 = vector.shape_cast %180 : vector<2x8xf32> to vector<2x8x1xf32>
    %182 = vector.broadcast %181 : vector<2x8x1xf32> to vector<2x8x8xf32>
    %183 = arith.subf %179, %182 : vector<2x8x8xf32>
    %184 = math.exp %183 : vector<2x8x8xf32>
    %cst_97 = arith.constant dense<0.000000e+00> : vector<2x8xf32>
    %185 = vector.multi_reduction <add>, %184, %cst_97 [2] : vector<2x8x8xf32> to vector<2x8xf32>
    %186 = vector.shape_cast %185 : vector<2x8xf32> to vector<2x8x1xf32>
    %187 = vector.broadcast %186 : vector<2x8x1xf32> to vector<2x8x8xf32>
    %188 = arith.divf %184, %187 : vector<2x8x8xf32>
    "tpu.trace_start"() <{level = 10 : i32, message = "bst,btd->bsd"}> : () -> ()
    %cst_98 = arith.constant dense<0.000000e+00> : vector<2x8x8xf32>
    %189 = tpu.matmul %188, %178, %cst_98 {dimension_numbers = #tpu.dot_dimension_numbers<[2], [1], [1], [2], [0, 0, 0, 1, 1, 2], [0], [0]>} : vector<2x8x8xf32>, vector<2x8x8xf32>, vector<2x8x8xf32> -> vector<2x8x8xf32>
    "tpu.trace_stop"() : () -> ()
    %190 = tpu.concatenate %147, %161, %175, %189 in 2 : vector<2x8x8xf32>, vector<2x8x8xf32>, vector<2x8x8xf32>, vector<2x8x8xf32> -> vector<2x8x32xf32>
    %191 = vector.shape_cast %190 : vector<2x8x32xf32> to vector<16x32xf32>
    %c1_99 = arith.constant 1 : index
    %c0_100 = arith.constant 0 : index
    %c0_101 = arith.constant 0 : index
    %192 = vector.load %arg15[%c1_99, %c0_100, %c0_101] : memref<3x32x128xf32, #tpu.memory_space<vmem>>, vector<1x32x128xf32>
    %193 = vector.shape_cast %192 : vector<1x32x128xf32> to vector<32x128xf32>
    %cst_102 = arith.constant dense<0.000000e+00> : vector<16x128xf32>
    %194 = tpu.matmul %191, %193, %cst_102 {dimension_numbers = #tpu.dot_dimension_numbers<[1], [0], [0], [1], [0, 0, 1, 1], [], []>} : vector<16x32xf32>, vector<32x128xf32>, vector<16x128xf32> -> vector<16x128xf32>
    %c1_103 = arith.constant 1 : index
    %c0_104 = arith.constant 0 : index
    %c0_105 = arith.constant 0 : index
    %195 = vector.load %arg16[%c1_103, %c0_104, %c0_105] : memref<3x1x128xf32, #tpu.memory_space<vmem>>, vector<1x1x128xf32>
    %196 = vector.shape_cast %195 : vector<1x1x128xf32> to vector<1x128xf32>
    %197 = vector.broadcast %196 : vector<1x128xf32> to vector<16x128xf32>
    %198 = arith.addf %194, %197 : vector<16x128xf32>
    %c2 = arith.constant 2 : index
    %c0_106 = arith.constant 0 : index
    %c0_107 = arith.constant 0 : index
    %199 = vector.load %arg9[%c2, %c0_106, %c0_107] : memref<3x128x128xf32, #tpu.memory_space<vmem>>, vector<1x128x128xf32>
    %200 = vector.shape_cast %199 : vector<1x128x128xf32> to vector<128x128xf32>
    %cst_108 = arith.constant dense<0.000000e+00> : vector<16x128xf32>
    %201 = tpu.matmul %109, %200, %cst_108 {dimension_numbers = #tpu.dot_dimension_numbers<[1], [0], [0], [1], [0, 0, 1, 1], [], []>} : vector<16x128xf32>, vector<128x128xf32>, vector<16x128xf32> -> vector<16x128xf32>
    %c2_109 = arith.constant 2 : index
    %c0_110 = arith.constant 0 : index
    %c0_111 = arith.constant 0 : index
    %202 = vector.load %arg12[%c2_109, %c0_110, %c0_111] : memref<3x1x128xf32, #tpu.memory_space<vmem>>, vector<1x1x128xf32>
    %203 = vector.shape_cast %202 : vector<1x1x128xf32> to vector<1x128xf32>
    %204 = vector.broadcast %203 : vector<1x128xf32> to vector<16x128xf32>
    %205 = arith.addf %201, %204 : vector<16x128xf32>
    %c2_112 = arith.constant 2 : index
    %c0_113 = arith.constant 0 : index
    %c0_114 = arith.constant 0 : index
    %206 = vector.load %arg10[%c2_112, %c0_113, %c0_114] : memref<3x128x128xf32, #tpu.memory_space<vmem>>, vector<1x128x128xf32>
    %207 = vector.shape_cast %206 : vector<1x128x128xf32> to vector<128x128xf32>
    %cst_115 = arith.constant dense<0.000000e+00> : vector<16x128xf32>
    %208 = tpu.matmul %198, %207, %cst_115 {dimension_numbers = #tpu.dot_dimension_numbers<[1], [0], [0], [1], [0, 0, 1, 1], [], []>} : vector<16x128xf32>, vector<128x128xf32>, vector<16x128xf32> -> vector<16x128xf32>
    %c2_116 = arith.constant 2 : index
    %c0_117 = arith.constant 0 : index
    %c0_118 = arith.constant 0 : index
    %209 = vector.load %arg13[%c2_116, %c0_117, %c0_118] : memref<3x1x128xf32, #tpu.memory_space<vmem>>, vector<1x1x128xf32>
    %210 = vector.shape_cast %209 : vector<1x1x128xf32> to vector<1x128xf32>
    %211 = vector.broadcast %210 : vector<1x128xf32> to vector<16x128xf32>
    %212 = arith.addf %208, %211 : vector<16x128xf32>
    %c2_119 = arith.constant 2 : index
    %c0_120 = arith.constant 0 : index
    %c0_121 = arith.constant 0 : index
    %213 = vector.load %arg11[%c2_119, %c0_120, %c0_121] : memref<3x128x128xf32, #tpu.memory_space<vmem>>, vector<1x128x128xf32>
    %214 = vector.shape_cast %213 : vector<1x128x128xf32> to vector<128x128xf32>
    %cst_122 = arith.constant dense<0.000000e+00> : vector<16x128xf32>
    %215 = tpu.matmul %109, %214, %cst_122 {dimension_numbers = #tpu.dot_dimension_numbers<[1], [0], [0], [1], [0, 0, 1, 1], [], []>} : vector<16x128xf32>, vector<128x128xf32>, vector<16x128xf32> -> vector<16x128xf32>
    %c2_123 = arith.constant 2 : index
    %c0_124 = arith.constant 0 : index
    %c0_125 = arith.constant 0 : index
    %216 = vector.load %arg14[%c2_123, %c0_124, %c0_125] : memref<3x1x128xf32, #tpu.memory_space<vmem>>, vector<1x1x128xf32>
    %217 = vector.shape_cast %216 : vector<1x1x128xf32> to vector<1x128xf32>
    %218 = vector.broadcast %217 : vector<1x128xf32> to vector<16x128xf32>
    %219 = arith.addf %215, %218 : vector<16x128xf32>
    %220 = vector.shape_cast %205 : vector<16x128xf32> to vector<2x8x128xf32>
    %221 = vector.shape_cast %212 : vector<16x128xf32> to vector<2x8x128xf32>
    %222 = vector.shape_cast %219 : vector<16x128xf32> to vector<2x8x128xf32>
    %223 = vector.extract_strided_slice %220 {offsets = [0, 0, 0], sizes = [2, 8, 8], strides = [1, 1, 1]} : vector<2x8x128xf32> to vector<2x8x8xf32>
    %224 = vector.extract_strided_slice %221 {offsets = [0, 0, 0], sizes = [2, 8, 8], strides = [1, 1, 1]} : vector<2x8x128xf32> to vector<2x8x8xf32>
    %225 = vector.extract_strided_slice %222 {offsets = [0, 0, 0], sizes = [2, 8, 8], strides = [1, 1, 1]} : vector<2x8x128xf32> to vector<2x8x8xf32>
    "tpu.trace_start"() <{level = 10 : i32, message = "bsd,btd->bst"}> : () -> ()
    %cst_126 = arith.constant dense<0.000000e+00> : vector<2x8x8xf32>
    %226 = tpu.matmul %223, %224, %cst_126 {dimension_numbers = #tpu.dot_dimension_numbers<[2], [2], [1], [1], [0, 0, 0, 1, 1, 1], [0], [0]>} : vector<2x8x8xf32>, vector<2x8x8xf32>, vector<2x8x8xf32> -> vector<2x8x8xf32>
    "tpu.trace_stop"() : () -> ()
    %cst_127 = arith.constant dense<0xFF800000> : vector<2x8xf32>
    %227 = vector.multi_reduction <maximumf>, %226, %cst_127 [2] : vector<2x8x8xf32> to vector<2x8xf32>
    %228 = vector.shape_cast %227 : vector<2x8xf32> to vector<2x8x1xf32>
    %229 = vector.broadcast %228 : vector<2x8x1xf32> to vector<2x8x8xf32>
    %230 = arith.subf %226, %229 : vector<2x8x8xf32>
    %231 = math.exp %230 : vector<2x8x8xf32>
    %cst_128 = arith.constant dense<0.000000e+00> : vector<2x8xf32>
    %232 = vector.multi_reduction <add>, %231, %cst_128 [2] : vector<2x8x8xf32> to vector<2x8xf32>
    %233 = vector.shape_cast %232 : vector<2x8xf32> to vector<2x8x1xf32>
    %234 = vector.broadcast %233 : vector<2x8x1xf32> to vector<2x8x8xf32>
    %235 = arith.divf %231, %234 : vector<2x8x8xf32>
    "tpu.trace_start"() <{level = 10 : i32, message = "bst,btd->bsd"}> : () -> ()
    %cst_129 = arith.constant dense<0.000000e+00> : vector<2x8x8xf32>
    %236 = tpu.matmul %235, %225, %cst_129 {dimension_numbers = #tpu.dot_dimension_numbers<[2], [1], [1], [2], [0, 0, 0, 1, 1, 2], [0], [0]>} : vector<2x8x8xf32>, vector<2x8x8xf32>, vector<2x8x8xf32> -> vector<2x8x8xf32>
    "tpu.trace_stop"() : () -> ()
    %237 = vector.extract_strided_slice %220 {offsets = [0, 0, 8], sizes = [2, 8, 8], strides = [1, 1, 1]} : vector<2x8x128xf32> to vector<2x8x8xf32>
    %238 = vector.extract_strided_slice %221 {offsets = [0, 0, 8], sizes = [2, 8, 8], strides = [1, 1, 1]} : vector<2x8x128xf32> to vector<2x8x8xf32>
    %239 = vector.extract_strided_slice %222 {offsets = [0, 0, 8], sizes = [2, 8, 8], strides = [1, 1, 1]} : vector<2x8x128xf32> to vector<2x8x8xf32>
    "tpu.trace_start"() <{level = 10 : i32, message = "bsd,btd->bst"}> : () -> ()
    %cst_130 = arith.constant dense<0.000000e+00> : vector<2x8x8xf32>
    %240 = tpu.matmul %237, %238, %cst_130 {dimension_numbers = #tpu.dot_dimension_numbers<[2], [2], [1], [1], [0, 0, 0, 1, 1, 1], [0], [0]>} : vector<2x8x8xf32>, vector<2x8x8xf32>, vector<2x8x8xf32> -> vector<2x8x8xf32>
    "tpu.trace_stop"() : () -> ()
    %cst_131 = arith.constant dense<0xFF800000> : vector<2x8xf32>
    %241 = vector.multi_reduction <maximumf>, %240, %cst_131 [2] : vector<2x8x8xf32> to vector<2x8xf32>
    %242 = vector.shape_cast %241 : vector<2x8xf32> to vector<2x8x1xf32>
    %243 = vector.broadcast %242 : vector<2x8x1xf32> to vector<2x8x8xf32>
    %244 = arith.subf %240, %243 : vector<2x8x8xf32>
    %245 = math.exp %244 : vector<2x8x8xf32>
    %cst_132 = arith.constant dense<0.000000e+00> : vector<2x8xf32>
    %246 = vector.multi_reduction <add>, %245, %cst_132 [2] : vector<2x8x8xf32> to vector<2x8xf32>
    %247 = vector.shape_cast %246 : vector<2x8xf32> to vector<2x8x1xf32>
    %248 = vector.broadcast %247 : vector<2x8x1xf32> to vector<2x8x8xf32>
    %249 = arith.divf %245, %248 : vector<2x8x8xf32>
    "tpu.trace_start"() <{level = 10 : i32, message = "bst,btd->bsd"}> : () -> ()
    %cst_133 = arith.constant dense<0.000000e+00> : vector<2x8x8xf32>
    %250 = tpu.matmul %249, %239, %cst_133 {dimension_numbers = #tpu.dot_dimension_numbers<[2], [1], [1], [2], [0, 0, 0, 1, 1, 2], [0], [0]>} : vector<2x8x8xf32>, vector<2x8x8xf32>, vector<2x8x8xf32> -> vector<2x8x8xf32>
    "tpu.trace_stop"() : () -> ()
    %251 = vector.extract_strided_slice %220 {offsets = [0, 0, 16], sizes = [2, 8, 8], strides = [1, 1, 1]} : vector<2x8x128xf32> to vector<2x8x8xf32>
    %252 = vector.extract_strided_slice %221 {offsets = [0, 0, 16], sizes = [2, 8, 8], strides = [1, 1, 1]} : vector<2x8x128xf32> to vector<2x8x8xf32>
    %253 = vector.extract_strided_slice %222 {offsets = [0, 0, 16], sizes = [2, 8, 8], strides = [1, 1, 1]} : vector<2x8x128xf32> to vector<2x8x8xf32>
    "tpu.trace_start"() <{level = 10 : i32, message = "bsd,btd->bst"}> : () -> ()
    %cst_134 = arith.constant dense<0.000000e+00> : vector<2x8x8xf32>
    %254 = tpu.matmul %251, %252, %cst_134 {dimension_numbers = #tpu.dot_dimension_numbers<[2], [2], [1], [1], [0, 0, 0, 1, 1, 1], [0], [0]>} : vector<2x8x8xf32>, vector<2x8x8xf32>, vector<2x8x8xf32> -> vector<2x8x8xf32>
    "tpu.trace_stop"() : () -> ()
    %cst_135 = arith.constant dense<0xFF800000> : vector<2x8xf32>
    %255 = vector.multi_reduction <maximumf>, %254, %cst_135 [2] : vector<2x8x8xf32> to vector<2x8xf32>
    %256 = vector.shape_cast %255 : vector<2x8xf32> to vector<2x8x1xf32>
    %257 = vector.broadcast %256 : vector<2x8x1xf32> to vector<2x8x8xf32>
    %258 = arith.subf %254, %257 : vector<2x8x8xf32>
    %259 = math.exp %258 : vector<2x8x8xf32>
    %cst_136 = arith.constant dense<0.000000e+00> : vector<2x8xf32>
    %260 = vector.multi_reduction <add>, %259, %cst_136 [2] : vector<2x8x8xf32> to vector<2x8xf32>
    %261 = vector.shape_cast %260 : vector<2x8xf32> to vector<2x8x1xf32>
    %262 = vector.broadcast %261 : vector<2x8x1xf32> to vector<2x8x8xf32>
    %263 = arith.divf %259, %262 : vector<2x8x8xf32>
    "tpu.trace_start"() <{level = 10 : i32, message = "bst,btd->bsd"}> : () -> ()
    %cst_137 = arith.constant dense<0.000000e+00> : vector<2x8x8xf32>
    %264 = tpu.matmul %263, %253, %cst_137 {dimension_numbers = #tpu.dot_dimension_numbers<[2], [1], [1], [2], [0, 0, 0, 1, 1, 2], [0], [0]>} : vector<2x8x8xf32>, vector<2x8x8xf32>, vector<2x8x8xf32> -> vector<2x8x8xf32>
    "tpu.trace_stop"() : () -> ()
    %265 = vector.extract_strided_slice %220 {offsets = [0, 0, 24], sizes = [2, 8, 8], strides = [1, 1, 1]} : vector<2x8x128xf32> to vector<2x8x8xf32>
    %266 = vector.extract_strided_slice %221 {offsets = [0, 0, 24], sizes = [2, 8, 8], strides = [1, 1, 1]} : vector<2x8x128xf32> to vector<2x8x8xf32>
    %267 = vector.extract_strided_slice %222 {offsets = [0, 0, 24], sizes = [2, 8, 8], strides = [1, 1, 1]} : vector<2x8x128xf32> to vector<2x8x8xf32>
    "tpu.trace_start"() <{level = 10 : i32, message = "bsd,btd->bst"}> : () -> ()
    %cst_138 = arith.constant dense<0.000000e+00> : vector<2x8x8xf32>
    %268 = tpu.matmul %265, %266, %cst_138 {dimension_numbers = #tpu.dot_dimension_numbers<[2], [2], [1], [1], [0, 0, 0, 1, 1, 1], [0], [0]>} : vector<2x8x8xf32>, vector<2x8x8xf32>, vector<2x8x8xf32> -> vector<2x8x8xf32>
    "tpu.trace_stop"() : () -> ()
    %cst_139 = arith.constant dense<0xFF800000> : vector<2x8xf32>
    %269 = vector.multi_reduction <maximumf>, %268, %cst_139 [2] : vector<2x8x8xf32> to vector<2x8xf32>
    %270 = vector.shape_cast %269 : vector<2x8xf32> to vector<2x8x1xf32>
    %271 = vector.broadcast %270 : vector<2x8x1xf32> to vector<2x8x8xf32>
    %272 = arith.subf %268, %271 : vector<2x8x8xf32>
    %273 = math.exp %272 : vector<2x8x8xf32>
    %cst_140 = arith.constant dense<0.000000e+00> : vector<2x8xf32>
    %274 = vector.multi_reduction <add>, %273, %cst_140 [2] : vector<2x8x8xf32> to vector<2x8xf32>
    %275 = vector.shape_cast %274 : vector<2x8xf32> to vector<2x8x1xf32>
    %276 = vector.broadcast %275 : vector<2x8x1xf32> to vector<2x8x8xf32>
    %277 = arith.divf %273, %276 : vector<2x8x8xf32>
    "tpu.trace_start"() <{level = 10 : i32, message = "bst,btd->bsd"}> : () -> ()
    %cst_141 = arith.constant dense<0.000000e+00> : vector<2x8x8xf32>
    %278 = tpu.matmul %277, %267, %cst_141 {dimension_numbers = #tpu.dot_dimension_numbers<[2], [1], [1], [2], [0, 0, 0, 1, 1, 2], [0], [0]>} : vector<2x8x8xf32>, vector<2x8x8xf32>, vector<2x8x8xf32> -> vector<2x8x8xf32>
    "tpu.trace_stop"() : () -> ()
    %279 = tpu.concatenate %236, %250, %264, %278 in 2 : vector<2x8x8xf32>, vector<2x8x8xf32>, vector<2x8x8xf32>, vector<2x8x8xf32> -> vector<2x8x32xf32>
    %280 = vector.shape_cast %279 : vector<2x8x32xf32> to vector<16x32xf32>
    %c2_142 = arith.constant 2 : index
    %c0_143 = arith.constant 0 : index
    %c0_144 = arith.constant 0 : index
    %281 = vector.load %arg15[%c2_142, %c0_143, %c0_144] : memref<3x32x128xf32, #tpu.memory_space<vmem>>, vector<1x32x128xf32>
    %282 = vector.shape_cast %281 : vector<1x32x128xf32> to vector<32x128xf32>
    %cst_145 = arith.constant dense<0.000000e+00> : vector<16x128xf32>
    %283 = tpu.matmul %280, %282, %cst_145 {dimension_numbers = #tpu.dot_dimension_numbers<[1], [0], [0], [1], [0, 0, 1, 1], [], []>} : vector<16x32xf32>, vector<32x128xf32>, vector<16x128xf32> -> vector<16x128xf32>
    %c2_146 = arith.constant 2 : index
    %c0_147 = arith.constant 0 : index
    %c0_148 = arith.constant 0 : index
    %284 = vector.load %arg16[%c2_146, %c0_147, %c0_148] : memref<3x1x128xf32, #tpu.memory_space<vmem>>, vector<1x1x128xf32>
    %285 = vector.shape_cast %284 : vector<1x1x128xf32> to vector<1x128xf32>
    %286 = vector.broadcast %285 : vector<1x128xf32> to vector<16x128xf32>
    %287 = arith.addf %283, %286 : vector<16x128xf32>
    %c0_149 = arith.constant 0 : index
    %c0_150 = arith.constant 0 : index
    %288 = vector.load %arg17[%c0_149, %c0_150] : memref<16x128xf32, #tpu.memory_space<vmem>>, vector<16x128xf32>
    tpu.vector_store %arg17[%c0_149, %c0_150], %287 {strides = array<i32>} : memref<16x128xf32, #tpu.memory_space<vmem>>, vector<16x128xf32>,
    %c0_151 = arith.constant 0 : index
    %c0_152 = arith.constant 0 : index
    %289 = vector.load %arg18[%c0_151, %c0_152] : memref<16x128xf32, #tpu.memory_space<vmem>>, vector<16x128xf32>
    tpu.vector_store %arg18[%c0_151, %c0_152], %198 {strides = array<i32>} : memref<16x128xf32, #tpu.memory_space<vmem>>, vector<16x128xf32>,
    return
  }
}

</mosaic_0001>

<llo_original>
// kernel: mask_guided_sequence_embedding.1
$region0: #{mask_guided_sequence_embedding.1}
  #allocation0 [shape = 'u32[]', space=smem, size = 0x4, offset = 0x4, fixed_abs, tag = 'smem constant byte address 0x4 - core index']
  #allocation1 [shape = 'u32[144,128]{1,0:T(1,128)}', space=vmem, size = 0x12000, scoped, tag = 'internal scratch']
  %s0 = inlined_call_operand.vmem [shape: f32[16,16], index: 0, kind: input, shape index: {}]
  %s1 = inlined_call_operand.vmem [shape: f32[16,16], index: 1, kind: input, shape index: {}]
  %s2 = inlined_call_operand.vmem [shape: f32[16,8], index: 2, kind: input, shape index: {}]
  %s3 = inlined_call_operand.vmem [shape: f32[8,128], index: 3, kind: input, shape index: {}]
  %s4 = inlined_call_operand.hbm [shape: f32[1,128], index: 4, kind: input, shape index: {}]
  %s5 = inlined_call_operand.vmem [shape: f32[16,128], index: 5, kind: input, shape index: {}]
  %s6 = inlined_call_operand.hbm [shape: f32[1,128], index: 6, kind: input, shape index: {}]
  %s7 = inlined_call_operand.vmem [shape: f32[16,128], index: 7, kind: input, shape index: {}]
  %s8 = inlined_call_operand.hbm [shape: f32[1,128], index: 8, kind: input, shape index: {}]
  %s9 = inlined_call_operand.hbm [shape: f32[3,128,128], index: 9, kind: input, shape index: {}]
  %s10 = inlined_call_operand.hbm [shape: f32[3,128,128], index: 10, kind: input, shape index: {}]
  %s11 = inlined_call_operand.hbm [shape: f32[3,128,128], index: 11, kind: input, shape index: {}]
  %s12 = inlined_call_operand.hbm [shape: f32[3,1,128], index: 12, kind: input, shape index: {}]
  %s13 = inlined_call_operand.hbm [shape: f32[3,1,128], index: 13, kind: input, shape index: {}]
  %s14 = inlined_call_operand.hbm [shape: f32[3,1,128], index: 14, kind: input, shape index: {}]
  %s15 = inlined_call_operand.vmem [shape: f32[3,32,128], index: 15, kind: input, shape index: {}]
  %s16 = inlined_call_operand.hbm [shape: f32[3,1,128], index: 16, kind: input, shape index: {}]
  %s17 = inlined_call_operand.vmem [shape: f32[16,128], index: 17, kind: output, shape index: {0}]
  %s18 = inlined_call_operand.vmem [shape: f32[16,128], index: 18, kind: output, shape index: {1}]
  %19 = xla_tuple %s17, %s18
  %s20 = sld [smem:[#allocation0]]
  $region126: #{mask_guided_sequence_embedding.1} parent=0
    _
  %s22 = ssub.s32 1, %s20
  %s23 = scalar_select 0, %s22, %s20
  $region1: #{mask_guided_sequence_embedding.1} parent=0
    #allocation2 [shape = 'u8[512]{0}', space=vmem, size = 0x400, scoped, tag = 'input window, operand 4, single buffered']
    #allocation3 [shape = 's32[1]{0}', space=sflag, size = 0x4, scoped, tag = 'scoped memory for mask_guided_sequence_embedding.1']
    #allocation4 [shape = 'u8[512]{0}', space=vmem, size = 0x400, scoped, tag = 'input window, operand 6, single buffered']
    #allocation5 [shape = 's32[1]{0}', space=sflag, size = 0x4, scoped, tag = 'scoped memory for mask_guided_sequence_embedding.1']
    #allocation6 [shape = 'u8[512]{0}', space=vmem, size = 0x400, scoped, tag = 'input window, operand 8, single buffered']
    #allocation7 [shape = 'u8[196608]{0}', space=vmem, size = 0x30000, scoped, tag = 'input window, operand 9, single buffered']
    #allocation8 [shape = 's32[1]{0}', space=sflag, size = 0x4, scoped, tag = 'scoped memory for mask_guided_sequence_embedding.1']
    #allocation9 [shape = 'u8[196608]{0}', space=vmem, size = 0x30000, scoped, tag = 'input window, operand 10, single buffered']
    #allocation10 [shape = 'u8[196608]{0}', space=vmem, size = 0x30000, scoped, tag = 'input window, operand 11, single buffered']
    #allocation11 [shape = 's32[1]{0}', space=sflag, size = 0x4, scoped, tag = 'scoped memory for mask_guided_sequence_embedding.1']
    #allocation12 [shape = 'u8[1536]{0}', space=vmem, size = 0x800, scoped, tag = 'input window, operand 12, single buffered']
    #allocation13 [shape = 'u8[1536]{0}', space=vmem, size = 0x800, scoped, tag = 'input window, operand 13, single buffered']
    #allocation14 [shape = 's32[1]{0}', space=sflag, size = 0x4, scoped, tag = 'scoped memory for mask_guided_sequence_embedding.1']
    #allocation15 [shape = 'u8[1536]{0}', space=vmem, size = 0x800, scoped, tag = 'input window, operand 14, single buffered']
    #allocation16 [shape = 'u8[1536]{0}', space=vmem, size = 0x800, scoped, tag = 'input window, operand 16, single buffered']
    #allocation17 [shape = 's32[1]{0}', space=sflag, size = 0x4, scoped, tag = 'scoped memory for mask_guided_sequence_embedding.1']
    %24 = vsyncpa [#allocation3], 0
    %25 = vsyncpa [#allocation5], 0
    %26 = vsyncpa [#allocation8], 0
    %27 = vsyncpa [#allocation11], 0
    %28 = vsyncpa [#allocation14], 0
    %29 = vsyncpa [#allocation17], 0
    // Predicated region
    $region2: #{mask_guided_sequence_embedding.1} parent=1 // pred_check
      _
    $region3: #{mask_guided_sequence_embedding.1} parent=1 // pred_check_branch
      %31 = sbr.rel (0) target = $region5
    $region4: #{mask_guided_sequence_embedding.1} parent=1 // pred_region
      _
    $region5: #{mask_guided_sequence_embedding.1} parent=1 // pred_fallthru
      _
    // Predicated region
    $region6: #{mask_guided_sequence_embedding.1} parent=1 // pred_check
      _
    $region7: #{mask_guided_sequence_embedding.1} parent=1 // pred_check_branch
      %33 = sbr.rel (0) target = $region9
    $region8: #{mask_guided_sequence_embedding.1} parent=1 // pred_region
      _
    $region9: #{mask_guided_sequence_embedding.1} parent=1 // pred_fallthru
      _
    // Predicated region
    $region10: #{mask_guided_sequence_embedding.1} parent=1 // pred_check
      _
    $region11: #{mask_guided_sequence_embedding.1} parent=1 // pred_check_branch
      %35 = sbr.rel (0) target = $region13
    $region12: #{mask_guided_sequence_embedding.1} parent=1 // pred_region
      _
    $region13: #{mask_guided_sequence_embedding.1} parent=1 // pred_fallthru
      _
    // Predicated region
    $region14: #{mask_guided_sequence_embedding.1} parent=1 // pred_check
      _
    $region15: #{mask_guided_sequence_embedding.1} parent=1 // pred_check_branch
      %37 = sbr.rel (0) target = $region17
    $region16: #{mask_guided_sequence_embedding.1} parent=1 // pred_region
      _
    $region17: #{mask_guided_sequence_embedding.1} parent=1 // pred_fallthru
      _
    // Predicated region
    $region18: #{mask_guided_sequence_embedding.1} parent=1 // pred_check
      _
    $region19: #{mask_guided_sequence_embedding.1} parent=1 // pred_check_branch
      %39 = sbr.rel (0) target = $region21
    $region20: #{mask_guided_sequence_embedding.1} parent=1 // pred_region
      %s41 = ssub.s32 16, 16
      %42 = vsyncadd [#allocation3], %s41
      %s44 = sshll.u32 [#allocation2], 4
      %s45 = int_to_ptr.vmem [resolvable:$true] %s44
      %47 = dma.hbm_to_vmem [thread:$0]  %s4, 16, %s45, [#allocation3]
    $region21: #{mask_guided_sequence_embedding.1} parent=1 // pred_fallthru
      _
    // Predicated region
    $region22: #{mask_guided_sequence_embedding.1} parent=1 // pred_check
      _
    $region23: #{mask_guided_sequence_embedding.1} parent=1 // pred_check_branch
      %49 = sbr.rel (0) target = $region25
    $region24: #{mask_guided_sequence_embedding.1} parent=1 // pred_region
      _
    $region25: #{mask_guided_sequence_embedding.1} parent=1 // pred_fallthru
      _
    // Predicated region
    $region26: #{mask_guided_sequence_embedding.1} parent=1 // pred_check
      _
    $region27: #{mask_guided_sequence_embedding.1} parent=1 // pred_check_branch
      %51 = sbr.rel (0) target = $region29
    $region28: #{mask_guided_sequence_embedding.1} parent=1 // pred_region
      %s53 = ssub.s32 16, 16
      %54 = vsyncadd [#allocation5], %s53
      %s56 = sshll.u32 [#allocation4], 4
      %s57 = int_to_ptr.vmem [resolvable:$true] %s56
      %59 = dma.hbm_to_vmem [thread:$0]  %s6, 16, %s57, [#allocation5]
    $region29: #{mask_guided_sequence_embedding.1} parent=1 // pred_fallthru
      _
    // Predicated region
    $region30: #{mask_guided_sequence_embedding.1} parent=1 // pred_check
      _
    $region31: #{mask_guided_sequence_embedding.1} parent=1 // pred_check_branch
      %61 = sbr.rel (0) target = $region33
    $region32: #{mask_guided_sequence_embedding.1} parent=1 // pred_region
      _
    $region33: #{mask_guided_sequence_embedding.1} parent=1 // pred_fallthru
      _
    // Predicated region
    $region34: #{mask_guided_sequence_embedding.1} parent=1 // pred_check
      _
    $region35: #{mask_guided_sequence_embedding.1} parent=1 // pred_check_branch
      %63 = sbr.rel (0) target = $region37
    $region36: #{mask_guided_sequence_embedding.1} parent=1 // pred_region
      %s65 = ssub.s32 16, 16
      %66 = vsyncadd [#allocation5], %s65
      %s68 = sshll.u32 [#allocation6], 4
      %s69 = int_to_ptr.vmem [resolvable:$true] %s68
      %71 = dma.hbm_to_vmem [thread:$0]  %s8, 16, %s69, [#allocation5]
    $region37: #{mask_guided_sequence_embedding.1} parent=1 // pred_fallthru
      _
    // Predicated region
    $region38: #{mask_guided_sequence_embedding.1} parent=1 // pred_check
      _
    $region39: #{mask_guided_sequence_embedding.1} parent=1 // pred_check_branch
      %73 = sbr.rel (0) target = $region41
    $region40: #{mask_guided_sequence_embedding.1} parent=1 // pred_region
      %s75 = ssub.s32 6144, 6144
      %76 = vsyncadd [#allocation8], %s75
      %s77 = sshll.u32 [#allocation7], 4
      %s78 = int_to_ptr.vmem [resolvable:$true] %s77
      %83 = dma.hbm_to_vmem [thread:$0]  %s9, 6144, %s78, [#allocation8], 128, 128, 8
    $region41: #{mask_guided_sequence_embedding.1} parent=1 // pred_fallthru
      _
    // Predicated region
    $region42: #{mask_guided_sequence_embedding.1} parent=1 // pred_check
      _
    $region43: #{mask_guided_sequence_embedding.1} parent=1 // pred_check_branch
      %85 = sbr.rel (0) target = $region45
    $region44: #{mask_guided_sequence_embedding.1} parent=1 // pred_region
      %s87 = ssub.s32 6144, 6144
      %88 = vsyncadd [#allocation8], %s87
      %s89 = sshll.u32 [#allocation9], 4
      %s90 = int_to_ptr.vmem [resolvable:$true] %s89
      %95 = dma.hbm_to_vmem [thread:$0]  %s10, 6144, %s90, [#allocation8], 128, 128, 8
    $region45: #{mask_guided_sequence_embedding.1} parent=1 // pred_fallthru
      _
    // Predicated region
    $region46: #{mask_guided_sequence_embedding.1} parent=1 // pred_check
      _
    $region47: #{mask_guided_sequence_embedding.1} parent=1 // pred_check_branch
      %97 = sbr.rel (0) target = $region49
    $region48: #{mask_guided_sequence_embedding.1} parent=1 // pred_region
      %s99 = ssub.s32 6144, 6144
      %100 = vsyncadd [#allocation11], %s99
      %s101 = sshll.u32 [#allocation10], 4
      %s102 = int_to_ptr.vmem [resolvable:$true] %s101
      %107 = dma.hbm_to_vmem [thread:$0]  %s11, 6144, %s102, [#allocation11], 128, 128, 8
    $region49: #{mask_guided_sequence_embedding.1} parent=1 // pred_fallthru
      _
    // Predicated region
    $region50: #{mask_guided_sequence_embedding.1} parent=1 // pred_check
      _
    $region51: #{mask_guided_sequence_embedding.1} parent=1 // pred_check_branch
      %109 = sbr.rel (0) target = $region53
    $region52: #{mask_guided_sequence_embedding.1} parent=1 // pred_region
      %s111 = ssub.s32 48, 48
      %112 = vsyncadd [#allocation11], %s111
      %s113 = sshll.u32 [#allocation12], 4
      %s114 = int_to_ptr.vmem [resolvable:$true] %s113
      %119 = dma.hbm_to_vmem [thread:$0]  %s12, 48, %s114, [#allocation11], 16, 16, 1
    $region53: #{mask_guided_sequence_embedding.1} parent=1 // pred_fallthru
      _
    // Predicated region
    $region54: #{mask_guided_sequence_embedding.1} parent=1 // pred_check
      _
    $region55: #{mask_guided_sequence_embedding.1} parent=1 // pred_check_branch
      %121 = sbr.rel (0) target = $region57
    $region56: #{mask_guided_sequence_embedding.1} parent=1 // pred_region
      %s123 = ssub.s32 48, 48
      %124 = vsyncadd [#allocation14], %s123
      %s125 = sshll.u32 [#allocation13], 4
      %s126 = int_to_ptr.vmem [resolvable:$true] %s125
      %131 = dma.hbm_to_vmem [thread:$0]  %s13, 48, %s126, [#allocation14], 16, 16, 1
    $region57: #{mask_guided_sequence_embedding.1} parent=1 // pred_fallthru
      _
    // Predicated region
    $region58: #{mask_guided_sequence_embedding.1} parent=1 // pred_check
      _
    $region59: #{mask_guided_sequence_embedding.1} parent=1 // pred_check_branch
      %133 = sbr.rel (0) target = $region61
    $region60: #{mask_guided_sequence_embedding.1} parent=1 // pred_region
      %s135 = ssub.s32 48, 48
      %136 = vsyncadd [#allocation14], %s135
      %s137 = sshll.u32 [#allocation15], 4
      %s138 = int_to_ptr.vmem [resolvable:$true] %s137
      %143 = dma.hbm_to_vmem [thread:$0]  %s14, 48, %s138, [#allocation14], 16, 16, 1
    $region61: #{mask_guided_sequence_embedding.1} parent=1 // pred_fallthru
      _
    // Predicated region
    $region62: #{mask_guided_sequence_embedding.1} parent=1 // pred_check
      _
    $region63: #{mask_guided_sequence_embedding.1} parent=1 // pred_check_branch
      %145 = sbr.rel (0) target = $region65
    $region64: #{mask_guided_sequence_embedding.1} parent=1 // pred_region
      _
    $region65: #{mask_guided_sequence_embedding.1} parent=1 // pred_fallthru
      _
    // Predicated region
    $region66: #{mask_guided_sequence_embedding.1} parent=1 // pred_check
      _
    $region67: #{mask_guided_sequence_embedding.1} parent=1 // pred_check_branch
      %147 = sbr.rel (0) target = $region69
    $region68: #{mask_guided_sequence_embedding.1} parent=1 // pred_region
      %s149 = ssub.s32 48, 48
      %150 = vsyncadd [#allocation17], %s149
      %s151 = sshll.u32 [#allocation16], 4
      %s152 = int_to_ptr.vmem [resolvable:$true] %s151
      %157 = dma.hbm_to_vmem [thread:$0]  %s16, 48, %s152, [#allocation17], 16, 16, 1
    $region69: #{mask_guided_sequence_embedding.1} parent=1 // pred_fallthru
      _
    // Predicated region
    $region70: #{mask_guided_sequence_embedding.1} parent=1 // pred_check
      _
    $region71: #{mask_guided_sequence_embedding.1} parent=1 // pred_check_branch
      %159 = sbr.rel (0) target = $region73
    $region72: #{mask_guided_sequence_embedding.1} parent=1 // pred_region
      %160 = dma.done [#allocation3], 16
    $region73: #{mask_guided_sequence_embedding.1} parent=1 // pred_fallthru
      _
    // Predicated region
    $region74: #{mask_guided_sequence_embedding.1} parent=1 // pred_check
      _
    $region75: #{mask_guided_sequence_embedding.1} parent=1 // pred_check_branch
      %162 = sbr.rel (0) target = $region77
    $region76: #{mask_guided_sequence_embedding.1} parent=1 // pred_region
      %163 = dma.done [#allocation5], 16
    $region77: #{mask_guided_sequence_embedding.1} parent=1 // pred_fallthru
      _
    // Predicated region
    $region78: #{mask_guided_sequence_embedding.1} parent=1 // pred_check
      _
    $region79: #{mask_guided_sequence_embedding.1} parent=1 // pred_check_branch
      %165 = sbr.rel (0) target = $region81
    $region80: #{mask_guided_sequence_embedding.1} parent=1 // pred_region
      %166 = dma.done [#allocation5], 16
    $region81: #{mask_guided_sequence_embedding.1} parent=1 // pred_fallthru
      _
    // Predicated region
    $region82: #{mask_guided_sequence_embedding.1} parent=1 // pred_check
      _
    $region83: #{mask_guided_sequence_embedding.1} parent=1 // pred_check_branch
      %168 = sbr.rel (0) target = $region85
    $region84: #{mask_guided_sequence_embedding.1} parent=1 // pred_region
      %169 = dma.done [#allocation8], 6144
    $region85: #{mask_guided_sequence_embedding.1} parent=1 // pred_fallthru
      _
    // Predicated region
    $region86: #{mask_guided_sequence_embedding.1} parent=1 // pred_check
      _
    $region87: #{mask_guided_sequence_embedding.1} parent=1 // pred_check_branch
      %171 = sbr.rel (0) target = $region89
    $region88: #{mask_guided_sequence_embedding.1} parent=1 // pred_region
      %172 = dma.done [#allocation8], 6144
    $region89: #{mask_guided_sequence_embedding.1} parent=1 // pred_fallthru
      _
    // Predicated region
    $region90: #{mask_guided_sequence_embedding.1} parent=1 // pred_check
      _
    $region91: #{mask_guided_sequence_embedding.1} parent=1 // pred_check_branch
      %174 = sbr.rel (0) target = $region93
    $region92: #{mask_guided_sequence_embedding.1} parent=1 // pred_region
      %175 = dma.done [#allocation11], 6144
    $region93: #{mask_guided_sequence_embedding.1} parent=1 // pred_fallthru
      _
    // Predicated region
    $region94: #{mask_guided_sequence_embedding.1} parent=1 // pred_check
      _
    $region95: #{mask_guided_sequence_embedding.1} parent=1 // pred_check_branch
      %177 = sbr.rel (0) target = $region97
    $region96: #{mask_guided_sequence_embedding.1} parent=1 // pred_region
      %178 = dma.done [#allocation11], 48
    $region97: #{mask_guided_sequence_embedding.1} parent=1 // pred_fallthru
      _
    // Predicated region
    $region98: #{mask_guided_sequence_embedding.1} parent=1 // pred_check
      _
    $region99: #{mask_guided_sequence_embedding.1} parent=1 // pred_check_branch
      %180 = sbr.rel (0) target = $region101
    $region100: #{mask_guided_sequence_embedding.1} parent=1 // pred_region
      %181 = dma.done [#allocation14], 48
    $region101: #{mask_guided_sequence_embedding.1} parent=1 // pred_fallthru
      _
    // Predicated region
    $region102: #{mask_guided_sequence_embedding.1} parent=1 // pred_check
      _
    $region103: #{mask_guided_sequence_embedding.1} parent=1 // pred_check_branch
      %183 = sbr.rel (0) target = $region105
    $region104: #{mask_guided_sequence_embedding.1} parent=1 // pred_region
      %184 = dma.done [#allocation14], 48
    $region105: #{mask_guided_sequence_embedding.1} parent=1 // pred_fallthru
      _
    // Predicated region
    $region106: #{mask_guided_sequence_embedding.1} parent=1 // pred_check
      _
    $region107: #{mask_guided_sequence_embedding.1} parent=1 // pred_check_branch
      %186 = sbr.rel (0) target = $region109
    $region108: #{mask_guided_sequence_embedding.1} parent=1 // pred_region
      %187 = dma.done [#allocation17], 48
    $region109: #{mask_guided_sequence_embedding.1} parent=1 // pred_fallthru
      _
    %v188 = vld [vmem:[%s2] sm:$0xff]
    %v189 = vld [vmem:[%s2 + $0x8] sm:$0xff]
    %v190 = vld [vmem:[%s3] sm:$0xff]
    %v191 = vld [vmem:[#allocation2] sm:$0x1]
    %v193 = vlaneseq
    %v194 = vshrl.u32 %v193, 7
    %v195 = vsub.s32 0, %v194
    %v196 = vrot.slane %v191, %v195
    %vm198 = vcmask 64512
    %v200 = vsel %vm198, %v188, 0
    %v203 = vsel %vm198, %v189, 0
    %205 = vmatprep.subr.mxu0 0.0
    %206 = vmatpush1.msra.mxu0 %v190
    %207 = vmatprep.subr.mxu0 0.0
    %208 = vmatpush1.msra.mxu0 0.0
    %209 = vmatprep.subr.mxu0 0.0
    %210 = vmatpush1.msra.mxu0 0.0
    %211 = vmatprep.subr.mxu0 0.0
    %212 = vmatpush1.msra.mxu0 0.0
    %213 = vmatprep.subr.mxu0 0.0
    %214 = vmatpush1.msra.mxu0 0.0
    %215 = vmatprep.subr.mxu0 0.0
    %216 = vmatpush1.msra.mxu0 0.0
    %217 = vmatprep.subr.mxu0 0.0
    %218 = vmatpush1.msra.mxu0 0.0
    %219 = vmatprep.subr.mxu0 0.0
    %220 = vmatpush1.msra.mxu0 0.0
    %221 = vmatprep.subr.mxu0 0.0
    %222 = vmatpush1.msra.mxu0 0.0
    %223 = vmatprep.subr.mxu0 0.0
    %224 = vmatpush1.msra.mxu0 0.0
    %225 = vmatprep.subr.mxu0 0.0
    %226 = vmatpush1.msra.mxu0 0.0
    %227 = vmatprep.subr.mxu0 0.0
    %228 = vmatpush1.msra.mxu0 0.0
    %229 = vmatprep.subr.mxu0 0.0
    %230 = vmatpush1.msra.mxu0 0.0
    %231 = vmatprep.subr.mxu0 0.0
    %232 = vmatpush1.msra.mxu0 0.0
    %233 = vmatprep.subr.mxu0 0.0
    %234 = vmatpush1.msra.mxu0 0.0
    %235 = vmatprep.subr.mxu0 0.0
    %236 = vmatpush1.msra.mxu0 0.0
    %237 = vmatprep.subr.mxu0 0.0
    %238 = vmatpush1.msra.mxu0 0.0
    %239 = vmatprep.subr.mxu0 0.0
    %240 = vmatpush1.msra.mxu0 0.0
    %241 = vmatprep.subr.mxu0 0.0
    %242 = vmatpush1.msra.mxu0 0.0
    %243 = vmatprep.subr.mxu0 0.0
    %244 = vmatpush1.msra.mxu0 0.0
    %245 = vmatprep.subr.mxu0 0.0
    %246 = vmatpush1.msra.mxu0 0.0
    %247 = vmatprep.subr.mxu0 0.0
    %248 = vmatpush1.msra.mxu0 0.0
    %249 = vmatprep.subr.mxu0 0.0
    %250 = vmatpush1.msra.mxu0 0.0
    %251 = vmatprep.subr.mxu0 0.0
    %252 = vmatpush1.msra.mxu0 0.0
    %253 = vmatprep.subr.mxu0 0.0
    %254 = vmatpush1.msra.mxu0 0.0
    %255 = vmatprep.subr.mxu0 0.0
    %256 = vmatpush1.msra.mxu0 0.0
    %257 = vmatprep.subr.mxu0 0.0
    %258 = vmatpush1.msra.mxu0 0.0
    %259 = vmatprep.subr.mxu0 0.0
    %260 = vmatpush1.msra.mxu0 0.0
    %261 = vmatprep.subr.mxu0 0.0
    %262 = vmatpush1.msra.mxu0 0.0
    %263 = vmatprep.subr.mxu0 0.0
    %264 = vmatpush1.msra.mxu0 0.0
    %265 = vmatprep.subr.mxu0 0.0
    %266 = vmatpush1.msra.mxu0 0.0
    %267 = vmatprep.subr.mxu0 0.0
    %268 = vmatpush1.msra.mxu0 0.0
    %269 = vmatprep.mubr.f32.mxu0 0.0
    %270 = vmatmul.mubr.f32.gmra.mrb[0].mxu0 %v200
    %v271 = vpop.f32.mrb[0].mxu0
    %v272 = vadd.f32 %v196, %v271
    %v273 = vpop.f32.mrb[0].mxu0
    %274 = vmatprep.mubr.f32.mxu0 0.0
    %275 = vmatmul.mubr.f32.gmra.mrb[0].mxu0 %v203
    %v276 = vpop.f32.mrb[0].mxu0
    %v277 = vadd.f32 %v196, %v276
    %v278 = vpop.f32.mrb[0].mxu0
    %279 = vdwg.mxu0
    %v280 = vtanh.pop %v272
    %v281 = vtanh.pop %v277
    %v282 = vld [vmem:[%s0] sm:$0xff]
    %v283 = vld [vmem:[%s0 + $0x8] sm:$0xff]
    %v284 = vld [vmem:[%s5] sm:$0xff]
    %v285 = vld [vmem:[%s5 + $0x8] sm:$0xff]
    %v286 = vld [vmem:[#allocation4] sm:$0x1]
    %v288 = vlaneseq
    %v289 = vshrl.u32 %v288, 7
    %v290 = vsub.s32 0, %v289
    %v291 = vrot.slane %v286, %v290
    %vm293 = vcmask 130048
    %v295 = vsel %vm293, %v282, 0
    %v298 = vsel %vm293, %v283, 0
    %300 = vmatprep.subr.mxu0 0.0
    %301 = vmatpush1.msra.mxu0 %v284
    %302 = vmatprep.subr.mxu0 0.0
    %303 = vmatpush1.msra.mxu0 %v285
    %304 = vmatprep.subr.mxu0 0.0
    %305 = vmatpush1.msra.mxu0 0.0
    %306 = vmatprep.subr.mxu0 0.0
    %307 = vmatpush1.msra.mxu0 0.0
    %308 = vmatprep.subr.mxu0 0.0
    %309 = vmatpush1.msra.mxu0 0.0
    %310 = vmatprep.subr.mxu0 0.0
    %311 = vmatpush1.msra.mxu0 0.0
    %312 = vmatprep.subr.mxu0 0.0
    %313 = vmatpush1.msra.mxu0 0.0
    %314 = vmatprep.subr.mxu0 0.0
    %315 = vmatpush1.msra.mxu0 0.0
    %316 = vmatprep.subr.mxu0 0.0
    %317 = vmatpush1.msra.mxu0 0.0
    %318 = vmatprep.subr.mxu0 0.0
    %319 = vmatpush1.msra.mxu0 0.0
    %320 = vmatprep.subr.mxu0 0.0
    %321 = vmatpush1.msra.mxu0 0.0
    %322 = vmatprep.subr.mxu0 0.0
    %323 = vmatpush1.msra.mxu0 0.0
    %324 = vmatprep.subr.mxu0 0.0
    %325 = vmatpush1.msra.mxu0 0.0
    %326 = vmatprep.subr.mxu0 0.0
    %327 = vmatpush1.msra.mxu0 0.0
    %328 = vmatprep.subr.mxu0 0.0
    %329 = vmatpush1.msra.mxu0 0.0
    %330 = vmatprep.subr.mxu0 0.0
    %331 = vmatpush1.msra.mxu0 0.0
    %332 = vmatprep.subr.mxu0 0.0
    %333 = vmatpush1.msra.mxu0 0.0
    %334 = vmatprep.subr.mxu0 0.0
    %335 = vmatpush1.msra.mxu0 0.0
    %336 = vmatprep.subr.mxu0 0.0
    %337 = vmatpush1.msra.mxu0 0.0
    %338 = vmatprep.subr.mxu0 0.0
    %339 = vmatpush1.msra.mxu0 0.0
    %340 = vmatprep.subr.mxu0 0.0
    %341 = vmatpush1.msra.mxu0 0.0
    %342 = vmatprep.subr.mxu0 0.0
    %343 = vmatpush1.msra.mxu0 0.0
    %344 = vmatprep.subr.mxu0 0.0
    %345 = vmatpush1.msra.mxu0 0.0
    %346 = vmatprep.subr.mxu0 0.0
    %347 = vmatpush1.msra.mxu0 0.0
    %348 = vmatprep.subr.mxu0 0.0
    %349 = vmatpush1.msra.mxu0 0.0
    %350 = vmatprep.subr.mxu0 0.0
    %351 = vmatpush1.msra.mxu0 0.0
    %352 = vmatprep.subr.mxu0 0.0
    %353 = vmatpush1.msra.mxu0 0.0
    %354 = vmatprep.subr.mxu0 0.0
    %355 = vmatpush1.msra.mxu0 0.0
    %356 = vmatprep.subr.mxu0 0.0
    %357 = vmatpush1.msra.mxu0 0.0
    %358 = vmatprep.subr.mxu0 0.0
    %359 = vmatpush1.msra.mxu0 0.0
    %360 = vmatprep.subr.mxu0 0.0
    %361 = vmatpush1.msra.mxu0 0.0
    %362 = vmatprep.subr.mxu0 0.0
    %363 = vmatpush1.msra.mxu0 0.0
    %364 = vmatprep.mubr.f32.mxu0 0.0
    %365 = vmatmul.mubr.f32.gmra.mrb[0].mxu0 %v295
    %v366 = vpop.f32.mrb[0].mxu0
    %v367 = vadd.f32 %v291, %v366
    %v368 = vpop.f32.mrb[0].mxu0
    %369 = vmatprep.mubr.f32.mxu0 0.0
    %370 = vmatmul.mubr.f32.gmra.mrb[0].mxu0 %v298
    %v371 = vpop.f32.mrb[0].mxu0
    %v372 = vadd.f32 %v291, %v371
    %v373 = vpop.f32.mrb[0].mxu0
    %374 = vdwg.mxu0
    %v375 = vadd.f32 %v367, %v280
    %v376 = vadd.f32 %v372, %v281
    %v377 = vld [vmem:[%s1] sm:$0xff]
    %v378 = vld [vmem:[%s1 + $0x8] sm:$0xff]
    %v379 = vld [vmem:[%s7] sm:$0xff]
    %v380 = vld [vmem:[%s7 + $0x8] sm:$0xff]
    %v381 = vld [vmem:[#allocation6] sm:$0x1]
    %v383 = vlaneseq
    %v384 = vshrl.u32 %v383, 7
    %v385 = vsub.s32 0, %v384
    %v386 = vrot.slane %v381, %v385
    %v389 = vsel %vm293, %v377, 0
    %v392 = vsel %vm293, %v378, 0
    %394 = vmatprep.subr.mxu0 0.0
    %395 = vmatpush1.msra.mxu0 %v379
    %396 = vmatprep.subr.mxu0 0.0
    %397 = vmatpush1.msra.mxu0 %v380
    %398 = vmatprep.subr.mxu0 0.0
    %399 = vmatpush1.msra.mxu0 0.0
    %400 = vmatprep.subr.mxu0 0.0
    %401 = vmatpush1.msra.mxu0 0.0
    %402 = vmatprep.subr.mxu0 0.0
    %403 = vmatpush1.msra.mxu0 0.0
    %404 = vmatprep.subr.mxu0 0.0
    %405 = vmatpush1.msra.mxu0 0.0
    %406 = vmatprep.subr.mxu0 0.0
    %407 = vmatpush1.msra.mxu0 0.0
    %408 = vmatprep.subr.mxu0 0.0
    %409 = vmatpush1.msra.mxu0 0.0
    %410 = vmatprep.subr.mxu0 0.0
    %411 = vmatpush1.msra.mxu0 0.0
    %412 = vmatprep.subr.mxu0 0.0
    %413 = vmatpush1.msra.mxu0 0.0
    %414 = vmatprep.subr.mxu0 0.0
    %415 = vmatpush1.msra.mxu0 0.0
    %416 = vmatprep.subr.mxu0 0.0
    %417 = vmatpush1.msra.mxu0 0.0
    %418 = vmatprep.subr.mxu0 0.0
    %419 = vmatpush1.msra.mxu0 0.0
    %420 = vmatprep.subr.mxu0 0.0
    %421 = vmatpush1.msra.mxu0 0.0
    %422 = vmatprep.subr.mxu0 0.0
    %423 = vmatpush1.msra.mxu0 0.0
    %424 = vmatprep.subr.mxu0 0.0
    %425 = vmatpush1.msra.mxu0 0.0
    %426 = vmatprep.subr.mxu0 0.0
    %427 = vmatpush1.msra.mxu0 0.0
    %428 = vmatprep.subr.mxu0 0.0
    %429 = vmatpush1.msra.mxu0 0.0
    %430 = vmatprep.subr.mxu0 0.0
    %431 = vmatpush1.msra.mxu0 0.0
    %432 = vmatprep.subr.mxu0 0.0
    %433 = vmatpush1.msra.mxu0 0.0
    %434 = vmatprep.subr.mxu0 0.0
    %435 = vmatpush1.msra.mxu0 0.0
    %436 = vmatprep.subr.mxu0 0.0
    %437 = vmatpush1.msra.mxu0 0.0
    %438 = vmatprep.subr.mxu0 0.0
    %439 = vmatpush1.msra.mxu0 0.0
    %440 = vmatprep.subr.mxu0 0.0
    %441 = vmatpush1.msra.mxu0 0.0
    %442 = vmatprep.subr.mxu0 0.0
    %443 = vmatpush1.msra.mxu0 0.0
    %444 = vmatprep.subr.mxu0 0.0
    %445 = vmatpush1.msra.mxu0 0.0
    %446 = vmatprep.subr.mxu0 0.0
    %447 = vmatpush1.msra.mxu0 0.0
    %448 = vmatprep.subr.mxu0 0.0
    %449 = vmatpush1.msra.mxu0 0.0
    %450 = vmatprep.subr.mxu0 0.0
    %451 = vmatpush1.msra.mxu0 0.0
    %452 = vmatprep.subr.mxu0 0.0
    %453 = vmatpush1.msra.mxu0 0.0
    %454 = vmatprep.subr.mxu0 0.0
    %455 = vmatpush1.msra.mxu0 0.0
    %456 = vmatprep.subr.mxu0 0.0
    %457 = vmatpush1.msra.mxu0 0.0
    %458 = vmatprep.mubr.f32.mxu0 0.0
    %459 = vmatmul.mubr.f32.gmra.mrb[0].mxu0 %v389
    %v460 = vpop.f32.mrb[0].mxu0
    %v461 = vadd.f32 %v386, %v460
    %v462 = vpop.f32.mrb[0].mxu0
    %463 = vmatprep.mubr.f32.mxu0 0.0
    %464 = vmatmul.mubr.f32.gmra.mrb[0].mxu0 %v392
    %v465 = vpop.f32.mrb[0].mxu0
    %v466 = vadd.f32 %v386, %v465
    %v467 = vpop.f32.mrb[0].mxu0
    %468 = vdwg.mxu0
    %v469 = vadd.f32 %v461, %v280
    %v470 = vadd.f32 %v466, %v281
    %v471 = vld [vmem:[#allocation7] sm:$0xff]
    %v472 = vld [vmem:[#allocation7 + $0x8] sm:$0xff]
    %v473 = vld [vmem:[#allocation7 + $0x10] sm:$0xff]
    %v474 = vld [vmem:[#allocation7 + $0x18] sm:$0xff]
    %v475 = vld [vmem:[#allocation7 + $0x20] sm:$0xff]
    %v476 = vld [vmem:[#allocation7 + $0x28] sm:$0xff]
    %v477 = vld [vmem:[#allocation7 + $0x30] sm:$0xff]
    %v478 = vld [vmem:[#allocation7 + $0x38] sm:$0xff]
    %v479 = vld [vmem:[#allocation7 + $0x40] sm:$0xff]
    %v480 = vld [vmem:[#allocation7 + $0x48] sm:$0xff]
    %v481 = vld [vmem:[#allocation7 + $0x50] sm:$0xff]
    %v482 = vld [vmem:[#allocation7 + $0x58] sm:$0xff]
    %v483 = vld [vmem:[#allocation7 + $0x60] sm:$0xff]
    %v484 = vld [vmem:[#allocation7 + $0x68] sm:$0xff]
    %v485 = vld [vmem:[#allocation7 + $0x70] sm:$0xff]
    %v486 = vld [vmem:[#allocation7 + $0x78] sm:$0xff]
    %v487 = vld [vmem:[#allocation12] sm:$0x1]
    %v489 = vlaneseq
    %v490 = vshrl.u32 %v489, 7
    %v491 = vsub.s32 0, %v490
    %v492 = vrot.slane %v487, %v491
    %494 = vmatprep.subr.mxu0 0.0
    %495 = vmatpush1.msra.mxu0 %v471
    %496 = vmatprep.subr.mxu0 0.0
    %497 = vmatpush1.msra.mxu0 %v472
    %498 = vmatprep.subr.mxu0 0.0
    %499 = vmatpush1.msra.mxu0 %v473
    %500 = vmatprep.subr.mxu0 0.0
    %501 = vmatpush1.msra.mxu0 %v474
    %502 = vmatprep.subr.mxu0 0.0
    %503 = vmatpush1.msra.mxu0 %v475
    %504 = vmatprep.subr.mxu0 0.0
    %505 = vmatpush1.msra.mxu0 %v476
    %506 = vmatprep.subr.mxu0 0.0
    %507 = vmatpush1.msra.mxu0 %v477
    %508 = vmatprep.subr.mxu0 0.0
    %509 = vmatpush1.msra.mxu0 %v478
    %510 = vmatprep.subr.mxu0 0.0
    %511 = vmatpush1.msra.mxu0 %v479
    %512 = vmatprep.subr.mxu0 0.0
    %513 = vmatpush1.msra.mxu0 %v480
    %514 = vmatprep.subr.mxu0 0.0
    %515 = vmatpush1.msra.mxu0 %v481
    %516 = vmatprep.subr.mxu0 0.0
    %517 = vmatpush1.msra.mxu0 %v482
    %518 = vmatprep.subr.mxu0 0.0
    %519 = vmatpush1.msra.mxu0 %v483
    %520 = vmatprep.subr.mxu0 0.0
    %521 = vmatpush1.msra.mxu0 %v484
    %522 = vmatprep.subr.mxu0 0.0
    %523 = vmatpush1.msra.mxu0 %v485
    %524 = vmatprep.subr.mxu0 0.0
    %525 = vmatpush1.msra.mxu0 %v486
    %526 = vmatprep.subr.mxu0 0.0
    %527 = vmatpush1.msra.mxu0 0.0
    %528 = vmatprep.subr.mxu0 0.0
    %529 = vmatpush1.msra.mxu0 0.0
    %530 = vmatprep.subr.mxu0 0.0
    %531 = vmatpush1.msra.mxu0 0.0
    %532 = vmatprep.subr.mxu0 0.0
    %533 = vmatpush1.msra.mxu0 0.0
    %534 = vmatprep.subr.mxu0 0.0
    %535 = vmatpush1.msra.mxu0 0.0
    %536 = vmatprep.subr.mxu0 0.0
    %537 = vmatpush1.msra.mxu0 0.0
    %538 = vmatprep.subr.mxu0 0.0
    %539 = vmatpush1.msra.mxu0 0.0
    %540 = vmatprep.subr.mxu0 0.0
    %541 = vmatpush1.msra.mxu0 0.0
    %542 = vmatprep.subr.mxu0 0.0
    %543 = vmatpush1.msra.mxu0 0.0
    %544 = vmatprep.subr.mxu0 0.0
    %545 = vmatpush1.msra.mxu0 0.0
    %546 = vmatprep.subr.mxu0 0.0
    %547 = vmatpush1.msra.mxu0 0.0
    %548 = vmatprep.subr.mxu0 0.0
    %549 = vmatpush1.msra.mxu0 0.0
    %550 = vmatprep.subr.mxu0 0.0
    %551 = vmatpush1.msra.mxu0 0.0
    %552 = vmatprep.subr.mxu0 0.0
    %553 = vmatpush1.msra.mxu0 0.0
    %554 = vmatprep.subr.mxu0 0.0
    %555 = vmatpush1.msra.mxu0 0.0
    %556 = vmatprep.subr.mxu0 0.0
    %557 = vmatpush1.msra.mxu0 0.0
    %558 = vmatprep.mubr.f32.mxu0 0.0
    %559 = vmatmul.mubr.f32.gmra.mrb[0].mxu0 %v375
    %v560 = vpop.f32.mrb[0].mxu0
    %v561 = vadd.f32 %v492, %v560
    %v562 = vpop.f32.mrb[0].mxu0
    %563 = vmatprep.mubr.f32.mxu0 0.0
    %564 = vmatmul.mubr.f32.gmra.mrb[0].mxu0 %v376
    %v565 = vpop.f32.mrb[0].mxu0
    %v566 = vadd.f32 %v492, %v565
    %v567 = vpop.f32.mrb[0].mxu0
    %568 = vdwg.mxu0
    %v569 = vld [vmem:[#allocation9] sm:$0xff]
    %v570 = vld [vmem:[#allocation9 + $0x8] sm:$0xff]
    %v571 = vld [vmem:[#allocation9 + $0x10] sm:$0xff]
    %v572 = vld [vmem:[#allocation9 + $0x18] sm:$0xff]
    %v573 = vld [vmem:[#allocation9 + $0x20] sm:$0xff]
    %v574 = vld [vmem:[#allocation9 + $0x28] sm:$0xff]
    %v575 = vld [vmem:[#allocation9 + $0x30] sm:$0xff]
    %v576 = vld [vmem:[#allocation9 + $0x38] sm:$0xff]
    %v577 = vld [vmem:[#allocation9 + $0x40] sm:$0xff]
    %v578 = vld [vmem:[#allocation9 + $0x48] sm:$0xff]
    %v579 = vld [vmem:[#allocation9 + $0x50] sm:$0xff]
    %v580 = vld [vmem:[#allocation9 + $0x58] sm:$0xff]
    %v581 = vld [vmem:[#allocation9 + $0x60] sm:$0xff]
    %v582 = vld [vmem:[#allocation9 + $0x68] sm:$0xff]
    %v583 = vld [vmem:[#allocation9 + $0x70] sm:$0xff]
    %v584 = vld [vmem:[#allocation9 + $0x78] sm:$0xff]
    %v585 = vld [vmem:[#allocation13] sm:$0x1]
    %v587 = vlaneseq
    %v588 = vshrl.u32 %v587, 7
    %v589 = vsub.s32 0, %v588
    %v590 = vrot.slane %v585, %v589
    %592 = vmatprep.subr.mxu0 0.0
    %593 = vmatpush1.msra.mxu0 %v569
    %594 = vmatprep.subr.mxu0 0.0
    %595 = vmatpush1.msra.mxu0 %v570
    %596 = vmatprep.subr.mxu0 0.0
    %597 = vmatpush1.msra.mxu0 %v571
    %598 = vmatprep.subr.mxu0 0.0
    %599 = vmatpush1.msra.mxu0 %v572
    %600 = vmatprep.subr.mxu0 0.0
    %601 = vmatpush1.msra.mxu0 %v573
    %602 = vmatprep.subr.mxu0 0.0
    %603 = vmatpush1.msra.mxu0 %v574
    %604 = vmatprep.subr.mxu0 0.0
    %605 = vmatpush1.msra.mxu0 %v575
    %606 = vmatprep.subr.mxu0 0.0
    %607 = vmatpush1.msra.mxu0 %v576
    %608 = vmatprep.subr.mxu0 0.0
    %609 = vmatpush1.msra.mxu0 %v577
    %610 = vmatprep.subr.mxu0 0.0
    %611 = vmatpush1.msra.mxu0 %v578
    %612 = vmatprep.subr.mxu0 0.0
    %613 = vmatpush1.msra.mxu0 %v579
    %614 = vmatprep.subr.mxu0 0.0
    %615 = vmatpush1.msra.mxu0 %v580
    %616 = vmatprep.subr.mxu0 0.0
    %617 = vmatpush1.msra.mxu0 %v581
    %618 = vmatprep.subr.mxu0 0.0
    %619 = vmatpush1.msra.mxu0 %v582
    %620 = vmatprep.subr.mxu0 0.0
    %621 = vmatpush1.msra.mxu0 %v583
    %622 = vmatprep.subr.mxu0 0.0
    %623 = vmatpush1.msra.mxu0 %v584
    %624 = vmatprep.subr.mxu0 0.0
    %625 = vmatpush1.msra.mxu0 0.0
    %626 = vmatprep.subr.mxu0 0.0
    %627 = vmatpush1.msra.mxu0 0.0
    %628 = vmatprep.subr.mxu0 0.0
    %629 = vmatpush1.msra.mxu0 0.0
    %630 = vmatprep.subr.mxu0 0.0
    %631 = vmatpush1.msra.mxu0 0.0
    %632 = vmatprep.subr.mxu0 0.0
    %633 = vmatpush1.msra.mxu0 0.0
    %634 = vmatprep.subr.mxu0 0.0
    %635 = vmatpush1.msra.mxu0 0.0
    %636 = vmatprep.subr.mxu0 0.0
    %637 = vmatpush1.msra.mxu0 0.0
    %638 = vmatprep.subr.mxu0 0.0
    %639 = vmatpush1.msra.mxu0 0.0
    %640 = vmatprep.subr.mxu0 0.0
    %641 = vmatpush1.msra.mxu0 0.0
    %642 = vmatprep.subr.mxu0 0.0
    %643 = vmatpush1.msra.mxu0 0.0
    %644 = vmatprep.subr.mxu0 0.0
    %645 = vmatpush1.msra.mxu0 0.0
    %646 = vmatprep.subr.mxu0 0.0
    %647 = vmatpush1.msra.mxu0 0.0
    %648 = vmatprep.subr.mxu0 0.0
    %649 = vmatpush1.msra.mxu0 0.0
    %650 = vmatprep.subr.mxu0 0.0
    %651 = vmatpush1.msra.mxu0 0.0
    %652 = vmatprep.subr.mxu0 0.0
    %653 = vmatpush1.msra.mxu0 0.0
    %654 = vmatprep.subr.mxu0 0.0
    %655 = vmatpush1.msra.mxu0 0.0
    %656 = vmatprep.mubr.f32.mxu0 0.0
    %657 = vmatmul.mubr.f32.gmra.mrb[0].mxu0 %v375
    %v658 = vpop.f32.mrb[0].mxu0
    %v659 = vadd.f32 %v590, %v658
    %v660 = vpop.f32.mrb[0].mxu0
    %661 = vmatprep.mubr.f32.mxu0 0.0
    %662 = vmatmul.mubr.f32.gmra.mrb[0].mxu0 %v376
    %v663 = vpop.f32.mrb[0].mxu0
    %v664 = vadd.f32 %v590, %v663
    %v665 = vpop.f32.mrb[0].mxu0
    %666 = vdwg.mxu0
    %v667 = vld [vmem:[#allocation10] sm:$0xff]
    %v668 = vld [vmem:[#allocation10 + $0x8] sm:$0xff]
    %v669 = vld [vmem:[#allocation10 + $0x10] sm:$0xff]
    %v670 = vld [vmem:[#allocation10 + $0x18] sm:$0xff]
    %v671 = vld [vmem:[#allocation10 + $0x20] sm:$0xff]
    %v672 = vld [vmem:[#allocation10 + $0x28] sm:$0xff]
    %v673 = vld [vmem:[#allocation10 + $0x30] sm:$0xff]
    %v674 = vld [vmem:[#allocation10 + $0x38] sm:$0xff]
    %v675 = vld [vmem:[#allocation10 + $0x40] sm:$0xff]
    %v676 = vld [vmem:[#allocation10 + $0x48] sm:$0xff]
    %v677 = vld [vmem:[#allocation10 + $0x50] sm:$0xff]
    %v678 = vld [vmem:[#allocation10 + $0x58] sm:$0xff]
    %v679 = vld [vmem:[#allocation10 + $0x60] sm:$0xff]
    %v680 = vld [vmem:[#allocation10 + $0x68] sm:$0xff]
    %v681 = vld [vmem:[#allocation10 + $0x70] sm:$0xff]
    %v682 = vld [vmem:[#allocation10 + $0x78] sm:$0xff]
    %v683 = vld [vmem:[#allocation15] sm:$0x1]
    %v685 = vlaneseq
    %v686 = vshrl.u32 %v685, 7
    %v687 = vsub.s32 0, %v686
    %v688 = vrot.slane %v683, %v687
    %690 = vmatprep.subr.mxu0 0.0
    %691 = vmatpush1.msra.mxu0 %v667
    %692 = vmatprep.subr.mxu0 0.0
    %693 = vmatpush1.msra.mxu0 %v668
    %694 = vmatprep.subr.mxu0 0.0
    %695 = vmatpush1.msra.mxu0 %v669
    %696 = vmatprep.subr.mxu0 0.0
    %697 = vmatpush1.msra.mxu0 %v670
    %698 = vmatprep.subr.mxu0 0.0
    %699 = vmatpush1.msra.mxu0 %v671
    %700 = vmatprep.subr.mxu0 0.0
    %701 = vmatpush1.msra.mxu0 %v672
    %702 = vmatprep.subr.mxu0 0.0
    %703 = vmatpush1.msra.mxu0 %v673
    %704 = vmatprep.subr.mxu0 0.0
    %705 = vmatpush1.msra.mxu0 %v674
    %706 = vmatprep.subr.mxu0 0.0
    %707 = vmatpush1.msra.mxu0 %v675
    %708 = vmatprep.subr.mxu0 0.0
    %709 = vmatpush1.msra.mxu0 %v676
    %710 = vmatprep.subr.mxu0 0.0
    %711 = vmatpush1.msra.mxu0 %v677
    %712 = vmatprep.subr.mxu0 0.0
    %713 = vmatpush1.msra.mxu0 %v678
    %714 = vmatprep.subr.mxu0 0.0
    %715 = vmatpush1.msra.mxu0 %v679
    %716 = vmatprep.subr.mxu0 0.0
    %717 = vmatpush1.msra.mxu0 %v680
    %718 = vmatprep.subr.mxu0 0.0
    %719 = vmatpush1.msra.mxu0 %v681
    %720 = vmatprep.subr.mxu0 0.0
    %721 = vmatpush1.msra.mxu0 %v682
    %722 = vmatprep.subr.mxu0 0.0
    %723 = vmatpush1.msra.mxu0 0.0
    %724 = vmatprep.subr.mxu0 0.0
    %725 = vmatpush1.msra.mxu0 0.0
    %726 = vmatprep.subr.mxu0 0.0
    %727 = vmatpush1.msra.mxu0 0.0
    %728 = vmatprep.subr.mxu0 0.0
    %729 = vmatpush1.msra.mxu0 0.0
    %730 = vmatprep.subr.mxu0 0.0
    %731 = vmatpush1.msra.mxu0 0.0
    %732 = vmatprep.subr.mxu0 0.0
    %733 = vmatpush1.msra.mxu0 0.0
    %734 = vmatprep.subr.mxu0 0.0
    %735 = vmatpush1.msra.mxu0 0.0
    %736 = vmatprep.subr.mxu0 0.0
    %737 = vmatpush1.msra.mxu0 0.0
    %738 = vmatprep.subr.mxu0 0.0
    %739 = vmatpush1.msra.mxu0 0.0
    %740 = vmatprep.subr.mxu0 0.0
    %741 = vmatpush1.msra.mxu0 0.0
    %742 = vmatprep.subr.mxu0 0.0
    %743 = vmatpush1.msra.mxu0 0.0
    %744 = vmatprep.subr.mxu0 0.0
    %745 = vmatpush1.msra.mxu0 0.0
    %746 = vmatprep.subr.mxu0 0.0
    %747 = vmatpush1.msra.mxu0 0.0
    %748 = vmatprep.subr.mxu0 0.0
    %749 = vmatpush1.msra.mxu0 0.0
    %750 = vmatprep.subr.mxu0 0.0
    %751 = vmatpush1.msra.mxu0 0.0
    %752 = vmatprep.subr.mxu0 0.0
    %753 = vmatpush1.msra.mxu0 0.0
    %754 = vmatprep.mubr.f32.mxu0 0.0
    %755 = vmatmul.mubr.f32.gmra.mrb[0].mxu0 %v375
    %v756 = vpop.f32.mrb[0].mxu0
    %v757 = vadd.f32 %v688, %v756
    %v758 = vpop.f32.mrb[0].mxu0
    %759 = vmatprep.mubr.f32.mxu0 0.0
    %760 = vmatmul.mubr.f32.gmra.mrb[0].mxu0 %v376
    %v761 = vpop.f32.mrb[0].mxu0
    %v762 = vadd.f32 %v688, %v761
    %v763 = vpop.f32.mrb[0].mxu0
    %764 = vdwg.mxu0
    %v766 = vsel %vm198, %v561, 0
    %v769 = vsel %vm198, %v659, 0
    %771 = vmatprep.subr.mxu0 0.0
    %772 = vmatpush1.xpose.msra.mxu0 %v769
    %773 = vmatprep.subr.mxu0 0.0
    %774 = vmatpush1.xpose.msra.mxu0 0.0
    %775 = vmatprep.subr.mxu0 0.0
    %776 = vmatpush1.xpose.msra.mxu0 0.0
    %777 = vmatprep.subr.mxu0 0.0
    %778 = vmatpush1.xpose.msra.mxu0 0.0
    %779 = vmatprep.subr.mxu0 0.0
    %780 = vmatpush1.xpose.msra.mxu0 0.0
    %781 = vmatprep.subr.mxu0 0.0
    %782 = vmatpush1.xpose.msra.mxu0 0.0
    %783 = vmatprep.subr.mxu0 0.0
    %784 = vmatpush1.xpose.msra.mxu0 0.0
    %785 = vmatprep.subr.mxu0 0.0
    %786 = vmatpush1.xpose.msra.mxu0 0.0
    %787 = vmatprep.subr.mxu0 0.0
    %788 = vmatpush1.xpose.msra.mxu0 0.0
    %789 = vmatprep.subr.mxu0 0.0
    %790 = vmatpush1.xpose.msra.mxu0 0.0
    %791 = vmatprep.subr.mxu0 0.0
    %792 = vmatpush1.xpose.msra.mxu0 0.0
    %793 = vmatprep.subr.mxu0 0.0
    %794 = vmatpush1.xpose.msra.mxu0 0.0
    %795 = vmatprep.subr.mxu0 0.0
    %796 = vmatpush1.xpose.msra.mxu0 0.0
    %797 = vmatprep.subr.mxu0 0.0
    %798 = vmatpush1.xpose.msra.mxu0 0.0
    %799 = vmatprep.subr.mxu0 0.0
    %800 = vmatpush1.xpose.msra.mxu0 0.0
    %801 = vmatprep.subr.mxu0 0.0
    %802 = vmatpush1.xpose.msra.mxu0 0.0
    %803 = vmatprep.subr.mxu0 0.0
    %804 = vmatpush1.xpose.msra.mxu0 0.0
    %805 = vmatprep.subr.mxu0 0.0
    %806 = vmatpush1.xpose.msra.mxu0 0.0
    %807 = vmatprep.subr.mxu0 0.0
    %808 = vmatpush1.xpose.msra.mxu0 0.0
    %809 = vmatprep.subr.mxu0 0.0
    %810 = vmatpush1.xpose.msra.mxu0 0.0
    %811 = vmatprep.subr.mxu0 0.0
    %812 = vmatpush1.xpose.msra.mxu0 0.0
    %813 = vmatprep.subr.mxu0 0.0
    %814 = vmatpush1.xpose.msra.mxu0 0.0
    %815 = vmatprep.subr.mxu0 0.0
    %816 = vmatpush1.xpose.msra.mxu0 0.0
    %817 = vmatprep.subr.mxu0 0.0
    %818 = vmatpush1.xpose.msra.mxu0 0.0
    %819 = vmatprep.subr.mxu0 0.0
    %820 = vmatpush1.xpose.msra.mxu0 0.0
    %821 = vmatprep.subr.mxu0 0.0
    %822 = vmatpush1.xpose.msra.mxu0 0.0
    %823 = vmatprep.subr.mxu0 0.0
    %824 = vmatpush1.xpose.msra.mxu0 0.0
    %825 = vmatprep.subr.mxu0 0.0
    %826 = vmatpush1.xpose.msra.mxu0 0.0
    %827 = vmatprep.subr.mxu0 0.0
    %828 = vmatpush1.xpose.msra.mxu0 0.0
    %829 = vmatprep.subr.mxu0 0.0
    %830 = vmatpush1.xpose.msra.mxu0 0.0
    %831 = vmatprep.subr.mxu0 0.0
    %832 = vmatpush1.xpose.msra.mxu0 0.0
    %833 = vmatprep.subr.mxu0 0.0
    %834 = vmatpush1.xpose.msra.mxu0 0.0
    %835 = vmatprep.mubr.f32.mxu0 0.0
    %836 = vmatmul.mubr.f32.gmra.mrb[0].mxu0 %v766
    %v837 = vpop.f32.mrb[0].mxu0
    %v838 = vadd.f32 0.0, %v837
    %v839 = vpop.f32.mrb[0].mxu0
    %840 = vdwg.mxu0
    %v842 = vsel %vm198, %v566, 0
    %v845 = vsel %vm198, %v664, 0
    %847 = vmatprep.subr.mxu0 0.0
    %848 = vmatpush1.xpose.msra.mxu0 %v845
    %849 = vmatprep.subr.mxu0 0.0
    %850 = vmatpush1.xpose.msra.mxu0 0.0
    %851 = vmatprep.subr.mxu0 0.0
    %852 = vmatpush1.xpose.msra.mxu0 0.0
    %853 = vmatprep.subr.mxu0 0.0
    %854 = vmatpush1.xpose.msra.mxu0 0.0
    %855 = vmatprep.subr.mxu0 0.0
    %856 = vmatpush1.xpose.msra.mxu0 0.0
    %857 = vmatprep.subr.mxu0 0.0
    %858 = vmatpush1.xpose.msra.mxu0 0.0
    %859 = vmatprep.subr.mxu0 0.0
    %860 = vmatpush1.xpose.msra.mxu0 0.0
    %861 = vmatprep.subr.mxu0 0.0
    %862 = vmatpush1.xpose.msra.mxu0 0.0
    %863 = vmatprep.subr.mxu0 0.0
    %864 = vmatpush1.xpose.msra.mxu0 0.0
    %865 = vmatprep.subr.mxu0 0.0
    %866 = vmatpush1.xpose.msra.mxu0 0.0
    %867 = vmatprep.subr.mxu0 0.0
    %868 = vmatpush1.xpose.msra.mxu0 0.0
    %869 = vmatprep.subr.mxu0 0.0
    %870 = vmatpush1.xpose.msra.mxu0 0.0
    %871 = vmatprep.subr.mxu0 0.0
    %872 = vmatpush1.xpose.msra.mxu0 0.0
    %873 = vmatprep.subr.mxu0 0.0
    %874 = vmatpush1.xpose.msra.mxu0 0.0
    %875 = vmatprep.subr.mxu0 0.0
    %876 = vmatpush1.xpose.msra.mxu0 0.0
    %877 = vmatprep.subr.mxu0 0.0
    %878 = vmatpush1.xpose.msra.mxu0 0.0
    %879 = vmatprep.subr.mxu0 0.0
    %880 = vmatpush1.xpose.msra.mxu0 0.0
    %881 = vmatprep.subr.mxu0 0.0
    %882 = vmatpush1.xpose.msra.mxu0 0.0
    %883 = vmatprep.subr.mxu0 0.0
    %884 = vmatpush1.xpose.msra.mxu0 0.0
    %885 = vmatprep.subr.mxu0 0.0
    %886 = vmatpush1.xpose.msra.mxu0 0.0
    %887 = vmatprep.subr.mxu0 0.0
    %888 = vmatpush1.xpose.msra.mxu0 0.0
    %889 = vmatprep.subr.mxu0 0.0
    %890 = vmatpush1.xpose.msra.mxu0 0.0
    %891 = vmatprep.subr.mxu0 0.0
    %892 = vmatpush1.xpose.msra.mxu0 0.0
    %893 = vmatprep.subr.mxu0 0.0
    %894 = vmatpush1.xpose.msra.mxu0 0.0
    %895 = vmatprep.subr.mxu0 0.0
    %896 = vmatpush1.xpose.msra.mxu0 0.0
    %897 = vmatprep.subr.mxu0 0.0
    %898 = vmatpush1.xpose.msra.mxu0 0.0
    %899 = vmatprep.subr.mxu0 0.0
    %900 = vmatpush1.xpose.msra.mxu0 0.0
    %901 = vmatprep.subr.mxu0 0.0
    %902 = vmatpush1.xpose.msra.mxu0 0.0
    %903 = vmatprep.subr.mxu0 0.0
    %904 = vmatpush1.xpose.msra.mxu0 0.0
    %905 = vmatprep.subr.mxu0 0.0
    %906 = vmatpush1.xpose.msra.mxu0 0.0
    %907 = vmatprep.subr.mxu0 0.0
    %908 = vmatpush1.xpose.msra.mxu0 0.0
    %909 = vmatprep.subr.mxu0 0.0
    %910 = vmatpush1.xpose.msra.mxu0 0.0
    %911 = vmatprep.mubr.f32.mxu0 0.0
    %912 = vmatmul.mubr.f32.gmra.mrb[0].mxu0 %v842
    %v913 = vpop.f32.mrb[0].mxu0
    %v914 = vadd.f32 0.0, %v913
    %v915 = vpop.f32.mrb[0].mxu0
    %916 = vdwg.mxu0
    %v917 = vsel %vm198, %v838, -inf
    %918 = vmax.xlane.f32.xlu0 %v917
    %v919 = vpop.xlane.xlu0 %918
    %v920 = vsel %vm198, %v914, -inf
    %921 = vmax.xlane.f32.xlu0 %v920
    %v922 = vpop.xlane.xlu0 %921
    %v923 = vsub.f32 %v838, %v919
    %v924 = vsub.f32 %v914, %v922
    %v925 = vmul.f32 %v923, 1.442695
    %v926 = vpow.pop %v925
    %v927 = vmul.f32 %v924, 1.442695
    %v928 = vpow.pop %v927
    %v929 = vsel %vm198, %v926, 0.0
    %930 = vadd.xlane.f32.xlu0 %v929
    %v931 = vpop.xlane.xlu0 %930
    %v932 = vsel %vm198, %v928, 0.0
    %933 = vadd.xlane.f32.xlu0 %v932
    %v934 = vpop.xlane.xlu0 %933
    %v935 = vrcp.pop %v931
    %v936 = vmul.f32 %v926, %v935
    %v937 = vrcp.pop %v934
    %v938 = vmul.f32 %v928, %v937
    %v940 = vsel %vm198, %v936, 0
    %942 = vmatprep.subr.mxu0 0.0
    %943 = vmatpush1.msra.mxu0 %v757
    %944 = vmatprep.subr.mxu0 0.0
    %945 = vmatpush1.msra.mxu0 0.0
    %946 = vmatprep.subr.mxu0 0.0
    %947 = vmatpush1.msra.mxu0 0.0
    %948 = vmatprep.subr.mxu0 0.0
    %949 = vmatpush1.msra.mxu0 0.0
    %950 = vmatprep.subr.mxu0 0.0
    %951 = vmatpush1.msra.mxu0 0.0
    %952 = vmatprep.subr.mxu0 0.0
    %953 = vmatpush1.msra.mxu0 0.0
    %954 = vmatprep.subr.mxu0 0.0
    %955 = vmatpush1.msra.mxu0 0.0
    %956 = vmatprep.subr.mxu0 0.0
    %957 = vmatpush1.msra.mxu0 0.0
    %958 = vmatprep.subr.mxu0 0.0
    %959 = vmatpush1.msra.mxu0 0.0
    %960 = vmatprep.subr.mxu0 0.0
    %961 = vmatpush1.msra.mxu0 0.0
    %962 = vmatprep.subr.mxu0 0.0
    %963 = vmatpush1.msra.mxu0 0.0
    %964 = vmatprep.subr.mxu0 0.0
    %965 = vmatpush1.msra.mxu0 0.0
    %966 = vmatprep.subr.mxu0 0.0
    %967 = vmatpush1.msra.mxu0 0.0
    %968 = vmatprep.subr.mxu0 0.0
    %969 = vmatpush1.msra.mxu0 0.0
    %970 = vmatprep.subr.mxu0 0.0
    %971 = vmatpush1.msra.mxu0 0.0
    %972 = vmatprep.subr.mxu0 0.0
    %973 = vmatpush1.msra.mxu0 0.0
    %974 = vmatprep.subr.mxu0 0.0
    %975 = vmatpush1.msra.mxu0 0.0
    %976 = vmatprep.subr.mxu0 0.0
    %977 = vmatpush1.msra.mxu0 0.0
    %978 = vmatprep.subr.mxu0 0.0
    %979 = vmatpush1.msra.mxu0 0.0
    %980 = vmatprep.subr.mxu0 0.0
    %981 = vmatpush1.msra.mxu0 0.0
    %982 = vmatprep.subr.mxu0 0.0
    %983 = vmatpush1.msra.mxu0 0.0
    %984 = vmatprep.subr.mxu0 0.0
    %985 = vmatpush1.msra.mxu0 0.0
    %986 = vmatprep.subr.mxu0 0.0
    %987 = vmatpush1.msra.mxu0 0.0
    %988 = vmatprep.subr.mxu0 0.0
    %989 = vmatpush1.msra.mxu0 0.0
    %990 = vmatprep.subr.mxu0 0.0
    %991 = vmatpush1.msra.mxu0 0.0
    %992 = vmatprep.subr.mxu0 0.0
    %993 = vmatpush1.msra.mxu0 0.0
    %994 = vmatprep.subr.mxu0 0.0
    %995 = vmatpush1.msra.mxu0 0.0
    %996 = vmatprep.subr.mxu0 0.0
    %997 = vmatpush1.msra.mxu0 0.0
    %998 = vmatprep.subr.mxu0 0.0
    %999 = vmatpush1.msra.mxu0 0.0
    %1000 = vmatprep.subr.mxu0 0.0
    %1001 = vmatpush1.msra.mxu0 0.0
    %1002 = vmatprep.subr.mxu0 0.0
    %1003 = vmatpush1.msra.mxu0 0.0
    %1004 = vmatprep.subr.mxu0 0.0
    %1005 = vmatpush1.msra.mxu0 0.0
    %1006 = vmatprep.mubr.f32.mxu0 0.0
    %1007 = vmatmul.mubr.f32.gmra.mrb[0].mxu0 %v940
    %v1008 = vpop.f32.mrb[0].mxu0
    %v1009 = vadd.f32 0.0, %v1008
    %v1010 = vpop.f32.mrb[0].mxu0
    %1011 = vdwg.mxu0
    %v1013 = vsel %vm198, %v938, 0
    %1015 = vmatprep.subr.mxu0 0.0
    %1016 = vmatpush1.msra.mxu0 %v762
    %1017 = vmatprep.subr.mxu0 0.0
    %1018 = vmatpush1.msra.mxu0 0.0
    %1019 = vmatprep.subr.mxu0 0.0
    %1020 = vmatpush1.msra.mxu0 0.0
    %1021 = vmatprep.subr.mxu0 0.0
    %1022 = vmatpush1.msra.mxu0 0.0
    %1023 = vmatprep.subr.mxu0 0.0
    %1024 = vmatpush1.msra.mxu0 0.0
    %1025 = vmatprep.subr.mxu0 0.0
    %1026 = vmatpush1.msra.mxu0 0.0
    %1027 = vmatprep.subr.mxu0 0.0
    %1028 = vmatpush1.msra.mxu0 0.0
    %1029 = vmatprep.subr.mxu0 0.0
    %1030 = vmatpush1.msra.mxu0 0.0
    %1031 = vmatprep.subr.mxu0 0.0
    %1032 = vmatpush1.msra.mxu0 0.0
    %1033 = vmatprep.subr.mxu0 0.0
    %1034 = vmatpush1.msra.mxu0 0.0
    %1035 = vmatprep.subr.mxu0 0.0
    %1036 = vmatpush1.msra.mxu0 0.0
    %1037 = vmatprep.subr.mxu0 0.0
    %1038 = vmatpush1.msra.mxu0 0.0
    %1039 = vmatprep.subr.mxu0 0.0
    %1040 = vmatpush1.msra.mxu0 0.0
    %1041 = vmatprep.subr.mxu0 0.0
    %1042 = vmatpush1.msra.mxu0 0.0
    %1043 = vmatprep.subr.mxu0 0.0
    %1044 = vmatpush1.msra.mxu0 0.0
    %1045 = vmatprep.subr.mxu0 0.0
    %1046 = vmatpush1.msra.mxu0 0.0
    %1047 = vmatprep.subr.mxu0 0.0
    %1048 = vmatpush1.msra.mxu0 0.0
    %1049 = vmatprep.subr.mxu0 0.0
    %1050 = vmatpush1.msra.mxu0 0.0
    %1051 = vmatprep.subr.mxu0 0.0
    %1052 = vmatpush1.msra.mxu0 0.0
    %1053 = vmatprep.subr.mxu0 0.0
    %1054 = vmatpush1.msra.mxu0 0.0
    %1055 = vmatprep.subr.mxu0 0.0
    %1056 = vmatpush1.msra.mxu0 0.0
    %1057 = vmatprep.subr.mxu0 0.0
    %1058 = vmatpush1.msra.mxu0 0.0
    %1059 = vmatprep.subr.mxu0 0.0
    %1060 = vmatpush1.msra.mxu0 0.0
    %1061 = vmatprep.subr.mxu0 0.0
    %1062 = vmatpush1.msra.mxu0 0.0
    %1063 = vmatprep.subr.mxu0 0.0
    %1064 = vmatpush1.msra.mxu0 0.0
    %1065 = vmatprep.subr.mxu0 0.0
    %1066 = vmatpush1.msra.mxu0 0.0
    %1067 = vmatprep.subr.mxu0 0.0
    %1068 = vmatpush1.msra.mxu0 0.0
    %1069 = vmatprep.subr.mxu0 0.0
    %1070 = vmatpush1.msra.mxu0 0.0
    %1071 = vmatprep.subr.mxu0 0.0
    %1072 = vmatpush1.msra.mxu0 0.0
    %1073 = vmatprep.subr.mxu0 0.0
    %1074 = vmatpush1.msra.mxu0 0.0
    %1075 = vmatprep.subr.mxu0 0.0
    %1076 = vmatpush1.msra.mxu0 0.0
    %1077 = vmatprep.subr.mxu0 0.0
    %1078 = vmatpush1.msra.mxu0 0.0
    %1079 = vmatprep.mubr.f32.mxu0 0.0
    %1080 = vmatmul.mubr.f32.gmra.mrb[0].mxu0 %v1013
    %v1081 = vpop.f32.mrb[0].mxu0
    %v1082 = vadd.f32 0.0, %v1081
    %v1083 = vpop.f32.mrb[0].mxu0
    %1084 = vdwg.mxu0
    %1085 = vrot.lane.b32.xlu0 %v561, 120
    %v1086 = vpop.permute.xlu0 %1085
    %1087 = vrot.lane.b32.xlu0 %v659, 120
    %v1088 = vpop.permute.xlu0 %1087
    %v1089 = vsel %vm198, %v1086, 0
    %v1091 = vsel %vm198, %v1088, 0
    %1093 = vmatprep.subr.mxu0 0.0
    %1094 = vmatpush1.xpose.msra.mxu0 %v1091
    %1095 = vmatprep.subr.mxu0 0.0
    %1096 = vmatpush1.xpose.msra.mxu0 0.0
    %1097 = vmatprep.subr.mxu0 0.0
    %1098 = vmatpush1.xpose.msra.mxu0 0.0
    %1099 = vmatprep.subr.mxu0 0.0
    %1100 = vmatpush1.xpose.msra.mxu0 0.0
    %1101 = vmatprep.subr.mxu0 0.0
    %1102 = vmatpush1.xpose.msra.mxu0 0.0
    %1103 = vmatprep.subr.mxu0 0.0
    %1104 = vmatpush1.xpose.msra.mxu0 0.0
    %1105 = vmatprep.subr.mxu0 0.0
    %1106 = vmatpush1.xpose.msra.mxu0 0.0
    %1107 = vmatprep.subr.mxu0 0.0
    %1108 = vmatpush1.xpose.msra.mxu0 0.0
    %1109 = vmatprep.subr.mxu0 0.0
    %1110 = vmatpush1.xpose.msra.mxu0 0.0
    %1111 = vmatprep.subr.mxu0 0.0
    %1112 = vmatpush1.xpose.msra.mxu0 0.0
    %1113 = vmatprep.subr.mxu0 0.0
    %1114 = vmatpush1.xpose.msra.mxu0 0.0
    %1115 = vmatprep.subr.mxu0 0.0
    %1116 = vmatpush1.xpose.msra.mxu0 0.0
    %1117 = vmatprep.subr.mxu0 0.0
    %1118 = vmatpush1.xpose.msra.mxu0 0.0
    %1119 = vmatprep.subr.mxu0 0.0
    %1120 = vmatpush1.xpose.msra.mxu0 0.0
    %1121 = vmatprep.subr.mxu0 0.0
    %1122 = vmatpush1.xpose.msra.mxu0 0.0
    %1123 = vmatprep.subr.mxu0 0.0
    %1124 = vmatpush1.xpose.msra.mxu0 0.0
    %1125 = vmatprep.subr.mxu0 0.0
    %1126 = vmatpush1.xpose.msra.mxu0 0.0
    %1127 = vmatprep.subr.mxu0 0.0
    %1128 = vmatpush1.xpose.msra.mxu0 0.0
    %1129 = vmatprep.subr.mxu0 0.0
    %1130 = vmatpush1.xpose.msra.mxu0 0.0
    %1131 = vmatprep.subr.mxu0 0.0
    %1132 = vmatpush1.xpose.msra.mxu0 0.0
    %1133 = vmatprep.subr.mxu0 0.0
    %1134 = vmatpush1.xpose.msra.mxu0 0.0
    %1135 = vmatprep.subr.mxu0 0.0
    %1136 = vmatpush1.xpose.msra.mxu0 0.0
    %1137 = vmatprep.subr.mxu0 0.0
    %1138 = vmatpush1.xpose.msra.mxu0 0.0
    %1139 = vmatprep.subr.mxu0 0.0
    %1140 = vmatpush1.xpose.msra.mxu0 0.0
    %1141 = vmatprep.subr.mxu0 0.0
    %1142 = vmatpush1.xpose.msra.mxu0 0.0
    %1143 = vmatprep.subr.mxu0 0.0
    %1144 = vmatpush1.xpose.msra.mxu0 0.0
    %1145 = vmatprep.subr.mxu0 0.0
    %1146 = vmatpush1.xpose.msra.mxu0 0.0
    %1147 = vmatprep.subr.mxu0 0.0
    %1148 = vmatpush1.xpose.msra.mxu0 0.0
    %1149 = vmatprep.subr.mxu0 0.0
    %1150 = vmatpush1.xpose.msra.mxu0 0.0
    %1151 = vmatprep.subr.mxu0 0.0
    %1152 = vmatpush1.xpose.msra.mxu0 0.0
    %1153 = vmatprep.subr.mxu0 0.0
    %1154 = vmatpush1.xpose.msra.mxu0 0.0
    %1155 = vmatprep.subr.mxu0 0.0
    %1156 = vmatpush1.xpose.msra.mxu0 0.0
    %1157 = vmatprep.mubr.f32.mxu0 0.0
    %1158 = vmatmul.mubr.f32.gmra.mrb[0].mxu0 %v1089
    %v1159 = vpop.f32.mrb[0].mxu0
    %v1160 = vadd.f32 0.0, %v1159
    %v1161 = vpop.f32.mrb[0].mxu0
    %1162 = vdwg.mxu0
    %1163 = vrot.lane.b32.xlu0 %v566, 120
    %v1164 = vpop.permute.xlu0 %1163
    %1165 = vrot.lane.b32.xlu0 %v664, 120
    %v1166 = vpop.permute.xlu0 %1165
    %v1167 = vsel %vm198, %v1164, 0
    %v1169 = vsel %vm198, %v1166, 0
    %1171 = vmatprep.subr.mxu0 0.0
    %1172 = vmatpush1.xpose.msra.mxu0 %v1169
    %1173 = vmatprep.subr.mxu0 0.0
    %1174 = vmatpush1.xpose.msra.mxu0 0.0
    %1175 = vmatprep.subr.mxu0 0.0
    %1176 = vmatpush1.xpose.msra.mxu0 0.0
    %1177 = vmatprep.subr.mxu0 0.0
    %1178 = vmatpush1.xpose.msra.mxu0 0.0
    %1179 = vmatprep.subr.mxu0 0.0
    %1180 = vmatpush1.xpose.msra.mxu0 0.0
    %1181 = vmatprep.subr.mxu0 0.0
    %1182 = vmatpush1.xpose.msra.mxu0 0.0
    %1183 = vmatprep.subr.mxu0 0.0
    %1184 = vmatpush1.xpose.msra.mxu0 0.0
    %1185 = vmatprep.subr.mxu0 0.0
    %1186 = vmatpush1.xpose.msra.mxu0 0.0
    %1187 = vmatprep.subr.mxu0 0.0
    %1188 = vmatpush1.xpose.msra.mxu0 0.0
    %1189 = vmatprep.subr.mxu0 0.0
    %1190 = vmatpush1.xpose.msra.mxu0 0.0
    %1191 = vmatprep.subr.mxu0 0.0
    %1192 = vmatpush1.xpose.msra.mxu0 0.0
    %1193 = vmatprep.subr.mxu0 0.0
    %1194 = vmatpush1.xpose.msra.mxu0 0.0
    %1195 = vmatprep.subr.mxu0 0.0
    %1196 = vmatpush1.xpose.msra.mxu0 0.0
    %1197 = vmatprep.subr.mxu0 0.0
    %1198 = vmatpush1.xpose.msra.mxu0 0.0
    %1199 = vmatprep.subr.mxu0 0.0
    %1200 = vmatpush1.xpose.msra.mxu0 0.0
    %1201 = vmatprep.subr.mxu0 0.0
    %1202 = vmatpush1.xpose.msra.mxu0 0.0
    %1203 = vmatprep.subr.mxu0 0.0
    %1204 = vmatpush1.xpose.msra.mxu0 0.0
    %1205 = vmatprep.subr.mxu0 0.0
    %1206 = vmatpush1.xpose.msra.mxu0 0.0
    %1207 = vmatprep.subr.mxu0 0.0
    %1208 = vmatpush1.xpose.msra.mxu0 0.0
    %1209 = vmatprep.subr.mxu0 0.0
    %1210 = vmatpush1.xpose.msra.mxu0 0.0
    %1211 = vmatprep.subr.mxu0 0.0
    %1212 = vmatpush1.xpose.msra.mxu0 0.0
    %1213 = vmatprep.subr.mxu0 0.0
    %1214 = vmatpush1.xpose.msra.mxu0 0.0
    %1215 = vmatprep.subr.mxu0 0.0
    %1216 = vmatpush1.xpose.msra.mxu0 0.0
    %1217 = vmatprep.subr.mxu0 0.0
    %1218 = vmatpush1.xpose.msra.mxu0 0.0
    %1219 = vmatprep.subr.mxu0 0.0
    %1220 = vmatpush1.xpose.msra.mxu0 0.0
    %1221 = vmatprep.subr.mxu0 0.0
    %1222 = vmatpush1.xpose.msra.mxu0 0.0
    %1223 = vmatprep.subr.mxu0 0.0
    %1224 = vmatpush1.xpose.msra.mxu0 0.0
    %1225 = vmatprep.subr.mxu0 0.0
    %1226 = vmatpush1.xpose.msra.mxu0 0.0
    %1227 = vmatprep.subr.mxu0 0.0
    %1228 = vmatpush1.xpose.msra.mxu0 0.0
    %1229 = vmatprep.subr.mxu0 0.0
    %1230 = vmatpush1.xpose.msra.mxu0 0.0
    %1231 = vmatprep.subr.mxu0 0.0
    %1232 = vmatpush1.xpose.msra.mxu0 0.0
    %1233 = vmatprep.subr.mxu0 0.0
    %1234 = vmatpush1.xpose.msra.mxu0 0.0
    %1235 = vmatprep.mubr.f32.mxu0 0.0
    %1236 = vmatmul.mubr.f32.gmra.mrb[0].mxu0 %v1167
    %v1237 = vpop.f32.mrb[0].mxu0
    %v1238 = vadd.f32 0.0, %v1237
    %v1239 = vpop.f32.mrb[0].mxu0
    %1240 = vdwg.mxu0
    %v1241 = vsel %vm198, %v1160, -inf
    %1242 = vmax.xlane.f32.xlu0 %v1241
    %v1243 = vpop.xlane.xlu0 %1242
    %v1244 = vsel %vm198, %v1238, -inf
    %1245 = vmax.xlane.f32.xlu0 %v1244
    %v1246 = vpop.xlane.xlu0 %1245
    %v1247 = vsub.f32 %v1160, %v1243
    %v1248 = vsub.f32 %v1238, %v1246
    %v1249 = vmul.f32 %v1247, 1.442695
    %v1250 = vpow.pop %v1249
    %v1251 = vmul.f32 %v1248, 1.442695
    %v1252 = vpow.pop %v1251
    %v1253 = vsel %vm198, %v1250, 0.0
    %1254 = vadd.xlane.f32.xlu0 %v1253
    %v1255 = vpop.xlane.xlu0 %1254
    %v1256 = vsel %vm198, %v1252, 0.0
    %1257 = vadd.xlane.f32.xlu0 %v1256
    %v1258 = vpop.xlane.xlu0 %1257
    %v1259 = vrcp.pop %v1255
    %v1260 = vmul.f32 %v1250, %v1259
    %v1261 = vrcp.pop %v1258
    %v1262 = vmul.f32 %v1252, %v1261
    %1264 = vrot.lane.b32.xlu0 %v757, 120
    %v1265 = vpop.permute.xlu0 %1264
    %v1268 = vsel %vm198, %v1260, 0
    %1270 = vmatprep.subr.mxu0 0.0
    %1271 = vmatpush1.msra.mxu0 %v1265
    %1272 = vmatprep.subr.mxu0 0.0
    %1273 = vmatpush1.msra.mxu0 0.0
    %1274 = vmatprep.subr.mxu0 0.0
    %1275 = vmatpush1.msra.mxu0 0.0
    %1276 = vmatprep.subr.mxu0 0.0
    %1277 = vmatpush1.msra.mxu0 0.0
    %1278 = vmatprep.subr.mxu0 0.0
    %1279 = vmatpush1.msra.mxu0 0.0
    %1280 = vmatprep.subr.mxu0 0.0
    %1281 = vmatpush1.msra.mxu0 0.0
    %1282 = vmatprep.subr.mxu0 0.0
    %1283 = vmatpush1.msra.mxu0 0.0
    %1284 = vmatprep.subr.mxu0 0.0
    %1285 = vmatpush1.msra.mxu0 0.0
    %1286 = vmatprep.subr.mxu0 0.0
    %1287 = vmatpush1.msra.mxu0 0.0
    %1288 = vmatprep.subr.mxu0 0.0
    %1289 = vmatpush1.msra.mxu0 0.0
    %1290 = vmatprep.subr.mxu0 0.0
    %1291 = vmatpush1.msra.mxu0 0.0
    %1292 = vmatprep.subr.mxu0 0.0
    %1293 = vmatpush1.msra.mxu0 0.0
    %1294 = vmatprep.subr.mxu0 0.0
    %1295 = vmatpush1.msra.mxu0 0.0
    %1296 = vmatprep.subr.mxu0 0.0
    %1297 = vmatpush1.msra.mxu0 0.0
    %1298 = vmatprep.subr.mxu0 0.0
    %1299 = vmatpush1.msra.mxu0 0.0
    %1300 = vmatprep.subr.mxu0 0.0
    %1301 = vmatpush1.msra.mxu0 0.0
    %1302 = vmatprep.subr.mxu0 0.0
    %1303 = vmatpush1.msra.mxu0 0.0
    %1304 = vmatprep.subr.mxu0 0.0
    %1305 = vmatpush1.msra.mxu0 0.0
    %1306 = vmatprep.subr.mxu0 0.0
    %1307 = vmatpush1.msra.mxu0 0.0
    %1308 = vmatprep.subr.mxu0 0.0
    %1309 = vmatpush1.msra.mxu0 0.0
    %1310 = vmatprep.subr.mxu0 0.0
    %1311 = vmatpush1.msra.mxu0 0.0
    %1312 = vmatprep.subr.mxu0 0.0
    %1313 = vmatpush1.msra.mxu0 0.0
    %1314 = vmatprep.subr.mxu0 0.0
    %1315 = vmatpush1.msra.mxu0 0.0
    %1316 = vmatprep.subr.mxu0 0.0
    %1317 = vmatpush1.msra.mxu0 0.0
    %1318 = vmatprep.subr.mxu0 0.0
    %1319 = vmatpush1.msra.mxu0 0.0
    %1320 = vmatprep.subr.mxu0 0.0
    %1321 = vmatpush1.msra.mxu0 0.0
    %1322 = vmatprep.subr.mxu0 0.0
    %1323 = vmatpush1.msra.mxu0 0.0
    %1324 = vmatprep.subr.mxu0 0.0
    %1325 = vmatpush1.msra.mxu0 0.0
    %1326 = vmatprep.subr.mxu0 0.0
    %1327 = vmatpush1.msra.mxu0 0.0
    %1328 = vmatprep.subr.mxu0 0.0
    %1329 = vmatpush1.msra.mxu0 0.0
    %1330 = vmatprep.subr.mxu0 0.0
    %1331 = vmatpush1.msra.mxu0 0.0
    %1332 = vmatprep.subr.mxu0 0.0
    %1333 = vmatpush1.msra.mxu0 0.0
    %1334 = vmatprep.mubr.f32.mxu0 0.0
    %1335 = vmatmul.mubr.f32.gmra.mrb[0].mxu0 %v1268
    %v1336 = vpop.f32.mrb[0].mxu0
    %v1337 = vadd.f32 0.0, %v1336
    %v1338 = vpop.f32.mrb[0].mxu0
    %1339 = vdwg.mxu0
    %1341 = vrot.lane.b32.xlu0 %v762, 120
    %v1342 = vpop.permute.xlu0 %1341
    %v1345 = vsel %vm198, %v1262, 0
    %1347 = vmatprep.subr.mxu0 0.0
    %1348 = vmatpush1.msra.mxu0 %v1342
    %1349 = vmatprep.subr.mxu0 0.0
    %1350 = vmatpush1.msra.mxu0 0.0
    %1351 = vmatprep.subr.mxu0 0.0
    %1352 = vmatpush1.msra.mxu0 0.0
    %1353 = vmatprep.subr.mxu0 0.0
    %1354 = vmatpush1.msra.mxu0 0.0
    %1355 = vmatprep.subr.mxu0 0.0
    %1356 = vmatpush1.msra.mxu0 0.0
    %1357 = vmatprep.subr.mxu0 0.0
    %1358 = vmatpush1.msra.mxu0 0.0
    %1359 = vmatprep.subr.mxu0 0.0
    %1360 = vmatpush1.msra.mxu0 0.0
    %1361 = vmatprep.subr.mxu0 0.0
    %1362 = vmatpush1.msra.mxu0 0.0
    %1363 = vmatprep.subr.mxu0 0.0
    %1364 = vmatpush1.msra.mxu0 0.0
    %1365 = vmatprep.subr.mxu0 0.0
    %1366 = vmatpush1.msra.mxu0 0.0
    %1367 = vmatprep.subr.mxu0 0.0
    %1368 = vmatpush1.msra.mxu0 0.0
    %1369 = vmatprep.subr.mxu0 0.0
    %1370 = vmatpush1.msra.mxu0 0.0
    %1371 = vmatprep.subr.mxu0 0.0
    %1372 = vmatpush1.msra.mxu0 0.0
    %1373 = vmatprep.subr.mxu0 0.0
    %1374 = vmatpush1.msra.mxu0 0.0
    %1375 = vmatprep.subr.mxu0 0.0
    %1376 = vmatpush1.msra.mxu0 0.0
    %1377 = vmatprep.subr.mxu0 0.0
    %1378 = vmatpush1.msra.mxu0 0.0
    %1379 = vmatprep.subr.mxu0 0.0
    %1380 = vmatpush1.msra.mxu0 0.0
    %1381 = vmatprep.subr.mxu0 0.0
    %1382 = vmatpush1.msra.mxu0 0.0
    %1383 = vmatprep.subr.mxu0 0.0
    %1384 = vmatpush1.msra.mxu0 0.0
    %1385 = vmatprep.subr.mxu0 0.0
    %1386 = vmatpush1.msra.mxu0 0.0
    %1387 = vmatprep.subr.mxu0 0.0
    %1388 = vmatpush1.msra.mxu0 0.0
    %1389 = vmatprep.subr.mxu0 0.0
    %1390 = vmatpush1.msra.mxu0 0.0
    %1391 = vmatprep.subr.mxu0 0.0
    %1392 = vmatpush1.msra.mxu0 0.0
    %1393 = vmatprep.subr.mxu0 0.0
    %1394 = vmatpush1.msra.mxu0 0.0
    %1395 = vmatprep.subr.mxu0 0.0
    %1396 = vmatpush1.msra.mxu0 0.0
    %1397 = vmatprep.subr.mxu0 0.0
    %1398 = vmatpush1.msra.mxu0 0.0
    %1399 = vmatprep.subr.mxu0 0.0
    %1400 = vmatpush1.msra.mxu0 0.0
    %1401 = vmatprep.subr.mxu0 0.0
    %1402 = vmatpush1.msra.mxu0 0.0
    %1403 = vmatprep.subr.mxu0 0.0
    %1404 = vmatpush1.msra.mxu0 0.0
    %1405 = vmatprep.subr.mxu0 0.0
    %1406 = vmatpush1.msra.mxu0 0.0
    %1407 = vmatprep.subr.mxu0 0.0
    %1408 = vmatpush1.msra.mxu0 0.0
    %1409 = vmatprep.subr.mxu0 0.0
    %1410 = vmatpush1.msra.mxu0 0.0
    %1411 = vmatprep.mubr.f32.mxu0 0.0
    %1412 = vmatmul.mubr.f32.gmra.mrb[0].mxu0 %v1345
    %v1413 = vpop.f32.mrb[0].mxu0
    %v1414 = vadd.f32 0.0, %v1413
    %v1415 = vpop.f32.mrb[0].mxu0
    %1416 = vdwg.mxu0
    %1417 = vrot.lane.b32.xlu0 %v561, 112
    %v1418 = vpop.permute.xlu0 %1417
    %1419 = vrot.lane.b32.xlu0 %v659, 112
    %v1420 = vpop.permute.xlu0 %1419
    %v1421 = vsel %vm198, %v1418, 0
    %v1423 = vsel %vm198, %v1420, 0
    %1425 = vmatprep.subr.mxu0 0.0
    %1426 = vmatpush1.xpose.msra.mxu0 %v1423
    %1427 = vmatprep.subr.mxu0 0.0
    %1428 = vmatpush1.xpose.msra.mxu0 0.0
    %1429 = vmatprep.subr.mxu0 0.0
    %1430 = vmatpush1.xpose.msra.mxu0 0.0
    %1431 = vmatprep.subr.mxu0 0.0
    %1432 = vmatpush1.xpose.msra.mxu0 0.0
    %1433 = vmatprep.subr.mxu0 0.0
    %1434 = vmatpush1.xpose.msra.mxu0 0.0
    %1435 = vmatprep.subr.mxu0 0.0
    %1436 = vmatpush1.xpose.msra.mxu0 0.0
    %1437 = vmatprep.subr.mxu0 0.0
    %1438 = vmatpush1.xpose.msra.mxu0 0.0
    %1439 = vmatprep.subr.mxu0 0.0
    %1440 = vmatpush1.xpose.msra.mxu0 0.0
    %1441 = vmatprep.subr.mxu0 0.0
    %1442 = vmatpush1.xpose.msra.mxu0 0.0
    %1443 = vmatprep.subr.mxu0 0.0
    %1444 = vmatpush1.xpose.msra.mxu0 0.0
    %1445 = vmatprep.subr.mxu0 0.0
    %1446 = vmatpush1.xpose.msra.mxu0 0.0
    %1447 = vmatprep.subr.mxu0 0.0
    %1448 = vmatpush1.xpose.msra.mxu0 0.0
    %1449 = vmatprep.subr.mxu0 0.0
    %1450 = vmatpush1.xpose.msra.mxu0 0.0
    %1451 = vmatprep.subr.mxu0 0.0
    %1452 = vmatpush1.xpose.msra.mxu0 0.0
    %1453 = vmatprep.subr.mxu0 0.0
    %1454 = vmatpush1.xpose.msra.mxu0 0.0
    %1455 = vmatprep.subr.mxu0 0.0
    %1456 = vmatpush1.xpose.msra.mxu0 0.0
    %1457 = vmatprep.subr.mxu0 0.0
    %1458 = vmatpush1.xpose.msra.mxu0 0.0
    %1459 = vmatprep.subr.mxu0 0.0
    %1460 = vmatpush1.xpose.msra.mxu0 0.0
    %1461 = vmatprep.subr.mxu0 0.0
    %1462 = vmatpush1.xpose.msra.mxu0 0.0
    %1463 = vmatprep.subr.mxu0 0.0
    %1464 = vmatpush1.xpose.msra.mxu0 0.0
    %1465 = vmatprep.subr.mxu0 0.0
    %1466 = vmatpush1.xpose.msra.mxu0 0.0
    %1467 = vmatprep.subr.mxu0 0.0
    %1468 = vmatpush1.xpose.msra.mxu0 0.0
    %1469 = vmatprep.subr.mxu0 0.0
    %1470 = vmatpush1.xpose.msra.mxu0 0.0
    %1471 = vmatprep.subr.mxu0 0.0
    %1472 = vmatpush1.xpose.msra.mxu0 0.0
    %1473 = vmatprep.subr.mxu0 0.0
    %1474 = vmatpush1.xpose.msra.mxu0 0.0
    %1475 = vmatprep.subr.mxu0 0.0
    %1476 = vmatpush1.xpose.msra.mxu0 0.0
    %1477 = vmatprep.subr.mxu0 0.0
    %1478 = vmatpush1.xpose.msra.mxu0 0.0
    %1479 = vmatprep.subr.mxu0 0.0
    %1480 = vmatpush1.xpose.msra.mxu0 0.0
    %1481 = vmatprep.subr.mxu0 0.0
    %1482 = vmatpush1.xpose.msra.mxu0 0.0
    %1483 = vmatprep.subr.mxu0 0.0
    %1484 = vmatpush1.xpose.msra.mxu0 0.0
    %1485 = vmatprep.subr.mxu0 0.0
    %1486 = vmatpush1.xpose.msra.mxu0 0.0
    %1487 = vmatprep.subr.mxu0 0.0
    %1488 = vmatpush1.xpose.msra.mxu0 0.0
    %1489 = vmatprep.mubr.f32.mxu0 0.0
    %1490 = vmatmul.mubr.f32.gmra.mrb[0].mxu0 %v1421
    %v1491 = vpop.f32.mrb[0].mxu0
    %v1492 = vadd.f32 0.0, %v1491
    %v1493 = vpop.f32.mrb[0].mxu0
    %1494 = vdwg.mxu0
    %1495 = vrot.lane.b32.xlu0 %v566, 112
    %v1496 = vpop.permute.xlu0 %1495
    %1497 = vrot.lane.b32.xlu0 %v664, 112
    %v1498 = vpop.permute.xlu0 %1497
    %v1499 = vsel %vm198, %v1496, 0
    %v1501 = vsel %vm198, %v1498, 0
    %1503 = vmatprep.subr.mxu0 0.0
    %1504 = vmatpush1.xpose.msra.mxu0 %v1501
    %1505 = vmatprep.subr.mxu0 0.0
    %1506 = vmatpush1.xpose.msra.mxu0 0.0
    %1507 = vmatprep.subr.mxu0 0.0
    %1508 = vmatpush1.xpose.msra.mxu0 0.0
    %1509 = vmatprep.subr.mxu0 0.0
    %1510 = vmatpush1.xpose.msra.mxu0 0.0
    %1511 = vmatprep.subr.mxu0 0.0
    %1512 = vmatpush1.xpose.msra.mxu0 0.0
    %1513 = vmatprep.subr.mxu0 0.0
    %1514 = vmatpush1.xpose.msra.mxu0 0.0
    %1515 = vmatprep.subr.mxu0 0.0
    %1516 = vmatpush1.xpose.msra.mxu0 0.0
    %1517 = vmatprep.subr.mxu0 0.0
    %1518 = vmatpush1.xpose.msra.mxu0 0.0
    %1519 = vmatprep.subr.mxu0 0.0
    %1520 = vmatpush1.xpose.msra.mxu0 0.0
    %1521 = vmatprep.subr.mxu0 0.0
    %1522 = vmatpush1.xpose.msra.mxu0 0.0
    %1523 = vmatprep.subr.mxu0 0.0
    %1524 = vmatpush1.xpose.msra.mxu0 0.0
    %1525 = vmatprep.subr.mxu0 0.0
    %1526 = vmatpush1.xpose.msra.mxu0 0.0
    %1527 = vmatprep.subr.mxu0 0.0
    %1528 = vmatpush1.xpose.msra.mxu0 0.0
    %1529 = vmatprep.subr.mxu0 0.0
    %1530 = vmatpush1.xpose.msra.mxu0 0.0
    %1531 = vmatprep.subr.mxu0 0.0
    %1532 = vmatpush1.xpose.msra.mxu0 0.0
    %1533 = vmatprep.subr.mxu0 0.0
    %1534 = vmatpush1.xpose.msra.mxu0 0.0
    %1535 = vmatprep.subr.mxu0 0.0
    %1536 = vmatpush1.xpose.msra.mxu0 0.0
    %1537 = vmatprep.subr.mxu0 0.0
    %1538 = vmatpush1.xpose.msra.mxu0 0.0
    %1539 = vmatprep.subr.mxu0 0.0
    %1540 = vmatpush1.xpose.msra.mxu0 0.0
    %1541 = vmatprep.subr.mxu0 0.0
    %1542 = vmatpush1.xpose.msra.mxu0 0.0
    %1543 = vmatprep.subr.mxu0 0.0
    %1544 = vmatpush1.xpose.msra.mxu0 0.0
    %1545 = vmatprep.subr.mxu0 0.0
    %1546 = vmatpush1.xpose.msra.mxu0 0.0
    %1547 = vmatprep.subr.mxu0 0.0
    %1548 = vmatpush1.xpose.msra.mxu0 0.0
    %1549 = vmatprep.subr.mxu0 0.0
    %1550 = vmatpush1.xpose.msra.mxu0 0.0
    %1551 = vmatprep.subr.mxu0 0.0
    %1552 = vmatpush1.xpose.msra.mxu0 0.0
    %1553 = vmatprep.subr.mxu0 0.0
    %1554 = vmatpush1.xpose.msra.mxu0 0.0
    %1555 = vmatprep.subr.mxu0 0.0
    %1556 = vmatpush1.xpose.msra.mxu0 0.0
    %1557 = vmatprep.subr.mxu0 0.0
    %1558 = vmatpush1.xpose.msra.mxu0 0.0
    %1559 = vmatprep.subr.mxu0 0.0
    %1560 = vmatpush1.xpose.msra.mxu0 0.0
    %1561 = vmatprep.subr.mxu0 0.0
    %1562 = vmatpush1.xpose.msra.mxu0 0.0
    %1563 = vmatprep.subr.mxu0 0.0
    %1564 = vmatpush1.xpose.msra.mxu0 0.0
    %1565 = vmatprep.subr.mxu0 0.0
    %1566 = vmatpush1.xpose.msra.mxu0 0.0
    %1567 = vmatprep.mubr.f32.mxu0 0.0
    %1568 = vmatmul.mubr.f32.gmra.mrb[0].mxu0 %v1499
    %v1569 = vpop.f32.mrb[0].mxu0
    %v1570 = vadd.f32 0.0, %v1569
    %v1571 = vpop.f32.mrb[0].mxu0
    %1572 = vdwg.mxu0
    %v1573 = vsel %vm198, %v1492, -inf
    %1574 = vmax.xlane.f32.xlu0 %v1573
    %v1575 = vpop.xlane.xlu0 %1574
    %v1576 = vsel %vm198, %v1570, -inf
    %1577 = vmax.xlane.f32.xlu0 %v1576
    %v1578 = vpop.xlane.xlu0 %1577
    %v1579 = vsub.f32 %v1492, %v1575
    %v1580 = vsub.f32 %v1570, %v1578
    %v1581 = vmul.f32 %v1579, 1.442695
    %v1582 = vpow.pop %v1581
    %v1583 = vmul.f32 %v1580, 1.442695
    %v1584 = vpow.pop %v1583
    %v1585 = vsel %vm198, %v1582, 0.0
    %1586 = vadd.xlane.f32.xlu0 %v1585
    %v1587 = vpop.xlane.xlu0 %1586
    %v1588 = vsel %vm198, %v1584, 0.0
    %1589 = vadd.xlane.f32.xlu0 %v1588
    %v1590 = vpop.xlane.xlu0 %1589
    %v1591 = vrcp.pop %v1587
    %v1592 = vmul.f32 %v1582, %v1591
    %v1593 = vrcp.pop %v1590
    %v1594 = vmul.f32 %v1584, %v1593
    %1595 = vrot.lane.b32.xlu0 %v757, 112
    %v1596 = vpop.permute.xlu0 %1595
    %v1599 = vsel %vm198, %v1592, 0
    %1601 = vmatprep.subr.mxu0 0.0
    %1602 = vmatpush1.msra.mxu0 %v1596
    %1603 = vmatprep.subr.mxu0 0.0
    %1604 = vmatpush1.msra.mxu0 0.0
    %1605 = vmatprep.subr.mxu0 0.0
    %1606 = vmatpush1.msra.mxu0 0.0
    %1607 = vmatprep.subr.mxu0 0.0
    %1608 = vmatpush1.msra.mxu0 0.0
    %1609 = vmatprep.subr.mxu0 0.0
    %1610 = vmatpush1.msra.mxu0 0.0
    %1611 = vmatprep.subr.mxu0 0.0
    %1612 = vmatpush1.msra.mxu0 0.0
    %1613 = vmatprep.subr.mxu0 0.0
    %1614 = vmatpush1.msra.mxu0 0.0
    %1615 = vmatprep.subr.mxu0 0.0
    %1616 = vmatpush1.msra.mxu0 0.0
    %1617 = vmatprep.subr.mxu0 0.0
    %1618 = vmatpush1.msra.mxu0 0.0
    %1619 = vmatprep.subr.mxu0 0.0
    %1620 = vmatpush1.msra.mxu0 0.0
    %1621 = vmatprep.subr.mxu0 0.0
    %1622 = vmatpush1.msra.mxu0 0.0
    %1623 = vmatprep.subr.mxu0 0.0
    %1624 = vmatpush1.msra.mxu0 0.0
    %1625 = vmatprep.subr.mxu0 0.0
    %1626 = vmatpush1.msra.mxu0 0.0
    %1627 = vmatprep.subr.mxu0 0.0
    %1628 = vmatpush1.msra.mxu0 0.0
    %1629 = vmatprep.subr.mxu0 0.0
    %1630 = vmatpush1.msra.mxu0 0.0
    %1631 = vmatprep.subr.mxu0 0.0
    %1632 = vmatpush1.msra.mxu0 0.0
    %1633 = vmatprep.subr.mxu0 0.0
    %1634 = vmatpush1.msra.mxu0 0.0
    %1635 = vmatprep.subr.mxu0 0.0
    %1636 = vmatpush1.msra.mxu0 0.0
    %1637 = vmatprep.subr.mxu0 0.0
    %1638 = vmatpush1.msra.mxu0 0.0
    %1639 = vmatprep.subr.mxu0 0.0
    %1640 = vmatpush1.msra.mxu0 0.0
    %1641 = vmatprep.subr.mxu0 0.0
    %1642 = vmatpush1.msra.mxu0 0.0
    %1643 = vmatprep.subr.mxu0 0.0
    %1644 = vmatpush1.msra.mxu0 0.0
    %1645 = vmatprep.subr.mxu0 0.0
    %1646 = vmatpush1.msra.mxu0 0.0
    %1647 = vmatprep.subr.mxu0 0.0
    %1648 = vmatpush1.msra.mxu0 0.0
    %1649 = vmatprep.subr.mxu0 0.0
    %1650 = vmatpush1.msra.mxu0 0.0
    %1651 = vmatprep.subr.mxu0 0.0
    %1652 = vmatpush1.msra.mxu0 0.0
    %1653 = vmatprep.subr.mxu0 0.0
    %1654 = vmatpush1.msra.mxu0 0.0
    %1655 = vmatprep.subr.mxu0 0.0
    %1656 = vmatpush1.msra.mxu0 0.0
    %1657 = vmatprep.subr.mxu0 0.0
    %1658 = vmatpush1.msra.mxu0 0.0
    %1659 = vmatprep.subr.mxu0 0.0
    %1660 = vmatpush1.msra.mxu0 0.0
    %1661 = vmatprep.subr.mxu0 0.0
    %1662 = vmatpush1.msra.mxu0 0.0
    %1663 = vmatprep.subr.mxu0 0.0
    %1664 = vmatpush1.msra.mxu0 0.0
    %1665 = vmatprep.mubr.f32.mxu0 0.0
    %1666 = vmatmul.mubr.f32.gmra.mrb[0].mxu0 %v1599
    %v1667 = vpop.f32.mrb[0].mxu0
    %v1668 = vadd.f32 0.0, %v1667
    %v1669 = vpop.f32.mrb[0].mxu0
    %1670 = vdwg.mxu0
    %1671 = vrot.lane.b32.xlu0 %v762, 112
    %v1672 = vpop.permute.xlu0 %1671
    %v1675 = vsel %vm198, %v1594, 0
    %1677 = vmatprep.subr.mxu0 0.0
    %1678 = vmatpush1.msra.mxu0 %v1672
    %1679 = vmatprep.subr.mxu0 0.0
    %1680 = vmatpush1.msra.mxu0 0.0
    %1681 = vmatprep.subr.mxu0 0.0
    %1682 = vmatpush1.msra.mxu0 0.0
    %1683 = vmatprep.subr.mxu0 0.0
    %1684 = vmatpush1.msra.mxu0 0.0
    %1685 = vmatprep.subr.mxu0 0.0
    %1686 = vmatpush1.msra.mxu0 0.0
    %1687 = vmatprep.subr.mxu0 0.0
    %1688 = vmatpush1.msra.mxu0 0.0
    %1689 = vmatprep.subr.mxu0 0.0
    %1690 = vmatpush1.msra.mxu0 0.0
    %1691 = vmatprep.subr.mxu0 0.0
    %1692 = vmatpush1.msra.mxu0 0.0
    %1693 = vmatprep.subr.mxu0 0.0
    %1694 = vmatpush1.msra.mxu0 0.0
    %1695 = vmatprep.subr.mxu0 0.0
    %1696 = vmatpush1.msra.mxu0 0.0
    %1697 = vmatprep.subr.mxu0 0.0
    %1698 = vmatpush1.msra.mxu0 0.0
    %1699 = vmatprep.subr.mxu0 0.0
    %1700 = vmatpush1.msra.mxu0 0.0
    %1701 = vmatprep.subr.mxu0 0.0
    %1702 = vmatpush1.msra.mxu0 0.0
    %1703 = vmatprep.subr.mxu0 0.0
    %1704 = vmatpush1.msra.mxu0 0.0
    %1705 = vmatprep.subr.mxu0 0.0
    %1706 = vmatpush1.msra.mxu0 0.0
    %1707 = vmatprep.subr.mxu0 0.0
    %1708 = vmatpush1.msra.mxu0 0.0
    %1709 = vmatprep.subr.mxu0 0.0
    %1710 = vmatpush1.msra.mxu0 0.0
    %1711 = vmatprep.subr.mxu0 0.0
    %1712 = vmatpush1.msra.mxu0 0.0
    %1713 = vmatprep.subr.mxu0 0.0
    %1714 = vmatpush1.msra.mxu0 0.0
    %1715 = vmatprep.subr.mxu0 0.0
    %1716 = vmatpush1.msra.mxu0 0.0
    %1717 = vmatprep.subr.mxu0 0.0
    %1718 = vmatpush1.msra.mxu0 0.0
    %1719 = vmatprep.subr.mxu0 0.0
    %1720 = vmatpush1.msra.mxu0 0.0
    %1721 = vmatprep.subr.mxu0 0.0
    %1722 = vmatpush1.msra.mxu0 0.0
    %1723 = vmatprep.subr.mxu0 0.0
    %1724 = vmatpush1.msra.mxu0 0.0
    %1725 = vmatprep.subr.mxu0 0.0
    %1726 = vmatpush1.msra.mxu0 0.0
    %1727 = vmatprep.subr.mxu0 0.0
    %1728 = vmatpush1.msra.mxu0 0.0
    %1729 = vmatprep.subr.mxu0 0.0
    %1730 = vmatpush1.msra.mxu0 0.0
    %1731 = vmatprep.subr.mxu0 0.0
    %1732 = vmatpush1.msra.mxu0 0.0
    %1733 = vmatprep.subr.mxu0 0.0
    %1734 = vmatpush1.msra.mxu0 0.0
    %1735 = vmatprep.subr.mxu0 0.0
    %1736 = vmatpush1.msra.mxu0 0.0
    %1737 = vmatprep.subr.mxu0 0.0
    %1738 = vmatpush1.msra.mxu0 0.0
    %1739 = vmatprep.subr.mxu0 0.0
    %1740 = vmatpush1.msra.mxu0 0.0
    %1741 = vmatprep.mubr.f32.mxu0 0.0
    %1742 = vmatmul.mubr.f32.gmra.mrb[0].mxu0 %v1675
    %v1743 = vpop.f32.mrb[0].mxu0
    %v1744 = vadd.f32 0.0, %v1743
    %v1745 = vpop.f32.mrb[0].mxu0
    %1746 = vdwg.mxu0
    %1747 = vrot.lane.b32.xlu0 %v561, 104
    %v1748 = vpop.permute.xlu0 %1747
    %1749 = vrot.lane.b32.xlu0 %v659, 104
    %v1750 = vpop.permute.xlu0 %1749
    %v1751 = vsel %vm198, %v1748, 0
    %v1753 = vsel %vm198, %v1750, 0
    %1755 = vmatprep.subr.mxu0 0.0
    %1756 = vmatpush1.xpose.msra.mxu0 %v1753
    %1757 = vmatprep.subr.mxu0 0.0
    %1758 = vmatpush1.xpose.msra.mxu0 0.0
    %1759 = vmatprep.subr.mxu0 0.0
    %1760 = vmatpush1.xpose.msra.mxu0 0.0
    %1761 = vmatprep.subr.mxu0 0.0
    %1762 = vmatpush1.xpose.msra.mxu0 0.0
    %1763 = vmatprep.subr.mxu0 0.0
    %1764 = vmatpush1.xpose.msra.mxu0 0.0
    %1765 = vmatprep.subr.mxu0 0.0
    %1766 = vmatpush1.xpose.msra.mxu0 0.0
    %1767 = vmatprep.subr.mxu0 0.0
    %1768 = vmatpush1.xpose.msra.mxu0 0.0
    %1769 = vmatprep.subr.mxu0 0.0
    %1770 = vmatpush1.xpose.msra.mxu0 0.0
    %1771 = vmatprep.subr.mxu0 0.0
    %1772 = vmatpush1.xpose.msra.mxu0 0.0
    %1773 = vmatprep.subr.mxu0 0.0
    %1774 = vmatpush1.xpose.msra.mxu0 0.0
    %1775 = vmatprep.subr.mxu0 0.0
    %1776 = vmatpush1.xpose.msra.mxu0 0.0
    %1777 = vmatprep.subr.mxu0 0.0
    %1778 = vmatpush1.xpose.msra.mxu0 0.0
    %1779 = vmatprep.subr.mxu0 0.0
    %1780 = vmatpush1.xpose.msra.mxu0 0.0
    %1781 = vmatprep.subr.mxu0 0.0
    %1782 = vmatpush1.xpose.msra.mxu0 0.0
    %1783 = vmatprep.subr.mxu0 0.0
    %1784 = vmatpush1.xpose.msra.mxu0 0.0
    %1785 = vmatprep.subr.mxu0 0.0
    %1786 = vmatpush1.xpose.msra.mxu0 0.0
    %1787 = vmatprep.subr.mxu0 0.0
    %1788 = vmatpush1.xpose.msra.mxu0 0.0
    %1789 = vmatprep.subr.mxu0 0.0
    %1790 = vmatpush1.xpose.msra.mxu0 0.0
    %1791 = vmatprep.subr.mxu0 0.0
    %1792 = vmatpush1.xpose.msra.mxu0 0.0
    %1793 = vmatprep.subr.mxu0 0.0
    %1794 = vmatpush1.xpose.msra.mxu0 0.0
    %1795 = vmatprep.subr.mxu0 0.0
    %1796 = vmatpush1.xpose.msra.mxu0 0.0
    %1797 = vmatprep.subr.mxu0 0.0
    %1798 = vmatpush1.xpose.msra.mxu0 0.0
    %1799 = vmatprep.subr.mxu0 0.0
    %1800 = vmatpush1.xpose.msra.mxu0 0.0
    %1801 = vmatprep.subr.mxu0 0.0
    %1802 = vmatpush1.xpose.msra.mxu0 0.0
    %1803 = vmatprep.subr.mxu0 0.0
    %1804 = vmatpush1.xpose.msra.mxu0 0.0
    %1805 = vmatprep.subr.mxu0 0.0
    %1806 = vmatpush1.xpose.msra.mxu0 0.0
    %1807 = vmatprep.subr.mxu0 0.0
    %1808 = vmatpush1.xpose.msra.mxu0 0.0
    %1809 = vmatprep.subr.mxu0 0.0
    %1810 = vmatpush1.xpose.msra.mxu0 0.0
    %1811 = vmatprep.subr.mxu0 0.0
    %1812 = vmatpush1.xpose.msra.mxu0 0.0
    %1813 = vmatprep.subr.mxu0 0.0
    %1814 = vmatpush1.xpose.msra.mxu0 0.0
    %1815 = vmatprep.subr.mxu0 0.0
    %1816 = vmatpush1.xpose.msra.mxu0 0.0
    %1817 = vmatprep.subr.mxu0 0.0
    %1818 = vmatpush1.xpose.msra.mxu0 0.0
    %1819 = vmatprep.mubr.f32.mxu0 0.0
    %1820 = vmatmul.mubr.f32.gmra.mrb[0].mxu0 %v1751
    %v1821 = vpop.f32.mrb[0].mxu0
    %v1822 = vadd.f32 0.0, %v1821
    %v1823 = vpop.f32.mrb[0].mxu0
    %1824 = vdwg.mxu0
    %1825 = vrot.lane.b32.xlu0 %v566, 104
    %v1826 = vpop.permute.xlu0 %1825
    %1827 = vrot.lane.b32.xlu0 %v664, 104
    %v1828 = vpop.permute.xlu0 %1827
    %v1829 = vsel %vm198, %v1826, 0
    %v1831 = vsel %vm198, %v1828, 0
    %1833 = vmatprep.subr.mxu0 0.0
    %1834 = vmatpush1.xpose.msra.mxu0 %v1831
    %1835 = vmatprep.subr.mxu0 0.0
    %1836 = vmatpush1.xpose.msra.mxu0 0.0
    %1837 = vmatprep.subr.mxu0 0.0
    %1838 = vmatpush1.xpose.msra.mxu0 0.0
    %1839 = vmatprep.subr.mxu0 0.0
    %1840 = vmatpush1.xpose.msra.mxu0 0.0
    %1841 = vmatprep.subr.mxu0 0.0
    %1842 = vmatpush1.xpose.msra.mxu0 0.0
    %1843 = vmatprep.subr.mxu0 0.0
    %1844 = vmatpush1.xpose.msra.mxu0 0.0
    %1845 = vmatprep.subr.mxu0 0.0
    %1846 = vmatpush1.xpose.msra.mxu0 0.0
    %1847 = vmatprep.subr.mxu0 0.0
    %1848 = vmatpush1.xpose.msra.mxu0 0.0
    %1849 = vmatprep.subr.mxu0 0.0
    %1850 = vmatpush1.xpose.msra.mxu0 0.0
    %1851 = vmatprep.subr.mxu0 0.0
    %1852 = vmatpush1.xpose.msra.mxu0 0.0
    %1853 = vmatprep.subr.mxu0 0.0
    %1854 = vmatpush1.xpose.msra.mxu0 0.0
    %1855 = vmatprep.subr.mxu0 0.0
    %1856 = vmatpush1.xpose.msra.mxu0 0.0
    %1857 = vmatprep.subr.mxu0 0.0
    %1858 = vmatpush1.xpose.msra.mxu0 0.0
    %1859 = vmatprep.subr.mxu0 0.0
    %1860 = vmatpush1.xpose.msra.mxu0 0.0
    %1861 = vmatprep.subr.mxu0 0.0
    %1862 = vmatpush1.xpose.msra.mxu0 0.0
    %1863 = vmatprep.subr.mxu0 0.0
    %1864 = vmatpush1.xpose.msra.mxu0 0.0
    %1865 = vmatprep.subr.mxu0 0.0
    %1866 = vmatpush1.xpose.msra.mxu0 0.0
    %1867 = vmatprep.subr.mxu0 0.0
    %1868 = vmatpush1.xpose.msra.mxu0 0.0
    %1869 = vmatprep.subr.mxu0 0.0
    %1870 = vmatpush1.xpose.msra.mxu0 0.0
    %1871 = vmatprep.subr.mxu0 0.0
    %1872 = vmatpush1.xpose.msra.mxu0 0.0
    %1873 = vmatprep.subr.mxu0 0.0
    %1874 = vmatpush1.xpose.msra.mxu0 0.0
    %1875 = vmatprep.subr.mxu0 0.0
    %1876 = vmatpush1.xpose.msra.mxu0 0.0
    %1877 = vmatprep.subr.mxu0 0.0
    %1878 = vmatpush1.xpose.msra.mxu0 0.0
    %1879 = vmatprep.subr.mxu0 0.0
    %1880 = vmatpush1.xpose.msra.mxu0 0.0
    %1881 = vmatprep.subr.mxu0 0.0
    %1882 = vmatpush1.xpose.msra.mxu0 0.0
    %1883 = vmatprep.subr.mxu0 0.0
    %1884 = vmatpush1.xpose.msra.mxu0 0.0
    %1885 = vmatprep.subr.mxu0 0.0
    %1886 = vmatpush1.xpose.msra.mxu0 0.0
    %1887 = vmatprep.subr.mxu0 0.0
    %1888 = vmatpush1.xpose.msra.mxu0 0.0
    %1889 = vmatprep.subr.mxu0 0.0
    %1890 = vmatpush1.xpose.msra.mxu0 0.0
    %1891 = vmatprep.subr.mxu0 0.0
    %1892 = vmatpush1.xpose.msra.mxu0 0.0
    %1893 = vmatprep.subr.mxu0 0.0
    %1894 = vmatpush1.xpose.msra.mxu0 0.0
    %1895 = vmatprep.subr.mxu0 0.0
    %1896 = vmatpush1.xpose.msra.mxu0 0.0
    %1897 = vmatprep.mubr.f32.mxu0 0.0
    %1898 = vmatmul.mubr.f32.gmra.mrb[0].mxu0 %v1829
    %v1899 = vpop.f32.mrb[0].mxu0
    %v1900 = vadd.f32 0.0, %v1899
    %v1901 = vpop.f32.mrb[0].mxu0
    %1902 = vdwg.mxu0
    %v1903 = vsel %vm198, %v1822, -inf
    %1904 = vmax.xlane.f32.xlu0 %v1903
    %v1905 = vpop.xlane.xlu0 %1904
    %v1906 = vsel %vm198, %v1900, -inf
    %1907 = vmax.xlane.f32.xlu0 %v1906
    %v1908 = vpop.xlane.xlu0 %1907
    %v1909 = vsub.f32 %v1822, %v1905
    %v1910 = vsub.f32 %v1900, %v1908
    %v1911 = vmul.f32 %v1909, 1.442695
    %v1912 = vpow.pop %v1911
    %v1913 = vmul.f32 %v1910, 1.442695
    %v1914 = vpow.pop %v1913
    %v1915 = vsel %vm198, %v1912, 0.0
    %1916 = vadd.xlane.f32.xlu0 %v1915
    %v1917 = vpop.xlane.xlu0 %1916
    %v1918 = vsel %vm198, %v1914, 0.0
    %1919 = vadd.xlane.f32.xlu0 %v1918
    %v1920 = vpop.xlane.xlu0 %1919
    %v1921 = vrcp.pop %v1917
    %v1922 = vmul.f32 %v1912, %v1921
    %v1923 = vrcp.pop %v1920
    %v1924 = vmul.f32 %v1914, %v1923
    %1925 = vrot.lane.b32.xlu0 %v757, 104
    %v1926 = vpop.permute.xlu0 %1925
    %v1929 = vsel %vm198, %v1922, 0
    %1931 = vmatprep.subr.mxu0 0.0
    %1932 = vmatpush1.msra.mxu0 %v1926
    %1933 = vmatprep.subr.mxu0 0.0
    %1934 = vmatpush1.msra.mxu0 0.0
    %1935 = vmatprep.subr.mxu0 0.0
    %1936 = vmatpush1.msra.mxu0 0.0
    %1937 = vmatprep.subr.mxu0 0.0
    %1938 = vmatpush1.msra.mxu0 0.0
    %1939 = vmatprep.subr.mxu0 0.0
    %1940 = vmatpush1.msra.mxu0 0.0
    %1941 = vmatprep.subr.mxu0 0.0
    %1942 = vmatpush1.msra.mxu0 0.0
    %1943 = vmatprep.subr.mxu0 0.0
    %1944 = vmatpush1.msra.mxu0 0.0
    %1945 = vmatprep.subr.mxu0 0.0
    %1946 = vmatpush1.msra.mxu0 0.0
    %1947 = vmatprep.subr.mxu0 0.0
    %1948 = vmatpush1.msra.mxu0 0.0
    %1949 = vmatprep.subr.mxu0 0.0
    %1950 = vmatpush1.msra.mxu0 0.0
    %1951 = vmatprep.subr.mxu0 0.0
    %1952 = vmatpush1.msra.mxu0 0.0
    %1953 = vmatprep.subr.mxu0 0.0
    %1954 = vmatpush1.msra.mxu0 0.0
    %1955 = vmatprep.subr.mxu0 0.0
    %1956 = vmatpush1.msra.mxu0 0.0
    %1957 = vmatprep.subr.mxu0 0.0
    %1958 = vmatpush1.msra.mxu0 0.0
    %1959 = vmatprep.subr.mxu0 0.0
    %1960 = vmatpush1.msra.mxu0 0.0
    %1961 = vmatprep.subr.mxu0 0.0
    %1962 = vmatpush1.msra.mxu0 0.0
    %1963 = vmatprep.subr.mxu0 0.0
    %1964 = vmatpush1.msra.mxu0 0.0
    %1965 = vmatprep.subr.mxu0 0.0
    %1966 = vmatpush1.msra.mxu0 0.0
    %1967 = vmatprep.subr.mxu0 0.0
    %1968 = vmatpush1.msra.mxu0 0.0
    %1969 = vmatprep.subr.mxu0 0.0
    %1970 = vmatpush1.msra.mxu0 0.0
    %1971 = vmatprep.subr.mxu0 0.0
    %1972 = vmatpush1.msra.mxu0 0.0
    %1973 = vmatprep.subr.mxu0 0.0
    %1974 = vmatpush1.msra.mxu0 0.0
    %1975 = vmatprep.subr.mxu0 0.0
    %1976 = vmatpush1.msra.mxu0 0.0
    %1977 = vmatprep.subr.mxu0 0.0
    %1978 = vmatpush1.msra.mxu0 0.0
    %1979 = vmatprep.subr.mxu0 0.0
    %1980 = vmatpush1.msra.mxu0 0.0
    %1981 = vmatprep.subr.mxu0 0.0
    %1982 = vmatpush1.msra.mxu0 0.0
    %1983 = vmatprep.subr.mxu0 0.0
    %1984 = vmatpush1.msra.mxu0 0.0
    %1985 = vmatprep.subr.mxu0 0.0
    %1986 = vmatpush1.msra.mxu0 0.0
    %1987 = vmatprep.subr.mxu0 0.0
    %1988 = vmatpush1.msra.mxu0 0.0
    %1989 = vmatprep.subr.mxu0 0.0
    %1990 = vmatpush1.msra.mxu0 0.0
    %1991 = vmatprep.subr.mxu0 0.0
    %1992 = vmatpush1.msra.mxu0 0.0
    %1993 = vmatprep.subr.mxu0 0.0
    %1994 = vmatpush1.msra.mxu0 0.0
    %1995 = vmatprep.mubr.f32.mxu0 0.0
    %1996 = vmatmul.mubr.f32.gmra.mrb[0].mxu0 %v1929
    %v1997 = vpop.f32.mrb[0].mxu0
    %v1998 = vadd.f32 0.0, %v1997
    %v1999 = vpop.f32.mrb[0].mxu0
    %2000 = vdwg.mxu0
    %2001 = vrot.lane.b32.xlu0 %v762, 104
    %v2002 = vpop.permute.xlu0 %2001
    %v2005 = vsel %vm198, %v1924, 0
    %2007 = vmatprep.subr.mxu0 0.0
    %2008 = vmatpush1.msra.mxu0 %v2002
    %2009 = vmatprep.subr.mxu0 0.0
    %2010 = vmatpush1.msra.mxu0 0.0
    %2011 = vmatprep.subr.mxu0 0.0
    %2012 = vmatpush1.msra.mxu0 0.0
    %2013 = vmatprep.subr.mxu0 0.0
    %2014 = vmatpush1.msra.mxu0 0.0
    %2015 = vmatprep.subr.mxu0 0.0
    %2016 = vmatpush1.msra.mxu0 0.0
    %2017 = vmatprep.subr.mxu0 0.0
    %2018 = vmatpush1.msra.mxu0 0.0
    %2019 = vmatprep.subr.mxu0 0.0
    %2020 = vmatpush1.msra.mxu0 0.0
    %2021 = vmatprep.subr.mxu0 0.0
    %2022 = vmatpush1.msra.mxu0 0.0
    %2023 = vmatprep.subr.mxu0 0.0
    %2024 = vmatpush1.msra.mxu0 0.0
    %2025 = vmatprep.subr.mxu0 0.0
    %2026 = vmatpush1.msra.mxu0 0.0
    %2027 = vmatprep.subr.mxu0 0.0
    %2028 = vmatpush1.msra.mxu0 0.0
    %2029 = vmatprep.subr.mxu0 0.0
    %2030 = vmatpush1.msra.mxu0 0.0
    %2031 = vmatprep.subr.mxu0 0.0
    %2032 = vmatpush1.msra.mxu0 0.0
    %2033 = vmatprep.subr.mxu0 0.0
    %2034 = vmatpush1.msra.mxu0 0.0
    %2035 = vmatprep.subr.mxu0 0.0
    %2036 = vmatpush1.msra.mxu0 0.0
    %2037 = vmatprep.subr.mxu0 0.0
    %2038 = vmatpush1.msra.mxu0 0.0
    %2039 = vmatprep.subr.mxu0 0.0
    %2040 = vmatpush1.msra.mxu0 0.0
    %2041 = vmatprep.subr.mxu0 0.0
    %2042 = vmatpush1.msra.mxu0 0.0
    %2043 = vmatprep.subr.mxu0 0.0
    %2044 = vmatpush1.msra.mxu0 0.0
    %2045 = vmatprep.subr.mxu0 0.0
    %2046 = vmatpush1.msra.mxu0 0.0
    %2047 = vmatprep.subr.mxu0 0.0
    %2048 = vmatpush1.msra.mxu0 0.0
    %2049 = vmatprep.subr.mxu0 0.0
    %2050 = vmatpush1.msra.mxu0 0.0
    %2051 = vmatprep.subr.mxu0 0.0
    %2052 = vmatpush1.msra.mxu0 0.0
    %2053 = vmatprep.subr.mxu0 0.0
    %2054 = vmatpush1.msra.mxu0 0.0
    %2055 = vmatprep.subr.mxu0 0.0
    %2056 = vmatpush1.msra.mxu0 0.0
    %2057 = vmatprep.subr.mxu0 0.0
    %2058 = vmatpush1.msra.mxu0 0.0
    %2059 = vmatprep.subr.mxu0 0.0
    %2060 = vmatpush1.msra.mxu0 0.0
    %2061 = vmatprep.subr.mxu0 0.0
    %2062 = vmatpush1.msra.mxu0 0.0
    %2063 = vmatprep.subr.mxu0 0.0
    %2064 = vmatpush1.msra.mxu0 0.0
    %2065 = vmatprep.subr.mxu0 0.0
    %2066 = vmatpush1.msra.mxu0 0.0
    %2067 = vmatprep.subr.mxu0 0.0
    %2068 = vmatpush1.msra.mxu0 0.0
    %2069 = vmatprep.subr.mxu0 0.0
    %2070 = vmatpush1.msra.mxu0 0.0
    %2071 = vmatprep.mubr.f32.mxu0 0.0
    %2072 = vmatmul.mubr.f32.gmra.mrb[0].mxu0 %v2005
    %v2073 = vpop.f32.mrb[0].mxu0
    %v2074 = vadd.f32 0.0, %v2073
    %v2075 = vpop.f32.mrb[0].mxu0
    %2076 = vdwg.mxu0
    %2079 = vrot.lane.b32.xlu0 %v1337, 8
    %v2080 = vpop.permute.xlu0 %2079
    %2081 = vrot.lane.b32.xlu0 %v1414, 8
    %v2082 = vpop.permute.xlu0 %2081
    %2087 = vrot.lane.b32.xlu0 %v1668, 16
    %v2088 = vpop.permute.xlu0 %2087
    %2089 = vrot.lane.b32.xlu0 %v1744, 16
    %v2090 = vpop.permute.xlu0 %2089
    %2095 = vrot.lane.b32.xlu0 %v1998, 24
    %v2096 = vpop.permute.xlu0 %2095
    %2097 = vrot.lane.b32.xlu0 %v2074, 24
    %v2098 = vpop.permute.xlu0 %2097
    %v2101 = vsel %vm198, %v1009, %v2080
    %v2102 = vsel %vm198, %v1082, %v2082
    %v2103 = vsel %vm293, %v2101, %v2088
    %v2104 = vsel %vm293, %v2102, %v2090
    %vm2105 = vcmask 195584
    %v2106 = vsel %vm2105, %v2103, %v2096
    %v2107 = vsel %vm2105, %v2104, %v2098
    %v2108 = vld [vmem:[%s15] sm:$0xff]
    %v2109 = vld [vmem:[%s15 + $0x8] sm:$0xff]
    %v2110 = vld [vmem:[%s15 + $0x10] sm:$0xff]
    %v2111 = vld [vmem:[%s15 + $0x18] sm:$0xff]
    %v2112 = vld [vmem:[#allocation16] sm:$0x1]
    %v2114 = vlaneseq
    %v2115 = vshrl.u32 %v2114, 7
    %v2116 = vsub.s32 0, %v2115
    %v2117 = vrot.slane %v2112, %v2116
    %vm2119 = vcmask 261120
    %v2121 = vsel %vm2119, %v2106, 0
    %v2124 = vsel %vm2119, %v2107, 0
    %2126 = vmatprep.subr.mxu0 0.0
    %2127 = vmatpush1.msra.mxu0 %v2108
    %2128 = vmatprep.subr.mxu0 0.0
    %2129 = vmatpush1.msra.mxu0 %v2109
    %2130 = vmatprep.subr.mxu0 0.0
    %2131 = vmatpush1.msra.mxu0 %v2110
    %2132 = vmatprep.subr.mxu0 0.0
    %2133 = vmatpush1.msra.mxu0 %v2111
    %2134 = vmatprep.subr.mxu0 0.0
    %2135 = vmatpush1.msra.mxu0 0.0
    %2136 = vmatprep.subr.mxu0 0.0
    %2137 = vmatpush1.msra.mxu0 0.0
    %2138 = vmatprep.subr.mxu0 0.0
    %2139 = vmatpush1.msra.mxu0 0.0
    %2140 = vmatprep.subr.mxu0 0.0
    %2141 = vmatpush1.msra.mxu0 0.0
    %2142 = vmatprep.subr.mxu0 0.0
    %2143 = vmatpush1.msra.mxu0 0.0
    %2144 = vmatprep.subr.mxu0 0.0
    %2145 = vmatpush1.msra.mxu0 0.0
    %2146 = vmatprep.subr.mxu0 0.0
    %2147 = vmatpush1.msra.mxu0 0.0
    %2148 = vmatprep.subr.mxu0 0.0
    %2149 = vmatpush1.msra.mxu0 0.0
    %2150 = vmatprep.subr.mxu0 0.0
    %2151 = vmatpush1.msra.mxu0 0.0
    %2152 = vmatprep.subr.mxu0 0.0
    %2153 = vmatpush1.msra.mxu0 0.0
    %2154 = vmatprep.subr.mxu0 0.0
    %2155 = vmatpush1.msra.mxu0 0.0
    %2156 = vmatprep.subr.mxu0 0.0
    %2157 = vmatpush1.msra.mxu0 0.0
    %2158 = vmatprep.subr.mxu0 0.0
    %2159 = vmatpush1.msra.mxu0 0.0
    %2160 = vmatprep.subr.mxu0 0.0
    %2161 = vmatpush1.msra.mxu0 0.0
    %2162 = vmatprep.subr.mxu0 0.0
    %2163 = vmatpush1.msra.mxu0 0.0
    %2164 = vmatprep.subr.mxu0 0.0
    %2165 = vmatpush1.msra.mxu0 0.0
    %2166 = vmatprep.subr.mxu0 0.0
    %2167 = vmatpush1.msra.mxu0 0.0
    %2168 = vmatprep.subr.mxu0 0.0
    %2169 = vmatpush1.msra.mxu0 0.0
    %2170 = vmatprep.subr.mxu0 0.0
    %2171 = vmatpush1.msra.mxu0 0.0
    %2172 = vmatprep.subr.mxu0 0.0
    %2173 = vmatpush1.msra.mxu0 0.0
    %2174 = vmatprep.subr.mxu0 0.0
    %2175 = vmatpush1.msra.mxu0 0.0
    %2176 = vmatprep.subr.mxu0 0.0
    %2177 = vmatpush1.msra.mxu0 0.0
    %2178 = vmatprep.subr.mxu0 0.0
    %2179 = vmatpush1.msra.mxu0 0.0
    %2180 = vmatprep.subr.mxu0 0.0
    %2181 = vmatpush1.msra.mxu0 0.0
    %2182 = vmatprep.subr.mxu0 0.0
    %2183 = vmatpush1.msra.mxu0 0.0
    %2184 = vmatprep.subr.mxu0 0.0
    %2185 = vmatpush1.msra.mxu0 0.0
    %2186 = vmatprep.subr.mxu0 0.0
    %2187 = vmatpush1.msra.mxu0 0.0
    %2188 = vmatprep.subr.mxu0 0.0
    %2189 = vmatpush1.msra.mxu0 0.0
    %2190 = vmatprep.mubr.f32.mxu0 0.0
    %2191 = vmatmul.mubr.f32.gmra.mrb[0].mxu0 %v2121
    %v2192 = vpop.f32.mrb[0].mxu0
    %v2193 = vadd.f32 %v2117, %v2192
    %v2194 = vpop.f32.mrb[0].mxu0
    %2195 = vmatprep.mubr.f32.mxu0 0.0
    %2196 = vmatmul.mubr.f32.gmra.mrb[0].mxu0 %v2124
    %v2197 = vpop.f32.mrb[0].mxu0
    %v2198 = vadd.f32 %v2117, %v2197
    %v2199 = vpop.f32.mrb[0].mxu0
    %2200 = vdwg.mxu0
    %s2201 = scalar_lea.vmem [#allocation7], 128
    %v2202 = vld [vmem:[%s2201] sm:$0xff]
    %v2203 = vld [vmem:[%s2201 + $0x8] sm:$0xff]
    %v2204 = vld [vmem:[%s2201 + $0x10] sm:$0xff]
    %v2205 = vld [vmem:[%s2201 + $0x18] sm:$0xff]
    %v2206 = vld [vmem:[%s2201 + $0x20] sm:$0xff]
    %v2207 = vld [vmem:[%s2201 + $0x28] sm:$0xff]
    %v2208 = vld [vmem:[%s2201 + $0x30] sm:$0xff]
    %v2209 = vld [vmem:[%s2201 + $0x38] sm:$0xff]
    %v2210 = vld [vmem:[%s2201 + $0x40] sm:$0xff]
    %v2211 = vld [vmem:[%s2201 + $0x48] sm:$0xff]
    %v2212 = vld [vmem:[%s2201 + $0x50] sm:$0xff]
    %v2213 = vld [vmem:[%s2201 + $0x58] sm:$0xff]
    %v2214 = vld [vmem:[%s2201 + $0x60] sm:$0xff]
    %v2215 = vld [vmem:[%s2201 + $0x68] sm:$0xff]
    %v2216 = vld [vmem:[%s2201 + $0x70] sm:$0xff]
    %v2217 = vld [vmem:[%s2201 + $0x78] sm:$0xff]
    %s2218 = scalar_lea.vmem [#allocation12], 1
    %v2219 = vld [vmem:[%s2218] sm:$0x1]
    %v2221 = vlaneseq
    %v2222 = vshrl.u32 %v2221, 7
    %v2223 = vsub.s32 0, %v2222
    %v2224 = vrot.slane %v2219, %v2223
    %2226 = vmatprep.subr.mxu0 0.0
    %2227 = vmatpush1.msra.mxu0 %v2202
    %2228 = vmatprep.subr.mxu0 0.0
    %2229 = vmatpush1.msra.mxu0 %v2203
    %2230 = vmatprep.subr.mxu0 0.0
    %2231 = vmatpush1.msra.mxu0 %v2204
    %2232 = vmatprep.subr.mxu0 0.0
    %2233 = vmatpush1.msra.mxu0 %v2205
    %2234 = vmatprep.subr.mxu0 0.0
    %2235 = vmatpush1.msra.mxu0 %v2206
    %2236 = vmatprep.subr.mxu0 0.0
    %2237 = vmatpush1.msra.mxu0 %v2207
    %2238 = vmatprep.subr.mxu0 0.0
    %2239 = vmatpush1.msra.mxu0 %v2208
    %2240 = vmatprep.subr.mxu0 0.0
    %2241 = vmatpush1.msra.mxu0 %v2209
    %2242 = vmatprep.subr.mxu0 0.0
    %2243 = vmatpush1.msra.mxu0 %v2210
    %2244 = vmatprep.subr.mxu0 0.0
    %2245 = vmatpush1.msra.mxu0 %v2211
    %2246 = vmatprep.subr.mxu0 0.0
    %2247 = vmatpush1.msra.mxu0 %v2212
    %2248 = vmatprep.subr.mxu0 0.0
    %2249 = vmatpush1.msra.mxu0 %v2213
    %2250 = vmatprep.subr.mxu0 0.0
    %2251 = vmatpush1.msra.mxu0 %v2214
    %2252 = vmatprep.subr.mxu0 0.0
    %2253 = vmatpush1.msra.mxu0 %v2215
    %2254 = vmatprep.subr.mxu0 0.0
    %2255 = vmatpush1.msra.mxu0 %v2216
    %2256 = vmatprep.subr.mxu0 0.0
    %2257 = vmatpush1.msra.mxu0 %v2217
    %2258 = vmatprep.subr.mxu0 0.0
    %2259 = vmatpush1.msra.mxu0 0.0
    %2260 = vmatprep.subr.mxu0 0.0
    %2261 = vmatpush1.msra.mxu0 0.0
    %2262 = vmatprep.subr.mxu0 0.0
    %2263 = vmatpush1.msra.mxu0 0.0
    %2264 = vmatprep.subr.mxu0 0.0
    %2265 = vmatpush1.msra.mxu0 0.0
    %2266 = vmatprep.subr.mxu0 0.0
    %2267 = vmatpush1.msra.mxu0 0.0
    %2268 = vmatprep.subr.mxu0 0.0
    %2269 = vmatpush1.msra.mxu0 0.0
    %2270 = vmatprep.subr.mxu0 0.0
    %2271 = vmatpush1.msra.mxu0 0.0
    %2272 = vmatprep.subr.mxu0 0.0
    %2273 = vmatpush1.msra.mxu0 0.0
    %2274 = vmatprep.subr.mxu0 0.0
    %2275 = vmatpush1.msra.mxu0 0.0
    %2276 = vmatprep.subr.mxu0 0.0
    %2277 = vmatpush1.msra.mxu0 0.0
    %2278 = vmatprep.subr.mxu0 0.0
    %2279 = vmatpush1.msra.mxu0 0.0
    %2280 = vmatprep.subr.mxu0 0.0
    %2281 = vmatpush1.msra.mxu0 0.0
    %2282 = vmatprep.subr.mxu0 0.0
    %2283 = vmatpush1.msra.mxu0 0.0
    %2284 = vmatprep.subr.mxu0 0.0
    %2285 = vmatpush1.msra.mxu0 0.0
    %2286 = vmatprep.subr.mxu0 0.0
    %2287 = vmatpush1.msra.mxu0 0.0
    %2288 = vmatprep.subr.mxu0 0.0
    %2289 = vmatpush1.msra.mxu0 0.0
    %2290 = vmatprep.mubr.f32.mxu0 0.0
    %2291 = vmatmul.mubr.f32.gmra.mrb[0].mxu0 %v469
    %v2292 = vpop.f32.mrb[0].mxu0
    %v2293 = vadd.f32 %v2224, %v2292
    %v2294 = vpop.f32.mrb[0].mxu0
    %2295 = vmatprep.mubr.f32.mxu0 0.0
    %2296 = vmatmul.mubr.f32.gmra.mrb[0].mxu0 %v470
    %v2297 = vpop.f32.mrb[0].mxu0
    %v2298 = vadd.f32 %v2224, %v2297
    %v2299 = vpop.f32.mrb[0].mxu0
    %2300 = vdwg.mxu0
    %s2301 = scalar_lea.vmem [#allocation9], 128
    %v2302 = vld [vmem:[%s2301] sm:$0xff]
    %v2303 = vld [vmem:[%s2301 + $0x8] sm:$0xff]
    %v2304 = vld [vmem:[%s2301 + $0x10] sm:$0xff]
    %v2305 = vld [vmem:[%s2301 + $0x18] sm:$0xff]
    %v2306 = vld [vmem:[%s2301 + $0x20] sm:$0xff]
    %v2307 = vld [vmem:[%s2301 + $0x28] sm:$0xff]
    %v2308 = vld [vmem:[%s2301 + $0x30] sm:$0xff]
    %v2309 = vld [vmem:[%s2301 + $0x38] sm:$0xff]
    %v2310 = vld [vmem:[%s2301 + $0x40] sm:$0xff]
    %v2311 = vld [vmem:[%s2301 + $0x48] sm:$0xff]
    %v2312 = vld [vmem:[%s2301 + $0x50] sm:$0xff]
    %v2313 = vld [vmem:[%s2301 + $0x58] sm:$0xff]
    %v2314 = vld [vmem:[%s2301 + $0x60] sm:$0xff]
    %v2315 = vld [vmem:[%s2301 + $0x68] sm:$0xff]
    %v2316 = vld [vmem:[%s2301 + $0x70] sm:$0xff]
    %v2317 = vld [vmem:[%s2301 + $0x78] sm:$0xff]
    %s2318 = scalar_lea.vmem [#allocation13], 1
    %v2319 = vld [vmem:[%s2318] sm:$0x1]
    %v2321 = vlaneseq
    %v2322 = vshrl.u32 %v2321, 7
    %v2323 = vsub.s32 0, %v2322
    %v2324 = vrot.slane %v2319, %v2323
    %2326 = vmatprep.subr.mxu0 0.0
    %2327 = vmatpush1.msra.mxu0 %v2302
    %2328 = vmatprep.subr.mxu0 0.0
    %2329 = vmatpush1.msra.mxu0 %v2303
    %2330 = vmatprep.subr.mxu0 0.0
    %2331 = vmatpush1.msra.mxu0 %v2304
    %2332 = vmatprep.subr.mxu0 0.0
    %2333 = vmatpush1.msra.mxu0 %v2305
    %2334 = vmatprep.subr.mxu0 0.0
    %2335 = vmatpush1.msra.mxu0 %v2306
    %2336 = vmatprep.subr.mxu0 0.0
    %2337 = vmatpush1.msra.mxu0 %v2307
    %2338 = vmatprep.subr.mxu0 0.0
    %2339 = vmatpush1.msra.mxu0 %v2308
    %2340 = vmatprep.subr.mxu0 0.0
    %2341 = vmatpush1.msra.mxu0 %v2309
    %2342 = vmatprep.subr.mxu0 0.0
    %2343 = vmatpush1.msra.mxu0 %v2310
    %2344 = vmatprep.subr.mxu0 0.0
    %2345 = vmatpush1.msra.mxu0 %v2311
    %2346 = vmatprep.subr.mxu0 0.0
    %2347 = vmatpush1.msra.mxu0 %v2312
    %2348 = vmatprep.subr.mxu0 0.0
    %2349 = vmatpush1.msra.mxu0 %v2313
    %2350 = vmatprep.subr.mxu0 0.0
    %2351 = vmatpush1.msra.mxu0 %v2314
    %2352 = vmatprep.subr.mxu0 0.0
    %2353 = vmatpush1.msra.mxu0 %v2315
    %2354 = vmatprep.subr.mxu0 0.0
    %2355 = vmatpush1.msra.mxu0 %v2316
    %2356 = vmatprep.subr.mxu0 0.0
    %2357 = vmatpush1.msra.mxu0 %v2317
    %2358 = vmatprep.subr.mxu0 0.0
    %2359 = vmatpush1.msra.mxu0 0.0
    %2360 = vmatprep.subr.mxu0 0.0
    %2361 = vmatpush1.msra.mxu0 0.0
    %2362 = vmatprep.subr.mxu0 0.0
    %2363 = vmatpush1.msra.mxu0 0.0
    %2364 = vmatprep.subr.mxu0 0.0
    %2365 = vmatpush1.msra.mxu0 0.0
    %2366 = vmatprep.subr.mxu0 0.0
    %2367 = vmatpush1.msra.mxu0 0.0
    %2368 = vmatprep.subr.mxu0 0.0
    %2369 = vmatpush1.msra.mxu0 0.0
    %2370 = vmatprep.subr.mxu0 0.0
    %2371 = vmatpush1.msra.mxu0 0.0
    %2372 = vmatprep.subr.mxu0 0.0
    %2373 = vmatpush1.msra.mxu0 0.0
    %2374 = vmatprep.subr.mxu0 0.0
    %2375 = vmatpush1.msra.mxu0 0.0
    %2376 = vmatprep.subr.mxu0 0.0
    %2377 = vmatpush1.msra.mxu0 0.0
    %2378 = vmatprep.subr.mxu0 0.0
    %2379 = vmatpush1.msra.mxu0 0.0
    %2380 = vmatprep.subr.mxu0 0.0
    %2381 = vmatpush1.msra.mxu0 0.0
    %2382 = vmatprep.subr.mxu0 0.0
    %2383 = vmatpush1.msra.mxu0 0.0
    %2384 = vmatprep.subr.mxu0 0.0
    %2385 = vmatpush1.msra.mxu0 0.0
    %2386 = vmatprep.subr.mxu0 0.0
    %2387 = vmatpush1.msra.mxu0 0.0
    %2388 = vmatprep.subr.mxu0 0.0
    %2389 = vmatpush1.msra.mxu0 0.0
    %2390 = vmatprep.mubr.f32.mxu0 0.0
    %2391 = vmatmul.mubr.f32.gmra.mrb[0].mxu0 %v469
    %v2392 = vpop.f32.mrb[0].mxu0
    %v2393 = vadd.f32 %v2324, %v2392
    %v2394 = vpop.f32.mrb[0].mxu0
    %2395 = vmatprep.mubr.f32.mxu0 0.0
    %2396 = vmatmul.mubr.f32.gmra.mrb[0].mxu0 %v470
    %v2397 = vpop.f32.mrb[0].mxu0
    %v2398 = vadd.f32 %v2324, %v2397
    %v2399 = vpop.f32.mrb[0].mxu0
    %2400 = vdwg.mxu0
    %s2401 = scalar_lea.vmem [#allocation10], 128
    %v2402 = vld [vmem:[%s2401] sm:$0xff]
    %v2403 = vld [vmem:[%s2401 + $0x8] sm:$0xff]
    %v2404 = vld [vmem:[%s2401 + $0x10] sm:$0xff]
    %v2405 = vld [vmem:[%s2401 + $0x18] sm:$0xff]
    %v2406 = vld [vmem:[%s2401 + $0x20] sm:$0xff]
    %v2407 = vld [vmem:[%s2401 + $0x28] sm:$0xff]
    %v2408 = vld [vmem:[%s2401 + $0x30] sm:$0xff]
    %v2409 = vld [vmem:[%s2401 + $0x38] sm:$0xff]
    %v2410 = vld [vmem:[%s2401 + $0x40] sm:$0xff]
    %v2411 = vld [vmem:[%s2401 + $0x48] sm:$0xff]
    %v2412 = vld [vmem:[%s2401 + $0x50] sm:$0xff]
    %v2413 = vld [vmem:[%s2401 + $0x58] sm:$0xff]
    %v2414 = vld [vmem:[%s2401 + $0x60] sm:$0xff]
    %v2415 = vld [vmem:[%s2401 + $0x68] sm:$0xff]
    %v2416 = vld [vmem:[%s2401 + $0x70] sm:$0xff]
    %v2417 = vld [vmem:[%s2401 + $0x78] sm:$0xff]
    %s2418 = scalar_lea.vmem [#allocation15], 1
    %v2419 = vld [vmem:[%s2418] sm:$0x1]
    %v2421 = vlaneseq
    %v2422 = vshrl.u32 %v2421, 7
    %v2423 = vsub.s32 0, %v2422
    %v2424 = vrot.slane %v2419, %v2423
    %2426 = vmatprep.subr.mxu0 0.0
    %2427 = vmatpush1.msra.mxu0 %v2402
    %2428 = vmatprep.subr.mxu0 0.0
    %2429 = vmatpush1.msra.mxu0 %v2403
    %2430 = vmatprep.subr.mxu0 0.0
    %2431 = vmatpush1.msra.mxu0 %v2404
    %2432 = vmatprep.subr.mxu0 0.0
    %2433 = vmatpush1.msra.mxu0 %v2405
    %2434 = vmatprep.subr.mxu0 0.0
    %2435 = vmatpush1.msra.mxu0 %v2406
    %2436 = vmatprep.subr.mxu0 0.0
    %2437 = vmatpush1.msra.mxu0 %v2407
    %2438 = vmatprep.subr.mxu0 0.0
    %2439 = vmatpush1.msra.mxu0 %v2408
    %2440 = vmatprep.subr.mxu0 0.0
    %2441 = vmatpush1.msra.mxu0 %v2409
    %2442 = vmatprep.subr.mxu0 0.0
    %2443 = vmatpush1.msra.mxu0 %v2410
    %2444 = vmatprep.subr.mxu0 0.0
    %2445 = vmatpush1.msra.mxu0 %v2411
    %2446 = vmatprep.subr.mxu0 0.0
    %2447 = vmatpush1.msra.mxu0 %v2412
    %2448 = vmatprep.subr.mxu0 0.0
    %2449 = vmatpush1.msra.mxu0 %v2413
    %2450 = vmatprep.subr.mxu0 0.0
    %2451 = vmatpush1.msra.mxu0 %v2414
    %2452 = vmatprep.subr.mxu0 0.0
    %2453 = vmatpush1.msra.mxu0 %v2415
    %2454 = vmatprep.subr.mxu0 0.0
    %2455 = vmatpush1.msra.mxu0 %v2416
    %2456 = vmatprep.subr.mxu0 0.0
    %2457 = vmatpush1.msra.mxu0 %v2417
    %2458 = vmatprep.subr.mxu0 0.0
    %2459 = vmatpush1.msra.mxu0 0.0
    %2460 = vmatprep.subr.mxu0 0.0
    %2461 = vmatpush1.msra.mxu0 0.0
    %2462 = vmatprep.subr.mxu0 0.0
    %2463 = vmatpush1.msra.mxu0 0.0
    %2464 = vmatprep.subr.mxu0 0.0
    %2465 = vmatpush1.msra.mxu0 0.0
    %2466 = vmatprep.subr.mxu0 0.0
    %2467 = vmatpush1.msra.mxu0 0.0
    %2468 = vmatprep.subr.mxu0 0.0
    %2469 = vmatpush1.msra.mxu0 0.0
    %2470 = vmatprep.subr.mxu0 0.0
    %2471 = vmatpush1.msra.mxu0 0.0
    %2472 = vmatprep.subr.mxu0 0.0
    %2473 = vmatpush1.msra.mxu0 0.0
    %2474 = vmatprep.subr.mxu0 0.0
    %2475 = vmatpush1.msra.mxu0 0.0
    %2476 = vmatprep.subr.mxu0 0.0
    %2477 = vmatpush1.msra.mxu0 0.0
    %2478 = vmatprep.subr.mxu0 0.0
    %2479 = vmatpush1.msra.mxu0 0.0
    %2480 = vmatprep.subr.mxu0 0.0
    %2481 = vmatpush1.msra.mxu0 0.0
    %2482 = vmatprep.subr.mxu0 0.0
    %2483 = vmatpush1.msra.mxu0 0.0
    %2484 = vmatprep.subr.mxu0 0.0
    %2485 = vmatpush1.msra.mxu0 0.0
    %2486 = vmatprep.subr.mxu0 0.0
    %2487 = vmatpush1.msra.mxu0 0.0
    %2488 = vmatprep.subr.mxu0 0.0
    %2489 = vmatpush1.msra.mxu0 0.0
    %2490 = vmatprep.mubr.f32.mxu0 0.0
    %2491 = vmatmul.mubr.f32.gmra.mrb[0].mxu0 %v469
    %v2492 = vpop.f32.mrb[0].mxu0
    %v2493 = vadd.f32 %v2424, %v2492
    %v2494 = vpop.f32.mrb[0].mxu0
    %2495 = vmatprep.mubr.f32.mxu0 0.0
    %2496 = vmatmul.mubr.f32.gmra.mrb[0].mxu0 %v470
    %v2497 = vpop.f32.mrb[0].mxu0
    %v2498 = vadd.f32 %v2424, %v2497
    %v2499 = vpop.f32.mrb[0].mxu0
    %2500 = vdwg.mxu0
    %v2502 = vsel %vm198, %v2293, 0
    %v2505 = vsel %vm198, %v2393, 0
    %2507 = vmatprep.subr.mxu0 0.0
    %2508 = vmatpush1.xpose.msra.mxu0 %v2505
    %2509 = vmatprep.subr.mxu0 0.0
    %2510 = vmatpush1.xpose.msra.mxu0 0.0
    %2511 = vmatprep.subr.mxu0 0.0
    %2512 = vmatpush1.xpose.msra.mxu0 0.0
    %2513 = vmatprep.subr.mxu0 0.0
    %2514 = vmatpush1.xpose.msra.mxu0 0.0
    %2515 = vmatprep.subr.mxu0 0.0
    %2516 = vmatpush1.xpose.msra.mxu0 0.0
    %2517 = vmatprep.subr.mxu0 0.0
    %2518 = vmatpush1.xpose.msra.mxu0 0.0
    %2519 = vmatprep.subr.mxu0 0.0
    %2520 = vmatpush1.xpose.msra.mxu0 0.0
    %2521 = vmatprep.subr.mxu0 0.0
    %2522 = vmatpush1.xpose.msra.mxu0 0.0
    %2523 = vmatprep.subr.mxu0 0.0
    %2524 = vmatpush1.xpose.msra.mxu0 0.0
    %2525 = vmatprep.subr.mxu0 0.0
    %2526 = vmatpush1.xpose.msra.mxu0 0.0
    %2527 = vmatprep.subr.mxu0 0.0
    %2528 = vmatpush1.xpose.msra.mxu0 0.0
    %2529 = vmatprep.subr.mxu0 0.0
    %2530 = vmatpush1.xpose.msra.mxu0 0.0
    %2531 = vmatprep.subr.mxu0 0.0
    %2532 = vmatpush1.xpose.msra.mxu0 0.0
    %2533 = vmatprep.subr.mxu0 0.0
    %2534 = vmatpush1.xpose.msra.mxu0 0.0
    %2535 = vmatprep.subr.mxu0 0.0
    %2536 = vmatpush1.xpose.msra.mxu0 0.0
    %2537 = vmatprep.subr.mxu0 0.0
    %2538 = vmatpush1.xpose.msra.mxu0 0.0
    %2539 = vmatprep.subr.mxu0 0.0
    %2540 = vmatpush1.xpose.msra.mxu0 0.0
    %2541 = vmatprep.subr.mxu0 0.0
    %2542 = vmatpush1.xpose.msra.mxu0 0.0
    %2543 = vmatprep.subr.mxu0 0.0
    %2544 = vmatpush1.xpose.msra.mxu0 0.0
    %2545 = vmatprep.subr.mxu0 0.0
    %2546 = vmatpush1.xpose.msra.mxu0 0.0
    %2547 = vmatprep.subr.mxu0 0.0
    %2548 = vmatpush1.xpose.msra.mxu0 0.0
    %2549 = vmatprep.subr.mxu0 0.0
    %2550 = vmatpush1.xpose.msra.mxu0 0.0
    %2551 = vmatprep.subr.mxu0 0.0
    %2552 = vmatpush1.xpose.msra.mxu0 0.0
    %2553 = vmatprep.subr.mxu0 0.0
    %2554 = vmatpush1.xpose.msra.mxu0 0.0
    %2555 = vmatprep.subr.mxu0 0.0
    %2556 = vmatpush1.xpose.msra.mxu0 0.0
    %2557 = vmatprep.subr.mxu0 0.0
    %2558 = vmatpush1.xpose.msra.mxu0 0.0
    %2559 = vmatprep.subr.mxu0 0.0
    %2560 = vmatpush1.xpose.msra.mxu0 0.0
    %2561 = vmatprep.subr.mxu0 0.0
    %2562 = vmatpush1.xpose.msra.mxu0 0.0
    %2563 = vmatprep.subr.mxu0 0.0
    %2564 = vmatpush1.xpose.msra.mxu0 0.0
    %2565 = vmatprep.subr.mxu0 0.0
    %2566 = vmatpush1.xpose.msra.mxu0 0.0
    %2567 = vmatprep.subr.mxu0 0.0
    %2568 = vmatpush1.xpose.msra.mxu0 0.0
    %2569 = vmatprep.subr.mxu0 0.0
    %2570 = vmatpush1.xpose.msra.mxu0 0.0
    %2571 = vmatprep.mubr.f32.mxu0 0.0
    %2572 = vmatmul.mubr.f32.gmra.mrb[0].mxu0 %v2502
    %v2573 = vpop.f32.mrb[0].mxu0
    %v2574 = vadd.f32 0.0, %v2573
    %v2575 = vpop.f32.mrb[0].mxu0
    %2576 = vdwg.mxu0
    %v2578 = vsel %vm198, %v2298, 0
    %v2581 = vsel %vm198, %v2398, 0
    %2583 = vmatprep.subr.mxu0 0.0
    %2584 = vmatpush1.xpose.msra.mxu0 %v2581
    %2585 = vmatprep.subr.mxu0 0.0
    %2586 = vmatpush1.xpose.msra.mxu0 0.0
    %2587 = vmatprep.subr.mxu0 0.0
    %2588 = vmatpush1.xpose.msra.mxu0 0.0
    %2589 = vmatprep.subr.mxu0 0.0
    %2590 = vmatpush1.xpose.msra.mxu0 0.0
    %2591 = vmatprep.subr.mxu0 0.0
    %2592 = vmatpush1.xpose.msra.mxu0 0.0
    %2593 = vmatprep.subr.mxu0 0.0
    %2594 = vmatpush1.xpose.msra.mxu0 0.0
    %2595 = vmatprep.subr.mxu0 0.0
    %2596 = vmatpush1.xpose.msra.mxu0 0.0
    %2597 = vmatprep.subr.mxu0 0.0
    %2598 = vmatpush1.xpose.msra.mxu0 0.0
    %2599 = vmatprep.subr.mxu0 0.0
    %2600 = vmatpush1.xpose.msra.mxu0 0.0
    %2601 = vmatprep.subr.mxu0 0.0
    %2602 = vmatpush1.xpose.msra.mxu0 0.0
    %2603 = vmatprep.subr.mxu0 0.0
    %2604 = vmatpush1.xpose.msra.mxu0 0.0
    %2605 = vmatprep.subr.mxu0 0.0
    %2606 = vmatpush1.xpose.msra.mxu0 0.0
    %2607 = vmatprep.subr.mxu0 0.0
    %2608 = vmatpush1.xpose.msra.mxu0 0.0
    %2609 = vmatprep.subr.mxu0 0.0
    %2610 = vmatpush1.xpose.msra.mxu0 0.0
    %2611 = vmatprep.subr.mxu0 0.0
    %2612 = vmatpush1.xpose.msra.mxu0 0.0
    %2613 = vmatprep.subr.mxu0 0.0
    %2614 = vmatpush1.xpose.msra.mxu0 0.0
    %2615 = vmatprep.subr.mxu0 0.0
    %2616 = vmatpush1.xpose.msra.mxu0 0.0
    %2617 = vmatprep.subr.mxu0 0.0
    %2618 = vmatpush1.xpose.msra.mxu0 0.0
    %2619 = vmatprep.subr.mxu0 0.0
    %2620 = vmatpush1.xpose.msra.mxu0 0.0
    %2621 = vmatprep.subr.mxu0 0.0
    %2622 = vmatpush1.xpose.msra.mxu0 0.0
    %2623 = vmatprep.subr.mxu0 0.0
    %2624 = vmatpush1.xpose.msra.mxu0 0.0
    %2625 = vmatprep.subr.mxu0 0.0
    %2626 = vmatpush1.xpose.msra.mxu0 0.0
    %2627 = vmatprep.subr.mxu0 0.0
    %2628 = vmatpush1.xpose.msra.mxu0 0.0
    %2629 = vmatprep.subr.mxu0 0.0
    %2630 = vmatpush1.xpose.msra.mxu0 0.0
    %2631 = vmatprep.subr.mxu0 0.0
    %2632 = vmatpush1.xpose.msra.mxu0 0.0
    %2633 = vmatprep.subr.mxu0 0.0
    %2634 = vmatpush1.xpose.msra.mxu0 0.0
    %2635 = vmatprep.subr.mxu0 0.0
    %2636 = vmatpush1.xpose.msra.mxu0 0.0
    %2637 = vmatprep.subr.mxu0 0.0
    %2638 = vmatpush1.xpose.msra.mxu0 0.0
    %2639 = vmatprep.subr.mxu0 0.0
    %2640 = vmatpush1.xpose.msra.mxu0 0.0
    %2641 = vmatprep.subr.mxu0 0.0
    %2642 = vmatpush1.xpose.msra.mxu0 0.0
    %2643 = vmatprep.subr.mxu0 0.0
    %2644 = vmatpush1.xpose.msra.mxu0 0.0
    %2645 = vmatprep.subr.mxu0 0.0
    %2646 = vmatpush1.xpose.msra.mxu0 0.0
    %2647 = vmatprep.mubr.f32.mxu0 0.0
    %2648 = vmatmul.mubr.f32.gmra.mrb[0].mxu0 %v2578
    %v2649 = vpop.f32.mrb[0].mxu0
    %v2650 = vadd.f32 0.0, %v2649
    %v2651 = vpop.f32.mrb[0].mxu0
    %2652 = vdwg.mxu0
    %v2653 = vsel %vm198, %v2574, -inf
    %2654 = vmax.xlane.f32.xlu0 %v2653
    %v2655 = vpop.xlane.xlu0 %2654
    %v2656 = vsel %vm198, %v2650, -inf
    %2657 = vmax.xlane.f32.xlu0 %v2656
    %v2658 = vpop.xlane.xlu0 %2657
    %v2659 = vsub.f32 %v2574, %v2655
    %v2660 = vsub.f32 %v2650, %v2658
    %v2661 = vmul.f32 %v2659, 1.442695
    %v2662 = vpow.pop %v2661
    %v2663 = vmul.f32 %v2660, 1.442695
    %v2664 = vpow.pop %v2663
    %v2665 = vsel %vm198, %v2662, 0.0
    %2666 = vadd.xlane.f32.xlu0 %v2665
    %v2667 = vpop.xlane.xlu0 %2666
    %v2668 = vsel %vm198, %v2664, 0.0
    %2669 = vadd.xlane.f32.xlu0 %v2668
    %v2670 = vpop.xlane.xlu0 %2669
    %v2671 = vrcp.pop %v2667
    %v2672 = vmul.f32 %v2662, %v2671
    %v2673 = vrcp.pop %v2670
    %v2674 = vmul.f32 %v2664, %v2673
    %v2676 = vsel %vm198, %v2672, 0
    %2678 = vmatprep.subr.mxu0 0.0
    %2679 = vmatpush1.msra.mxu0 %v2493
    %2680 = vmatprep.subr.mxu0 0.0
    %2681 = vmatpush1.msra.mxu0 0.0
    %2682 = vmatprep.subr.mxu0 0.0
    %2683 = vmatpush1.msra.mxu0 0.0
    %2684 = vmatprep.subr.mxu0 0.0
    %2685 = vmatpush1.msra.mxu0 0.0
    %2686 = vmatprep.subr.mxu0 0.0
    %2687 = vmatpush1.msra.mxu0 0.0
    %2688 = vmatprep.subr.mxu0 0.0
    %2689 = vmatpush1.msra.mxu0 0.0
    %2690 = vmatprep.subr.mxu0 0.0
    %2691 = vmatpush1.msra.mxu0 0.0
    %2692 = vmatprep.subr.mxu0 0.0
    %2693 = vmatpush1.msra.mxu0 0.0
    %2694 = vmatprep.subr.mxu0 0.0
    %2695 = vmatpush1.msra.mxu0 0.0
    %2696 = vmatprep.subr.mxu0 0.0
    %2697 = vmatpush1.msra.mxu0 0.0
    %2698 = vmatprep.subr.mxu0 0.0
    %2699 = vmatpush1.msra.mxu0 0.0
    %2700 = vmatprep.subr.mxu0 0.0
    %2701 = vmatpush1.msra.mxu0 0.0
    %2702 = vmatprep.subr.mxu0 0.0
    %2703 = vmatpush1.msra.mxu0 0.0
    %2704 = vmatprep.subr.mxu0 0.0
    %2705 = vmatpush1.msra.mxu0 0.0
    %2706 = vmatprep.subr.mxu0 0.0
    %2707 = vmatpush1.msra.mxu0 0.0
    %2708 = vmatprep.subr.mxu0 0.0
    %2709 = vmatpush1.msra.mxu0 0.0
    %2710 = vmatprep.subr.mxu0 0.0
    %2711 = vmatpush1.msra.mxu0 0.0
    %2712 = vmatprep.subr.mxu0 0.0
    %2713 = vmatpush1.msra.mxu0 0.0
    %2714 = vmatprep.subr.mxu0 0.0
    %2715 = vmatpush1.msra.mxu0 0.0
    %2716 = vmatprep.subr.mxu0 0.0
    %2717 = vmatpush1.msra.mxu0 0.0
    %2718 = vmatprep.subr.mxu0 0.0
    %2719 = vmatpush1.msra.mxu0 0.0
    %2720 = vmatprep.subr.mxu0 0.0
    %2721 = vmatpush1.msra.mxu0 0.0
    %2722 = vmatprep.subr.mxu0 0.0
    %2723 = vmatpush1.msra.mxu0 0.0
    %2724 = vmatprep.subr.mxu0 0.0
    %2725 = vmatpush1.msra.mxu0 0.0
    %2726 = vmatprep.subr.mxu0 0.0
    %2727 = vmatpush1.msra.mxu0 0.0
    %2728 = vmatprep.subr.mxu0 0.0
    %2729 = vmatpush1.msra.mxu0 0.0
    %2730 = vmatprep.subr.mxu0 0.0
    %2731 = vmatpush1.msra.mxu0 0.0
    %2732 = vmatprep.subr.mxu0 0.0
    %2733 = vmatpush1.msra.mxu0 0.0
    %2734 = vmatprep.subr.mxu0 0.0
    %2735 = vmatpush1.msra.mxu0 0.0
    %2736 = vmatprep.subr.mxu0 0.0
    %2737 = vmatpush1.msra.mxu0 0.0
    %2738 = vmatprep.subr.mxu0 0.0
    %2739 = vmatpush1.msra.mxu0 0.0
    %2740 = vmatprep.subr.mxu0 0.0
    %2741 = vmatpush1.msra.mxu0 0.0
    %2742 = vmatprep.mubr.f32.mxu0 0.0
    %2743 = vmatmul.mubr.f32.gmra.mrb[0].mxu0 %v2676
    %v2744 = vpop.f32.mrb[0].mxu0
    %v2745 = vadd.f32 0.0, %v2744
    %v2746 = vpop.f32.mrb[0].mxu0
    %2747 = vdwg.mxu0
    %v2749 = vsel %vm198, %v2674, 0
    %2751 = vmatprep.subr.mxu0 0.0
    %2752 = vmatpush1.msra.mxu0 %v2498
    %2753 = vmatprep.subr.mxu0 0.0
    %2754 = vmatpush1.msra.mxu0 0.0
    %2755 = vmatprep.subr.mxu0 0.0
    %2756 = vmatpush1.msra.mxu0 0.0
    %2757 = vmatprep.subr.mxu0 0.0
    %2758 = vmatpush1.msra.mxu0 0.0
    %2759 = vmatprep.subr.mxu0 0.0
    %2760 = vmatpush1.msra.mxu0 0.0
    %2761 = vmatprep.subr.mxu0 0.0
    %2762 = vmatpush1.msra.mxu0 0.0
    %2763 = vmatprep.subr.mxu0 0.0
    %2764 = vmatpush1.msra.mxu0 0.0
    %2765 = vmatprep.subr.mxu0 0.0
    %2766 = vmatpush1.msra.mxu0 0.0
    %2767 = vmatprep.subr.mxu0 0.0
    %2768 = vmatpush1.msra.mxu0 0.0
    %2769 = vmatprep.subr.mxu0 0.0
    %2770 = vmatpush1.msra.mxu0 0.0
    %2771 = vmatprep.subr.mxu0 0.0
    %2772 = vmatpush1.msra.mxu0 0.0
    %2773 = vmatprep.subr.mxu0 0.0
    %2774 = vmatpush1.msra.mxu0 0.0
    %2775 = vmatprep.subr.mxu0 0.0
    %2776 = vmatpush1.msra.mxu0 0.0
    %2777 = vmatprep.subr.mxu0 0.0
    %2778 = vmatpush1.msra.mxu0 0.0
    %2779 = vmatprep.subr.mxu0 0.0
    %2780 = vmatpush1.msra.mxu0 0.0
    %2781 = vmatprep.subr.mxu0 0.0
    %2782 = vmatpush1.msra.mxu0 0.0
    %2783 = vmatprep.subr.mxu0 0.0
    %2784 = vmatpush1.msra.mxu0 0.0
    %2785 = vmatprep.subr.mxu0 0.0
    %2786 = vmatpush1.msra.mxu0 0.0
    %2787 = vmatprep.subr.mxu0 0.0
    %2788 = vmatpush1.msra.mxu0 0.0
    %2789 = vmatprep.subr.mxu0 0.0
    %2790 = vmatpush1.msra.mxu0 0.0
    %2791 = vmatprep.subr.mxu0 0.0
    %2792 = vmatpush1.msra.mxu0 0.0
    %2793 = vmatprep.subr.mxu0 0.0
    %2794 = vmatpush1.msra.mxu0 0.0
    %2795 = vmatprep.subr.mxu0 0.0
    %2796 = vmatpush1.msra.mxu0 0.0
    %2797 = vmatprep.subr.mxu0 0.0
    %2798 = vmatpush1.msra.mxu0 0.0
    %2799 = vmatprep.subr.mxu0 0.0
    %2800 = vmatpush1.msra.mxu0 0.0
    %2801 = vmatprep.subr.mxu0 0.0
    %2802 = vmatpush1.msra.mxu0 0.0
    %2803 = vmatprep.subr.mxu0 0.0
    %2804 = vmatpush1.msra.mxu0 0.0
    %2805 = vmatprep.subr.mxu0 0.0
    %2806 = vmatpush1.msra.mxu0 0.0
    %2807 = vmatprep.subr.mxu0 0.0
    %2808 = vmatpush1.msra.mxu0 0.0
    %2809 = vmatprep.subr.mxu0 0.0
    %2810 = vmatpush1.msra.mxu0 0.0
    %2811 = vmatprep.subr.mxu0 0.0
    %2812 = vmatpush1.msra.mxu0 0.0
    %2813 = vmatprep.subr.mxu0 0.0
    %2814 = vmatpush1.msra.mxu0 0.0
    %2815 = vmatprep.mubr.f32.mxu0 0.0
    %2816 = vmatmul.mubr.f32.gmra.mrb[0].mxu0 %v2749
    %v2817 = vpop.f32.mrb[0].mxu0
    %v2818 = vadd.f32 0.0, %v2817
    %v2819 = vpop.f32.mrb[0].mxu0
    %2820 = vdwg.mxu0
    %2821 = vrot.lane.b32.xlu0 %v2293, 120
    %v2822 = vpop.permute.xlu0 %2821
    %2823 = vrot.lane.b32.xlu0 %v2393, 120
    %v2824 = vpop.permute.xlu0 %2823
    %v2825 = vsel %vm198, %v2822, 0
    %v2827 = vsel %vm198, %v2824, 0
    %2829 = vmatprep.subr.mxu0 0.0
    %2830 = vmatpush1.xpose.msra.mxu0 %v2827
    %2831 = vmatprep.subr.mxu0 0.0
    %2832 = vmatpush1.xpose.msra.mxu0 0.0
    %2833 = vmatprep.subr.mxu0 0.0
    %2834 = vmatpush1.xpose.msra.mxu0 0.0
    %2835 = vmatprep.subr.mxu0 0.0
    %2836 = vmatpush1.xpose.msra.mxu0 0.0
    %2837 = vmatprep.subr.mxu0 0.0
    %2838 = vmatpush1.xpose.msra.mxu0 0.0
    %2839 = vmatprep.subr.mxu0 0.0
    %2840 = vmatpush1.xpose.msra.mxu0 0.0
    %2841 = vmatprep.subr.mxu0 0.0
    %2842 = vmatpush1.xpose.msra.mxu0 0.0
    %2843 = vmatprep.subr.mxu0 0.0
    %2844 = vmatpush1.xpose.msra.mxu0 0.0
    %2845 = vmatprep.subr.mxu0 0.0
    %2846 = vmatpush1.xpose.msra.mxu0 0.0
    %2847 = vmatprep.subr.mxu0 0.0
    %2848 = vmatpush1.xpose.msra.mxu0 0.0
    %2849 = vmatprep.subr.mxu0 0.0
    %2850 = vmatpush1.xpose.msra.mxu0 0.0
    %2851 = vmatprep.subr.mxu0 0.0
    %2852 = vmatpush1.xpose.msra.mxu0 0.0
    %2853 = vmatprep.subr.mxu0 0.0
    %2854 = vmatpush1.xpose.msra.mxu0 0.0
    %2855 = vmatprep.subr.mxu0 0.0
    %2856 = vmatpush1.xpose.msra.mxu0 0.0
    %2857 = vmatprep.subr.mxu0 0.0
    %2858 = vmatpush1.xpose.msra.mxu0 0.0
    %2859 = vmatprep.subr.mxu0 0.0
    %2860 = vmatpush1.xpose.msra.mxu0 0.0
    %2861 = vmatprep.subr.mxu0 0.0
    %2862 = vmatpush1.xpose.msra.mxu0 0.0
    %2863 = vmatprep.subr.mxu0 0.0
    %2864 = vmatpush1.xpose.msra.mxu0 0.0
    %2865 = vmatprep.subr.mxu0 0.0
    %2866 = vmatpush1.xpose.msra.mxu0 0.0
    %2867 = vmatprep.subr.mxu0 0.0
    %2868 = vmatpush1.xpose.msra.mxu0 0.0
    %2869 = vmatprep.subr.mxu0 0.0
    %2870 = vmatpush1.xpose.msra.mxu0 0.0
    %2871 = vmatprep.subr.mxu0 0.0
    %2872 = vmatpush1.xpose.msra.mxu0 0.0
    %2873 = vmatprep.subr.mxu0 0.0
    %2874 = vmatpush1.xpose.msra.mxu0 0.0
    %2875 = vmatprep.subr.mxu0 0.0
    %2876 = vmatpush1.xpose.msra.mxu0 0.0
    %2877 = vmatprep.subr.mxu0 0.0
    %2878 = vmatpush1.xpose.msra.mxu0 0.0
    %2879 = vmatprep.subr.mxu0 0.0
    %2880 = vmatpush1.xpose.msra.mxu0 0.0
    %2881 = vmatprep.subr.mxu0 0.0
    %2882 = vmatpush1.xpose.msra.mxu0 0.0
    %2883 = vmatprep.subr.mxu0 0.0
    %2884 = vmatpush1.xpose.msra.mxu0 0.0
    %2885 = vmatprep.subr.mxu0 0.0
    %2886 = vmatpush1.xpose.msra.mxu0 0.0
    %2887 = vmatprep.subr.mxu0 0.0
    %2888 = vmatpush1.xpose.msra.mxu0 0.0
    %2889 = vmatprep.subr.mxu0 0.0
    %2890 = vmatpush1.xpose.msra.mxu0 0.0
    %2891 = vmatprep.subr.mxu0 0.0
    %2892 = vmatpush1.xpose.msra.mxu0 0.0
    %2893 = vmatprep.mubr.f32.mxu0 0.0
    %2894 = vmatmul.mubr.f32.gmra.mrb[0].mxu0 %v2825
    %v2895 = vpop.f32.mrb[0].mxu0
    %v2896 = vadd.f32 0.0, %v2895
    %v2897 = vpop.f32.mrb[0].mxu0
    %2898 = vdwg.mxu0
    %2899 = vrot.lane.b32.xlu0 %v2298, 120
    %v2900 = vpop.permute.xlu0 %2899
    %2901 = vrot.lane.b32.xlu0 %v2398, 120
    %v2902 = vpop.permute.xlu0 %2901
    %v2903 = vsel %vm198, %v2900, 0
    %v2905 = vsel %vm198, %v2902, 0
    %2907 = vmatprep.subr.mxu0 0.0
    %2908 = vmatpush1.xpose.msra.mxu0 %v2905
    %2909 = vmatprep.subr.mxu0 0.0
    %2910 = vmatpush1.xpose.msra.mxu0 0.0
    %2911 = vmatprep.subr.mxu0 0.0
    %2912 = vmatpush1.xpose.msra.mxu0 0.0
    %2913 = vmatprep.subr.mxu0 0.0
    %2914 = vmatpush1.xpose.msra.mxu0 0.0
    %2915 = vmatprep.subr.mxu0 0.0
    %2916 = vmatpush1.xpose.msra.mxu0 0.0
    %2917 = vmatprep.subr.mxu0 0.0
    %2918 = vmatpush1.xpose.msra.mxu0 0.0
    %2919 = vmatprep.subr.mxu0 0.0
    %2920 = vmatpush1.xpose.msra.mxu0 0.0
    %2921 = vmatprep.subr.mxu0 0.0
    %2922 = vmatpush1.xpose.msra.mxu0 0.0
    %2923 = vmatprep.subr.mxu0 0.0
    %2924 = vmatpush1.xpose.msra.mxu0 0.0
    %2925 = vmatprep.subr.mxu0 0.0
    %2926 = vmatpush1.xpose.msra.mxu0 0.0
    %2927 = vmatprep.subr.mxu0 0.0
    %2928 = vmatpush1.xpose.msra.mxu0 0.0
    %2929 = vmatprep.subr.mxu0 0.0
    %2930 = vmatpush1.xpose.msra.mxu0 0.0
    %2931 = vmatprep.subr.mxu0 0.0
    %2932 = vmatpush1.xpose.msra.mxu0 0.0
    %2933 = vmatprep.subr.mxu0 0.0
    %2934 = vmatpush1.xpose.msra.mxu0 0.0
    %2935 = vmatprep.subr.mxu0 0.0
    %2936 = vmatpush1.xpose.msra.mxu0 0.0
    %2937 = vmatprep.subr.mxu0 0.0
    %2938 = vmatpush1.xpose.msra.mxu0 0.0
    %2939 = vmatprep.subr.mxu0 0.0
    %2940 = vmatpush1.xpose.msra.mxu0 0.0
    %2941 = vmatprep.subr.mxu0 0.0
    %2942 = vmatpush1.xpose.msra.mxu0 0.0
    %2943 = vmatprep.subr.mxu0 0.0
    %2944 = vmatpush1.xpose.msra.mxu0 0.0
    %2945 = vmatprep.subr.mxu0 0.0
    %2946 = vmatpush1.xpose.msra.mxu0 0.0
    %2947 = vmatprep.subr.mxu0 0.0
    %2948 = vmatpush1.xpose.msra.mxu0 0.0
    %2949 = vmatprep.subr.mxu0 0.0
    %2950 = vmatpush1.xpose.msra.mxu0 0.0
    %2951 = vmatprep.subr.mxu0 0.0
    %2952 = vmatpush1.xpose.msra.mxu0 0.0
    %2953 = vmatprep.subr.mxu0 0.0
    %2954 = vmatpush1.xpose.msra.mxu0 0.0
    %2955 = vmatprep.subr.mxu0 0.0
    %2956 = vmatpush1.xpose.msra.mxu0 0.0
    %2957 = vmatprep.subr.mxu0 0.0
    %2958 = vmatpush1.xpose.msra.mxu0 0.0
    %2959 = vmatprep.subr.mxu0 0.0
    %2960 = vmatpush1.xpose.msra.mxu0 0.0
    %2961 = vmatprep.subr.mxu0 0.0
    %2962 = vmatpush1.xpose.msra.mxu0 0.0
    %2963 = vmatprep.subr.mxu0 0.0
    %2964 = vmatpush1.xpose.msra.mxu0 0.0
    %2965 = vmatprep.subr.mxu0 0.0
    %2966 = vmatpush1.xpose.msra.mxu0 0.0
    %2967 = vmatprep.subr.mxu0 0.0
    %2968 = vmatpush1.xpose.msra.mxu0 0.0
    %2969 = vmatprep.subr.mxu0 0.0
    %2970 = vmatpush1.xpose.msra.mxu0 0.0
    %2971 = vmatprep.mubr.f32.mxu0 0.0
    %2972 = vmatmul.mubr.f32.gmra.mrb[0].mxu0 %v2903
    %v2973 = vpop.f32.mrb[0].mxu0
    %v2974 = vadd.f32 0.0, %v2973
    %v2975 = vpop.f32.mrb[0].mxu0
    %2976 = vdwg.mxu0
    %v2977 = vsel %vm198, %v2896, -inf
    %2978 = vmax.xlane.f32.xlu0 %v2977
    %v2979 = vpop.xlane.xlu0 %2978
    %v2980 = vsel %vm198, %v2974, -inf
    %2981 = vmax.xlane.f32.xlu0 %v2980
    %v2982 = vpop.xlane.xlu0 %2981
    %v2983 = vsub.f32 %v2896, %v2979
    %v2984 = vsub.f32 %v2974, %v2982
    %v2985 = vmul.f32 %v2983, 1.442695
    %v2986 = vpow.pop %v2985
    %v2987 = vmul.f32 %v2984, 1.442695
    %v2988 = vpow.pop %v2987
    %v2989 = vsel %vm198, %v2986, 0.0
    %2990 = vadd.xlane.f32.xlu0 %v2989
    %v2991 = vpop.xlane.xlu0 %2990
    %v2992 = vsel %vm198, %v2988, 0.0
    %2993 = vadd.xlane.f32.xlu0 %v2992
    %v2994 = vpop.xlane.xlu0 %2993
    %v2995 = vrcp.pop %v2991
    %v2996 = vmul.f32 %v2986, %v2995
    %v2997 = vrcp.pop %v2994
    %v2998 = vmul.f32 %v2988, %v2997
    %3000 = vrot.lane.b32.xlu0 %v2493, 120
    %v3001 = vpop.permute.xlu0 %3000
    %v3004 = vsel %vm198, %v2996, 0
    %3006 = vmatprep.subr.mxu0 0.0
    %3007 = vmatpush1.msra.mxu0 %v3001
    %3008 = vmatprep.subr.mxu0 0.0
    %3009 = vmatpush1.msra.mxu0 0.0
    %3010 = vmatprep.subr.mxu0 0.0
    %3011 = vmatpush1.msra.mxu0 0.0
    %3012 = vmatprep.subr.mxu0 0.0
    %3013 = vmatpush1.msra.mxu0 0.0
    %3014 = vmatprep.subr.mxu0 0.0
    %3015 = vmatpush1.msra.mxu0 0.0
    %3016 = vmatprep.subr.mxu0 0.0
    %3017 = vmatpush1.msra.mxu0 0.0
    %3018 = vmatprep.subr.mxu0 0.0
    %3019 = vmatpush1.msra.mxu0 0.0
    %3020 = vmatprep.subr.mxu0 0.0
    %3021 = vmatpush1.msra.mxu0 0.0
    %3022 = vmatprep.subr.mxu0 0.0
    %3023 = vmatpush1.msra.mxu0 0.0
    %3024 = vmatprep.subr.mxu0 0.0
    %3025 = vmatpush1.msra.mxu0 0.0
    %3026 = vmatprep.subr.mxu0 0.0
    %3027 = vmatpush1.msra.mxu0 0.0
    %3028 = vmatprep.subr.mxu0 0.0
    %3029 = vmatpush1.msra.mxu0 0.0
    %3030 = vmatprep.subr.mxu0 0.0
    %3031 = vmatpush1.msra.mxu0 0.0
    %3032 = vmatprep.subr.mxu0 0.0
    %3033 = vmatpush1.msra.mxu0 0.0
    %3034 = vmatprep.subr.mxu0 0.0
    %3035 = vmatpush1.msra.mxu0 0.0
    %3036 = vmatprep.subr.mxu0 0.0
    %3037 = vmatpush1.msra.mxu0 0.0
    %3038 = vmatprep.subr.mxu0 0.0
    %3039 = vmatpush1.msra.mxu0 0.0
    %3040 = vmatprep.subr.mxu0 0.0
    %3041 = vmatpush1.msra.mxu0 0.0
    %3042 = vmatprep.subr.mxu0 0.0
    %3043 = vmatpush1.msra.mxu0 0.0
    %3044 = vmatprep.subr.mxu0 0.0
    %3045 = vmatpush1.msra.mxu0 0.0
    %3046 = vmatprep.subr.mxu0 0.0
    %3047 = vmatpush1.msra.mxu0 0.0
    %3048 = vmatprep.subr.mxu0 0.0
    %3049 = vmatpush1.msra.mxu0 0.0
    %3050 = vmatprep.subr.mxu0 0.0
    %3051 = vmatpush1.msra.mxu0 0.0
    %3052 = vmatprep.subr.mxu0 0.0
    %3053 = vmatpush1.msra.mxu0 0.0
    %3054 = vmatprep.subr.mxu0 0.0
    %3055 = vmatpush1.msra.mxu0 0.0
    %3056 = vmatprep.subr.mxu0 0.0
    %3057 = vmatpush1.msra.mxu0 0.0
    %3058 = vmatprep.subr.mxu0 0.0
    %3059 = vmatpush1.msra.mxu0 0.0
    %3060 = vmatprep.subr.mxu0 0.0
    %3061 = vmatpush1.msra.mxu0 0.0
    %3062 = vmatprep.subr.mxu0 0.0
    %3063 = vmatpush1.msra.mxu0 0.0
    %3064 = vmatprep.subr.mxu0 0.0
    %3065 = vmatpush1.msra.mxu0 0.0
    %3066 = vmatprep.subr.mxu0 0.0
    %3067 = vmatpush1.msra.mxu0 0.0
    %3068 = vmatprep.subr.mxu0 0.0
    %3069 = vmatpush1.msra.mxu0 0.0
    %3070 = vmatprep.mubr.f32.mxu0 0.0
    %3071 = vmatmul.mubr.f32.gmra.mrb[0].mxu0 %v3004
    %v3072 = vpop.f32.mrb[0].mxu0
    %v3073 = vadd.f32 0.0, %v3072
    %v3074 = vpop.f32.mrb[0].mxu0
    %3075 = vdwg.mxu0
    %3077 = vrot.lane.b32.xlu0 %v2498, 120
    %v3078 = vpop.permute.xlu0 %3077
    %v3081 = vsel %vm198, %v2998, 0
    %3083 = vmatprep.subr.mxu0 0.0
    %3084 = vmatpush1.msra.mxu0 %v3078
    %3085 = vmatprep.subr.mxu0 0.0
    %3086 = vmatpush1.msra.mxu0 0.0
    %3087 = vmatprep.subr.mxu0 0.0
    %3088 = vmatpush1.msra.mxu0 0.0
    %3089 = vmatprep.subr.mxu0 0.0
    %3090 = vmatpush1.msra.mxu0 0.0
    %3091 = vmatprep.subr.mxu0 0.0
    %3092 = vmatpush1.msra.mxu0 0.0
    %3093 = vmatprep.subr.mxu0 0.0
    %3094 = vmatpush1.msra.mxu0 0.0
    %3095 = vmatprep.subr.mxu0 0.0
    %3096 = vmatpush1.msra.mxu0 0.0
    %3097 = vmatprep.subr.mxu0 0.0
    %3098 = vmatpush1.msra.mxu0 0.0
    %3099 = vmatprep.subr.mxu0 0.0
    %3100 = vmatpush1.msra.mxu0 0.0
    %3101 = vmatprep.subr.mxu0 0.0
    %3102 = vmatpush1.msra.mxu0 0.0
    %3103 = vmatprep.subr.mxu0 0.0
    %3104 = vmatpush1.msra.mxu0 0.0
    %3105 = vmatprep.subr.mxu0 0.0
    %3106 = vmatpush1.msra.mxu0 0.0
    %3107 = vmatprep.subr.mxu0 0.0
    %3108 = vmatpush1.msra.mxu0 0.0
    %3109 = vmatprep.subr.mxu0 0.0
    %3110 = vmatpush1.msra.mxu0 0.0
    %3111 = vmatprep.subr.mxu0 0.0
    %3112 = vmatpush1.msra.mxu0 0.0
    %3113 = vmatprep.subr.mxu0 0.0
    %3114 = vmatpush1.msra.mxu0 0.0
    %3115 = vmatprep.subr.mxu0 0.0
    %3116 = vmatpush1.msra.mxu0 0.0
    %3117 = vmatprep.subr.mxu0 0.0
    %3118 = vmatpush1.msra.mxu0 0.0
    %3119 = vmatprep.subr.mxu0 0.0
    %3120 = vmatpush1.msra.mxu0 0.0
    %3121 = vmatprep.subr.mxu0 0.0
    %3122 = vmatpush1.msra.mxu0 0.0
    %3123 = vmatprep.subr.mxu0 0.0
    %3124 = vmatpush1.msra.mxu0 0.0
    %3125 = vmatprep.subr.mxu0 0.0
    %3126 = vmatpush1.msra.mxu0 0.0
    %3127 = vmatprep.subr.mxu0 0.0
    %3128 = vmatpush1.msra.mxu0 0.0
    %3129 = vmatprep.subr.mxu0 0.0
    %3130 = vmatpush1.msra.mxu0 0.0
    %3131 = vmatprep.subr.mxu0 0.0
    %3132 = vmatpush1.msra.mxu0 0.0
    %3133 = vmatprep.subr.mxu0 0.0
    %3134 = vmatpush1.msra.mxu0 0.0
    %3135 = vmatprep.subr.mxu0 0.0
    %3136 = vmatpush1.msra.mxu0 0.0
    %3137 = vmatprep.subr.mxu0 0.0
    %3138 = vmatpush1.msra.mxu0 0.0
    %3139 = vmatprep.subr.mxu0 0.0
    %3140 = vmatpush1.msra.mxu0 0.0
    %3141 = vmatprep.subr.mxu0 0.0
    %3142 = vmatpush1.msra.mxu0 0.0
    %3143 = vmatprep.subr.mxu0 0.0
    %3144 = vmatpush1.msra.mxu0 0.0
    %3145 = vmatprep.subr.mxu0 0.0
    %3146 = vmatpush1.msra.mxu0 0.0
    %3147 = vmatprep.mubr.f32.mxu0 0.0
    %3148 = vmatmul.mubr.f32.gmra.mrb[0].mxu0 %v3081
    %v3149 = vpop.f32.mrb[0].mxu0
    %v3150 = vadd.f32 0.0, %v3149
    %v3151 = vpop.f32.mrb[0].mxu0
    %3152 = vdwg.mxu0
    %3153 = vrot.lane.b32.xlu0 %v2293, 112
    %v3154 = vpop.permute.xlu0 %3153
    %3155 = vrot.lane.b32.xlu0 %v2393, 112
    %v3156 = vpop.permute.xlu0 %3155
    %v3157 = vsel %vm198, %v3154, 0
    %v3159 = vsel %vm198, %v3156, 0
    %3161 = vmatprep.subr.mxu0 0.0
    %3162 = vmatpush1.xpose.msra.mxu0 %v3159
    %3163 = vmatprep.subr.mxu0 0.0
    %3164 = vmatpush1.xpose.msra.mxu0 0.0
    %3165 = vmatprep.subr.mxu0 0.0
    %3166 = vmatpush1.xpose.msra.mxu0 0.0
    %3167 = vmatprep.subr.mxu0 0.0
    %3168 = vmatpush1.xpose.msra.mxu0 0.0
    %3169 = vmatprep.subr.mxu0 0.0
    %3170 = vmatpush1.xpose.msra.mxu0 0.0
    %3171 = vmatprep.subr.mxu0 0.0
    %3172 = vmatpush1.xpose.msra.mxu0 0.0
    %3173 = vmatprep.subr.mxu0 0.0
    %3174 = vmatpush1.xpose.msra.mxu0 0.0
    %3175 = vmatprep.subr.mxu0 0.0
    %3176 = vmatpush1.xpose.msra.mxu0 0.0
    %3177 = vmatprep.subr.mxu0 0.0
    %3178 = vmatpush1.xpose.msra.mxu0 0.0
    %3179 = vmatprep.subr.mxu0 0.0
    %3180 = vmatpush1.xpose.msra.mxu0 0.0
    %3181 = vmatprep.subr.mxu0 0.0
    %3182 = vmatpush1.xpose.msra.mxu0 0.0
    %3183 = vmatprep.subr.mxu0 0.0
    %3184 = vmatpush1.xpose.msra.mxu0 0.0
    %3185 = vmatprep.subr.mxu0 0.0
    %3186 = vmatpush1.xpose.msra.mxu0 0.0
    %3187 = vmatprep.subr.mxu0 0.0
    %3188 = vmatpush1.xpose.msra.mxu0 0.0
    %3189 = vmatprep.subr.mxu0 0.0
    %3190 = vmatpush1.xpose.msra.mxu0 0.0
    %3191 = vmatprep.subr.mxu0 0.0
    %3192 = vmatpush1.xpose.msra.mxu0 0.0
    %3193 = vmatprep.subr.mxu0 0.0
    %3194 = vmatpush1.xpose.msra.mxu0 0.0
    %3195 = vmatprep.subr.mxu0 0.0
    %3196 = vmatpush1.xpose.msra.mxu0 0.0
    %3197 = vmatprep.subr.mxu0 0.0
    %3198 = vmatpush1.xpose.msra.mxu0 0.0
    %3199 = vmatprep.subr.mxu0 0.0
    %3200 = vmatpush1.xpose.msra.mxu0 0.0
    %3201 = vmatprep.subr.mxu0 0.0
    %3202 = vmatpush1.xpose.msra.mxu0 0.0
    %3203 = vmatprep.subr.mxu0 0.0
    %3204 = vmatpush1.xpose.msra.mxu0 0.0
    %3205 = vmatprep.subr.mxu0 0.0
    %3206 = vmatpush1.xpose.msra.mxu0 0.0
    %3207 = vmatprep.subr.mxu0 0.0
    %3208 = vmatpush1.xpose.msra.mxu0 0.0
    %3209 = vmatprep.subr.mxu0 0.0
    %3210 = vmatpush1.xpose.msra.mxu0 0.0
    %3211 = vmatprep.subr.mxu0 0.0
    %3212 = vmatpush1.xpose.msra.mxu0 0.0
    %3213 = vmatprep.subr.mxu0 0.0
    %3214 = vmatpush1.xpose.msra.mxu0 0.0
    %3215 = vmatprep.subr.mxu0 0.0
    %3216 = vmatpush1.xpose.msra.mxu0 0.0
    %3217 = vmatprep.subr.mxu0 0.0
    %3218 = vmatpush1.xpose.msra.mxu0 0.0
    %3219 = vmatprep.subr.mxu0 0.0
    %3220 = vmatpush1.xpose.msra.mxu0 0.0
    %3221 = vmatprep.subr.mxu0 0.0
    %3222 = vmatpush1.xpose.msra.mxu0 0.0
    %3223 = vmatprep.subr.mxu0 0.0
    %3224 = vmatpush1.xpose.msra.mxu0 0.0
    %3225 = vmatprep.mubr.f32.mxu0 0.0
    %3226 = vmatmul.mubr.f32.gmra.mrb[0].mxu0 %v3157
    %v3227 = vpop.f32.mrb[0].mxu0
    %v3228 = vadd.f32 0.0, %v3227
    %v3229 = vpop.f32.mrb[0].mxu0
    %3230 = vdwg.mxu0
    %3231 = vrot.lane.b32.xlu0 %v2298, 112
    %v3232 = vpop.permute.xlu0 %3231
    %3233 = vrot.lane.b32.xlu0 %v2398, 112
    %v3234 = vpop.permute.xlu0 %3233
    %v3235 = vsel %vm198, %v3232, 0
    %v3237 = vsel %vm198, %v3234, 0
    %3239 = vmatprep.subr.mxu0 0.0
    %3240 = vmatpush1.xpose.msra.mxu0 %v3237
    %3241 = vmatprep.subr.mxu0 0.0
    %3242 = vmatpush1.xpose.msra.mxu0 0.0
    %3243 = vmatprep.subr.mxu0 0.0
    %3244 = vmatpush1.xpose.msra.mxu0 0.0
    %3245 = vmatprep.subr.mxu0 0.0
    %3246 = vmatpush1.xpose.msra.mxu0 0.0
    %3247 = vmatprep.subr.mxu0 0.0
    %3248 = vmatpush1.xpose.msra.mxu0 0.0
    %3249 = vmatprep.subr.mxu0 0.0
    %3250 = vmatpush1.xpose.msra.mxu0 0.0
    %3251 = vmatprep.subr.mxu0 0.0
    %3252 = vmatpush1.xpose.msra.mxu0 0.0
    %3253 = vmatprep.subr.mxu0 0.0
    %3254 = vmatpush1.xpose.msra.mxu0 0.0
    %3255 = vmatprep.subr.mxu0 0.0
    %3256 = vmatpush1.xpose.msra.mxu0 0.0
    %3257 = vmatprep.subr.mxu0 0.0
    %3258 = vmatpush1.xpose.msra.mxu0 0.0
    %3259 = vmatprep.subr.mxu0 0.0
    %3260 = vmatpush1.xpose.msra.mxu0 0.0
    %3261 = vmatprep.subr.mxu0 0.0
    %3262 = vmatpush1.xpose.msra.mxu0 0.0
    %3263 = vmatprep.subr.mxu0 0.0
    %3264 = vmatpush1.xpose.msra.mxu0 0.0
    %3265 = vmatprep.subr.mxu0 0.0
    %3266 = vmatpush1.xpose.msra.mxu0 0.0
    %3267 = vmatprep.subr.mxu0 0.0
    %3268 = vmatpush1.xpose.msra.mxu0 0.0
    %3269 = vmatprep.subr.mxu0 0.0
    %3270 = vmatpush1.xpose.msra.mxu0 0.0
    %3271 = vmatprep.subr.mxu0 0.0
    %3272 = vmatpush1.xpose.msra.mxu0 0.0
    %3273 = vmatprep.subr.mxu0 0.0
    %3274 = vmatpush1.xpose.msra.mxu0 0.0
    %3275 = vmatprep.subr.mxu0 0.0
    %3276 = vmatpush1.xpose.msra.mxu0 0.0
    %3277 = vmatprep.subr.mxu0 0.0
    %3278 = vmatpush1.xpose.msra.mxu0 0.0
    %3279 = vmatprep.subr.mxu0 0.0
    %3280 = vmatpush1.xpose.msra.mxu0 0.0
    %3281 = vmatprep.subr.mxu0 0.0
    %3282 = vmatpush1.xpose.msra.mxu0 0.0
    %3283 = vmatprep.subr.mxu0 0.0
    %3284 = vmatpush1.xpose.msra.mxu0 0.0
    %3285 = vmatprep.subr.mxu0 0.0
    %3286 = vmatpush1.xpose.msra.mxu0 0.0
    %3287 = vmatprep.subr.mxu0 0.0
    %3288 = vmatpush1.xpose.msra.mxu0 0.0
    %3289 = vmatprep.subr.mxu0 0.0
    %3290 = vmatpush1.xpose.msra.mxu0 0.0
    %3291 = vmatprep.subr.mxu0 0.0
    %3292 = vmatpush1.xpose.msra.mxu0 0.0
    %3293 = vmatprep.subr.mxu0 0.0
    %3294 = vmatpush1.xpose.msra.mxu0 0.0
    %3295 = vmatprep.subr.mxu0 0.0
    %3296 = vmatpush1.xpose.msra.mxu0 0.0
    %3297 = vmatprep.subr.mxu0 0.0
    %3298 = vmatpush1.xpose.msra.mxu0 0.0
    %3299 = vmatprep.subr.mxu0 0.0
    %3300 = vmatpush1.xpose.msra.mxu0 0.0
    %3301 = vmatprep.subr.mxu0 0.0
    %3302 = vmatpush1.xpose.msra.mxu0 0.0
    %3303 = vmatprep.mubr.f32.mxu0 0.0
    %3304 = vmatmul.mubr.f32.gmra.mrb[0].mxu0 %v3235
    %v3305 = vpop.f32.mrb[0].mxu0
    %v3306 = vadd.f32 0.0, %v3305
    %v3307 = vpop.f32.mrb[0].mxu0
    %3308 = vdwg.mxu0
    %v3309 = vsel %vm198, %v3228, -inf
    %3310 = vmax.xlane.f32.xlu0 %v3309
    %v3311 = vpop.xlane.xlu0 %3310
    %v3312 = vsel %vm198, %v3306, -inf
    %3313 = vmax.xlane.f32.xlu0 %v3312
    %v3314 = vpop.xlane.xlu0 %3313
    %v3315 = vsub.f32 %v3228, %v3311
    %v3316 = vsub.f32 %v3306, %v3314
    %v3317 = vmul.f32 %v3315, 1.442695
    %v3318 = vpow.pop %v3317
    %v3319 = vmul.f32 %v3316, 1.442695
    %v3320 = vpow.pop %v3319
    %v3321 = vsel %vm198, %v3318, 0.0
    %3322 = vadd.xlane.f32.xlu0 %v3321
    %v3323 = vpop.xlane.xlu0 %3322
    %v3324 = vsel %vm198, %v3320, 0.0
    %3325 = vadd.xlane.f32.xlu0 %v3324
    %v3326 = vpop.xlane.xlu0 %3325
    %v3327 = vrcp.pop %v3323
    %v3328 = vmul.f32 %v3318, %v3327
    %v3329 = vrcp.pop %v3326
    %v3330 = vmul.f32 %v3320, %v3329
    %3331 = vrot.lane.b32.xlu0 %v2493, 112
    %v3332 = vpop.permute.xlu0 %3331
    %v3335 = vsel %vm198, %v3328, 0
    %3337 = vmatprep.subr.mxu0 0.0
    %3338 = vmatpush1.msra.mxu0 %v3332
    %3339 = vmatprep.subr.mxu0 0.0
    %3340 = vmatpush1.msra.mxu0 0.0
    %3341 = vmatprep.subr.mxu0 0.0
    %3342 = vmatpush1.msra.mxu0 0.0
    %3343 = vmatprep.subr.mxu0 0.0
    %3344 = vmatpush1.msra.mxu0 0.0
    %3345 = vmatprep.subr.mxu0 0.0
    %3346 = vmatpush1.msra.mxu0 0.0
    %3347 = vmatprep.subr.mxu0 0.0
    %3348 = vmatpush1.msra.mxu0 0.0
    %3349 = vmatprep.subr.mxu0 0.0
    %3350 = vmatpush1.msra.mxu0 0.0
    %3351 = vmatprep.subr.mxu0 0.0
    %3352 = vmatpush1.msra.mxu0 0.0
    %3353 = vmatprep.subr.mxu0 0.0
    %3354 = vmatpush1.msra.mxu0 0.0
    %3355 = vmatprep.subr.mxu0 0.0
    %3356 = vmatpush1.msra.mxu0 0.0
    %3357 = vmatprep.subr.mxu0 0.0
    %3358 = vmatpush1.msra.mxu0 0.0
    %3359 = vmatprep.subr.mxu0 0.0
    %3360 = vmatpush1.msra.mxu0 0.0
    %3361 = vmatprep.subr.mxu0 0.0
    %3362 = vmatpush1.msra.mxu0 0.0
    %3363 = vmatprep.subr.mxu0 0.0
    %3364 = vmatpush1.msra.mxu0 0.0
    %3365 = vmatprep.subr.mxu0 0.0
    %3366 = vmatpush1.msra.mxu0 0.0
    %3367 = vmatprep.subr.mxu0 0.0
    %3368 = vmatpush1.msra.mxu0 0.0
    %3369 = vmatprep.subr.mxu0 0.0
    %3370 = vmatpush1.msra.mxu0 0.0
    %3371 = vmatprep.subr.mxu0 0.0
    %3372 = vmatpush1.msra.mxu0 0.0
    %3373 = vmatprep.subr.mxu0 0.0
    %3374 = vmatpush1.msra.mxu0 0.0
    %3375 = vmatprep.subr.mxu0 0.0
    %3376 = vmatpush1.msra.mxu0 0.0
    %3377 = vmatprep.subr.mxu0 0.0
    %3378 = vmatpush1.msra.mxu0 0.0
    %3379 = vmatprep.subr.mxu0 0.0
    %3380 = vmatpush1.msra.mxu0 0.0
    %3381 = vmatprep.subr.mxu0 0.0
    %3382 = vmatpush1.msra.mxu0 0.0
    %3383 = vmatprep.subr.mxu0 0.0
    %3384 = vmatpush1.msra.mxu0 0.0
    %3385 = vmatprep.subr.mxu0 0.0
    %3386 = vmatpush1.msra.mxu0 0.0
    %3387 = vmatprep.subr.mxu0 0.0
    %3388 = vmatpush1.msra.mxu0 0.0
    %3389 = vmatprep.subr.mxu0 0.0
    %3390 = vmatpush1.msra.mxu0 0.0
    %3391 = vmatprep.subr.mxu0 0.0
    %3392 = vmatpush1.msra.mxu0 0.0
    %3393 = vmatprep.subr.mxu0 0.0
    %3394 = vmatpush1.msra.mxu0 0.0
    %3395 = vmatprep.subr.mxu0 0.0
    %3396 = vmatpush1.msra.mxu0 0.0
    %3397 = vmatprep.subr.mxu0 0.0
    %3398 = vmatpush1.msra.mxu0 0.0
    %3399 = vmatprep.subr.mxu0 0.0
    %3400 = vmatpush1.msra.mxu0 0.0
    %3401 = vmatprep.mubr.f32.mxu0 0.0
    %3402 = vmatmul.mubr.f32.gmra.mrb[0].mxu0 %v3335
    %v3403 = vpop.f32.mrb[0].mxu0
    %v3404 = vadd.f32 0.0, %v3403
    %v3405 = vpop.f32.mrb[0].mxu0
    %3406 = vdwg.mxu0
    %3407 = vrot.lane.b32.xlu0 %v2498, 112
    %v3408 = vpop.permute.xlu0 %3407
    %v3411 = vsel %vm198, %v3330, 0
    %3413 = vmatprep.subr.mxu0 0.0
    %3414 = vmatpush1.msra.mxu0 %v3408
    %3415 = vmatprep.subr.mxu0 0.0
    %3416 = vmatpush1.msra.mxu0 0.0
    %3417 = vmatprep.subr.mxu0 0.0
    %3418 = vmatpush1.msra.mxu0 0.0
    %3419 = vmatprep.subr.mxu0 0.0
    %3420 = vmatpush1.msra.mxu0 0.0
    %3421 = vmatprep.subr.mxu0 0.0
    %3422 = vmatpush1.msra.mxu0 0.0
    %3423 = vmatprep.subr.mxu0 0.0
    %3424 = vmatpush1.msra.mxu0 0.0
    %3425 = vmatprep.subr.mxu0 0.0
    %3426 = vmatpush1.msra.mxu0 0.0
    %3427 = vmatprep.subr.mxu0 0.0
    %3428 = vmatpush1.msra.mxu0 0.0
    %3429 = vmatprep.subr.mxu0 0.0
    %3430 = vmatpush1.msra.mxu0 0.0
    %3431 = vmatprep.subr.mxu0 0.0
    %3432 = vmatpush1.msra.mxu0 0.0
    %3433 = vmatprep.subr.mxu0 0.0
    %3434 = vmatpush1.msra.mxu0 0.0
    %3435 = vmatprep.subr.mxu0 0.0
    %3436 = vmatpush1.msra.mxu0 0.0
    %3437 = vmatprep.subr.mxu0 0.0
    %3438 = vmatpush1.msra.mxu0 0.0
    %3439 = vmatprep.subr.mxu0 0.0
    %3440 = vmatpush1.msra.mxu0 0.0
    %3441 = vmatprep.subr.mxu0 0.0
    %3442 = vmatpush1.msra.mxu0 0.0
    %3443 = vmatprep.subr.mxu0 0.0
    %3444 = vmatpush1.msra.mxu0 0.0
    %3445 = vmatprep.subr.mxu0 0.0
    %3446 = vmatpush1.msra.mxu0 0.0
    %3447 = vmatprep.subr.mxu0 0.0
    %3448 = vmatpush1.msra.mxu0 0.0
    %3449 = vmatprep.subr.mxu0 0.0
    %3450 = vmatpush1.msra.mxu0 0.0
    %3451 = vmatprep.subr.mxu0 0.0
    %3452 = vmatpush1.msra.mxu0 0.0
    %3453 = vmatprep.subr.mxu0 0.0
    %3454 = vmatpush1.msra.mxu0 0.0
    %3455 = vmatprep.subr.mxu0 0.0
    %3456 = vmatpush1.msra.mxu0 0.0
    %3457 = vmatprep.subr.mxu0 0.0
    %3458 = vmatpush1.msra.mxu0 0.0
    %3459 = vmatprep.subr.mxu0 0.0
    %3460 = vmatpush1.msra.mxu0 0.0
    %3461 = vmatprep.subr.mxu0 0.0
    %3462 = vmatpush1.msra.mxu0 0.0
    %3463 = vmatprep.subr.mxu0 0.0
    %3464 = vmatpush1.msra.mxu0 0.0
    %3465 = vmatprep.subr.mxu0 0.0
    %3466 = vmatpush1.msra.mxu0 0.0
    %3467 = vmatprep.subr.mxu0 0.0
    %3468 = vmatpush1.msra.mxu0 0.0
    %3469 = vmatprep.subr.mxu0 0.0
    %3470 = vmatpush1.msra.mxu0 0.0
    %3471 = vmatprep.subr.mxu0 0.0
    %3472 = vmatpush1.msra.mxu0 0.0
    %3473 = vmatprep.subr.mxu0 0.0
    %3474 = vmatpush1.msra.mxu0 0.0
    %3475 = vmatprep.subr.mxu0 0.0
    %3476 = vmatpush1.msra.mxu0 0.0
    %3477 = vmatprep.mubr.f32.mxu0 0.0
    %3478 = vmatmul.mubr.f32.gmra.mrb[0].mxu0 %v3411
    %v3479 = vpop.f32.mrb[0].mxu0
    %v3480 = vadd.f32 0.0, %v3479
    %v3481 = vpop.f32.mrb[0].mxu0
    %3482 = vdwg.mxu0
    %3483 = vrot.lane.b32.xlu0 %v2293, 104
    %v3484 = vpop.permute.xlu0 %3483
    %3485 = vrot.lane.b32.xlu0 %v2393, 104
    %v3486 = vpop.permute.xlu0 %3485
    %v3487 = vsel %vm198, %v3484, 0
    %v3489 = vsel %vm198, %v3486, 0
    %3491 = vmatprep.subr.mxu0 0.0
    %3492 = vmatpush1.xpose.msra.mxu0 %v3489
    %3493 = vmatprep.subr.mxu0 0.0
    %3494 = vmatpush1.xpose.msra.mxu0 0.0
    %3495 = vmatprep.subr.mxu0 0.0
    %3496 = vmatpush1.xpose.msra.mxu0 0.0
    %3497 = vmatprep.subr.mxu0 0.0
    %3498 = vmatpush1.xpose.msra.mxu0 0.0
    %3499 = vmatprep.subr.mxu0 0.0
    %3500 = vmatpush1.xpose.msra.mxu0 0.0
    %3501 = vmatprep.subr.mxu0 0.0
    %3502 = vmatpush1.xpose.msra.mxu0 0.0
    %3503 = vmatprep.subr.mxu0 0.0
    %3504 = vmatpush1.xpose.msra.mxu0 0.0
    %3505 = vmatprep.subr.mxu0 0.0
    %3506 = vmatpush1.xpose.msra.mxu0 0.0
    %3507 = vmatprep.subr.mxu0 0.0
    %3508 = vmatpush1.xpose.msra.mxu0 0.0
    %3509 = vmatprep.subr.mxu0 0.0
    %3510 = vmatpush1.xpose.msra.mxu0 0.0
    %3511 = vmatprep.subr.mxu0 0.0
    %3512 = vmatpush1.xpose.msra.mxu0 0.0
    %3513 = vmatprep.subr.mxu0 0.0
    %3514 = vmatpush1.xpose.msra.mxu0 0.0
    %3515 = vmatprep.subr.mxu0 0.0
    %3516 = vmatpush1.xpose.msra.mxu0 0.0
    %3517 = vmatprep.subr.mxu0 0.0
    %3518 = vmatpush1.xpose.msra.mxu0 0.0
    %3519 = vmatprep.subr.mxu0 0.0
    %3520 = vmatpush1.xpose.msra.mxu0 0.0
    %3521 = vmatprep.subr.mxu0 0.0
    %3522 = vmatpush1.xpose.msra.mxu0 0.0
    %3523 = vmatprep.subr.mxu0 0.0
    %3524 = vmatpush1.xpose.msra.mxu0 0.0
    %3525 = vmatprep.subr.mxu0 0.0
    %3526 = vmatpush1.xpose.msra.mxu0 0.0
    %3527 = vmatprep.subr.mxu0 0.0
    %3528 = vmatpush1.xpose.msra.mxu0 0.0
    %3529 = vmatprep.subr.mxu0 0.0
    %3530 = vmatpush1.xpose.msra.mxu0 0.0
    %3531 = vmatprep.subr.mxu0 0.0
    %3532 = vmatpush1.xpose.msra.mxu0 0.0
    %3533 = vmatprep.subr.mxu0 0.0
    %3534 = vmatpush1.xpose.msra.mxu0 0.0
    %3535 = vmatprep.subr.mxu0 0.0
    %3536 = vmatpush1.xpose.msra.mxu0 0.0
    %3537 = vmatprep.subr.mxu0 0.0
    %3538 = vmatpush1.xpose.msra.mxu0 0.0
    %3539 = vmatprep.subr.mxu0 0.0
    %3540 = vmatpush1.xpose.msra.mxu0 0.0
    %3541 = vmatprep.subr.mxu0 0.0
    %3542 = vmatpush1.xpose.msra.mxu0 0.0
    %3543 = vmatprep.subr.mxu0 0.0
    %3544 = vmatpush1.xpose.msra.mxu0 0.0
    %3545 = vmatprep.subr.mxu0 0.0
    %3546 = vmatpush1.xpose.msra.mxu0 0.0
    %3547 = vmatprep.subr.mxu0 0.0
    %3548 = vmatpush1.xpose.msra.mxu0 0.0
    %3549 = vmatprep.subr.mxu0 0.0
    %3550 = vmatpush1.xpose.msra.mxu0 0.0
    %3551 = vmatprep.subr.mxu0 0.0
    %3552 = vmatpush1.xpose.msra.mxu0 0.0
    %3553 = vmatprep.subr.mxu0 0.0
    %3554 = vmatpush1.xpose.msra.mxu0 0.0
    %3555 = vmatprep.mubr.f32.mxu0 0.0
    %3556 = vmatmul.mubr.f32.gmra.mrb[0].mxu0 %v3487
    %v3557 = vpop.f32.mrb[0].mxu0
    %v3558 = vadd.f32 0.0, %v3557
    %v3559 = vpop.f32.mrb[0].mxu0
    %3560 = vdwg.mxu0
    %3561 = vrot.lane.b32.xlu0 %v2298, 104
    %v3562 = vpop.permute.xlu0 %3561
    %3563 = vrot.lane.b32.xlu0 %v2398, 104
    %v3564 = vpop.permute.xlu0 %3563
    %v3565 = vsel %vm198, %v3562, 0
    %v3567 = vsel %vm198, %v3564, 0
    %3569 = vmatprep.subr.mxu0 0.0
    %3570 = vmatpush1.xpose.msra.mxu0 %v3567
    %3571 = vmatprep.subr.mxu0 0.0
    %3572 = vmatpush1.xpose.msra.mxu0 0.0
    %3573 = vmatprep.subr.mxu0 0.0
    %3574 = vmatpush1.xpose.msra.mxu0 0.0
    %3575 = vmatprep.subr.mxu0 0.0
    %3576 = vmatpush1.xpose.msra.mxu0 0.0
    %3577 = vmatprep.subr.mxu0 0.0
    %3578 = vmatpush1.xpose.msra.mxu0 0.0
    %3579 = vmatprep.subr.mxu0 0.0
    %3580 = vmatpush1.xpose.msra.mxu0 0.0
    %3581 = vmatprep.subr.mxu0 0.0
    %3582 = vmatpush1.xpose.msra.mxu0 0.0
    %3583 = vmatprep.subr.mxu0 0.0
    %3584 = vmatpush1.xpose.msra.mxu0 0.0
    %3585 = vmatprep.subr.mxu0 0.0
    %3586 = vmatpush1.xpose.msra.mxu0 0.0
    %3587 = vmatprep.subr.mxu0 0.0
    %3588 = vmatpush1.xpose.msra.mxu0 0.0
    %3589 = vmatprep.subr.mxu0 0.0
    %3590 = vmatpush1.xpose.msra.mxu0 0.0
    %3591 = vmatprep.subr.mxu0 0.0
    %3592 = vmatpush1.xpose.msra.mxu0 0.0
    %3593 = vmatprep.subr.mxu0 0.0
    %3594 = vmatpush1.xpose.msra.mxu0 0.0
    %3595 = vmatprep.subr.mxu0 0.0
    %3596 = vmatpush1.xpose.msra.mxu0 0.0
    %3597 = vmatprep.subr.mxu0 0.0
    %3598 = vmatpush1.xpose.msra.mxu0 0.0
    %3599 = vmatprep.subr.mxu0 0.0
    %3600 = vmatpush1.xpose.msra.mxu0 0.0
    %3601 = vmatprep.subr.mxu0 0.0
    %3602 = vmatpush1.xpose.msra.mxu0 0.0
    %3603 = vmatprep.subr.mxu0 0.0
    %3604 = vmatpush1.xpose.msra.mxu0 0.0
    %3605 = vmatprep.subr.mxu0 0.0
    %3606 = vmatpush1.xpose.msra.mxu0 0.0
    %3607 = vmatprep.subr.mxu0 0.0
    %3608 = vmatpush1.xpose.msra.mxu0 0.0
    %3609 = vmatprep.subr.mxu0 0.0
    %3610 = vmatpush1.xpose.msra.mxu0 0.0
    %3611 = vmatprep.subr.mxu0 0.0
    %3612 = vmatpush1.xpose.msra.mxu0 0.0
    %3613 = vmatprep.subr.mxu0 0.0
    %3614 = vmatpush1.xpose.msra.mxu0 0.0
    %3615 = vmatprep.subr.mxu0 0.0
    %3616 = vmatpush1.xpose.msra.mxu0 0.0
    %3617 = vmatprep.subr.mxu0 0.0
    %3618 = vmatpush1.xpose.msra.mxu0 0.0
    %3619 = vmatprep.subr.mxu0 0.0
    %3620 = vmatpush1.xpose.msra.mxu0 0.0
    %3621 = vmatprep.subr.mxu0 0.0
    %3622 = vmatpush1.xpose.msra.mxu0 0.0
    %3623 = vmatprep.subr.mxu0 0.0
    %3624 = vmatpush1.xpose.msra.mxu0 0.0
    %3625 = vmatprep.subr.mxu0 0.0
    %3626 = vmatpush1.xpose.msra.mxu0 0.0
    %3627 = vmatprep.subr.mxu0 0.0
    %3628 = vmatpush1.xpose.msra.mxu0 0.0
    %3629 = vmatprep.subr.mxu0 0.0
    %3630 = vmatpush1.xpose.msra.mxu0 0.0
    %3631 = vmatprep.subr.mxu0 0.0
    %3632 = vmatpush1.xpose.msra.mxu0 0.0
    %3633 = vmatprep.mubr.f32.mxu0 0.0
    %3634 = vmatmul.mubr.f32.gmra.mrb[0].mxu0 %v3565
    %v3635 = vpop.f32.mrb[0].mxu0
    %v3636 = vadd.f32 0.0, %v3635
    %v3637 = vpop.f32.mrb[0].mxu0
    %3638 = vdwg.mxu0
    %v3639 = vsel %vm198, %v3558, -inf
    %3640 = vmax.xlane.f32.xlu0 %v3639
    %v3641 = vpop.xlane.xlu0 %3640
    %v3642 = vsel %vm198, %v3636, -inf
    %3643 = vmax.xlane.f32.xlu0 %v3642
    %v3644 = vpop.xlane.xlu0 %3643
    %v3645 = vsub.f32 %v3558, %v3641
    %v3646 = vsub.f32 %v3636, %v3644
    %v3647 = vmul.f32 %v3645, 1.442695
    %v3648 = vpow.pop %v3647
    %v3649 = vmul.f32 %v3646, 1.442695
    %v3650 = vpow.pop %v3649
    %v3651 = vsel %vm198, %v3648, 0.0
    %3652 = vadd.xlane.f32.xlu0 %v3651
    %v3653 = vpop.xlane.xlu0 %3652
    %v3654 = vsel %vm198, %v3650, 0.0
    %3655 = vadd.xlane.f32.xlu0 %v3654
    %v3656 = vpop.xlane.xlu0 %3655
    %v3657 = vrcp.pop %v3653
    %v3658 = vmul.f32 %v3648, %v3657
    %v3659 = vrcp.pop %v3656
    %v3660 = vmul.f32 %v3650, %v3659
    %3661 = vrot.lane.b32.xlu0 %v2493, 104
    %v3662 = vpop.permute.xlu0 %3661
    %v3665 = vsel %vm198, %v3658, 0
    %3667 = vmatprep.subr.mxu0 0.0
    %3668 = vmatpush1.msra.mxu0 %v3662
    %3669 = vmatprep.subr.mxu0 0.0
    %3670 = vmatpush1.msra.mxu0 0.0
    %3671 = vmatprep.subr.mxu0 0.0
    %3672 = vmatpush1.msra.mxu0 0.0
    %3673 = vmatprep.subr.mxu0 0.0
    %3674 = vmatpush1.msra.mxu0 0.0
    %3675 = vmatprep.subr.mxu0 0.0
    %3676 = vmatpush1.msra.mxu0 0.0
    %3677 = vmatprep.subr.mxu0 0.0
    %3678 = vmatpush1.msra.mxu0 0.0
    %3679 = vmatprep.subr.mxu0 0.0
    %3680 = vmatpush1.msra.mxu0 0.0
    %3681 = vmatprep.subr.mxu0 0.0
    %3682 = vmatpush1.msra.mxu0 0.0
    %3683 = vmatprep.subr.mxu0 0.0
    %3684 = vmatpush1.msra.mxu0 0.0
    %3685 = vmatprep.subr.mxu0 0.0
    %3686 = vmatpush1.msra.mxu0 0.0
    %3687 = vmatprep.subr.mxu0 0.0
    %3688 = vmatpush1.msra.mxu0 0.0
    %3689 = vmatprep.subr.mxu0 0.0
    %3690 = vmatpush1.msra.mxu0 0.0
    %3691 = vmatprep.subr.mxu0 0.0
    %3692 = vmatpush1.msra.mxu0 0.0
    %3693 = vmatprep.subr.mxu0 0.0
    %3694 = vmatpush1.msra.mxu0 0.0
    %3695 = vmatprep.subr.mxu0 0.0
    %3696 = vmatpush1.msra.mxu0 0.0
    %3697 = vmatprep.subr.mxu0 0.0
    %3698 = vmatpush1.msra.mxu0 0.0
    %3699 = vmatprep.subr.mxu0 0.0
    %3700 = vmatpush1.msra.mxu0 0.0
    %3701 = vmatprep.subr.mxu0 0.0
    %3702 = vmatpush1.msra.mxu0 0.0
    %3703 = vmatprep.subr.mxu0 0.0
    %3704 = vmatpush1.msra.mxu0 0.0
    %3705 = vmatprep.subr.mxu0 0.0
    %3706 = vmatpush1.msra.mxu0 0.0
    %3707 = vmatprep.subr.mxu0 0.0
    %3708 = vmatpush1.msra.mxu0 0.0
    %3709 = vmatprep.subr.mxu0 0.0
    %3710 = vmatpush1.msra.mxu0 0.0
    %3711 = vmatprep.subr.mxu0 0.0
    %3712 = vmatpush1.msra.mxu0 0.0
    %3713 = vmatprep.subr.mxu0 0.0
    %3714 = vmatpush1.msra.mxu0 0.0
    %3715 = vmatprep.subr.mxu0 0.0
    %3716 = vmatpush1.msra.mxu0 0.0
    %3717 = vmatprep.subr.mxu0 0.0
    %3718 = vmatpush1.msra.mxu0 0.0
    %3719 = vmatprep.subr.mxu0 0.0
    %3720 = vmatpush1.msra.mxu0 0.0
    %3721 = vmatprep.subr.mxu0 0.0
    %3722 = vmatpush1.msra.mxu0 0.0
    %3723 = vmatprep.subr.mxu0 0.0
    %3724 = vmatpush1.msra.mxu0 0.0
    %3725 = vmatprep.subr.mxu0 0.0
    %3726 = vmatpush1.msra.mxu0 0.0
    %3727 = vmatprep.subr.mxu0 0.0
    %3728 = vmatpush1.msra.mxu0 0.0
    %3729 = vmatprep.subr.mxu0 0.0
    %3730 = vmatpush1.msra.mxu0 0.0
    %3731 = vmatprep.mubr.f32.mxu0 0.0
    %3732 = vmatmul.mubr.f32.gmra.mrb[0].mxu0 %v3665
    %v3733 = vpop.f32.mrb[0].mxu0
    %v3734 = vadd.f32 0.0, %v3733
    %v3735 = vpop.f32.mrb[0].mxu0
    %3736 = vdwg.mxu0
    %3737 = vrot.lane.b32.xlu0 %v2498, 104
    %v3738 = vpop.permute.xlu0 %3737
    %v3741 = vsel %vm198, %v3660, 0
    %3743 = vmatprep.subr.mxu0 0.0
    %3744 = vmatpush1.msra.mxu0 %v3738
    %3745 = vmatprep.subr.mxu0 0.0
    %3746 = vmatpush1.msra.mxu0 0.0
    %3747 = vmatprep.subr.mxu0 0.0
    %3748 = vmatpush1.msra.mxu0 0.0
    %3749 = vmatprep.subr.mxu0 0.0
    %3750 = vmatpush1.msra.mxu0 0.0
    %3751 = vmatprep.subr.mxu0 0.0
    %3752 = vmatpush1.msra.mxu0 0.0
    %3753 = vmatprep.subr.mxu0 0.0
    %3754 = vmatpush1.msra.mxu0 0.0
    %3755 = vmatprep.subr.mxu0 0.0
    %3756 = vmatpush1.msra.mxu0 0.0
    %3757 = vmatprep.subr.mxu0 0.0
    %3758 = vmatpush1.msra.mxu0 0.0
    %3759 = vmatprep.subr.mxu0 0.0
    %3760 = vmatpush1.msra.mxu0 0.0
    %3761 = vmatprep.subr.mxu0 0.0
    %3762 = vmatpush1.msra.mxu0 0.0
    %3763 = vmatprep.subr.mxu0 0.0
    %3764 = vmatpush1.msra.mxu0 0.0
    %3765 = vmatprep.subr.mxu0 0.0
    %3766 = vmatpush1.msra.mxu0 0.0
    %3767 = vmatprep.subr.mxu0 0.0
    %3768 = vmatpush1.msra.mxu0 0.0
    %3769 = vmatprep.subr.mxu0 0.0
    %3770 = vmatpush1.msra.mxu0 0.0
    %3771 = vmatprep.subr.mxu0 0.0
    %3772 = vmatpush1.msra.mxu0 0.0
    %3773 = vmatprep.subr.mxu0 0.0
    %3774 = vmatpush1.msra.mxu0 0.0
    %3775 = vmatprep.subr.mxu0 0.0
    %3776 = vmatpush1.msra.mxu0 0.0
    %3777 = vmatprep.subr.mxu0 0.0
    %3778 = vmatpush1.msra.mxu0 0.0
    %3779 = vmatprep.subr.mxu0 0.0
    %3780 = vmatpush1.msra.mxu0 0.0
    %3781 = vmatprep.subr.mxu0 0.0
    %3782 = vmatpush1.msra.mxu0 0.0
    %3783 = vmatprep.subr.mxu0 0.0
    %3784 = vmatpush1.msra.mxu0 0.0
    %3785 = vmatprep.subr.mxu0 0.0
    %3786 = vmatpush1.msra.mxu0 0.0
    %3787 = vmatprep.subr.mxu0 0.0
    %3788 = vmatpush1.msra.mxu0 0.0
    %3789 = vmatprep.subr.mxu0 0.0
    %3790 = vmatpush1.msra.mxu0 0.0
    %3791 = vmatprep.subr.mxu0 0.0
    %3792 = vmatpush1.msra.mxu0 0.0
    %3793 = vmatprep.subr.mxu0 0.0
    %3794 = vmatpush1.msra.mxu0 0.0
    %3795 = vmatprep.subr.mxu0 0.0
    %3796 = vmatpush1.msra.mxu0 0.0
    %3797 = vmatprep.subr.mxu0 0.0
    %3798 = vmatpush1.msra.mxu0 0.0
    %3799 = vmatprep.subr.mxu0 0.0
    %3800 = vmatpush1.msra.mxu0 0.0
    %3801 = vmatprep.subr.mxu0 0.0
    %3802 = vmatpush1.msra.mxu0 0.0
    %3803 = vmatprep.subr.mxu0 0.0
    %3804 = vmatpush1.msra.mxu0 0.0
    %3805 = vmatprep.subr.mxu0 0.0
    %3806 = vmatpush1.msra.mxu0 0.0
    %3807 = vmatprep.mubr.f32.mxu0 0.0
    %3808 = vmatmul.mubr.f32.gmra.mrb[0].mxu0 %v3741
    %v3809 = vpop.f32.mrb[0].mxu0
    %v3810 = vadd.f32 0.0, %v3809
    %v3811 = vpop.f32.mrb[0].mxu0
    %3812 = vdwg.mxu0
    %3815 = vrot.lane.b32.xlu0 %v3073, 8
    %v3816 = vpop.permute.xlu0 %3815
    %3817 = vrot.lane.b32.xlu0 %v3150, 8
    %v3818 = vpop.permute.xlu0 %3817
    %3823 = vrot.lane.b32.xlu0 %v3404, 16
    %v3824 = vpop.permute.xlu0 %3823
    %3825 = vrot.lane.b32.xlu0 %v3480, 16
    %v3826 = vpop.permute.xlu0 %3825
    %3831 = vrot.lane.b32.xlu0 %v3734, 24
    %v3832 = vpop.permute.xlu0 %3831
    %3833 = vrot.lane.b32.xlu0 %v3810, 24
    %v3834 = vpop.permute.xlu0 %3833
    %v3837 = vsel %vm198, %v2745, %v3816
    %v3838 = vsel %vm198, %v2818, %v3818
    %v3839 = vsel %vm293, %v3837, %v3824
    %v3840 = vsel %vm293, %v3838, %v3826
    %v3841 = vsel %vm2105, %v3839, %v3832
    %v3842 = vsel %vm2105, %v3840, %v3834
    %s3843 = scalar_lea.vmem %s15, 32
    %v3844 = vld [vmem:[%s3843] sm:$0xff]
    %v3845 = vld [vmem:[%s3843 + $0x8] sm:$0xff]
    %v3846 = vld [vmem:[%s3843 + $0x10] sm:$0xff]
    %v3847 = vld [vmem:[%s3843 + $0x18] sm:$0xff]
    %s3848 = scalar_lea.vmem [#allocation16], 1
    %v3849 = vld [vmem:[%s3848] sm:$0x1]
    %v3851 = vlaneseq
    %v3852 = vshrl.u32 %v3851, 7
    %v3853 = vsub.s32 0, %v3852
    %v3854 = vrot.slane %v3849, %v3853
    %v3857 = vsel %vm2119, %v3841, 0
    %v3860 = vsel %vm2119, %v3842, 0
    %3862 = vmatprep.subr.mxu0 0.0
    %3863 = vmatpush1.msra.mxu0 %v3844
    %3864 = vmatprep.subr.mxu0 0.0
    %3865 = vmatpush1.msra.mxu0 %v3845
    %3866 = vmatprep.subr.mxu0 0.0
    %3867 = vmatpush1.msra.mxu0 %v3846
    %3868 = vmatprep.subr.mxu0 0.0
    %3869 = vmatpush1.msra.mxu0 %v3847
    %3870 = vmatprep.subr.mxu0 0.0
    %3871 = vmatpush1.msra.mxu0 0.0
    %3872 = vmatprep.subr.mxu0 0.0
    %3873 = vmatpush1.msra.mxu0 0.0
    %3874 = vmatprep.subr.mxu0 0.0
    %3875 = vmatpush1.msra.mxu0 0.0
    %3876 = vmatprep.subr.mxu0 0.0
    %3877 = vmatpush1.msra.mxu0 0.0
    %3878 = vmatprep.subr.mxu0 0.0
    %3879 = vmatpush1.msra.mxu0 0.0
    %3880 = vmatprep.subr.mxu0 0.0
    %3881 = vmatpush1.msra.mxu0 0.0
    %3882 = vmatprep.subr.mxu0 0.0
    %3883 = vmatpush1.msra.mxu0 0.0
    %3884 = vmatprep.subr.mxu0 0.0
    %3885 = vmatpush1.msra.mxu0 0.0
    %3886 = vmatprep.subr.mxu0 0.0
    %3887 = vmatpush1.msra.mxu0 0.0
    %3888 = vmatprep.subr.mxu0 0.0
    %3889 = vmatpush1.msra.mxu0 0.0
    %3890 = vmatprep.subr.mxu0 0.0
    %3891 = vmatpush1.msra.mxu0 0.0
    %3892 = vmatprep.subr.mxu0 0.0
    %3893 = vmatpush1.msra.mxu0 0.0
    %3894 = vmatprep.subr.mxu0 0.0
    %3895 = vmatpush1.msra.mxu0 0.0
    %3896 = vmatprep.subr.mxu0 0.0
    %3897 = vmatpush1.msra.mxu0 0.0
    %3898 = vmatprep.subr.mxu0 0.0
    %3899 = vmatpush1.msra.mxu0 0.0
    %3900 = vmatprep.subr.mxu0 0.0
    %3901 = vmatpush1.msra.mxu0 0.0
    %3902 = vmatprep.subr.mxu0 0.0
    %3903 = vmatpush1.msra.mxu0 0.0
    %3904 = vmatprep.subr.mxu0 0.0
    %3905 = vmatpush1.msra.mxu0 0.0
    %3906 = vmatprep.subr.mxu0 0.0
    %3907 = vmatpush1.msra.mxu0 0.0
    %3908 = vmatprep.subr.mxu0 0.0
    %3909 = vmatpush1.msra.mxu0 0.0
    %3910 = vmatprep.subr.mxu0 0.0
    %3911 = vmatpush1.msra.mxu0 0.0
    %3912 = vmatprep.subr.mxu0 0.0
    %3913 = vmatpush1.msra.mxu0 0.0
    %3914 = vmatprep.subr.mxu0 0.0
    %3915 = vmatpush1.msra.mxu0 0.0
    %3916 = vmatprep.subr.mxu0 0.0
    %3917 = vmatpush1.msra.mxu0 0.0
    %3918 = vmatprep.subr.mxu0 0.0
    %3919 = vmatpush1.msra.mxu0 0.0
    %3920 = vmatprep.subr.mxu0 0.0
    %3921 = vmatpush1.msra.mxu0 0.0
    %3922 = vmatprep.subr.mxu0 0.0
    %3923 = vmatpush1.msra.mxu0 0.0
    %3924 = vmatprep.subr.mxu0 0.0
    %3925 = vmatpush1.msra.mxu0 0.0
    %3926 = vmatprep.mubr.f32.mxu0 0.0
    %3927 = vmatmul.mubr.f32.gmra.mrb[0].mxu0 %v3857
    %v3928 = vpop.f32.mrb[0].mxu0
    %v3929 = vadd.f32 %v3854, %v3928
    %v3930 = vpop.f32.mrb[0].mxu0
    %3931 = vmatprep.mubr.f32.mxu0 0.0
    %3932 = vmatmul.mubr.f32.gmra.mrb[0].mxu0 %v3860
    %v3933 = vpop.f32.mrb[0].mxu0
    %v3934 = vadd.f32 %v3854, %v3933
    %v3935 = vpop.f32.mrb[0].mxu0
    %3936 = vdwg.mxu0
    %s3937 = scalar_lea.vmem [#allocation7], 256
    %v3938 = vld [vmem:[%s3937] sm:$0xff]
    %v3939 = vld [vmem:[%s3937 + $0x8] sm:$0xff]
    %v3940 = vld [vmem:[%s3937 + $0x10] sm:$0xff]
    %v3941 = vld [vmem:[%s3937 + $0x18] sm:$0xff]
    %v3942 = vld [vmem:[%s3937 + $0x20] sm:$0xff]
    %v3943 = vld [vmem:[%s3937 + $0x28] sm:$0xff]
    %v3944 = vld [vmem:[%s3937 + $0x30] sm:$0xff]
    %v3945 = vld [vmem:[%s3937 + $0x38] sm:$0xff]
    %v3946 = vld [vmem:[%s3937 + $0x40] sm:$0xff]
    %v3947 = vld [vmem:[%s3937 + $0x48] sm:$0xff]
    %v3948 = vld [vmem:[%s3937 + $0x50] sm:$0xff]
    %v3949 = vld [vmem:[%s3937 + $0x58] sm:$0xff]
    %v3950 = vld [vmem:[%s3937 + $0x60] sm:$0xff]
    %v3951 = vld [vmem:[%s3937 + $0x68] sm:$0xff]
    %v3952 = vld [vmem:[%s3937 + $0x70] sm:$0xff]
    %v3953 = vld [vmem:[%s3937 + $0x78] sm:$0xff]
    %s3954 = scalar_lea.vmem [#allocation12], 2
    %v3955 = vld [vmem:[%s3954] sm:$0x1]
    %v3957 = vlaneseq
    %v3958 = vshrl.u32 %v3957, 7
    %v3959 = vsub.s32 0, %v3958
    %v3960 = vrot.slane %v3955, %v3959
    %3962 = vmatprep.subr.mxu0 0.0
    %3963 = vmatpush1.msra.mxu0 %v3938
    %3964 = vmatprep.subr.mxu0 0.0
    %3965 = vmatpush1.msra.mxu0 %v3939
    %3966 = vmatprep.subr.mxu0 0.0
    %3967 = vmatpush1.msra.mxu0 %v3940
    %3968 = vmatprep.subr.mxu0 0.0
    %3969 = vmatpush1.msra.mxu0 %v3941
    %3970 = vmatprep.subr.mxu0 0.0
    %3971 = vmatpush1.msra.mxu0 %v3942
    %3972 = vmatprep.subr.mxu0 0.0
    %3973 = vmatpush1.msra.mxu0 %v3943
    %3974 = vmatprep.subr.mxu0 0.0
    %3975 = vmatpush1.msra.mxu0 %v3944
    %3976 = vmatprep.subr.mxu0 0.0
    %3977 = vmatpush1.msra.mxu0 %v3945
    %3978 = vmatprep.subr.mxu0 0.0
    %3979 = vmatpush1.msra.mxu0 %v3946
    %3980 = vmatprep.subr.mxu0 0.0
    %3981 = vmatpush1.msra.mxu0 %v3947
    %3982 = vmatprep.subr.mxu0 0.0
    %3983 = vmatpush1.msra.mxu0 %v3948
    %3984 = vmatprep.subr.mxu0 0.0
    %3985 = vmatpush1.msra.mxu0 %v3949
    %3986 = vmatprep.subr.mxu0 0.0
    %3987 = vmatpush1.msra.mxu0 %v3950
    %3988 = vmatprep.subr.mxu0 0.0
    %3989 = vmatpush1.msra.mxu0 %v3951
    %3990 = vmatprep.subr.mxu0 0.0
    %3991 = vmatpush1.msra.mxu0 %v3952
    %3992 = vmatprep.subr.mxu0 0.0
    %3993 = vmatpush1.msra.mxu0 %v3953
    %3994 = vmatprep.subr.mxu0 0.0
    %3995 = vmatpush1.msra.mxu0 0.0
    %3996 = vmatprep.subr.mxu0 0.0
    %3997 = vmatpush1.msra.mxu0 0.0
    %3998 = vmatprep.subr.mxu0 0.0
    %3999 = vmatpush1.msra.mxu0 0.0
    %4000 = vmatprep.subr.mxu0 0.0
    %4001 = vmatpush1.msra.mxu0 0.0
    %4002 = vmatprep.subr.mxu0 0.0
    %4003 = vmatpush1.msra.mxu0 0.0
    %4004 = vmatprep.subr.mxu0 0.0
    %4005 = vmatpush1.msra.mxu0 0.0
    %4006 = vmatprep.subr.mxu0 0.0
    %4007 = vmatpush1.msra.mxu0 0.0
    %4008 = vmatprep.subr.mxu0 0.0
    %4009 = vmatpush1.msra.mxu0 0.0
    %4010 = vmatprep.subr.mxu0 0.0
    %4011 = vmatpush1.msra.mxu0 0.0
    %4012 = vmatprep.subr.mxu0 0.0
    %4013 = vmatpush1.msra.mxu0 0.0
    %4014 = vmatprep.subr.mxu0 0.0
    %4015 = vmatpush1.msra.mxu0 0.0
    %4016 = vmatprep.subr.mxu0 0.0
    %4017 = vmatpush1.msra.mxu0 0.0
    %4018 = vmatprep.subr.mxu0 0.0
    %4019 = vmatpush1.msra.mxu0 0.0
    %4020 = vmatprep.subr.mxu0 0.0
    %4021 = vmatpush1.msra.mxu0 0.0
    %4022 = vmatprep.subr.mxu0 0.0
    %4023 = vmatpush1.msra.mxu0 0.0
    %4024 = vmatprep.subr.mxu0 0.0
    %4025 = vmatpush1.msra.mxu0 0.0
    %4026 = vmatprep.mubr.f32.mxu0 0.0
    %4027 = vmatmul.mubr.f32.gmra.mrb[0].mxu0 %v2193
    %v4028 = vpop.f32.mrb[0].mxu0
    %v4029 = vadd.f32 %v3960, %v4028
    %v4030 = vpop.f32.mrb[0].mxu0
    %4031 = vmatprep.mubr.f32.mxu0 0.0
    %4032 = vmatmul.mubr.f32.gmra.mrb[0].mxu0 %v2198
    %v4033 = vpop.f32.mrb[0].mxu0
    %v4034 = vadd.f32 %v3960, %v4033
    %v4035 = vpop.f32.mrb[0].mxu0
    %4036 = vdwg.mxu0
    %s4037 = scalar_lea.vmem [#allocation9], 256
    %v4038 = vld [vmem:[%s4037] sm:$0xff]
    %v4039 = vld [vmem:[%s4037 + $0x8] sm:$0xff]
    %v4040 = vld [vmem:[%s4037 + $0x10] sm:$0xff]
    %v4041 = vld [vmem:[%s4037 + $0x18] sm:$0xff]
    %v4042 = vld [vmem:[%s4037 + $0x20] sm:$0xff]
    %v4043 = vld [vmem:[%s4037 + $0x28] sm:$0xff]
    %v4044 = vld [vmem:[%s4037 + $0x30] sm:$0xff]
    %v4045 = vld [vmem:[%s4037 + $0x38] sm:$0xff]
    %v4046 = vld [vmem:[%s4037 + $0x40] sm:$0xff]
    %v4047 = vld [vmem:[%s4037 + $0x48] sm:$0xff]
    %v4048 = vld [vmem:[%s4037 + $0x50] sm:$0xff]
    %v4049 = vld [vmem:[%s4037 + $0x58] sm:$0xff]
    %v4050 = vld [vmem:[%s4037 + $0x60] sm:$0xff]
    %v4051 = vld [vmem:[%s4037 + $0x68] sm:$0xff]
    %v4052 = vld [vmem:[%s4037 + $0x70] sm:$0xff]
    %v4053 = vld [vmem:[%s4037 + $0x78] sm:$0xff]
    %s4054 = scalar_lea.vmem [#allocation13], 2
    %v4055 = vld [vmem:[%s4054] sm:$0x1]
    %v4057 = vlaneseq
    %v4058 = vshrl.u32 %v4057, 7
    %v4059 = vsub.s32 0, %v4058
    %v4060 = vrot.slane %v4055, %v4059
    %4062 = vmatprep.subr.mxu0 0.0
    %4063 = vmatpush1.msra.mxu0 %v4038
    %4064 = vmatprep.subr.mxu0 0.0
    %4065 = vmatpush1.msra.mxu0 %v4039
    %4066 = vmatprep.subr.mxu0 0.0
    %4067 = vmatpush1.msra.mxu0 %v4040
    %4068 = vmatprep.subr.mxu0 0.0
    %4069 = vmatpush1.msra.mxu0 %v4041
    %4070 = vmatprep.subr.mxu0 0.0
    %4071 = vmatpush1.msra.mxu0 %v4042
    %4072 = vmatprep.subr.mxu0 0.0
    %4073 = vmatpush1.msra.mxu0 %v4043
    %4074 = vmatprep.subr.mxu0 0.0
    %4075 = vmatpush1.msra.mxu0 %v4044
    %4076 = vmatprep.subr.mxu0 0.0
    %4077 = vmatpush1.msra.mxu0 %v4045
    %4078 = vmatprep.subr.mxu0 0.0
    %4079 = vmatpush1.msra.mxu0 %v4046
    %4080 = vmatprep.subr.mxu0 0.0
    %4081 = vmatpush1.msra.mxu0 %v4047
    %4082 = vmatprep.subr.mxu0 0.0
    %4083 = vmatpush1.msra.mxu0 %v4048
    %4084 = vmatprep.subr.mxu0 0.0
    %4085 = vmatpush1.msra.mxu0 %v4049
    %4086 = vmatprep.subr.mxu0 0.0
    %4087 = vmatpush1.msra.mxu0 %v4050
    %4088 = vmatprep.subr.mxu0 0.0
    %4089 = vmatpush1.msra.mxu0 %v4051
    %4090 = vmatprep.subr.mxu0 0.0
    %4091 = vmatpush1.msra.mxu0 %v4052
    %4092 = vmatprep.subr.mxu0 0.0
    %4093 = vmatpush1.msra.mxu0 %v4053
    %4094 = vmatprep.subr.mxu0 0.0
    %4095 = vmatpush1.msra.mxu0 0.0
    %4096 = vmatprep.subr.mxu0 0.0
    %4097 = vmatpush1.msra.mxu0 0.0
    %4098 = vmatprep.subr.mxu0 0.0
    %4099 = vmatpush1.msra.mxu0 0.0
    %4100 = vmatprep.subr.mxu0 0.0
    %4101 = vmatpush1.msra.mxu0 0.0
    %4102 = vmatprep.subr.mxu0 0.0
    %4103 = vmatpush1.msra.mxu0 0.0
    %4104 = vmatprep.subr.mxu0 0.0
    %4105 = vmatpush1.msra.mxu0 0.0
    %4106 = vmatprep.subr.mxu0 0.0
    %4107 = vmatpush1.msra.mxu0 0.0
    %4108 = vmatprep.subr.mxu0 0.0
    %4109 = vmatpush1.msra.mxu0 0.0
    %4110 = vmatprep.subr.mxu0 0.0
    %4111 = vmatpush1.msra.mxu0 0.0
    %4112 = vmatprep.subr.mxu0 0.0
    %4113 = vmatpush1.msra.mxu0 0.0
    %4114 = vmatprep.subr.mxu0 0.0
    %4115 = vmatpush1.msra.mxu0 0.0
    %4116 = vmatprep.subr.mxu0 0.0
    %4117 = vmatpush1.msra.mxu0 0.0
    %4118 = vmatprep.subr.mxu0 0.0
    %4119 = vmatpush1.msra.mxu0 0.0
    %4120 = vmatprep.subr.mxu0 0.0
    %4121 = vmatpush1.msra.mxu0 0.0
    %4122 = vmatprep.subr.mxu0 0.0
    %4123 = vmatpush1.msra.mxu0 0.0
    %4124 = vmatprep.subr.mxu0 0.0
    %4125 = vmatpush1.msra.mxu0 0.0
    %4126 = vmatprep.mubr.f32.mxu0 0.0
    %4127 = vmatmul.mubr.f32.gmra.mrb[0].mxu0 %v3929
    %v4128 = vpop.f32.mrb[0].mxu0
    %v4129 = vadd.f32 %v4060, %v4128
    %v4130 = vpop.f32.mrb[0].mxu0
    %4131 = vmatprep.mubr.f32.mxu0 0.0
    %4132 = vmatmul.mubr.f32.gmra.mrb[0].mxu0 %v3934
    %v4133 = vpop.f32.mrb[0].mxu0
    %v4134 = vadd.f32 %v4060, %v4133
    %v4135 = vpop.f32.mrb[0].mxu0
    %4136 = vdwg.mxu0
    %s4137 = scalar_lea.vmem [#allocation10], 256
    %v4138 = vld [vmem:[%s4137] sm:$0xff]
    %v4139 = vld [vmem:[%s4137 + $0x8] sm:$0xff]
    %v4140 = vld [vmem:[%s4137 + $0x10] sm:$0xff]
    %v4141 = vld [vmem:[%s4137 + $0x18] sm:$0xff]
    %v4142 = vld [vmem:[%s4137 + $0x20] sm:$0xff]
    %v4143 = vld [vmem:[%s4137 + $0x28] sm:$0xff]
    %v4144 = vld [vmem:[%s4137 + $0x30] sm:$0xff]
    %v4145 = vld [vmem:[%s4137 + $0x38] sm:$0xff]
    %v4146 = vld [vmem:[%s4137 + $0x40] sm:$0xff]
    %v4147 = vld [vmem:[%s4137 + $0x48] sm:$0xff]
    %v4148 = vld [vmem:[%s4137 + $0x50] sm:$0xff]
    %v4149 = vld [vmem:[%s4137 + $0x58] sm:$0xff]
    %v4150 = vld [vmem:[%s4137 + $0x60] sm:$0xff]
    %v4151 = vld [vmem:[%s4137 + $0x68] sm:$0xff]
    %v4152 = vld [vmem:[%s4137 + $0x70] sm:$0xff]
    %v4153 = vld [vmem:[%s4137 + $0x78] sm:$0xff]
    %s4154 = scalar_lea.vmem [#allocation15], 2
    %v4155 = vld [vmem:[%s4154] sm:$0x1]
    %v4157 = vlaneseq
    %v4158 = vshrl.u32 %v4157, 7
    %v4159 = vsub.s32 0, %v4158
    %v4160 = vrot.slane %v4155, %v4159
    %4162 = vmatprep.subr.mxu0 0.0
    %4163 = vmatpush1.msra.mxu0 %v4138
    %4164 = vmatprep.subr.mxu0 0.0
    %4165 = vmatpush1.msra.mxu0 %v4139
    %4166 = vmatprep.subr.mxu0 0.0
    %4167 = vmatpush1.msra.mxu0 %v4140
    %4168 = vmatprep.subr.mxu0 0.0
    %4169 = vmatpush1.msra.mxu0 %v4141
    %4170 = vmatprep.subr.mxu0 0.0
    %4171 = vmatpush1.msra.mxu0 %v4142
    %4172 = vmatprep.subr.mxu0 0.0
    %4173 = vmatpush1.msra.mxu0 %v4143
    %4174 = vmatprep.subr.mxu0 0.0
    %4175 = vmatpush1.msra.mxu0 %v4144
    %4176 = vmatprep.subr.mxu0 0.0
    %4177 = vmatpush1.msra.mxu0 %v4145
    %4178 = vmatprep.subr.mxu0 0.0
    %4179 = vmatpush1.msra.mxu0 %v4146
    %4180 = vmatprep.subr.mxu0 0.0
    %4181 = vmatpush1.msra.mxu0 %v4147
    %4182 = vmatprep.subr.mxu0 0.0
    %4183 = vmatpush1.msra.mxu0 %v4148
    %4184 = vmatprep.subr.mxu0 0.0
    %4185 = vmatpush1.msra.mxu0 %v4149
    %4186 = vmatprep.subr.mxu0 0.0
    %4187 = vmatpush1.msra.mxu0 %v4150
    %4188 = vmatprep.subr.mxu0 0.0
    %4189 = vmatpush1.msra.mxu0 %v4151
    %4190 = vmatprep.subr.mxu0 0.0
    %4191 = vmatpush1.msra.mxu0 %v4152
    %4192 = vmatprep.subr.mxu0 0.0
    %4193 = vmatpush1.msra.mxu0 %v4153
    %4194 = vmatprep.subr.mxu0 0.0
    %4195 = vmatpush1.msra.mxu0 0.0
    %4196 = vmatprep.subr.mxu0 0.0
    %4197 = vmatpush1.msra.mxu0 0.0
    %4198 = vmatprep.subr.mxu0 0.0
    %4199 = vmatpush1.msra.mxu0 0.0
    %4200 = vmatprep.subr.mxu0 0.0
    %4201 = vmatpush1.msra.mxu0 0.0
    %4202 = vmatprep.subr.mxu0 0.0
    %4203 = vmatpush1.msra.mxu0 0.0
    %4204 = vmatprep.subr.mxu0 0.0
    %4205 = vmatpush1.msra.mxu0 0.0
    %4206 = vmatprep.subr.mxu0 0.0
    %4207 = vmatpush1.msra.mxu0 0.0
    %4208 = vmatprep.subr.mxu0 0.0
    %4209 = vmatpush1.msra.mxu0 0.0
    %4210 = vmatprep.subr.mxu0 0.0
    %4211 = vmatpush1.msra.mxu0 0.0
    %4212 = vmatprep.subr.mxu0 0.0
    %4213 = vmatpush1.msra.mxu0 0.0
    %4214 = vmatprep.subr.mxu0 0.0
    %4215 = vmatpush1.msra.mxu0 0.0
    %4216 = vmatprep.subr.mxu0 0.0
    %4217 = vmatpush1.msra.mxu0 0.0
    %4218 = vmatprep.subr.mxu0 0.0
    %4219 = vmatpush1.msra.mxu0 0.0
    %4220 = vmatprep.subr.mxu0 0.0
    %4221 = vmatpush1.msra.mxu0 0.0
    %4222 = vmatprep.subr.mxu0 0.0
    %4223 = vmatpush1.msra.mxu0 0.0
    %4224 = vmatprep.subr.mxu0 0.0
    %4225 = vmatpush1.msra.mxu0 0.0
    %4226 = vmatprep.mubr.f32.mxu0 0.0
    %4227 = vmatmul.mubr.f32.gmra.mrb[0].mxu0 %v2193
    %v4228 = vpop.f32.mrb[0].mxu0
    %v4229 = vadd.f32 %v4160, %v4228
    %v4230 = vpop.f32.mrb[0].mxu0
    %4231 = vmatprep.mubr.f32.mxu0 0.0
    %4232 = vmatmul.mubr.f32.gmra.mrb[0].mxu0 %v2198
    %v4233 = vpop.f32.mrb[0].mxu0
    %v4234 = vadd.f32 %v4160, %v4233
    %v4235 = vpop.f32.mrb[0].mxu0
    %4236 = vdwg.mxu0
    %v4238 = vsel %vm198, %v4029, 0
    %v4241 = vsel %vm198, %v4129, 0
    %4243 = vmatprep.subr.mxu0 0.0
    %4244 = vmatpush1.xpose.msra.mxu0 %v4241
    %4245 = vmatprep.subr.mxu0 0.0
    %4246 = vmatpush1.xpose.msra.mxu0 0.0
    %4247 = vmatprep.subr.mxu0 0.0
    %4248 = vmatpush1.xpose.msra.mxu0 0.0
    %4249 = vmatprep.subr.mxu0 0.0
    %4250 = vmatpush1.xpose.msra.mxu0 0.0
    %4251 = vmatprep.subr.mxu0 0.0
    %4252 = vmatpush1.xpose.msra.mxu0 0.0
    %4253 = vmatprep.subr.mxu0 0.0
    %4254 = vmatpush1.xpose.msra.mxu0 0.0
    %4255 = vmatprep.subr.mxu0 0.0
    %4256 = vmatpush1.xpose.msra.mxu0 0.0
    %4257 = vmatprep.subr.mxu0 0.0
    %4258 = vmatpush1.xpose.msra.mxu0 0.0
    %4259 = vmatprep.subr.mxu0 0.0
    %4260 = vmatpush1.xpose.msra.mxu0 0.0
    %4261 = vmatprep.subr.mxu0 0.0
    %4262 = vmatpush1.xpose.msra.mxu0 0.0
    %4263 = vmatprep.subr.mxu0 0.0
    %4264 = vmatpush1.xpose.msra.mxu0 0.0
    %4265 = vmatprep.subr.mxu0 0.0
    %4266 = vmatpush1.xpose.msra.mxu0 0.0
    %4267 = vmatprep.subr.mxu0 0.0
    %4268 = vmatpush1.xpose.msra.mxu0 0.0
    %4269 = vmatprep.subr.mxu0 0.0
    %4270 = vmatpush1.xpose.msra.mxu0 0.0
    %4271 = vmatprep.subr.mxu0 0.0
    %4272 = vmatpush1.xpose.msra.mxu0 0.0
    %4273 = vmatprep.subr.mxu0 0.0
    %4274 = vmatpush1.xpose.msra.mxu0 0.0
    %4275 = vmatprep.subr.mxu0 0.0
    %4276 = vmatpush1.xpose.msra.mxu0 0.0
    %4277 = vmatprep.subr.mxu0 0.0
    %4278 = vmatpush1.xpose.msra.mxu0 0.0
    %4279 = vmatprep.subr.mxu0 0.0
    %4280 = vmatpush1.xpose.msra.mxu0 0.0
    %4281 = vmatprep.subr.mxu0 0.0
    %4282 = vmatpush1.xpose.msra.mxu0 0.0
    %4283 = vmatprep.subr.mxu0 0.0
    %4284 = vmatpush1.xpose.msra.mxu0 0.0
    %4285 = vmatprep.subr.mxu0 0.0
    %4286 = vmatpush1.xpose.msra.mxu0 0.0
    %4287 = vmatprep.subr.mxu0 0.0
    %4288 = vmatpush1.xpose.msra.mxu0 0.0
    %4289 = vmatprep.subr.mxu0 0.0
    %4290 = vmatpush1.xpose.msra.mxu0 0.0
    %4291 = vmatprep.subr.mxu0 0.0
    %4292 = vmatpush1.xpose.msra.mxu0 0.0
    %4293 = vmatprep.subr.mxu0 0.0
    %4294 = vmatpush1.xpose.msra.mxu0 0.0
    %4295 = vmatprep.subr.mxu0 0.0
    %4296 = vmatpush1.xpose.msra.mxu0 0.0
    %4297 = vmatprep.subr.mxu0 0.0
    %4298 = vmatpush1.xpose.msra.mxu0 0.0
    %4299 = vmatprep.subr.mxu0 0.0
    %4300 = vmatpush1.xpose.msra.mxu0 0.0
    %4301 = vmatprep.subr.mxu0 0.0
    %4302 = vmatpush1.xpose.msra.mxu0 0.0
    %4303 = vmatprep.subr.mxu0 0.0
    %4304 = vmatpush1.xpose.msra.mxu0 0.0
    %4305 = vmatprep.subr.mxu0 0.0
    %4306 = vmatpush1.xpose.msra.mxu0 0.0
    %4307 = vmatprep.mubr.f32.mxu0 0.0
    %4308 = vmatmul.mubr.f32.gmra.mrb[0].mxu0 %v4238
    %v4309 = vpop.f32.mrb[0].mxu0
    %v4310 = vadd.f32 0.0, %v4309
    %v4311 = vpop.f32.mrb[0].mxu0
    %4312 = vdwg.mxu0
    %v4314 = vsel %vm198, %v4034, 0
    %v4317 = vsel %vm198, %v4134, 0
    %4319 = vmatprep.subr.mxu0 0.0
    %4320 = vmatpush1.xpose.msra.mxu0 %v4317
    %4321 = vmatprep.subr.mxu0 0.0
    %4322 = vmatpush1.xpose.msra.mxu0 0.0
    %4323 = vmatprep.subr.mxu0 0.0
    %4324 = vmatpush1.xpose.msra.mxu0 0.0
    %4325 = vmatprep.subr.mxu0 0.0
    %4326 = vmatpush1.xpose.msra.mxu0 0.0
    %4327 = vmatprep.subr.mxu0 0.0
    %4328 = vmatpush1.xpose.msra.mxu0 0.0
    %4329 = vmatprep.subr.mxu0 0.0
    %4330 = vmatpush1.xpose.msra.mxu0 0.0
    %4331 = vmatprep.subr.mxu0 0.0
    %4332 = vmatpush1.xpose.msra.mxu0 0.0
    %4333 = vmatprep.subr.mxu0 0.0
    %4334 = vmatpush1.xpose.msra.mxu0 0.0
    %4335 = vmatprep.subr.mxu0 0.0
    %4336 = vmatpush1.xpose.msra.mxu0 0.0
    %4337 = vmatprep.subr.mxu0 0.0
    %4338 = vmatpush1.xpose.msra.mxu0 0.0
    %4339 = vmatprep.subr.mxu0 0.0
    %4340 = vmatpush1.xpose.msra.mxu0 0.0
    %4341 = vmatprep.subr.mxu0 0.0
    %4342 = vmatpush1.xpose.msra.mxu0 0.0
    %4343 = vmatprep.subr.mxu0 0.0
    %4344 = vmatpush1.xpose.msra.mxu0 0.0
    %4345 = vmatprep.subr.mxu0 0.0
    %4346 = vmatpush1.xpose.msra.mxu0 0.0
    %4347 = vmatprep.subr.mxu0 0.0
    %4348 = vmatpush1.xpose.msra.mxu0 0.0
    %4349 = vmatprep.subr.mxu0 0.0
    %4350 = vmatpush1.xpose.msra.mxu0 0.0
    %4351 = vmatprep.subr.mxu0 0.0
    %4352 = vmatpush1.xpose.msra.mxu0 0.0
    %4353 = vmatprep.subr.mxu0 0.0
    %4354 = vmatpush1.xpose.msra.mxu0 0.0
    %4355 = vmatprep.subr.mxu0 0.0
    %4356 = vmatpush1.xpose.msra.mxu0 0.0
    %4357 = vmatprep.subr.mxu0 0.0
    %4358 = vmatpush1.xpose.msra.mxu0 0.0
    %4359 = vmatprep.subr.mxu0 0.0
    %4360 = vmatpush1.xpose.msra.mxu0 0.0
    %4361 = vmatprep.subr.mxu0 0.0
    %4362 = vmatpush1.xpose.msra.mxu0 0.0
    %4363 = vmatprep.subr.mxu0 0.0
    %4364 = vmatpush1.xpose.msra.mxu0 0.0
    %4365 = vmatprep.subr.mxu0 0.0
    %4366 = vmatpush1.xpose.msra.mxu0 0.0
    %4367 = vmatprep.subr.mxu0 0.0
    %4368 = vmatpush1.xpose.msra.mxu0 0.0
    %4369 = vmatprep.subr.mxu0 0.0
    %4370 = vmatpush1.xpose.msra.mxu0 0.0
    %4371 = vmatprep.subr.mxu0 0.0
    %4372 = vmatpush1.xpose.msra.mxu0 0.0
    %4373 = vmatprep.subr.mxu0 0.0
    %4374 = vmatpush1.xpose.msra.mxu0 0.0
    %4375 = vmatprep.subr.mxu0 0.0
    %4376 = vmatpush1.xpose.msra.mxu0 0.0
    %4377 = vmatprep.subr.mxu0 0.0
    %4378 = vmatpush1.xpose.msra.mxu0 0.0
    %4379 = vmatprep.subr.mxu0 0.0
    %4380 = vmatpush1.xpose.msra.mxu0 0.0
    %4381 = vmatprep.subr.mxu0 0.0
    %4382 = vmatpush1.xpose.msra.mxu0 0.0
    %4383 = vmatprep.mubr.f32.mxu0 0.0
    %4384 = vmatmul.mubr.f32.gmra.mrb[0].mxu0 %v4314
    %v4385 = vpop.f32.mrb[0].mxu0
    %v4386 = vadd.f32 0.0, %v4385
    %v4387 = vpop.f32.mrb[0].mxu0
    %4388 = vdwg.mxu0
    %v4389 = vsel %vm198, %v4310, -inf
    %4390 = vmax.xlane.f32.xlu0 %v4389
    %v4391 = vpop.xlane.xlu0 %4390
    %v4392 = vsel %vm198, %v4386, -inf
    %4393 = vmax.xlane.f32.xlu0 %v4392
    %v4394 = vpop.xlane.xlu0 %4393
    %v4395 = vsub.f32 %v4310, %v4391
    %v4396 = vsub.f32 %v4386, %v4394
    %v4397 = vmul.f32 %v4395, 1.442695
    %v4398 = vpow.pop %v4397
    %v4399 = vmul.f32 %v4396, 1.442695
    %v4400 = vpow.pop %v4399
    %v4401 = vsel %vm198, %v4398, 0.0
    %4402 = vadd.xlane.f32.xlu0 %v4401
    %v4403 = vpop.xlane.xlu0 %4402
    %v4404 = vsel %vm198, %v4400, 0.0
    %4405 = vadd.xlane.f32.xlu0 %v4404
    %v4406 = vpop.xlane.xlu0 %4405
    %v4407 = vrcp.pop %v4403
    %v4408 = vmul.f32 %v4398, %v4407
    %v4409 = vrcp.pop %v4406
    %v4410 = vmul.f32 %v4400, %v4409
    %v4412 = vsel %vm198, %v4408, 0
    %4414 = vmatprep.subr.mxu0 0.0
    %4415 = vmatpush1.msra.mxu0 %v4229
    %4416 = vmatprep.subr.mxu0 0.0
    %4417 = vmatpush1.msra.mxu0 0.0
    %4418 = vmatprep.subr.mxu0 0.0
    %4419 = vmatpush1.msra.mxu0 0.0
    %4420 = vmatprep.subr.mxu0 0.0
    %4421 = vmatpush1.msra.mxu0 0.0
    %4422 = vmatprep.subr.mxu0 0.0
    %4423 = vmatpush1.msra.mxu0 0.0
    %4424 = vmatprep.subr.mxu0 0.0
    %4425 = vmatpush1.msra.mxu0 0.0
    %4426 = vmatprep.subr.mxu0 0.0
    %4427 = vmatpush1.msra.mxu0 0.0
    %4428 = vmatprep.subr.mxu0 0.0
    %4429 = vmatpush1.msra.mxu0 0.0
    %4430 = vmatprep.subr.mxu0 0.0
    %4431 = vmatpush1.msra.mxu0 0.0
    %4432 = vmatprep.subr.mxu0 0.0
    %4433 = vmatpush1.msra.mxu0 0.0
    %4434 = vmatprep.subr.mxu0 0.0
    %4435 = vmatpush1.msra.mxu0 0.0
    %4436 = vmatprep.subr.mxu0 0.0
    %4437 = vmatpush1.msra.mxu0 0.0
    %4438 = vmatprep.subr.mxu0 0.0
    %4439 = vmatpush1.msra.mxu0 0.0
    %4440 = vmatprep.subr.mxu0 0.0
    %4441 = vmatpush1.msra.mxu0 0.0
    %4442 = vmatprep.subr.mxu0 0.0
    %4443 = vmatpush1.msra.mxu0 0.0
    %4444 = vmatprep.subr.mxu0 0.0
    %4445 = vmatpush1.msra.mxu0 0.0
    %4446 = vmatprep.subr.mxu0 0.0
    %4447 = vmatpush1.msra.mxu0 0.0
    %4448 = vmatprep.subr.mxu0 0.0
    %4449 = vmatpush1.msra.mxu0 0.0
    %4450 = vmatprep.subr.mxu0 0.0
    %4451 = vmatpush1.msra.mxu0 0.0
    %4452 = vmatprep.subr.mxu0 0.0
    %4453 = vmatpush1.msra.mxu0 0.0
    %4454 = vmatprep.subr.mxu0 0.0
    %4455 = vmatpush1.msra.mxu0 0.0
    %4456 = vmatprep.subr.mxu0 0.0
    %4457 = vmatpush1.msra.mxu0 0.0
    %4458 = vmatprep.subr.mxu0 0.0
    %4459 = vmatpush1.msra.mxu0 0.0
    %4460 = vmatprep.subr.mxu0 0.0
    %4461 = vmatpush1.msra.mxu0 0.0
    %4462 = vmatprep.subr.mxu0 0.0
    %4463 = vmatpush1.msra.mxu0 0.0
    %4464 = vmatprep.subr.mxu0 0.0
    %4465 = vmatpush1.msra.mxu0 0.0
    %4466 = vmatprep.subr.mxu0 0.0
    %4467 = vmatpush1.msra.mxu0 0.0
    %4468 = vmatprep.subr.mxu0 0.0
    %4469 = vmatpush1.msra.mxu0 0.0
    %4470 = vmatprep.subr.mxu0 0.0
    %4471 = vmatpush1.msra.mxu0 0.0
    %4472 = vmatprep.subr.mxu0 0.0
    %4473 = vmatpush1.msra.mxu0 0.0
    %4474 = vmatprep.subr.mxu0 0.0
    %4475 = vmatpush1.msra.mxu0 0.0
    %4476 = vmatprep.subr.mxu0 0.0
    %4477 = vmatpush1.msra.mxu0 0.0
    %4478 = vmatprep.mubr.f32.mxu0 0.0
    %4479 = vmatmul.mubr.f32.gmra.mrb[0].mxu0 %v4412
    %v4480 = vpop.f32.mrb[0].mxu0
    %v4481 = vadd.f32 0.0, %v4480
    %v4482 = vpop.f32.mrb[0].mxu0
    %4483 = vdwg.mxu0
    %v4485 = vsel %vm198, %v4410, 0
    %4487 = vmatprep.subr.mxu0 0.0
    %4488 = vmatpush1.msra.mxu0 %v4234
    %4489 = vmatprep.subr.mxu0 0.0
    %4490 = vmatpush1.msra.mxu0 0.0
    %4491 = vmatprep.subr.mxu0 0.0
    %4492 = vmatpush1.msra.mxu0 0.0
    %4493 = vmatprep.subr.mxu0 0.0
    %4494 = vmatpush1.msra.mxu0 0.0
    %4495 = vmatprep.subr.mxu0 0.0
    %4496 = vmatpush1.msra.mxu0 0.0
    %4497 = vmatprep.subr.mxu0 0.0
    %4498 = vmatpush1.msra.mxu0 0.0
    %4499 = vmatprep.subr.mxu0 0.0
    %4500 = vmatpush1.msra.mxu0 0.0
    %4501 = vmatprep.subr.mxu0 0.0
    %4502 = vmatpush1.msra.mxu0 0.0
    %4503 = vmatprep.subr.mxu0 0.0
    %4504 = vmatpush1.msra.mxu0 0.0
    %4505 = vmatprep.subr.mxu0 0.0
    %4506 = vmatpush1.msra.mxu0 0.0
    %4507 = vmatprep.subr.mxu0 0.0
    %4508 = vmatpush1.msra.mxu0 0.0
    %4509 = vmatprep.subr.mxu0 0.0
    %4510 = vmatpush1.msra.mxu0 0.0
    %4511 = vmatprep.subr.mxu0 0.0
    %4512 = vmatpush1.msra.mxu0 0.0
    %4513 = vmatprep.subr.mxu0 0.0
    %4514 = vmatpush1.msra.mxu0 0.0
    %4515 = vmatprep.subr.mxu0 0.0
    %4516 = vmatpush1.msra.mxu0 0.0
    %4517 = vmatprep.subr.mxu0 0.0
    %4518 = vmatpush1.msra.mxu0 0.0
    %4519 = vmatprep.subr.mxu0 0.0
    %4520 = vmatpush1.msra.mxu0 0.0
    %4521 = vmatprep.subr.mxu0 0.0
    %4522 = vmatpush1.msra.mxu0 0.0
    %4523 = vmatprep.subr.mxu0 0.0
    %4524 = vmatpush1.msra.mxu0 0.0
    %4525 = vmatprep.subr.mxu0 0.0
    %4526 = vmatpush1.msra.mxu0 0.0
    %4527 = vmatprep.subr.mxu0 0.0
    %4528 = vmatpush1.msra.mxu0 0.0
    %4529 = vmatprep.subr.mxu0 0.0
    %4530 = vmatpush1.msra.mxu0 0.0
    %4531 = vmatprep.subr.mxu0 0.0
    %4532 = vmatpush1.msra.mxu0 0.0
    %4533 = vmatprep.subr.mxu0 0.0
    %4534 = vmatpush1.msra.mxu0 0.0
    %4535 = vmatprep.subr.mxu0 0.0
    %4536 = vmatpush1.msra.mxu0 0.0
    %4537 = vmatprep.subr.mxu0 0.0
    %4538 = vmatpush1.msra.mxu0 0.0
    %4539 = vmatprep.subr.mxu0 0.0
    %4540 = vmatpush1.msra.mxu0 0.0
    %4541 = vmatprep.subr.mxu0 0.0
    %4542 = vmatpush1.msra.mxu0 0.0
    %4543 = vmatprep.subr.mxu0 0.0
    %4544 = vmatpush1.msra.mxu0 0.0
    %4545 = vmatprep.subr.mxu0 0.0
    %4546 = vmatpush1.msra.mxu0 0.0
    %4547 = vmatprep.subr.mxu0 0.0
    %4548 = vmatpush1.msra.mxu0 0.0
    %4549 = vmatprep.subr.mxu0 0.0
    %4550 = vmatpush1.msra.mxu0 0.0
    %4551 = vmatprep.mubr.f32.mxu0 0.0
    %4552 = vmatmul.mubr.f32.gmra.mrb[0].mxu0 %v4485
    %v4553 = vpop.f32.mrb[0].mxu0
    %v4554 = vadd.f32 0.0, %v4553
    %v4555 = vpop.f32.mrb[0].mxu0
    %4556 = vdwg.mxu0
    %4557 = vrot.lane.b32.xlu0 %v4029, 120
    %v4558 = vpop.permute.xlu0 %4557
    %4559 = vrot.lane.b32.xlu0 %v4129, 120
    %v4560 = vpop.permute.xlu0 %4559
    %v4561 = vsel %vm198, %v4558, 0
    %v4563 = vsel %vm198, %v4560, 0
    %4565 = vmatprep.subr.mxu0 0.0
    %4566 = vmatpush1.xpose.msra.mxu0 %v4563
    %4567 = vmatprep.subr.mxu0 0.0
    %4568 = vmatpush1.xpose.msra.mxu0 0.0
    %4569 = vmatprep.subr.mxu0 0.0
    %4570 = vmatpush1.xpose.msra.mxu0 0.0
    %4571 = vmatprep.subr.mxu0 0.0
    %4572 = vmatpush1.xpose.msra.mxu0 0.0
    %4573 = vmatprep.subr.mxu0 0.0
    %4574 = vmatpush1.xpose.msra.mxu0 0.0
    %4575 = vmatprep.subr.mxu0 0.0
    %4576 = vmatpush1.xpose.msra.mxu0 0.0
    %4577 = vmatprep.subr.mxu0 0.0
    %4578 = vmatpush1.xpose.msra.mxu0 0.0
    %4579 = vmatprep.subr.mxu0 0.0
    %4580 = vmatpush1.xpose.msra.mxu0 0.0
    %4581 = vmatprep.subr.mxu0 0.0
    %4582 = vmatpush1.xpose.msra.mxu0 0.0
    %4583 = vmatprep.subr.mxu0 0.0
    %4584 = vmatpush1.xpose.msra.mxu0 0.0
    %4585 = vmatprep.subr.mxu0 0.0
    %4586 = vmatpush1.xpose.msra.mxu0 0.0
    %4587 = vmatprep.subr.mxu0 0.0
    %4588 = vmatpush1.xpose.msra.mxu0 0.0
    %4589 = vmatprep.subr.mxu0 0.0
    %4590 = vmatpush1.xpose.msra.mxu0 0.0
    %4591 = vmatprep.subr.mxu0 0.0
    %4592 = vmatpush1.xpose.msra.mxu0 0.0
    %4593 = vmatprep.subr.mxu0 0.0
    %4594 = vmatpush1.xpose.msra.mxu0 0.0
    %4595 = vmatprep.subr.mxu0 0.0
    %4596 = vmatpush1.xpose.msra.mxu0 0.0
    %4597 = vmatprep.subr.mxu0 0.0
    %4598 = vmatpush1.xpose.msra.mxu0 0.0
    %4599 = vmatprep.subr.mxu0 0.0
    %4600 = vmatpush1.xpose.msra.mxu0 0.0
    %4601 = vmatprep.subr.mxu0 0.0
    %4602 = vmatpush1.xpose.msra.mxu0 0.0
    %4603 = vmatprep.subr.mxu0 0.0
    %4604 = vmatpush1.xpose.msra.mxu0 0.0
    %4605 = vmatprep.subr.mxu0 0.0
    %4606 = vmatpush1.xpose.msra.mxu0 0.0
    %4607 = vmatprep.subr.mxu0 0.0
    %4608 = vmatpush1.xpose.msra.mxu0 0.0
    %4609 = vmatprep.subr.mxu0 0.0
    %4610 = vmatpush1.xpose.msra.mxu0 0.0
    %4611 = vmatprep.subr.mxu0 0.0
    %4612 = vmatpush1.xpose.msra.mxu0 0.0
    %4613 = vmatprep.subr.mxu0 0.0
    %4614 = vmatpush1.xpose.msra.mxu0 0.0
    %4615 = vmatprep.subr.mxu0 0.0
    %4616 = vmatpush1.xpose.msra.mxu0 0.0
    %4617 = vmatprep.subr.mxu0 0.0
    %4618 = vmatpush1.xpose.msra.mxu0 0.0
    %4619 = vmatprep.subr.mxu0 0.0
    %4620 = vmatpush1.xpose.msra.mxu0 0.0
    %4621 = vmatprep.subr.mxu0 0.0
    %4622 = vmatpush1.xpose.msra.mxu0 0.0
    %4623 = vmatprep.subr.mxu0 0.0
    %4624 = vmatpush1.xpose.msra.mxu0 0.0
    %4625 = vmatprep.subr.mxu0 0.0
    %4626 = vmatpush1.xpose.msra.mxu0 0.0
    %4627 = vmatprep.subr.mxu0 0.0
    %4628 = vmatpush1.xpose.msra.mxu0 0.0
    %4629 = vmatprep.mubr.f32.mxu0 0.0
    %4630 = vmatmul.mubr.f32.gmra.mrb[0].mxu0 %v4561
    %v4631 = vpop.f32.mrb[0].mxu0
    %v4632 = vadd.f32 0.0, %v4631
    %v4633 = vpop.f32.mrb[0].mxu0
    %4634 = vdwg.mxu0
    %4635 = vrot.lane.b32.xlu0 %v4034, 120
    %v4636 = vpop.permute.xlu0 %4635
    %4637 = vrot.lane.b32.xlu0 %v4134, 120
    %v4638 = vpop.permute.xlu0 %4637
    %v4639 = vsel %vm198, %v4636, 0
    %v4641 = vsel %vm198, %v4638, 0
    %4643 = vmatprep.subr.mxu0 0.0
    %4644 = vmatpush1.xpose.msra.mxu0 %v4641
    %4645 = vmatprep.subr.mxu0 0.0
    %4646 = vmatpush1.xpose.msra.mxu0 0.0
    %4647 = vmatprep.subr.mxu0 0.0
    %4648 = vmatpush1.xpose.msra.mxu0 0.0
    %4649 = vmatprep.subr.mxu0 0.0
    %4650 = vmatpush1.xpose.msra.mxu0 0.0
    %4651 = vmatprep.subr.mxu0 0.0
    %4652 = vmatpush1.xpose.msra.mxu0 0.0
    %4653 = vmatprep.subr.mxu0 0.0
    %4654 = vmatpush1.xpose.msra.mxu0 0.0
    %4655 = vmatprep.subr.mxu0 0.0
    %4656 = vmatpush1.xpose.msra.mxu0 0.0
    %4657 = vmatprep.subr.mxu0 0.0
    %4658 = vmatpush1.xpose.msra.mxu0 0.0
    %4659 = vmatprep.subr.mxu0 0.0
    %4660 = vmatpush1.xpose.msra.mxu0 0.0
    %4661 = vmatprep.subr.mxu0 0.0
    %4662 = vmatpush1.xpose.msra.mxu0 0.0
    %4663 = vmatprep.subr.mxu0 0.0
    %4664 = vmatpush1.xpose.msra.mxu0 0.0
    %4665 = vmatprep.subr.mxu0 0.0
    %4666 = vmatpush1.xpose.msra.mxu0 0.0
    %4667 = vmatprep.subr.mxu0 0.0
    %4668 = vmatpush1.xpose.msra.mxu0 0.0
    %4669 = vmatprep.subr.mxu0 0.0
    %4670 = vmatpush1.xpose.msra.mxu0 0.0
    %4671 = vmatprep.subr.mxu0 0.0
    %4672 = vmatpush1.xpose.msra.mxu0 0.0
    %4673 = vmatprep.subr.mxu0 0.0
    %4674 = vmatpush1.xpose.msra.mxu0 0.0
    %4675 = vmatprep.subr.mxu0 0.0
    %4676 = vmatpush1.xpose.msra.mxu0 0.0
    %4677 = vmatprep.subr.mxu0 0.0
    %4678 = vmatpush1.xpose.msra.mxu0 0.0
    %4679 = vmatprep.subr.mxu0 0.0
    %4680 = vmatpush1.xpose.msra.mxu0 0.0
    %4681 = vmatprep.subr.mxu0 0.0
    %4682 = vmatpush1.xpose.msra.mxu0 0.0
    %4683 = vmatprep.subr.mxu0 0.0
    %4684 = vmatpush1.xpose.msra.mxu0 0.0
    %4685 = vmatprep.subr.mxu0 0.0
    %4686 = vmatpush1.xpose.msra.mxu0 0.0
    %4687 = vmatprep.subr.mxu0 0.0
    %4688 = vmatpush1.xpose.msra.mxu0 0.0
    %4689 = vmatprep.subr.mxu0 0.0
    %4690 = vmatpush1.xpose.msra.mxu0 0.0
    %4691 = vmatprep.subr.mxu0 0.0
    %4692 = vmatpush1.xpose.msra.mxu0 0.0
    %4693 = vmatprep.subr.mxu0 0.0
    %4694 = vmatpush1.xpose.msra.mxu0 0.0
    %4695 = vmatprep.subr.mxu0 0.0
    %4696 = vmatpush1.xpose.msra.mxu0 0.0
    %4697 = vmatprep.subr.mxu0 0.0
    %4698 = vmatpush1.xpose.msra.mxu0 0.0
    %4699 = vmatprep.subr.mxu0 0.0
    %4700 = vmatpush1.xpose.msra.mxu0 0.0
    %4701 = vmatprep.subr.mxu0 0.0
    %4702 = vmatpush1.xpose.msra.mxu0 0.0
    %4703 = vmatprep.subr.mxu0 0.0
    %4704 = vmatpush1.xpose.msra.mxu0 0.0
    %4705 = vmatprep.subr.mxu0 0.0
    %4706 = vmatpush1.xpose.msra.mxu0 0.0
    %4707 = vmatprep.mubr.f32.mxu0 0.0
    %4708 = vmatmul.mubr.f32.gmra.mrb[0].mxu0 %v4639
    %v4709 = vpop.f32.mrb[0].mxu0
    %v4710 = vadd.f32 0.0, %v4709
    %v4711 = vpop.f32.mrb[0].mxu0
    %4712 = vdwg.mxu0
    %v4713 = vsel %vm198, %v4632, -inf
    %4714 = vmax.xlane.f32.xlu0 %v4713
    %v4715 = vpop.xlane.xlu0 %4714
    %v4716 = vsel %vm198, %v4710, -inf
    %4717 = vmax.xlane.f32.xlu0 %v4716
    %v4718 = vpop.xlane.xlu0 %4717
    %v4719 = vsub.f32 %v4632, %v4715
    %v4720 = vsub.f32 %v4710, %v4718
    %v4721 = vmul.f32 %v4719, 1.442695
    %v4722 = vpow.pop %v4721
    %v4723 = vmul.f32 %v4720, 1.442695
    %v4724 = vpow.pop %v4723
    %v4725 = vsel %vm198, %v4722, 0.0
    %4726 = vadd.xlane.f32.xlu0 %v4725
    %v4727 = vpop.xlane.xlu0 %4726
    %v4728 = vsel %vm198, %v4724, 0.0
    %4729 = vadd.xlane.f32.xlu0 %v4728
    %v4730 = vpop.xlane.xlu0 %4729
    %v4731 = vrcp.pop %v4727
    %v4732 = vmul.f32 %v4722, %v4731
    %v4733 = vrcp.pop %v4730
    %v4734 = vmul.f32 %v4724, %v4733
    %4736 = vrot.lane.b32.xlu0 %v4229, 120
    %v4737 = vpop.permute.xlu0 %4736
    %v4740 = vsel %vm198, %v4732, 0
    %4742 = vmatprep.subr.mxu0 0.0
    %4743 = vmatpush1.msra.mxu0 %v4737
    %4744 = vmatprep.subr.mxu0 0.0
    %4745 = vmatpush1.msra.mxu0 0.0
    %4746 = vmatprep.subr.mxu0 0.0
    %4747 = vmatpush1.msra.mxu0 0.0
    %4748 = vmatprep.subr.mxu0 0.0
    %4749 = vmatpush1.msra.mxu0 0.0
    %4750 = vmatprep.subr.mxu0 0.0
    %4751 = vmatpush1.msra.mxu0 0.0
    %4752 = vmatprep.subr.mxu0 0.0
    %4753 = vmatpush1.msra.mxu0 0.0
    %4754 = vmatprep.subr.mxu0 0.0
    %4755 = vmatpush1.msra.mxu0 0.0
    %4756 = vmatprep.subr.mxu0 0.0
    %4757 = vmatpush1.msra.mxu0 0.0
    %4758 = vmatprep.subr.mxu0 0.0
    %4759 = vmatpush1.msra.mxu0 0.0
    %4760 = vmatprep.subr.mxu0 0.0
    %4761 = vmatpush1.msra.mxu0 0.0
    %4762 = vmatprep.subr.mxu0 0.0
    %4763 = vmatpush1.msra.mxu0 0.0
    %4764 = vmatprep.subr.mxu0 0.0
    %4765 = vmatpush1.msra.mxu0 0.0
    %4766 = vmatprep.subr.mxu0 0.0
    %4767 = vmatpush1.msra.mxu0 0.0
    %4768 = vmatprep.subr.mxu0 0.0
    %4769 = vmatpush1.msra.mxu0 0.0
    %4770 = vmatprep.subr.mxu0 0.0
    %4771 = vmatpush1.msra.mxu0 0.0
    %4772 = vmatprep.subr.mxu0 0.0
    %4773 = vmatpush1.msra.mxu0 0.0
    %4774 = vmatprep.subr.mxu0 0.0
    %4775 = vmatpush1.msra.mxu0 0.0
    %4776 = vmatprep.subr.mxu0 0.0
    %4777 = vmatpush1.msra.mxu0 0.0
    %4778 = vmatprep.subr.mxu0 0.0
    %4779 = vmatpush1.msra.mxu0 0.0
    %4780 = vmatprep.subr.mxu0 0.0
    %4781 = vmatpush1.msra.mxu0 0.0
    %4782 = vmatprep.subr.mxu0 0.0
    %4783 = vmatpush1.msra.mxu0 0.0
    %4784 = vmatprep.subr.mxu0 0.0
    %4785 = vmatpush1.msra.mxu0 0.0
    %4786 = vmatprep.subr.mxu0 0.0
    %4787 = vmatpush1.msra.mxu0 0.0
    %4788 = vmatprep.subr.mxu0 0.0
    %4789 = vmatpush1.msra.mxu0 0.0
    %4790 = vmatprep.subr.mxu0 0.0
    %4791 = vmatpush1.msra.mxu0 0.0
    %4792 = vmatprep.subr.mxu0 0.0
    %4793 = vmatpush1.msra.mxu0 0.0
    %4794 = vmatprep.subr.mxu0 0.0
    %4795 = vmatpush1.msra.mxu0 0.0
    %4796 = vmatprep.subr.mxu0 0.0
    %4797 = vmatpush1.msra.mxu0 0.0
    %4798 = vmatprep.subr.mxu0 0.0
    %4799 = vmatpush1.msra.mxu0 0.0
    %4800 = vmatprep.subr.mxu0 0.0
    %4801 = vmatpush1.msra.mxu0 0.0
    %4802 = vmatprep.subr.mxu0 0.0
    %4803 = vmatpush1.msra.mxu0 0.0
    %4804 = vmatprep.subr.mxu0 0.0
    %4805 = vmatpush1.msra.mxu0 0.0
    %4806 = vmatprep.mubr.f32.mxu0 0.0
    %4807 = vmatmul.mubr.f32.gmra.mrb[0].mxu0 %v4740
    %v4808 = vpop.f32.mrb[0].mxu0
    %v4809 = vadd.f32 0.0, %v4808
    %v4810 = vpop.f32.mrb[0].mxu0
    %4811 = vdwg.mxu0
    %4813 = vrot.lane.b32.xlu0 %v4234, 120
    %v4814 = vpop.permute.xlu0 %4813
    %v4817 = vsel %vm198, %v4734, 0
    %4819 = vmatprep.subr.mxu0 0.0
    %4820 = vmatpush1.msra.mxu0 %v4814
    %4821 = vmatprep.subr.mxu0 0.0
    %4822 = vmatpush1.msra.mxu0 0.0
    %4823 = vmatprep.subr.mxu0 0.0
    %4824 = vmatpush1.msra.mxu0 0.0
    %4825 = vmatprep.subr.mxu0 0.0
    %4826 = vmatpush1.msra.mxu0 0.0
    %4827 = vmatprep.subr.mxu0 0.0
    %4828 = vmatpush1.msra.mxu0 0.0
    %4829 = vmatprep.subr.mxu0 0.0
    %4830 = vmatpush1.msra.mxu0 0.0
    %4831 = vmatprep.subr.mxu0 0.0
    %4832 = vmatpush1.msra.mxu0 0.0
    %4833 = vmatprep.subr.mxu0 0.0
    %4834 = vmatpush1.msra.mxu0 0.0
    %4835 = vmatprep.subr.mxu0 0.0
    %4836 = vmatpush1.msra.mxu0 0.0
    %4837 = vmatprep.subr.mxu0 0.0
    %4838 = vmatpush1.msra.mxu0 0.0
    %4839 = vmatprep.subr.mxu0 0.0
    %4840 = vmatpush1.msra.mxu0 0.0
    %4841 = vmatprep.subr.mxu0 0.0
    %4842 = vmatpush1.msra.mxu0 0.0
    %4843 = vmatprep.subr.mxu0 0.0
    %4844 = vmatpush1.msra.mxu0 0.0
    %4845 = vmatprep.subr.mxu0 0.0
    %4846 = vmatpush1.msra.mxu0 0.0
    %4847 = vmatprep.subr.mxu0 0.0
    %4848 = vmatpush1.msra.mxu0 0.0
    %4849 = vmatprep.subr.mxu0 0.0
    %4850 = vmatpush1.msra.mxu0 0.0
    %4851 = vmatprep.subr.mxu0 0.0
    %4852 = vmatpush1.msra.mxu0 0.0
    %4853 = vmatprep.subr.mxu0 0.0
    %4854 = vmatpush1.msra.mxu0 0.0
    %4855 = vmatprep.subr.mxu0 0.0
    %4856 = vmatpush1.msra.mxu0 0.0
    %4857 = vmatprep.subr.mxu0 0.0
    %4858 = vmatpush1.msra.mxu0 0.0
    %4859 = vmatprep.subr.mxu0 0.0
    %4860 = vmatpush1.msra.mxu0 0.0
    %4861 = vmatprep.subr.mxu0 0.0
    %4862 = vmatpush1.msra.mxu0 0.0
    %4863 = vmatprep.subr.mxu0 0.0
    %4864 = vmatpush1.msra.mxu0 0.0
    %4865 = vmatprep.subr.mxu0 0.0
    %4866 = vmatpush1.msra.mxu0 0.0
    %4867 = vmatprep.subr.mxu0 0.0
    %4868 = vmatpush1.msra.mxu0 0.0
    %4869 = vmatprep.subr.mxu0 0.0
    %4870 = vmatpush1.msra.mxu0 0.0
    %4871 = vmatprep.subr.mxu0 0.0
    %4872 = vmatpush1.msra.mxu0 0.0
    %4873 = vmatprep.subr.mxu0 0.0
    %4874 = vmatpush1.msra.mxu0 0.0
    %4875 = vmatprep.subr.mxu0 0.0
    %4876 = vmatpush1.msra.mxu0 0.0
    %4877 = vmatprep.subr.mxu0 0.0
    %4878 = vmatpush1.msra.mxu0 0.0
    %4879 = vmatprep.subr.mxu0 0.0
    %4880 = vmatpush1.msra.mxu0 0.0
    %4881 = vmatprep.subr.mxu0 0.0
    %4882 = vmatpush1.msra.mxu0 0.0
    %4883 = vmatprep.mubr.f32.mxu0 0.0
    %4884 = vmatmul.mubr.f32.gmra.mrb[0].mxu0 %v4817
    %v4885 = vpop.f32.mrb[0].mxu0
    %v4886 = vadd.f32 0.0, %v4885
    %v4887 = vpop.f32.mrb[0].mxu0
    %4888 = vdwg.mxu0
    %4889 = vrot.lane.b32.xlu0 %v4029, 112
    %v4890 = vpop.permute.xlu0 %4889
    %4891 = vrot.lane.b32.xlu0 %v4129, 112
    %v4892 = vpop.permute.xlu0 %4891
    %v4893 = vsel %vm198, %v4890, 0
    %v4895 = vsel %vm198, %v4892, 0
    %4897 = vmatprep.subr.mxu0 0.0
    %4898 = vmatpush1.xpose.msra.mxu0 %v4895
    %4899 = vmatprep.subr.mxu0 0.0
    %4900 = vmatpush1.xpose.msra.mxu0 0.0
    %4901 = vmatprep.subr.mxu0 0.0
    %4902 = vmatpush1.xpose.msra.mxu0 0.0
    %4903 = vmatprep.subr.mxu0 0.0
    %4904 = vmatpush1.xpose.msra.mxu0 0.0
    %4905 = vmatprep.subr.mxu0 0.0
    %4906 = vmatpush1.xpose.msra.mxu0 0.0
    %4907 = vmatprep.subr.mxu0 0.0
    %4908 = vmatpush1.xpose.msra.mxu0 0.0
    %4909 = vmatprep.subr.mxu0 0.0
    %4910 = vmatpush1.xpose.msra.mxu0 0.0
    %4911 = vmatprep.subr.mxu0 0.0
    %4912 = vmatpush1.xpose.msra.mxu0 0.0
    %4913 = vmatprep.subr.mxu0 0.0
    %4914 = vmatpush1.xpose.msra.mxu0 0.0
    %4915 = vmatprep.subr.mxu0 0.0
    %4916 = vmatpush1.xpose.msra.mxu0 0.0
    %4917 = vmatprep.subr.mxu0 0.0
    %4918 = vmatpush1.xpose.msra.mxu0 0.0
    %4919 = vmatprep.subr.mxu0 0.0
    %4920 = vmatpush1.xpose.msra.mxu0 0.0
    %4921 = vmatprep.subr.mxu0 0.0
    %4922 = vmatpush1.xpose.msra.mxu0 0.0
    %4923 = vmatprep.subr.mxu0 0.0
    %4924 = vmatpush1.xpose.msra.mxu0 0.0
    %4925 = vmatprep.subr.mxu0 0.0
    %4926 = vmatpush1.xpose.msra.mxu0 0.0
    %4927 = vmatprep.subr.mxu0 0.0
    %4928 = vmatpush1.xpose.msra.mxu0 0.0
    %4929 = vmatprep.subr.mxu0 0.0
    %4930 = vmatpush1.xpose.msra.mxu0 0.0
    %4931 = vmatprep.subr.mxu0 0.0
    %4932 = vmatpush1.xpose.msra.mxu0 0.0
    %4933 = vmatprep.subr.mxu0 0.0
    %4934 = vmatpush1.xpose.msra.mxu0 0.0
    %4935 = vmatprep.subr.mxu0 0.0
    %4936 = vmatpush1.xpose.msra.mxu0 0.0
    %4937 = vmatprep.subr.mxu0 0.0
    %4938 = vmatpush1.xpose.msra.mxu0 0.0
    %4939 = vmatprep.subr.mxu0 0.0
    %4940 = vmatpush1.xpose.msra.mxu0 0.0
    %4941 = vmatprep.subr.mxu0 0.0
    %4942 = vmatpush1.xpose.msra.mxu0 0.0
    %4943 = vmatprep.subr.mxu0 0.0
    %4944 = vmatpush1.xpose.msra.mxu0 0.0
    %4945 = vmatprep.subr.mxu0 0.0
    %4946 = vmatpush1.xpose.msra.mxu0 0.0
    %4947 = vmatprep.subr.mxu0 0.0
    %4948 = vmatpush1.xpose.msra.mxu0 0.0
    %4949 = vmatprep.subr.mxu0 0.0
    %4950 = vmatpush1.xpose.msra.mxu0 0.0
    %4951 = vmatprep.subr.mxu0 0.0
    %4952 = vmatpush1.xpose.msra.mxu0 0.0
    %4953 = vmatprep.subr.mxu0 0.0
    %4954 = vmatpush1.xpose.msra.mxu0 0.0
    %4955 = vmatprep.subr.mxu0 0.0
    %4956 = vmatpush1.xpose.msra.mxu0 0.0
    %4957 = vmatprep.subr.mxu0 0.0
    %4958 = vmatpush1.xpose.msra.mxu0 0.0
    %4959 = vmatprep.subr.mxu0 0.0
    %4960 = vmatpush1.xpose.msra.mxu0 0.0
    %4961 = vmatprep.mubr.f32.mxu0 0.0
    %4962 = vmatmul.mubr.f32.gmra.mrb[0].mxu0 %v4893
    %v4963 = vpop.f32.mrb[0].mxu0
    %v4964 = vadd.f32 0.0, %v4963
    %v4965 = vpop.f32.mrb[0].mxu0
    %4966 = vdwg.mxu0
    %4967 = vrot.lane.b32.xlu0 %v4034, 112
    %v4968 = vpop.permute.xlu0 %4967
    %4969 = vrot.lane.b32.xlu0 %v4134, 112
    %v4970 = vpop.permute.xlu0 %4969
    %v4971 = vsel %vm198, %v4968, 0
    %v4973 = vsel %vm198, %v4970, 0
    %4975 = vmatprep.subr.mxu0 0.0
    %4976 = vmatpush1.xpose.msra.mxu0 %v4973
    %4977 = vmatprep.subr.mxu0 0.0
    %4978 = vmatpush1.xpose.msra.mxu0 0.0
    %4979 = vmatprep.subr.mxu0 0.0
    %4980 = vmatpush1.xpose.msra.mxu0 0.0
    %4981 = vmatprep.subr.mxu0 0.0
    %4982 = vmatpush1.xpose.msra.mxu0 0.0
    %4983 = vmatprep.subr.mxu0 0.0
    %4984 = vmatpush1.xpose.msra.mxu0 0.0
    %4985 = vmatprep.subr.mxu0 0.0
    %4986 = vmatpush1.xpose.msra.mxu0 0.0
    %4987 = vmatprep.subr.mxu0 0.0
    %4988 = vmatpush1.xpose.msra.mxu0 0.0
    %4989 = vmatprep.subr.mxu0 0.0
    %4990 = vmatpush1.xpose.msra.mxu0 0.0
    %4991 = vmatprep.subr.mxu0 0.0
    %4992 = vmatpush1.xpose.msra.mxu0 0.0
    %4993 = vmatprep.subr.mxu0 0.0
    %4994 = vmatpush1.xpose.msra.mxu0 0.0
    %4995 = vmatprep.subr.mxu0 0.0
    %4996 = vmatpush1.xpose.msra.mxu0 0.0
    %4997 = vmatprep.subr.mxu0 0.0
    %4998 = vmatpush1.xpose.msra.mxu0 0.0
    %4999 = vmatprep.subr.mxu0 0.0
    %5000 = vmatpush1.xpose.msra.mxu0 0.0
    %5001 = vmatprep.subr.mxu0 0.0
    %5002 = vmatpush1.xpose.msra.mxu0 0.0
    %5003 = vmatprep.subr.mxu0 0.0
    %5004 = vmatpush1.xpose.msra.mxu0 0.0
    %5005 = vmatprep.subr.mxu0 0.0
    %5006 = vmatpush1.xpose.msra.mxu0 0.0
    %5007 = vmatprep.subr.mxu0 0.0
    %5008 = vmatpush1.xpose.msra.mxu0 0.0
    %5009 = vmatprep.subr.mxu0 0.0
    %5010 = vmatpush1.xpose.msra.mxu0 0.0
    %5011 = vmatprep.subr.mxu0 0.0
    %5012 = vmatpush1.xpose.msra.mxu0 0.0
    %5013 = vmatprep.subr.mxu0 0.0
    %5014 = vmatpush1.xpose.msra.mxu0 0.0
    %5015 = vmatprep.subr.mxu0 0.0
    %5016 = vmatpush1.xpose.msra.mxu0 0.0
    %5017 = vmatprep.subr.mxu0 0.0
    %5018 = vmatpush1.xpose.msra.mxu0 0.0
    %5019 = vmatprep.subr.mxu0 0.0
    %5020 = vmatpush1.xpose.msra.mxu0 0.0
    %5021 = vmatprep.subr.mxu0 0.0
    %5022 = vmatpush1.xpose.msra.mxu0 0.0
    %5023 = vmatprep.subr.mxu0 0.0
    %5024 = vmatpush1.xpose.msra.mxu0 0.0
    %5025 = vmatprep.subr.mxu0 0.0
    %5026 = vmatpush1.xpose.msra.mxu0 0.0
    %5027 = vmatprep.subr.mxu0 0.0
    %5028 = vmatpush1.xpose.msra.mxu0 0.0
    %5029 = vmatprep.subr.mxu0 0.0
    %5030 = vmatpush1.xpose.msra.mxu0 0.0
    %5031 = vmatprep.subr.mxu0 0.0
    %5032 = vmatpush1.xpose.msra.mxu0 0.0
    %5033 = vmatprep.subr.mxu0 0.0
    %5034 = vmatpush1.xpose.msra.mxu0 0.0
    %5035 = vmatprep.subr.mxu0 0.0
    %5036 = vmatpush1.xpose.msra.mxu0 0.0
    %5037 = vmatprep.subr.mxu0 0.0
    %5038 = vmatpush1.xpose.msra.mxu0 0.0
    %5039 = vmatprep.mubr.f32.mxu0 0.0
    %5040 = vmatmul.mubr.f32.gmra.mrb[0].mxu0 %v4971
    %v5041 = vpop.f32.mrb[0].mxu0
    %v5042 = vadd.f32 0.0, %v5041
    %v5043 = vpop.f32.mrb[0].mxu0
    %5044 = vdwg.mxu0
    %v5045 = vsel %vm198, %v4964, -inf
    %5046 = vmax.xlane.f32.xlu0 %v5045
    %v5047 = vpop.xlane.xlu0 %5046
    %v5048 = vsel %vm198, %v5042, -inf
    %5049 = vmax.xlane.f32.xlu0 %v5048
    %v5050 = vpop.xlane.xlu0 %5049
    %v5051 = vsub.f32 %v4964, %v5047
    %v5052 = vsub.f32 %v5042, %v5050
    %v5053 = vmul.f32 %v5051, 1.442695
    %v5054 = vpow.pop %v5053
    %v5055 = vmul.f32 %v5052, 1.442695
    %v5056 = vpow.pop %v5055
    %v5057 = vsel %vm198, %v5054, 0.0
    %5058 = vadd.xlane.f32.xlu0 %v5057
    %v5059 = vpop.xlane.xlu0 %5058
    %v5060 = vsel %vm198, %v5056, 0.0
    %5061 = vadd.xlane.f32.xlu0 %v5060
    %v5062 = vpop.xlane.xlu0 %5061
    %v5063 = vrcp.pop %v5059
    %v5064 = vmul.f32 %v5054, %v5063
    %v5065 = vrcp.pop %v5062
    %v5066 = vmul.f32 %v5056, %v5065
    %5067 = vrot.lane.b32.xlu0 %v4229, 112
    %v5068 = vpop.permute.xlu0 %5067
    %v5071 = vsel %vm198, %v5064, 0
    %5073 = vmatprep.subr.mxu0 0.0
    %5074 = vmatpush1.msra.mxu0 %v5068
    %5075 = vmatprep.subr.mxu0 0.0
    %5076 = vmatpush1.msra.mxu0 0.0
    %5077 = vmatprep.subr.mxu0 0.0
    %5078 = vmatpush1.msra.mxu0 0.0
    %5079 = vmatprep.subr.mxu0 0.0
    %5080 = vmatpush1.msra.mxu0 0.0
    %5081 = vmatprep.subr.mxu0 0.0
    %5082 = vmatpush1.msra.mxu0 0.0
    %5083 = vmatprep.subr.mxu0 0.0
    %5084 = vmatpush1.msra.mxu0 0.0
    %5085 = vmatprep.subr.mxu0 0.0
    %5086 = vmatpush1.msra.mxu0 0.0
    %5087 = vmatprep.subr.mxu0 0.0
    %5088 = vmatpush1.msra.mxu0 0.0
    %5089 = vmatprep.subr.mxu0 0.0
    %5090 = vmatpush1.msra.mxu0 0.0
    %5091 = vmatprep.subr.mxu0 0.0
    %5092 = vmatpush1.msra.mxu0 0.0
    %5093 = vmatprep.subr.mxu0 0.0
    %5094 = vmatpush1.msra.mxu0 0.0
    %5095 = vmatprep.subr.mxu0 0.0
    %5096 = vmatpush1.msra.mxu0 0.0
    %5097 = vmatprep.subr.mxu0 0.0
    %5098 = vmatpush1.msra.mxu0 0.0
    %5099 = vmatprep.subr.mxu0 0.0
    %5100 = vmatpush1.msra.mxu0 0.0
    %5101 = vmatprep.subr.mxu0 0.0
    %5102 = vmatpush1.msra.mxu0 0.0
    %5103 = vmatprep.subr.mxu0 0.0
    %5104 = vmatpush1.msra.mxu0 0.0
    %5105 = vmatprep.subr.mxu0 0.0
    %5106 = vmatpush1.msra.mxu0 0.0
    %5107 = vmatprep.subr.mxu0 0.0
    %5108 = vmatpush1.msra.mxu0 0.0
    %5109 = vmatprep.subr.mxu0 0.0
    %5110 = vmatpush1.msra.mxu0 0.0
    %5111 = vmatprep.subr.mxu0 0.0
    %5112 = vmatpush1.msra.mxu0 0.0
    %5113 = vmatprep.subr.mxu0 0.0
    %5114 = vmatpush1.msra.mxu0 0.0
    %5115 = vmatprep.subr.mxu0 0.0
    %5116 = vmatpush1.msra.mxu0 0.0
    %5117 = vmatprep.subr.mxu0 0.0
    %5118 = vmatpush1.msra.mxu0 0.0
    %5119 = vmatprep.subr.mxu0 0.0
    %5120 = vmatpush1.msra.mxu0 0.0
    %5121 = vmatprep.subr.mxu0 0.0
    %5122 = vmatpush1.msra.mxu0 0.0
    %5123 = vmatprep.subr.mxu0 0.0
    %5124 = vmatpush1.msra.mxu0 0.0
    %5125 = vmatprep.subr.mxu0 0.0
    %5126 = vmatpush1.msra.mxu0 0.0
    %5127 = vmatprep.subr.mxu0 0.0
    %5128 = vmatpush1.msra.mxu0 0.0
    %5129 = vmatprep.subr.mxu0 0.0
    %5130 = vmatpush1.msra.mxu0 0.0
    %5131 = vmatprep.subr.mxu0 0.0
    %5132 = vmatpush1.msra.mxu0 0.0
    %5133 = vmatprep.subr.mxu0 0.0
    %5134 = vmatpush1.msra.mxu0 0.0
    %5135 = vmatprep.subr.mxu0 0.0
    %5136 = vmatpush1.msra.mxu0 0.0
    %5137 = vmatprep.mubr.f32.mxu0 0.0
    %5138 = vmatmul.mubr.f32.gmra.mrb[0].mxu0 %v5071
    %v5139 = vpop.f32.mrb[0].mxu0
    %v5140 = vadd.f32 0.0, %v5139
    %v5141 = vpop.f32.mrb[0].mxu0
    %5142 = vdwg.mxu0
    %5143 = vrot.lane.b32.xlu0 %v4234, 112
    %v5144 = vpop.permute.xlu0 %5143
    %v5147 = vsel %vm198, %v5066, 0
    %5149 = vmatprep.subr.mxu0 0.0
    %5150 = vmatpush1.msra.mxu0 %v5144
    %5151 = vmatprep.subr.mxu0 0.0
    %5152 = vmatpush1.msra.mxu0 0.0
    %5153 = vmatprep.subr.mxu0 0.0
    %5154 = vmatpush1.msra.mxu0 0.0
    %5155 = vmatprep.subr.mxu0 0.0
    %5156 = vmatpush1.msra.mxu0 0.0
    %5157 = vmatprep.subr.mxu0 0.0
    %5158 = vmatpush1.msra.mxu0 0.0
    %5159 = vmatprep.subr.mxu0 0.0
    %5160 = vmatpush1.msra.mxu0 0.0
    %5161 = vmatprep.subr.mxu0 0.0
    %5162 = vmatpush1.msra.mxu0 0.0
    %5163 = vmatprep.subr.mxu0 0.0
    %5164 = vmatpush1.msra.mxu0 0.0
    %5165 = vmatprep.subr.mxu0 0.0
    %5166 = vmatpush1.msra.mxu0 0.0
    %5167 = vmatprep.subr.mxu0 0.0
    %5168 = vmatpush1.msra.mxu0 0.0
    %5169 = vmatprep.subr.mxu0 0.0
    %5170 = vmatpush1.msra.mxu0 0.0
    %5171 = vmatprep.subr.mxu0 0.0
    %5172 = vmatpush1.msra.mxu0 0.0
    %5173 = vmatprep.subr.mxu0 0.0
    %5174 = vmatpush1.msra.mxu0 0.0
    %5175 = vmatprep.subr.mxu0 0.0
    %5176 = vmatpush1.msra.mxu0 0.0
    %5177 = vmatprep.subr.mxu0 0.0
    %5178 = vmatpush1.msra.mxu0 0.0
    %5179 = vmatprep.subr.mxu0 0.0
    %5180 = vmatpush1.msra.mxu0 0.0
    %5181 = vmatprep.subr.mxu0 0.0
    %5182 = vmatpush1.msra.mxu0 0.0
    %5183 = vmatprep.subr.mxu0 0.0
    %5184 = vmatpush1.msra.mxu0 0.0
    %5185 = vmatprep.subr.mxu0 0.0
    %5186 = vmatpush1.msra.mxu0 0.0
    %5187 = vmatprep.subr.mxu0 0.0
    %5188 = vmatpush1.msra.mxu0 0.0
    %5189 = vmatprep.subr.mxu0 0.0
    %5190 = vmatpush1.msra.mxu0 0.0
    %5191 = vmatprep.subr.mxu0 0.0
    %5192 = vmatpush1.msra.mxu0 0.0
    %5193 = vmatprep.subr.mxu0 0.0
    %5194 = vmatpush1.msra.mxu0 0.0
    %5195 = vmatprep.subr.mxu0 0.0
    %5196 = vmatpush1.msra.mxu0 0.0
    %5197 = vmatprep.subr.mxu0 0.0
    %5198 = vmatpush1.msra.mxu0 0.0
    %5199 = vmatprep.subr.mxu0 0.0
    %5200 = vmatpush1.msra.mxu0 0.0
    %5201 = vmatprep.subr.mxu0 0.0
    %5202 = vmatpush1.msra.mxu0 0.0
    %5203 = vmatprep.subr.mxu0 0.0
    %5204 = vmatpush1.msra.mxu0 0.0
    %5205 = vmatprep.subr.mxu0 0.0
    %5206 = vmatpush1.msra.mxu0 0.0
    %5207 = vmatprep.subr.mxu0 0.0
    %5208 = vmatpush1.msra.mxu0 0.0
    %5209 = vmatprep.subr.mxu0 0.0
    %5210 = vmatpush1.msra.mxu0 0.0
    %5211 = vmatprep.subr.mxu0 0.0
    %5212 = vmatpush1.msra.mxu0 0.0
    %5213 = vmatprep.mubr.f32.mxu0 0.0
    %5214 = vmatmul.mubr.f32.gmra.mrb[0].mxu0 %v5147
    %v5215 = vpop.f32.mrb[0].mxu0
    %v5216 = vadd.f32 0.0, %v5215
    %v5217 = vpop.f32.mrb[0].mxu0
    %5218 = vdwg.mxu0
    %5219 = vrot.lane.b32.xlu0 %v4029, 104
    %v5220 = vpop.permute.xlu0 %5219
    %5221 = vrot.lane.b32.xlu0 %v4129, 104
    %v5222 = vpop.permute.xlu0 %5221
    %v5223 = vsel %vm198, %v5220, 0
    %v5225 = vsel %vm198, %v5222, 0
    %5227 = vmatprep.subr.mxu0 0.0
    %5228 = vmatpush1.xpose.msra.mxu0 %v5225
    %5229 = vmatprep.subr.mxu0 0.0
    %5230 = vmatpush1.xpose.msra.mxu0 0.0
    %5231 = vmatprep.subr.mxu0 0.0
    %5232 = vmatpush1.xpose.msra.mxu0 0.0
    %5233 = vmatprep.subr.mxu0 0.0
    %5234 = vmatpush1.xpose.msra.mxu0 0.0
    %5235 = vmatprep.subr.mxu0 0.0
    %5236 = vmatpush1.xpose.msra.mxu0 0.0
    %5237 = vmatprep.subr.mxu0 0.0
    %5238 = vmatpush1.xpose.msra.mxu0 0.0
    %5239 = vmatprep.subr.mxu0 0.0
    %5240 = vmatpush1.xpose.msra.mxu0 0.0
    %5241 = vmatprep.subr.mxu0 0.0
    %5242 = vmatpush1.xpose.msra.mxu0 0.0
    %5243 = vmatprep.subr.mxu0 0.0
    %5244 = vmatpush1.xpose.msra.mxu0 0.0
    %5245 = vmatprep.subr.mxu0 0.0
    %5246 = vmatpush1.xpose.msra.mxu0 0.0
    %5247 = vmatprep.subr.mxu0 0.0
    %5248 = vmatpush1.xpose.msra.mxu0 0.0
    %5249 = vmatprep.subr.mxu0 0.0
    %5250 = vmatpush1.xpose.msra.mxu0 0.0
    %5251 = vmatprep.subr.mxu0 0.0
    %5252 = vmatpush1.xpose.msra.mxu0 0.0
    %5253 = vmatprep.subr.mxu0 0.0
    %5254 = vmatpush1.xpose.msra.mxu0 0.0
    %5255 = vmatprep.subr.mxu0 0.0
    %5256 = vmatpush1.xpose.msra.mxu0 0.0
    %5257 = vmatprep.subr.mxu0 0.0
    %5258 = vmatpush1.xpose.msra.mxu0 0.0
    %5259 = vmatprep.subr.mxu0 0.0
    %5260 = vmatpush1.xpose.msra.mxu0 0.0
    %5261 = vmatprep.subr.mxu0 0.0
    %5262 = vmatpush1.xpose.msra.mxu0 0.0
    %5263 = vmatprep.subr.mxu0 0.0
    %5264 = vmatpush1.xpose.msra.mxu0 0.0
    %5265 = vmatprep.subr.mxu0 0.0
    %5266 = vmatpush1.xpose.msra.mxu0 0.0
    %5267 = vmatprep.subr.mxu0 0.0
    %5268 = vmatpush1.xpose.msra.mxu0 0.0
    %5269 = vmatprep.subr.mxu0 0.0
    %5270 = vmatpush1.xpose.msra.mxu0 0.0
    %5271 = vmatprep.subr.mxu0 0.0
    %5272 = vmatpush1.xpose.msra.mxu0 0.0
    %5273 = vmatprep.subr.mxu0 0.0
    %5274 = vmatpush1.xpose.msra.mxu0 0.0
    %5275 = vmatprep.subr.mxu0 0.0
    %5276 = vmatpush1.xpose.msra.mxu0 0.0
    %5277 = vmatprep.subr.mxu0 0.0
    %5278 = vmatpush1.xpose.msra.mxu0 0.0
    %5279 = vmatprep.subr.mxu0 0.0
    %5280 = vmatpush1.xpose.msra.mxu0 0.0
    %5281 = vmatprep.subr.mxu0 0.0
    %5282 = vmatpush1.xpose.msra.mxu0 0.0
    %5283 = vmatprep.subr.mxu0 0.0
    %5284 = vmatpush1.xpose.msra.mxu0 0.0
    %5285 = vmatprep.subr.mxu0 0.0
    %5286 = vmatpush1.xpose.msra.mxu0 0.0
    %5287 = vmatprep.subr.mxu0 0.0
    %5288 = vmatpush1.xpose.msra.mxu0 0.0
    %5289 = vmatprep.subr.mxu0 0.0
    %5290 = vmatpush1.xpose.msra.mxu0 0.0
    %5291 = vmatprep.mubr.f32.mxu0 0.0
    %5292 = vmatmul.mubr.f32.gmra.mrb[0].mxu0 %v5223
    %v5293 = vpop.f32.mrb[0].mxu0
    %v5294 = vadd.f32 0.0, %v5293
    %v5295 = vpop.f32.mrb[0].mxu0
    %5296 = vdwg.mxu0
    %5297 = vrot.lane.b32.xlu0 %v4034, 104
    %v5298 = vpop.permute.xlu0 %5297
    %5299 = vrot.lane.b32.xlu0 %v4134, 104
    %v5300 = vpop.permute.xlu0 %5299
    %v5301 = vsel %vm198, %v5298, 0
    %v5303 = vsel %vm198, %v5300, 0
    %5305 = vmatprep.subr.mxu0 0.0
    %5306 = vmatpush1.xpose.msra.mxu0 %v5303
    %5307 = vmatprep.subr.mxu0 0.0
    %5308 = vmatpush1.xpose.msra.mxu0 0.0
    %5309 = vmatprep.subr.mxu0 0.0
    %5310 = vmatpush1.xpose.msra.mxu0 0.0
    %5311 = vmatprep.subr.mxu0 0.0
    %5312 = vmatpush1.xpose.msra.mxu0 0.0
    %5313 = vmatprep.subr.mxu0 0.0
    %5314 = vmatpush1.xpose.msra.mxu0 0.0
    %5315 = vmatprep.subr.mxu0 0.0
    %5316 = vmatpush1.xpose.msra.mxu0 0.0
    %5317 = vmatprep.subr.mxu0 0.0
    %5318 = vmatpush1.xpose.msra.mxu0 0.0
    %5319 = vmatprep.subr.mxu0 0.0
    %5320 = vmatpush1.xpose.msra.mxu0 0.0
    %5321 = vmatprep.subr.mxu0 0.0
    %5322 = vmatpush1.xpose.msra.mxu0 0.0
    %5323 = vmatprep.subr.mxu0 0.0
    %5324 = vmatpush1.xpose.msra.mxu0 0.0
    %5325 = vmatprep.subr.mxu0 0.0
    %5326 = vmatpush1.xpose.msra.mxu0 0.0
    %5327 = vmatprep.subr.mxu0 0.0
    %5328 = vmatpush1.xpose.msra.mxu0 0.0
    %5329 = vmatprep.subr.mxu0 0.0
    %5330 = vmatpush1.xpose.msra.mxu0 0.0
    %5331 = vmatprep.subr.mxu0 0.0
    %5332 = vmatpush1.xpose.msra.mxu0 0.0
    %5333 = vmatprep.subr.mxu0 0.0
    %5334 = vmatpush1.xpose.msra.mxu0 0.0
    %5335 = vmatprep.subr.mxu0 0.0
    %5336 = vmatpush1.xpose.msra.mxu0 0.0
    %5337 = vmatprep.subr.mxu0 0.0
    %5338 = vmatpush1.xpose.msra.mxu0 0.0
    %5339 = vmatprep.subr.mxu0 0.0
    %5340 = vmatpush1.xpose.msra.mxu0 0.0
    %5341 = vmatprep.subr.mxu0 0.0
    %5342 = vmatpush1.xpose.msra.mxu0 0.0
    %5343 = vmatprep.subr.mxu0 0.0
    %5344 = vmatpush1.xpose.msra.mxu0 0.0
    %5345 = vmatprep.subr.mxu0 0.0
    %5346 = vmatpush1.xpose.msra.mxu0 0.0
    %5347 = vmatprep.subr.mxu0 0.0
    %5348 = vmatpush1.xpose.msra.mxu0 0.0
    %5349 = vmatprep.subr.mxu0 0.0
    %5350 = vmatpush1.xpose.msra.mxu0 0.0
    %5351 = vmatprep.subr.mxu0 0.0
    %5352 = vmatpush1.xpose.msra.mxu0 0.0
    %5353 = vmatprep.subr.mxu0 0.0
    %5354 = vmatpush1.xpose.msra.mxu0 0.0
    %5355 = vmatprep.subr.mxu0 0.0
    %5356 = vmatpush1.xpose.msra.mxu0 0.0
    %5357 = vmatprep.subr.mxu0 0.0
    %5358 = vmatpush1.xpose.msra.mxu0 0.0
    %5359 = vmatprep.subr.mxu0 0.0
    %5360 = vmatpush1.xpose.msra.mxu0 0.0
    %5361 = vmatprep.subr.mxu0 0.0
    %5362 = vmatpush1.xpose.msra.mxu0 0.0
    %5363 = vmatprep.subr.mxu0 0.0
    %5364 = vmatpush1.xpose.msra.mxu0 0.0
    %5365 = vmatprep.subr.mxu0 0.0
    %5366 = vmatpush1.xpose.msra.mxu0 0.0
    %5367 = vmatprep.subr.mxu0 0.0
    %5368 = vmatpush1.xpose.msra.mxu0 0.0
    %5369 = vmatprep.mubr.f32.mxu0 0.0
    %5370 = vmatmul.mubr.f32.gmra.mrb[0].mxu0 %v5301
    %v5371 = vpop.f32.mrb[0].mxu0
    %v5372 = vadd.f32 0.0, %v5371
    %v5373 = vpop.f32.mrb[0].mxu0
    %5374 = vdwg.mxu0
    %v5375 = vsel %vm198, %v5294, -inf
    %5376 = vmax.xlane.f32.xlu0 %v5375
    %v5377 = vpop.xlane.xlu0 %5376
    %v5378 = vsel %vm198, %v5372, -inf
    %5379 = vmax.xlane.f32.xlu0 %v5378
    %v5380 = vpop.xlane.xlu0 %5379
    %v5381 = vsub.f32 %v5294, %v5377
    %v5382 = vsub.f32 %v5372, %v5380
    %v5383 = vmul.f32 %v5381, 1.442695
    %v5384 = vpow.pop %v5383
    %v5385 = vmul.f32 %v5382, 1.442695
    %v5386 = vpow.pop %v5385
    %v5387 = vsel %vm198, %v5384, 0.0
    %5388 = vadd.xlane.f32.xlu0 %v5387
    %v5389 = vpop.xlane.xlu0 %5388
    %v5390 = vsel %vm198, %v5386, 0.0
    %5391 = vadd.xlane.f32.xlu0 %v5390
    %v5392 = vpop.xlane.xlu0 %5391
    %v5393 = vrcp.pop %v5389
    %v5394 = vmul.f32 %v5384, %v5393
    %v5395 = vrcp.pop %v5392
    %v5396 = vmul.f32 %v5386, %v5395
    %5397 = vrot.lane.b32.xlu0 %v4229, 104
    %v5398 = vpop.permute.xlu0 %5397
    %v5401 = vsel %vm198, %v5394, 0
    %5403 = vmatprep.subr.mxu0 0.0
    %5404 = vmatpush1.msra.mxu0 %v5398
    %5405 = vmatprep.subr.mxu0 0.0
    %5406 = vmatpush1.msra.mxu0 0.0
    %5407 = vmatprep.subr.mxu0 0.0
    %5408 = vmatpush1.msra.mxu0 0.0
    %5409 = vmatprep.subr.mxu0 0.0
    %5410 = vmatpush1.msra.mxu0 0.0
    %5411 = vmatprep.subr.mxu0 0.0
    %5412 = vmatpush1.msra.mxu0 0.0
    %5413 = vmatprep.subr.mxu0 0.0
    %5414 = vmatpush1.msra.mxu0 0.0
    %5415 = vmatprep.subr.mxu0 0.0
    %5416 = vmatpush1.msra.mxu0 0.0
    %5417 = vmatprep.subr.mxu0 0.0
    %5418 = vmatpush1.msra.mxu0 0.0
    %5419 = vmatprep.subr.mxu0 0.0
    %5420 = vmatpush1.msra.mxu0 0.0
    %5421 = vmatprep.subr.mxu0 0.0
    %5422 = vmatpush1.msra.mxu0 0.0
    %5423 = vmatprep.subr.mxu0 0.0
    %5424 = vmatpush1.msra.mxu0 0.0
    %5425 = vmatprep.subr.mxu0 0.0
    %5426 = vmatpush1.msra.mxu0 0.0
    %5427 = vmatprep.subr.mxu0 0.0
    %5428 = vmatpush1.msra.mxu0 0.0
    %5429 = vmatprep.subr.mxu0 0.0
    %5430 = vmatpush1.msra.mxu0 0.0
    %5431 = vmatprep.subr.mxu0 0.0
    %5432 = vmatpush1.msra.mxu0 0.0
    %5433 = vmatprep.subr.mxu0 0.0
    %5434 = vmatpush1.msra.mxu0 0.0
    %5435 = vmatprep.subr.mxu0 0.0
    %5436 = vmatpush1.msra.mxu0 0.0
    %5437 = vmatprep.subr.mxu0 0.0
    %5438 = vmatpush1.msra.mxu0 0.0
    %5439 = vmatprep.subr.mxu0 0.0
    %5440 = vmatpush1.msra.mxu0 0.0
    %5441 = vmatprep.subr.mxu0 0.0
    %5442 = vmatpush1.msra.mxu0 0.0
    %5443 = vmatprep.subr.mxu0 0.0
    %5444 = vmatpush1.msra.mxu0 0.0
    %5445 = vmatprep.subr.mxu0 0.0
    %5446 = vmatpush1.msra.mxu0 0.0
    %5447 = vmatprep.subr.mxu0 0.0
    %5448 = vmatpush1.msra.mxu0 0.0
    %5449 = vmatprep.subr.mxu0 0.0
    %5450 = vmatpush1.msra.mxu0 0.0
    %5451 = vmatprep.subr.mxu0 0.0
    %5452 = vmatpush1.msra.mxu0 0.0
    %5453 = vmatprep.subr.mxu0 0.0
    %5454 = vmatpush1.msra.mxu0 0.0
    %5455 = vmatprep.subr.mxu0 0.0
    %5456 = vmatpush1.msra.mxu0 0.0
    %5457 = vmatprep.subr.mxu0 0.0
    %5458 = vmatpush1.msra.mxu0 0.0
    %5459 = vmatprep.subr.mxu0 0.0
    %5460 = vmatpush1.msra.mxu0 0.0
    %5461 = vmatprep.subr.mxu0 0.0
    %5462 = vmatpush1.msra.mxu0 0.0
    %5463 = vmatprep.subr.mxu0 0.0
    %5464 = vmatpush1.msra.mxu0 0.0
    %5465 = vmatprep.subr.mxu0 0.0
    %5466 = vmatpush1.msra.mxu0 0.0
    %5467 = vmatprep.mubr.f32.mxu0 0.0
    %5468 = vmatmul.mubr.f32.gmra.mrb[0].mxu0 %v5401
    %v5469 = vpop.f32.mrb[0].mxu0
    %v5470 = vadd.f32 0.0, %v5469
    %v5471 = vpop.f32.mrb[0].mxu0
    %5472 = vdwg.mxu0
    %5473 = vrot.lane.b32.xlu0 %v4234, 104
    %v5474 = vpop.permute.xlu0 %5473
    %v5477 = vsel %vm198, %v5396, 0
    %5479 = vmatprep.subr.mxu0 0.0
    %5480 = vmatpush1.msra.mxu0 %v5474
    %5481 = vmatprep.subr.mxu0 0.0
    %5482 = vmatpush1.msra.mxu0 0.0
    %5483 = vmatprep.subr.mxu0 0.0
    %5484 = vmatpush1.msra.mxu0 0.0
    %5485 = vmatprep.subr.mxu0 0.0
    %5486 = vmatpush1.msra.mxu0 0.0
    %5487 = vmatprep.subr.mxu0 0.0
    %5488 = vmatpush1.msra.mxu0 0.0
    %5489 = vmatprep.subr.mxu0 0.0
    %5490 = vmatpush1.msra.mxu0 0.0
    %5491 = vmatprep.subr.mxu0 0.0
    %5492 = vmatpush1.msra.mxu0 0.0
    %5493 = vmatprep.subr.mxu0 0.0
    %5494 = vmatpush1.msra.mxu0 0.0
    %5495 = vmatprep.subr.mxu0 0.0
    %5496 = vmatpush1.msra.mxu0 0.0
    %5497 = vmatprep.subr.mxu0 0.0
    %5498 = vmatpush1.msra.mxu0 0.0
    %5499 = vmatprep.subr.mxu0 0.0
    %5500 = vmatpush1.msra.mxu0 0.0
    %5501 = vmatprep.subr.mxu0 0.0
    %5502 = vmatpush1.msra.mxu0 0.0
    %5503 = vmatprep.subr.mxu0 0.0
    %5504 = vmatpush1.msra.mxu0 0.0
    %5505 = vmatprep.subr.mxu0 0.0
    %5506 = vmatpush1.msra.mxu0 0.0
    %5507 = vmatprep.subr.mxu0 0.0
    %5508 = vmatpush1.msra.mxu0 0.0
    %5509 = vmatprep.subr.mxu0 0.0
    %5510 = vmatpush1.msra.mxu0 0.0
    %5511 = vmatprep.subr.mxu0 0.0
    %5512 = vmatpush1.msra.mxu0 0.0
    %5513 = vmatprep.subr.mxu0 0.0
    %5514 = vmatpush1.msra.mxu0 0.0
    %5515 = vmatprep.subr.mxu0 0.0
    %5516 = vmatpush1.msra.mxu0 0.0
    %5517 = vmatprep.subr.mxu0 0.0
    %5518 = vmatpush1.msra.mxu0 0.0
    %5519 = vmatprep.subr.mxu0 0.0
    %5520 = vmatpush1.msra.mxu0 0.0
    %5521 = vmatprep.subr.mxu0 0.0
    %5522 = vmatpush1.msra.mxu0 0.0
    %5523 = vmatprep.subr.mxu0 0.0
    %5524 = vmatpush1.msra.mxu0 0.0
    %5525 = vmatprep.subr.mxu0 0.0
    %5526 = vmatpush1.msra.mxu0 0.0
    %5527 = vmatprep.subr.mxu0 0.0
    %5528 = vmatpush1.msra.mxu0 0.0
    %5529 = vmatprep.subr.mxu0 0.0
    %5530 = vmatpush1.msra.mxu0 0.0
    %5531 = vmatprep.subr.mxu0 0.0
    %5532 = vmatpush1.msra.mxu0 0.0
    %5533 = vmatprep.subr.mxu0 0.0
    %5534 = vmatpush1.msra.mxu0 0.0
    %5535 = vmatprep.subr.mxu0 0.0
    %5536 = vmatpush1.msra.mxu0 0.0
    %5537 = vmatprep.subr.mxu0 0.0
    %5538 = vmatpush1.msra.mxu0 0.0
    %5539 = vmatprep.subr.mxu0 0.0
    %5540 = vmatpush1.msra.mxu0 0.0
    %5541 = vmatprep.subr.mxu0 0.0
    %5542 = vmatpush1.msra.mxu0 0.0
    %5543 = vmatprep.mubr.f32.mxu0 0.0
    %5544 = vmatmul.mubr.f32.gmra.mrb[0].mxu0 %v5477
    %v5545 = vpop.f32.mrb[0].mxu0
    %v5546 = vadd.f32 0.0, %v5545
    %v5547 = vpop.f32.mrb[0].mxu0
    %5548 = vdwg.mxu0
    %5551 = vrot.lane.b32.xlu0 %v4809, 8
    %v5552 = vpop.permute.xlu0 %5551
    %5553 = vrot.lane.b32.xlu0 %v4886, 8
    %v5554 = vpop.permute.xlu0 %5553
    %5559 = vrot.lane.b32.xlu0 %v5140, 16
    %v5560 = vpop.permute.xlu0 %5559
    %5561 = vrot.lane.b32.xlu0 %v5216, 16
    %v5562 = vpop.permute.xlu0 %5561
    %5567 = vrot.lane.b32.xlu0 %v5470, 24
    %v5568 = vpop.permute.xlu0 %5567
    %5569 = vrot.lane.b32.xlu0 %v5546, 24
    %v5570 = vpop.permute.xlu0 %5569
    %v5573 = vsel %vm198, %v4481, %v5552
    %v5574 = vsel %vm198, %v4554, %v5554
    %v5575 = vsel %vm293, %v5573, %v5560
    %v5576 = vsel %vm293, %v5574, %v5562
    %v5577 = vsel %vm2105, %v5575, %v5568
    %v5578 = vsel %vm2105, %v5576, %v5570
    %s5579 = scalar_lea.vmem %s15, 64
    %v5580 = vld [vmem:[%s5579] sm:$0xff]
    %v5581 = vld [vmem:[%s5579 + $0x8] sm:$0xff]
    %v5582 = vld [vmem:[%s5579 + $0x10] sm:$0xff]
    %v5583 = vld [vmem:[%s5579 + $0x18] sm:$0xff]
    %s5584 = scalar_lea.vmem [#allocation16], 2
    %v5585 = vld [vmem:[%s5584] sm:$0x1]
    %v5587 = vlaneseq
    %v5588 = vshrl.u32 %v5587, 7
    %v5589 = vsub.s32 0, %v5588
    %v5590 = vrot.slane %v5585, %v5589
    %v5593 = vsel %vm2119, %v5577, 0
    %v5596 = vsel %vm2119, %v5578, 0
    %5598 = vmatprep.subr.mxu0 0.0
    %5599 = vmatpush1.msra.mxu0 %v5580
    %5600 = vmatprep.subr.mxu0 0.0
    %5601 = vmatpush1.msra.mxu0 %v5581
    %5602 = vmatprep.subr.mxu0 0.0
    %5603 = vmatpush1.msra.mxu0 %v5582
    %5604 = vmatprep.subr.mxu0 0.0
    %5605 = vmatpush1.msra.mxu0 %v5583
    %5606 = vmatprep.subr.mxu0 0.0
    %5607 = vmatpush1.msra.mxu0 0.0
    %5608 = vmatprep.subr.mxu0 0.0
    %5609 = vmatpush1.msra.mxu0 0.0
    %5610 = vmatprep.subr.mxu0 0.0
    %5611 = vmatpush1.msra.mxu0 0.0
    %5612 = vmatprep.subr.mxu0 0.0
    %5613 = vmatpush1.msra.mxu0 0.0
    %5614 = vmatprep.subr.mxu0 0.0
    %5615 = vmatpush1.msra.mxu0 0.0
    %5616 = vmatprep.subr.mxu0 0.0
    %5617 = vmatpush1.msra.mxu0 0.0
    %5618 = vmatprep.subr.mxu0 0.0
    %5619 = vmatpush1.msra.mxu0 0.0
    %5620 = vmatprep.subr.mxu0 0.0
    %5621 = vmatpush1.msra.mxu0 0.0
    %5622 = vmatprep.subr.mxu0 0.0
    %5623 = vmatpush1.msra.mxu0 0.0
    %5624 = vmatprep.subr.mxu0 0.0
    %5625 = vmatpush1.msra.mxu0 0.0
    %5626 = vmatprep.subr.mxu0 0.0
    %5627 = vmatpush1.msra.mxu0 0.0
    %5628 = vmatprep.subr.mxu0 0.0
    %5629 = vmatpush1.msra.mxu0 0.0
    %5630 = vmatprep.subr.mxu0 0.0
    %5631 = vmatpush1.msra.mxu0 0.0
    %5632 = vmatprep.subr.mxu0 0.0
    %5633 = vmatpush1.msra.mxu0 0.0
    %5634 = vmatprep.subr.mxu0 0.0
    %5635 = vmatpush1.msra.mxu0 0.0
    %5636 = vmatprep.subr.mxu0 0.0
    %5637 = vmatpush1.msra.mxu0 0.0
    %5638 = vmatprep.subr.mxu0 0.0
    %5639 = vmatpush1.msra.mxu0 0.0
    %5640 = vmatprep.subr.mxu0 0.0
    %5641 = vmatpush1.msra.mxu0 0.0
    %5642 = vmatprep.subr.mxu0 0.0
    %5643 = vmatpush1.msra.mxu0 0.0
    %5644 = vmatprep.subr.mxu0 0.0
    %5645 = vmatpush1.msra.mxu0 0.0
    %5646 = vmatprep.subr.mxu0 0.0
    %5647 = vmatpush1.msra.mxu0 0.0
    %5648 = vmatprep.subr.mxu0 0.0
    %5649 = vmatpush1.msra.mxu0 0.0
    %5650 = vmatprep.subr.mxu0 0.0
    %5651 = vmatpush1.msra.mxu0 0.0
    %5652 = vmatprep.subr.mxu0 0.0
    %5653 = vmatpush1.msra.mxu0 0.0
    %5654 = vmatprep.subr.mxu0 0.0
    %5655 = vmatpush1.msra.mxu0 0.0
    %5656 = vmatprep.subr.mxu0 0.0
    %5657 = vmatpush1.msra.mxu0 0.0
    %5658 = vmatprep.subr.mxu0 0.0
    %5659 = vmatpush1.msra.mxu0 0.0
    %5660 = vmatprep.subr.mxu0 0.0
    %5661 = vmatpush1.msra.mxu0 0.0
    %5662 = vmatprep.mubr.f32.mxu0 0.0
    %5663 = vmatmul.mubr.f32.gmra.mrb[0].mxu0 %v5593
    %v5664 = vpop.f32.mrb[0].mxu0
    %v5665 = vadd.f32 %v5590, %v5664
    %v5666 = vpop.f32.mrb[0].mxu0
    %5667 = vmatprep.mubr.f32.mxu0 0.0
    %5668 = vmatmul.mubr.f32.gmra.mrb[0].mxu0 %v5596
    %v5669 = vpop.f32.mrb[0].mxu0
    %v5670 = vadd.f32 %v5590, %v5669
    %v5671 = vpop.f32.mrb[0].mxu0
    %5672 = vdwg.mxu0
    %5673 = vst [vmem:[%s17] sm:$0xff] %v5665
    %5674 = vst [vmem:[%s17 + $0x8] sm:$0xff] %v5670
    %5675 = vst [vmem:[%s18] sm:$0xff] %v3929
    %5676 = vst [vmem:[%s18 + $0x8] sm:$0xff] %v3934
    // Predicated region
    $region110: #{mask_guided_sequence_embedding.1} parent=1 // pred_check
      _
    $region111: #{mask_guided_sequence_embedding.1} parent=1 // pred_check_branch
      %5678 = sbr.rel (0) target = $region113
    $region112: #{mask_guided_sequence_embedding.1} parent=1 // pred_region
      _
    $region113: #{mask_guided_sequence_embedding.1} parent=1 // pred_fallthru
      _
    // Predicated region
    $region114: #{mask_guided_sequence_embedding.1} parent=1 // pred_check
      _
    $region115: #{mask_guided_sequence_embedding.1} parent=1 // pred_check_branch
      %5680 = sbr.rel (0) target = $region117
    $region116: #{mask_guided_sequence_embedding.1} parent=1 // pred_region
      _
    $region117: #{mask_guided_sequence_embedding.1} parent=1 // pred_fallthru
      _
    // Predicated region
    $region118: #{mask_guided_sequence_embedding.1} parent=1 // pred_check
      _
    $region119: #{mask_guided_sequence_embedding.1} parent=1 // pred_check_branch
      %5682 = sbr.rel (0) target = $region121
    $region120: #{mask_guided_sequence_embedding.1} parent=1 // pred_region
      _
    $region121: #{mask_guided_sequence_embedding.1} parent=1 // pred_fallthru
      _
    // Predicated region
    $region122: #{mask_guided_sequence_embedding.1} parent=1 // pred_check
      _
    $region123: #{mask_guided_sequence_embedding.1} parent=1 // pred_check_branch
      %5684 = sbr.rel (0) target = $region125
    $region124: #{mask_guided_sequence_embedding.1} parent=1 // pred_region
      _
    $region125: #{mask_guided_sequence_embedding.1} parent=1 // pred_fallthru
      _
    %5685 = vsyncpa [#allocation3], 1
    %5686 = vsyncpa [#allocation5], 1
    %5687 = vsyncpa [#allocation8], 1
    %5688 = vsyncpa [#allocation11], 1
    %5689 = vsyncpa [#allocation14], 1
    %5690 = vsyncpa [#allocation17], 1

</llo_original>
